<compile_context>
chip_gen: v7x
topology: tpu7x:2x2x1
jax: 0.10.0
libtpu: 0.0.40
codegen_flags: <defaults>
</compile_context>

<pallas_src>
import functools
import math

import jax
import jax.numpy as jnp
from jax import lax
from jax.experimental import pallas as pl
from jax.experimental.pallas import tpu as pltpu


# --------------------------------------------------------------------------
# Tiny kernel: continuous-position-bias MLP (parameter-only, run once).
#   table (T, 8 zero-padded from 2) -> Linear -> ReLU -> Linear -> 16*sigmoid
# --------------------------------------------------------------------------
def _cpb_mlp_kernel(tbl_ref, w1_ref, b1_ref, w2_ref, o_ref):
    h = jnp.dot(tbl_ref[...], w1_ref[...],
                preferred_element_type=jnp.float32) + b1_ref[...]
    h = jnp.maximum(h, 0.0)                                      # ReLU
    o = jnp.dot(h, w2_ref[...], preferred_element_type=jnp.float32)
    # 16 * sigmoid folded here (elementwise, commutes with the later gather).
    o_ref[...] = 16.0 / (1.0 + jnp.exp(-o))


# --------------------------------------------------------------------------
# Main fused kernel: one grid step = WB attention windows.
# --------------------------------------------------------------------------
def _swin_layer_kernel(x_ref, wqkv_ref, bqkv_ref, scale_ref, rpb_ref,
                       wproj_ref, bproj_ref, g1_ref, b1_ref,
                       w1_ref, bb1_ref, w2_ref, bb2_ref, g2_ref, b2_ref,
                       o_ref, *, num_heads):
    WB, N, C = x_ref.shape
    hd = C // num_heads

    x = x_ref[...]                                   # (WB, N, C) f32
    xf = x.reshape(WB * N, C)                        # token slab

    # ---- QKV projection: single lane-dense matmul (K = C, lanes = 3C) ----
    qkv = jnp.dot(xf, wqkv_ref[...],
                  preferred_element_type=jnp.float32) + bqkv_ref[...]
    qkv3 = qkv.reshape(WB, N, 3 * C)

    # ---- per-head cosine attention (static unrolled loop; heads are few) --
    y = jnp.zeros((WB * N, C), jnp.float32)
    for h in range(num_heads):
        q = qkv3[:, :, h * hd:(h + 1) * hd]                      # (WB, N, hd)
        k = qkv3[:, :, C + h * hd:C + (h + 1) * hd]
        v = qkv3[:, :, 2 * C + h * hd:2 * C + (h + 1) * hd]

        qn = q / jnp.maximum(
            jnp.sqrt(jnp.sum(q * q, axis=-1, keepdims=True)), 1e-12)
        kn = k / jnp.maximum(
            jnp.sqrt(jnp.sum(k * k, axis=-1, keepdims=True)), 1e-12)

        attn = jnp.einsum('wnd,wmd->wnm', qn, kn,
                          preferred_element_type=jnp.float32)    # (WB, N, N)
        attn = attn * scale_ref[h] + rpb_ref[h][None, :, :]

        attn = attn - jnp.max(attn, axis=-1, keepdims=True)
        attn = jnp.exp(attn)
        attn = attn / jnp.sum(attn, axis=-1, keepdims=True)

        ctx = jnp.einsum('wnm,wmd->wnd', attn, v,
                         preferred_element_type=jnp.float32)     # (WB, N, hd)
        # Fold this head's slice of the output projection (avoids a concat).
        y = y + jnp.dot(ctx.reshape(WB * N, hd),
                        wproj_ref[h * hd:(h + 1) * hd, :],
                        preferred_element_type=jnp.float32)
    y = y + bproj_ref[...]                                       # (WB*N, C)

    def _layernorm(t, g, b):
        mu = jnp.mean(t, axis=-1, keepdims=True)
        tc = t - mu
        var = jnp.mean(tc * tc, axis=-1, keepdims=True)
        return tc * lax.rsqrt(var + 1e-5) * g + b

    # ---- residual 1 (post-norm, Swin v2): x + norm1(attn_out) -------------
    x1 = xf + _layernorm(y, g1_ref[...], b1_ref[...])

    # ---- MLP: fc1 -> SiLU -> fc2 ------------------------------------------
    h1 = jnp.dot(x1, w1_ref[...],
                 preferred_element_type=jnp.float32) + bb1_ref[...]
    h1 = h1 / (1.0 + jnp.exp(-h1)) * 1.0 + 0.0                   # placeholder
    # SiLU = h * sigmoid(h); written explicitly:
    # (recompute cleanly to keep the expression obvious)
    h1 = (jnp.dot(x1, w1_ref[...],
                  preferred_element_type=jnp.float32) + bb1_ref[...])
    h1 = h1 * (1.0 / (1.0 + jnp.exp(-h1)))
    m = jnp.dot(h1, w2_ref[...],
                preferred_element_type=jnp.float32) + bb2_ref[...]

    # ---- residual 2: x + norm2(mlp(x)) ------------------------------------
    out = x1 + _layernorm(m, g2_ref[...], b2_ref[...])

    o_ref[...] = out.reshape(WB, N, C).astype(o_ref.dtype)


# --------------------------------------------------------------------------
# JAX-side layout glue (pure reshapes / permutes / gather).
# --------------------------------------------------------------------------
def _window_partition(x_nhwc, ws):
    B, H, W, C = x_nhwc.shape
    x = x_nhwc.reshape(B, H // ws, ws, W // ws, ws, C)
    x = x.transpose(0, 1, 3, 2, 4, 5)
    return x.reshape(-1, ws * ws, C)


def _window_reverse(wins, ws, B, H, W):
    C = wins.shape[-1]
    x = wins.reshape(B, H // ws, W // ws, ws, ws, C)
    x = x.transpose(0, 1, 3, 2, 4, 5)
    return x.reshape(B, H, W, C)


def _relative_coords_table(ws):
    r = jnp.arange(-(ws - 1), ws, dtype=jnp.float32)
    tbl = jnp.stack(jnp.meshgrid(r, r, indexing='ij'), axis=-1)  # (2ws-1,2ws-1,2)
    tbl = tbl / float(ws - 1) * 8.0
    tbl = jnp.sign(tbl) * jnp.log2(jnp.abs(tbl) + 1.0) / math.log2(8.0)
    return tbl.reshape(-1, 2)                                    # (T, 2)


def _relative_position_index(ws):
    coords = jnp.stack(jnp.meshgrid(jnp.arange(ws), jnp.arange(ws),
                                    indexing='ij'))              # (2, ws, ws)
    cf = coords.reshape(2, -1)                                   # (2, N)
    rel = cf[:, :, None] - cf[:, None, :]                        # (2, N, N)
    rel = rel.transpose(1, 2, 0)                                 # (N, N, 2)
    rel = rel.at[:, :, 0].add(ws - 1)
    rel = rel.at[:, :, 1].add(ws - 1)
    rel = rel.at[:, :, 0].multiply(2 * ws - 1)
    return rel.sum(-1)                                           # (N, N) int32


def _relative_position_bias(params, ws, num_heads):
    tbl = _relative_coords_table(ws)                             # (T, 2)
    T = tbl.shape[0]
    tbl8 = jnp.pad(tbl, ((0, 0), (0, 6)))                        # K=2 -> K=8
    w1p = jnp.pad(params['cpb_w1'], ((0, 6), (0, 0)))            # (8, 512)
    tbl_act = pl.pallas_call(
        _cpb_mlp_kernel,
        out_shape=jax.ShapeDtypeStruct((T, num_heads), jnp.float32),
    )(tbl8, w1p, params['cpb_b1'], params['cpb_w2'])             # 16*sigmoid'd
    idx = _relative_position_index(ws).reshape(-1)
    N = ws * ws
    rpb = tbl_act[idx].reshape(N, N, num_heads)
    return jnp.transpose(rpb, (2, 0, 1))                         # (nH, N, N)


def _pick_block_windows(nwt, cap=256):
    if nwt <= 1:
        return 1
    wb = min(cap, nwt // 2 if nwt % 2 == 0 else nwt)
    while nwt % wb:
        wb -= 1
    return max(wb, 1)


# --------------------------------------------------------------------------
# Full layer forward (NCHW in / NCHW out, like the PyTorch module).
# --------------------------------------------------------------------------
def swin_layer_forward(x_nchw, params, *, window_size, num_heads):
    B, C, H_, W_ = x_nchw.shape
    ws = window_size
    assert C % num_heads == 0

    pad_b = (-H_) % ws
    pad_r = (-W_) % ws
    x = x_nchw
    if pad_b or pad_r:
        x = jnp.pad(x, ((0, 0), (0, 0), (0, pad_b), (0, pad_r)))
    H, W = H_ + pad_b, W_ + pad_r

    xh = jnp.transpose(x, (0, 2, 3, 1))                          # NHWC
    xw = _window_partition(xh, ws)                               # (nWt, N, C)
    nWt, N, _ = xw.shape

    hidden = params['w1'].shape[1]
    rpb = _relative_position_bias(params, ws, num_heads)         # (nH, N, N)
    scale = jnp.exp(jnp.minimum(params['logit_scale'],
                                math.log(1.0 / 0.01)))           # (nH,)
    scale_b = jnp.broadcast_to(scale[:, None, None],
                               (num_heads, 1, N)).astype(jnp.float32)

    WB = _pick_block_windows(nWt)
    grid = (nWt // WB,)
    kernel = functools.partial(_swin_layer_kernel, num_heads=num_heads)

    out_w = pl.pallas_call(
        kernel,
        out_shape=jax.ShapeDtypeStruct((nWt, N, C), xw.dtype),
        grid_spec=pltpu.PrefetchScalarGridSpec(
            num_scalar_prefetch=0,
            grid=grid,
            in_specs=[
                pl.BlockSpec((WB, N, C), lambda i: (i, 0, 0)),          # x
                pl.BlockSpec((C, 3 * C), lambda i: (0, 0)),             # wqkv
                pl.BlockSpec((1, 3 * C), lambda i: (0, 0)),             # bqkv
                pl.BlockSpec((num_heads, 1, N), lambda i: (0, 0, 0)),   # scale
                pl.BlockSpec((num_heads, N, N), lambda i: (0, 0, 0)),   # rpb
                pl.BlockSpec((C, C), lambda i: (0, 0)),                 # wproj
                pl.BlockSpec((1, C), lambda i: (0, 0)),                 # bproj
                pl.BlockSpec((1, C), lambda i: (0, 0)),                 # g1
                pl.BlockSpec((1, C), lambda i: (0, 0)),                 # b1
                pl.BlockSpec((C, hidden), lambda i: (0, 0)),            # w1
                pl.BlockSpec((1, hidden), lambda i: (0, 0)),            # bb1
                pl.BlockSpec((hidden, C), lambda i: (0, 0)),            # w2
                pl.BlockSpec((1, C), lambda i: (0, 0)),                 # bb2
                pl.BlockSpec((1, C), lambda i: (0, 0)),                 # g2
                pl.BlockSpec((1, C), lambda i: (0, 0)),                 # b2
            ],
            out_specs=pl.BlockSpec((WB, N, C), lambda i: (i, 0, 0)),
        ),
        compiler_params=pltpu.CompilerParams(
            dimension_semantics=("parallel",)),
    )(xw, params['wqkv'], params['bqkv'], scale_b, rpb,
      params['wproj'], params['bproj'], params['g1'], params['b1'],
      params['w1'], params['bb1'], params['w2'], params['bb2'],
      params['g2'], params['b2'])

    xh_out = _window_reverse(out_w, ws, B, H, W)                 # NHWC
    out = jnp.transpose(xh_out, (0, 3, 1, 2))                    # NCHW
    if pad_b or pad_r:
        out = out[:, :, :H_, :W_]
    return out


# --------------------------------------------------------------------------
# Deterministic synthetic parameters (PyTorch-equivalent layout, transposed
# so the kernel computes x @ W).
# --------------------------------------------------------------------------
def make_params(key, dim, num_heads, mlp_ratio=4.0):
    hidden = int(dim * mlp_ratio)
    ks = jax.random.split(key, 14)

    def lin(k, fan_in, shape):
        return jax.random.normal(k, shape, jnp.float32) / math.sqrt(fan_in)

    q_bias = 0.02 * jax.random.normal(ks[1], (dim,), jnp.float32)
    v_bias = 0.02 * jax.random.normal(ks[2], (dim,), jnp.float32)
    return {
        'wqkv': lin(ks[0], dim, (dim, 3 * dim)),
        'bqkv': jnp.concatenate(
            [q_bias, jnp.zeros((dim,), jnp.float32), v_bias]).reshape(1, 3 * dim),
        'logit_scale': jnp.log(10.0 * jnp.ones((num_heads,), jnp.float32)),
        'cpb_w1': lin(ks[3], 2, (2, 512)),
        'cpb_b1': 0.02 * jax.random.normal(ks[4], (1, 512), jnp.float32),
        'cpb_w2': lin(ks[5], 512, (512, num_heads)),
        'wproj': lin(ks[6], dim, (dim, dim)),
        'bproj': 0.02 * jax.random.normal(ks[7], (1, dim), jnp.float32),
        'g1': 1.0 + 0.1 * jax.random.normal(ks[8], (1, dim), jnp.float32),
        'b1': 0.1 * jax.random.normal(ks[9], (1, dim), jnp.float32),
        'w1': lin(ks[10], dim, (dim, hidden)),
        'bb1': 0.02 * jax.random.normal(ks[11], (1, hidden), jnp.float32),
        'w2': lin(ks[12], hidden, (hidden, dim)),
        'bb2': 0.02 * jax.random.normal(ks[13], (1, dim), jnp.float32),
        'g2': jnp.ones((1, dim), jnp.float32),
        'b2': jnp.zeros((1, dim), jnp.float32),
    }


if __name__ == "__main__":
    dim = 32
    num_heads = 4
    window_size = 4
    B, H, W = 2, 8, 8            # 2 x 2 windows per image -> 8 windows total

    key = jax.random.PRNGKey(0)
    kx, kp = jax.random.split(key)
    x = jax.random.normal(kx, (B, dim, H, W), jnp.float32)       # NCHW like torch
    params = make_params(kp, dim, num_heads, mlp_ratio=4.0)

    fwd = jax.jit(functools.partial(swin_layer_forward,
                                    window_size=window_size,
                                    num_heads=num_heads))
    out = jax.block_until_ready(fwd(x, params))

    assert out.shape == (B, dim, H, W), out.shape
    assert bool(jnp.all(jnp.isfinite(out)))
    print("KERNEL_OK")
</pallas_src>

<mosaic_0001>
module attributes {stable_mosaic.version = 11 : i64} {
  func.func @_cpb_mlp_kernel(%arg0: memref<49x8xf32, #tpu.memory_space<vmem>>, %arg1: memref<8x512xf32, #tpu.memory_space<vmem>>, %arg2: memref<1x512xf32, #tpu.memory_space<vmem>>, %arg3: memref<512x4xf32, #tpu.memory_space<vmem>>, %arg4: memref<49x4xf32, #tpu.memory_space<vmem>>) attributes {dimension_semantics = [], scalar_prefetch = 0 : i64, scratch_operands = 0 : i64, tpu.core_type = #tpu.core_type<tc>} {
    %c0 = arith.constant 0 : index
    %c0_0 = arith.constant 0 : index
    %0 = vector.load %arg0[%c0, %c0_0] : memref<49x8xf32, #tpu.memory_space<vmem>>, vector<49x8xf32>
    %c0_1 = arith.constant 0 : index
    %c0_2 = arith.constant 0 : index
    %1 = vector.load %arg1[%c0_1, %c0_2] : memref<8x512xf32, #tpu.memory_space<vmem>>, vector<8x512xf32>
    %cst = arith.constant dense<0.000000e+00> : vector<49x512xf32>
    %2 = tpu.matmul %0, %1, %cst {dimension_numbers = #tpu.dot_dimension_numbers<[1], [0], [0], [1], [0, 0, 1, 1], [], []>} : vector<49x8xf32>, vector<8x512xf32>, vector<49x512xf32> -> vector<49x512xf32>
    %c0_3 = arith.constant 0 : index
    %c0_4 = arith.constant 0 : index
    %3 = vector.load %arg2[%c0_3, %c0_4] : memref<1x512xf32, #tpu.memory_space<vmem>>, vector<1x512xf32>
    %4 = vector.broadcast %3 : vector<1x512xf32> to vector<49x512xf32>
    %5 = arith.addf %2, %4 : vector<49x512xf32>
    %cst_5 = arith.constant 0.000000e+00 : f32
    %6 = vector.broadcast %cst_5 : f32 to vector<49x512xf32>
    %7 = arith.maximumf %5, %6 : vector<49x512xf32>
    %c0_6 = arith.constant 0 : index
    %c0_7 = arith.constant 0 : index
    %8 = vector.load %arg3[%c0_6, %c0_7] : memref<512x4xf32, #tpu.memory_space<vmem>>, vector<512x4xf32>
    %cst_8 = arith.constant dense<0.000000e+00> : vector<49x4xf32>
    %9 = tpu.matmul %7, %8, %cst_8 {dimension_numbers = #tpu.dot_dimension_numbers<[1], [0], [0], [1], [0, 0, 1, 1], [], []>} : vector<49x512xf32>, vector<512x4xf32>, vector<49x4xf32> -> vector<49x4xf32>
    %cst_9 = arith.constant 0.000000e+00 : f32
    %10 = vector.broadcast %cst_9 : f32 to vector<49x4xf32>
    %11 = arith.subf %10, %9 : vector<49x4xf32>
    %12 = math.exp %11 : vector<49x4xf32>
    %cst_10 = arith.constant 1.000000e+00 : f32
    %13 = vector.broadcast %cst_10 : f32 to vector<49x4xf32>
    %14 = arith.addf %13, %12 : vector<49x4xf32>
    %cst_11 = arith.constant 1.600000e+01 : f32
    %15 = vector.broadcast %cst_11 : f32 to vector<49x4xf32>
    %16 = arith.divf %15, %14 : vector<49x4xf32>
    %c0_12 = arith.constant 0 : index
    %c0_13 = arith.constant 0 : index
    %17 = vector.load %arg4[%c0_12, %c0_13] : memref<49x4xf32, #tpu.memory_space<vmem>>, vector<49x4xf32>
    tpu.vector_store %arg4[%c0_12, %c0_13], %16 {strides = array<i32>} : memref<49x4xf32, #tpu.memory_space<vmem>>, vector<49x4xf32>,
    return
  }
}

module attributes {stable_mosaic.version = 11 : i64} {
  func.func @_swin_layer_kernel(%arg0: i32, %arg1: memref<4x16x32xf32, #tpu.memory_space<vmem>>, %arg2: memref<32x96xf32, #tpu.memory_space<vmem>>, %arg3: memref<1x96xf32, #tpu.memory_space<vmem>>, %arg4: memref<4x1x16xf32, #tpu.memory_space<vmem>>, %arg5: memref<4x16x16xf32, #tpu.memory_space<vmem>>, %arg6: memref<32x32xf32, #tpu.memory_space<vmem>>, %arg7: memref<1x32xf32, #tpu.memory_space<vmem>>, %arg8: memref<1x32xf32, #tpu.memory_space<vmem>>, %arg9: memref<1x32xf32, #tpu.memory_space<vmem>>, %arg10: memref<32x128xf32, #tpu.memory_space<vmem>>, %arg11: memref<1x128xf32, #tpu.memory_space<vmem>>, %arg12: memref<128x32xf32, #tpu.memory_space<vmem>>, %arg13: memref<1x32xf32, #tpu.memory_space<vmem>>, %arg14: memref<1x32xf32, #tpu.memory_space<vmem>>, %arg15: memref<1x32xf32, #tpu.memory_space<vmem>>, %arg16: memref<4x16x32xf32, #tpu.memory_space<vmem>>) attributes {dimension_semantics = [#tpu.dimension_semantics<parallel>], iteration_bounds = array<i64: 2>, scalar_prefetch = 0 : i64, scratch_operands = 0 : i64, tpu.core_type = #tpu.core_type<tc>, window_params = [{transform_indices = @transform_0, window_bounds = array<i64: 4, 16, 32>}, {pipeline_mode = #tpu.pipeline_mode<synchronous>, transform_indices = @transform_1, window_bounds = array<i64: 32, 96>}, {pipeline_mode = #tpu.pipeline_mode<synchronous>, transform_indices = @transform_2, window_bounds = array<i64: 1, 96>}, {pipeline_mode = #tpu.pipeline_mode<synchronous>, transform_indices = @transform_3, window_bounds = array<i64: 4, 1, 16>}, {pipeline_mode = #tpu.pipeline_mode<synchronous>, transform_indices = @transform_4, window_bounds = array<i64: 4, 16, 16>}, {pipeline_mode = #tpu.pipeline_mode<synchronous>, transform_indices = @transform_5, window_bounds = array<i64: 32, 32>}, {pipeline_mode = #tpu.pipeline_mode<synchronous>, transform_indices = @transform_6, window_bounds = array<i64: 1, 32>}, {pipeline_mode = #tpu.pipeline_mode<synchronous>, transform_indices = @transform_7, window_bounds = array<i64: 1, 32>}, {pipeline_mode = #tpu.pipeline_mode<synchronous>, transform_indices = @transform_8, window_bounds = array<i64: 1, 32>}, {pipeline_mode = #tpu.pipeline_mode<synchronous>, transform_indices = @transform_9, window_bounds = array<i64: 32, 128>}, {pipeline_mode = #tpu.pipeline_mode<synchronous>, transform_indices = @transform_10, window_bounds = array<i64: 1, 128>}, {pipeline_mode = #tpu.pipeline_mode<synchronous>, transform_indices = @transform_11, window_bounds = array<i64: 128, 32>}, {pipeline_mode = #tpu.pipeline_mode<synchronous>, transform_indices = @transform_12, window_bounds = array<i64: 1, 32>}, {pipeline_mode = #tpu.pipeline_mode<synchronous>, transform_indices = @transform_13, window_bounds = array<i64: 1, 32>}, {pipeline_mode = #tpu.pipeline_mode<synchronous>, transform_indices = @transform_14, window_bounds = array<i64: 1, 32>}, {transform_indices = @transform_15, window_bounds = array<i64: 4, 16, 32>}]} {
    %c0 = arith.constant 0 : index
    %c0_0 = arith.constant 0 : index
    %c0_1 = arith.constant 0 : index
    %0 = vector.load %arg1[%c0, %c0_0, %c0_1] : memref<4x16x32xf32, #tpu.memory_space<vmem>>, vector<4x16x32xf32>
    %1 = vector.shape_cast %0 : vector<4x16x32xf32> to vector<64x32xf32>
    %c0_2 = arith.constant 0 : index
    %c0_3 = arith.constant 0 : index
    %2 = vector.load %arg2[%c0_2, %c0_3] : memref<32x96xf32, #tpu.memory_space<vmem>>, vector<32x96xf32>
    %cst = arith.constant dense<0.000000e+00> : vector<64x96xf32>
    %3 = tpu.matmul %1, %2, %cst {dimension_numbers = #tpu.dot_dimension_numbers<[1], [0], [0], [1], [0, 0, 1, 1], [], []>} : vector<64x32xf32>, vector<32x96xf32>, vector<64x96xf32> -> vector<64x96xf32>
    %c0_4 = arith.constant 0 : index
    %c0_5 = arith.constant 0 : index
    %4 = vector.load %arg3[%c0_4, %c0_5] : memref<1x96xf32, #tpu.memory_space<vmem>>, vector<1x96xf32>
    %5 = vector.broadcast %4 : vector<1x96xf32> to vector<64x96xf32>
    %6 = arith.addf %3, %5 : vector<64x96xf32>
    %7 = vector.shape_cast %6 : vector<64x96xf32> to vector<4x16x96xf32>
    %cst_6 = arith.constant 0.000000e+00 : f32
    %8 = vector.broadcast %cst_6 : f32 to vector<64x32xf32>
    %9 = vector.extract_strided_slice %7 {offsets = [0, 0, 0], sizes = [4, 16, 8], strides = [1, 1, 1]} : vector<4x16x96xf32> to vector<4x16x8xf32>
    %10 = vector.extract_strided_slice %7 {offsets = [0, 0, 32], sizes = [4, 16, 8], strides = [1, 1, 1]} : vector<4x16x96xf32> to vector<4x16x8xf32>
    %11 = vector.extract_strided_slice %7 {offsets = [0, 0, 64], sizes = [4, 16, 8], strides = [1, 1, 1]} : vector<4x16x96xf32> to vector<4x16x8xf32>
    %12 = arith.mulf %9, %9 : vector<4x16x8xf32>
    %cst_7 = arith.constant dense<0.000000e+00> : vector<4x16xf32>
    %13 = vector.multi_reduction <add>, %12, %cst_7 [2] : vector<4x16x8xf32> to vector<4x16xf32>
    %14 = vector.shape_cast %13 : vector<4x16xf32> to vector<4x16x1xf32>
    %15 = math.sqrt %14 : vector<4x16x1xf32>
    %cst_8 = arith.constant 9.99999996E-13 : f32
    %16 = vector.broadcast %cst_8 : f32 to vector<4x16x1xf32>
    %17 = arith.maximumf %15, %16 : vector<4x16x1xf32>
    %18 = vector.broadcast %17 : vector<4x16x1xf32> to vector<4x16x8xf32>
    %19 = arith.divf %9, %18 : vector<4x16x8xf32>
    %20 = arith.mulf %10, %10 : vector<4x16x8xf32>
    %cst_9 = arith.constant dense<0.000000e+00> : vector<4x16xf32>
    %21 = vector.multi_reduction <add>, %20, %cst_9 [2] : vector<4x16x8xf32> to vector<4x16xf32>
    %22 = vector.shape_cast %21 : vector<4x16xf32> to vector<4x16x1xf32>
    %23 = math.sqrt %22 : vector<4x16x1xf32>
    %cst_10 = arith.constant 9.99999996E-13 : f32
    %24 = vector.broadcast %cst_10 : f32 to vector<4x16x1xf32>
    %25 = arith.maximumf %23, %24 : vector<4x16x1xf32>
    %26 = vector.broadcast %25 : vector<4x16x1xf32> to vector<4x16x8xf32>
    %27 = arith.divf %10, %26 : vector<4x16x8xf32>
    "tpu.trace_start"() <{level = 10 : i32, message = "wnd,wmd->wnm"}> : () -> ()
    %cst_11 = arith.constant dense<0.000000e+00> : vector<4x16x16xf32>
    %28 = tpu.matmul %19, %27, %cst_11 {dimension_numbers = #tpu.dot_dimension_numbers<[2], [2], [1], [1], [0, 0, 0, 1, 1, 1], [0], [0]>} : vector<4x16x8xf32>, vector<4x16x8xf32>, vector<4x16x16xf32> -> vector<4x16x16xf32>
    "tpu.trace_stop"() : () -> ()
    %c0_12 = arith.constant 0 : index
    %c0_13 = arith.constant 0 : index
    %c0_14 = arith.constant 0 : index
    %29 = vector.load %arg4[%c0_12, %c0_13, %c0_14] : memref<4x1x16xf32, #tpu.memory_space<vmem>>, vector<1x1x16xf32>
    %30 = vector.shape_cast %29 : vector<1x1x16xf32> to vector<1x16xf32>
    %31 = vector.shape_cast %30 : vector<1x16xf32> to vector<1x1x16xf32>
    %32 = vector.broadcast %31 : vector<1x1x16xf32> to vector<4x16x16xf32>
    %33 = arith.mulf %28, %32 : vector<4x16x16xf32>
    %c0_15 = arith.constant 0 : index
    %c0_16 = arith.constant 0 : index
    %c0_17 = arith.constant 0 : index
    %34 = vector.load %arg5[%c0_15, %c0_16, %c0_17] : memref<4x16x16xf32, #tpu.memory_space<vmem>>, vector<1x16x16xf32>
    %35 = vector.shape_cast %34 : vector<1x16x16xf32> to vector<16x16xf32>
    %36 = vector.shape_cast %35 : vector<16x16xf32> to vector<1x16x16xf32>
    %37 = vector.broadcast %36 : vector<1x16x16xf32> to vector<4x16x16xf32>
    %38 = arith.addf %33, %37 : vector<4x16x16xf32>
    %cst_18 = arith.constant dense<0xFF800000> : vector<4x16xf32>
    %39 = vector.multi_reduction <maximumf>, %38, %cst_18 [2] : vector<4x16x16xf32> to vector<4x16xf32>
    %40 = vector.shape_cast %39 : vector<4x16xf32> to vector<4x16x1xf32>
    %41 = vector.broadcast %40 : vector<4x16x1xf32> to vector<4x16x16xf32>
    %42 = arith.subf %38, %41 : vector<4x16x16xf32>
    %43 = math.exp %42 : vector<4x16x16xf32>
    %cst_19 = arith.constant dense<0.000000e+00> : vector<4x16xf32>
    %44 = vector.multi_reduction <add>, %43, %cst_19 [2] : vector<4x16x16xf32> to vector<4x16xf32>
    %45 = vector.shape_cast %44 : vector<4x16xf32> to vector<4x16x1xf32>
    %46 = vector.broadcast %45 : vector<4x16x1xf32> to vector<4x16x16xf32>
    %47 = arith.divf %43, %46 : vector<4x16x16xf32>
    "tpu.trace_start"() <{level = 10 : i32, message = "wnm,wmd->wnd"}> : () -> ()
    %cst_20 = arith.constant dense<0.000000e+00> : vector<4x16x8xf32>
    %48 = tpu.matmul %47, %11, %cst_20 {dimension_numbers = #tpu.dot_dimension_numbers<[2], [1], [1], [2], [0, 0, 0, 1, 1, 2], [0], [0]>} : vector<4x16x16xf32>, vector<4x16x8xf32>, vector<4x16x8xf32> -> vector<4x16x8xf32>
    "tpu.trace_stop"() : () -> ()
    %49 = vector.shape_cast %48 : vector<4x16x8xf32> to vector<64x8xf32>
    %c0_21 = arith.constant 0 : index
    %c0_22 = arith.constant 0 : index
    %50 = vector.load %arg6[%c0_21, %c0_22] : memref<32x32xf32, #tpu.memory_space<vmem>>, vector<8x32xf32>
    %cst_23 = arith.constant dense<0.000000e+00> : vector<64x32xf32>
    %51 = tpu.matmul %49, %50, %cst_23 {dimension_numbers = #tpu.dot_dimension_numbers<[1], [0], [0], [1], [0, 0, 1, 1], [], []>} : vector<64x8xf32>, vector<8x32xf32>, vector<64x32xf32> -> vector<64x32xf32>
    %52 = arith.addf %8, %51 : vector<64x32xf32>
    %53 = vector.extract_strided_slice %7 {offsets = [0, 0, 8], sizes = [4, 16, 8], strides = [1, 1, 1]} : vector<4x16x96xf32> to vector<4x16x8xf32>
    %54 = vector.extract_strided_slice %7 {offsets = [0, 0, 40], sizes = [4, 16, 8], strides = [1, 1, 1]} : vector<4x16x96xf32> to vector<4x16x8xf32>
    %55 = vector.extract_strided_slice %7 {offsets = [0, 0, 72], sizes = [4, 16, 8], strides = [1, 1, 1]} : vector<4x16x96xf32> to vector<4x16x8xf32>
    %56 = arith.mulf %53, %53 : vector<4x16x8xf32>
    %cst_24 = arith.constant dense<0.000000e+00> : vector<4x16xf32>
    %57 = vector.multi_reduction <add>, %56, %cst_24 [2] : vector<4x16x8xf32> to vector<4x16xf32>
    %58 = vector.shape_cast %57 : vector<4x16xf32> to vector<4x16x1xf32>
    %59 = math.sqrt %58 : vector<4x16x1xf32>
    %cst_25 = arith.constant 9.99999996E-13 : f32
    %60 = vector.broadcast %cst_25 : f32 to vector<4x16x1xf32>
    %61 = arith.maximumf %59, %60 : vector<4x16x1xf32>
    %62 = vector.broadcast %61 : vector<4x16x1xf32> to vector<4x16x8xf32>
    %63 = arith.divf %53, %62 : vector<4x16x8xf32>
    %64 = arith.mulf %54, %54 : vector<4x16x8xf32>
    %cst_26 = arith.constant dense<0.000000e+00> : vector<4x16xf32>
    %65 = vector.multi_reduction <add>, %64, %cst_26 [2] : vector<4x16x8xf32> to vector<4x16xf32>
    %66 = vector.shape_cast %65 : vector<4x16xf32> to vector<4x16x1xf32>
    %67 = math.sqrt %66 : vector<4x16x1xf32>
    %cst_27 = arith.constant 9.99999996E-13 : f32
    %68 = vector.broadcast %cst_27 : f32 to vector<4x16x1xf32>
    %69 = arith.maximumf %67, %68 : vector<4x16x1xf32>
    %70 = vector.broadcast %69 : vector<4x16x1xf32> to vector<4x16x8xf32>
    %71 = arith.divf %54, %70 : vector<4x16x8xf32>
    "tpu.trace_start"() <{level = 10 : i32, message = "wnd,wmd->wnm"}> : () -> ()
    %cst_28 = arith.constant dense<0.000000e+00> : vector<4x16x16xf32>
    %72 = tpu.matmul %63, %71, %cst_28 {dimension_numbers = #tpu.dot_dimension_numbers<[2], [2], [1], [1], [0, 0, 0, 1, 1, 1], [0], [0]>} : vector<4x16x8xf32>, vector<4x16x8xf32>, vector<4x16x16xf32> -> vector<4x16x16xf32>
    "tpu.trace_stop"() : () -> ()
    %c1 = arith.constant 1 : index
    %c0_29 = arith.constant 0 : index
    %c0_30 = arith.constant 0 : index
    %73 = vector.load %arg4[%c1, %c0_29, %c0_30] : memref<4x1x16xf32, #tpu.memory_space<vmem>>, vector<1x1x16xf32>
    %74 = vector.shape_cast %73 : vector<1x1x16xf32> to vector<1x16xf32>
    %75 = vector.shape_cast %74 : vector<1x16xf32> to vector<1x1x16xf32>
    %76 = vector.broadcast %75 : vector<1x1x16xf32> to vector<4x16x16xf32>
    %77 = arith.mulf %72, %76 : vector<4x16x16xf32>
    %c1_31 = arith.constant 1 : index
    %c0_32 = arith.constant 0 : index
    %c0_33 = arith.constant 0 : index
    %78 = vector.load %arg5[%c1_31, %c0_32, %c0_33] : memref<4x16x16xf32, #tpu.memory_space<vmem>>, vector<1x16x16xf32>
    %79 = vector.shape_cast %78 : vector<1x16x16xf32> to vector<16x16xf32>
    %80 = vector.shape_cast %79 : vector<16x16xf32> to vector<1x16x16xf32>
    %81 = vector.broadcast %80 : vector<1x16x16xf32> to vector<4x16x16xf32>
    %82 = arith.addf %77, %81 : vector<4x16x16xf32>
    %cst_34 = arith.constant dense<0xFF800000> : vector<4x16xf32>
    %83 = vector.multi_reduction <maximumf>, %82, %cst_34 [2] : vector<4x16x16xf32> to vector<4x16xf32>
    %84 = vector.shape_cast %83 : vector<4x16xf32> to vector<4x16x1xf32>
    %85 = vector.broadcast %84 : vector<4x16x1xf32> to vector<4x16x16xf32>
    %86 = arith.subf %82, %85 : vector<4x16x16xf32>
    %87 = math.exp %86 : vector<4x16x16xf32>
    %cst_35 = arith.constant dense<0.000000e+00> : vector<4x16xf32>
    %88 = vector.multi_reduction <add>, %87, %cst_35 [2] : vector<4x16x16xf32> to vector<4x16xf32>
    %89 = vector.shape_cast %88 : vector<4x16xf32> to vector<4x16x1xf32>
    %90 = vector.broadcast %89 : vector<4x16x1xf32> to vector<4x16x16xf32>
    %91 = arith.divf %87, %90 : vector<4x16x16xf32>
    "tpu.trace_start"() <{level = 10 : i32, message = "wnm,wmd->wnd"}> : () -> ()
    %cst_36 = arith.constant dense<0.000000e+00> : vector<4x16x8xf32>
    %92 = tpu.matmul %91, %55, %cst_36 {dimension_numbers = #tpu.dot_dimension_numbers<[2], [1], [1], [2], [0, 0, 0, 1, 1, 2], [0], [0]>} : vector<4x16x16xf32>, vector<4x16x8xf32>, vector<4x16x8xf32> -> vector<4x16x8xf32>
    "tpu.trace_stop"() : () -> ()
    %93 = vector.shape_cast %92 : vector<4x16x8xf32> to vector<64x8xf32>
    %c8 = arith.constant 8 : index
    %c0_37 = arith.constant 0 : index
    %94 = vector.load %arg6[%c8, %c0_37] : memref<32x32xf32, #tpu.memory_space<vmem>>, vector<8x32xf32>
    %cst_38 = arith.constant dense<0.000000e+00> : vector<64x32xf32>
    %95 = tpu.matmul %93, %94, %cst_38 {dimension_numbers = #tpu.dot_dimension_numbers<[1], [0], [0], [1], [0, 0, 1, 1], [], []>} : vector<64x8xf32>, vector<8x32xf32>, vector<64x32xf32> -> vector<64x32xf32>
    %96 = arith.addf %52, %95 : vector<64x32xf32>
    %97 = vector.extract_strided_slice %7 {offsets = [0, 0, 16], sizes = [4, 16, 8], strides = [1, 1, 1]} : vector<4x16x96xf32> to vector<4x16x8xf32>
    %98 = vector.extract_strided_slice %7 {offsets = [0, 0, 48], sizes = [4, 16, 8], strides = [1, 1, 1]} : vector<4x16x96xf32> to vector<4x16x8xf32>
    %99 = vector.extract_strided_slice %7 {offsets = [0, 0, 80], sizes = [4, 16, 8], strides = [1, 1, 1]} : vector<4x16x96xf32> to vector<4x16x8xf32>
    %100 = arith.mulf %97, %97 : vector<4x16x8xf32>
    %cst_39 = arith.constant dense<0.000000e+00> : vector<4x16xf32>
    %101 = vector.multi_reduction <add>, %100, %cst_39 [2] : vector<4x16x8xf32> to vector<4x16xf32>
    %102 = vector.shape_cast %101 : vector<4x16xf32> to vector<4x16x1xf32>
    %103 = math.sqrt %102 : vector<4x16x1xf32>
    %cst_40 = arith.constant 9.99999996E-13 : f32
    %104 = vector.broadcast %cst_40 : f32 to vector<4x16x1xf32>
    %105 = arith.maximumf %103, %104 : vector<4x16x1xf32>
    %106 = vector.broadcast %105 : vector<4x16x1xf32> to vector<4x16x8xf32>
    %107 = arith.divf %97, %106 : vector<4x16x8xf32>
    %108 = arith.mulf %98, %98 : vector<4x16x8xf32>
    %cst_41 = arith.constant dense<0.000000e+00> : vector<4x16xf32>
    %109 = vector.multi_reduction <add>, %108, %cst_41 [2] : vector<4x16x8xf32> to vector<4x16xf32>
    %110 = vector.shape_cast %109 : vector<4x16xf32> to vector<4x16x1xf32>
    %111 = math.sqrt %110 : vector<4x16x1xf32>
    %cst_42 = arith.constant 9.99999996E-13 : f32
    %112 = vector.broadcast %cst_42 : f32 to vector<4x16x1xf32>
    %113 = arith.maximumf %111, %112 : vector<4x16x1xf32>
    %114 = vector.broadcast %113 : vector<4x16x1xf32> to vector<4x16x8xf32>
    %115 = arith.divf %98, %114 : vector<4x16x8xf32>
    "tpu.trace_start"() <{level = 10 : i32, message = "wnd,wmd->wnm"}> : () -> ()
    %cst_43 = arith.constant dense<0.000000e+00> : vector<4x16x16xf32>
    %116 = tpu.matmul %107, %115, %cst_43 {dimension_numbers = #tpu.dot_dimension_numbers<[2], [2], [1], [1], [0, 0, 0, 1, 1, 1], [0], [0]>} : vector<4x16x8xf32>, vector<4x16x8xf32>, vector<4x16x16xf32> -> vector<4x16x16xf32>
    "tpu.trace_stop"() : () -> ()
    %c2 = arith.constant 2 : index
    %c0_44 = arith.constant 0 : index
    %c0_45 = arith.constant 0 : index
    %117 = vector.load %arg4[%c2, %c0_44, %c0_45] : memref<4x1x16xf32, #tpu.memory_space<vmem>>, vector<1x1x16xf32>
    %118 = vector.shape_cast %117 : vector<1x1x16xf32> to vector<1x16xf32>
    %119 = vector.shape_cast %118 : vector<1x16xf32> to vector<1x1x16xf32>
    %120 = vector.broadcast %119 : vector<1x1x16xf32> to vector<4x16x16xf32>
    %121 = arith.mulf %116, %120 : vector<4x16x16xf32>
    %c2_46 = arith.constant 2 : index
    %c0_47 = arith.constant 0 : index
    %c0_48 = arith.constant 0 : index
    %122 = vector.load %arg5[%c2_46, %c0_47, %c0_48] : memref<4x16x16xf32, #tpu.memory_space<vmem>>, vector<1x16x16xf32>
    %123 = vector.shape_cast %122 : vector<1x16x16xf32> to vector<16x16xf32>
    %124 = vector.shape_cast %123 : vector<16x16xf32> to vector<1x16x16xf32>
    %125 = vector.broadcast %124 : vector<1x16x16xf32> to vector<4x16x16xf32>
    %126 = arith.addf %121, %125 : vector<4x16x16xf32>
    %cst_49 = arith.constant dense<0xFF800000> : vector<4x16xf32>
    %127 = vector.multi_reduction <maximumf>, %126, %cst_49 [2] : vector<4x16x16xf32> to vector<4x16xf32>
    %128 = vector.shape_cast %127 : vector<4x16xf32> to vector<4x16x1xf32>
    %129 = vector.broadcast %128 : vector<4x16x1xf32> to vector<4x16x16xf32>
    %130 = arith.subf %126, %129 : vector<4x16x16xf32>
    %131 = math.exp %130 : vector<4x16x16xf32>
    %cst_50 = arith.constant dense<0.000000e+00> : vector<4x16xf32>
    %132 = vector.multi_reduction <add>, %131, %cst_50 [2] : vector<4x16x16xf32> to vector<4x16xf32>
    %133 = vector.shape_cast %132 : vector<4x16xf32> to vector<4x16x1xf32>
    %134 = vector.broadcast %133 : vector<4x16x1xf32> to vector<4x16x16xf32>
    %135 = arith.divf %131, %134 : vector<4x16x16xf32>
    "tpu.trace_start"() <{level = 10 : i32, message = "wnm,wmd->wnd"}> : () -> ()
    %cst_51 = arith.constant dense<0.000000e+00> : vector<4x16x8xf32>
    %136 = tpu.matmul %135, %99, %cst_51 {dimension_numbers = #tpu.dot_dimension_numbers<[2], [1], [1], [2], [0, 0, 0, 1, 1, 2], [0], [0]>} : vector<4x16x16xf32>, vector<4x16x8xf32>, vector<4x16x8xf32> -> vector<4x16x8xf32>
    "tpu.trace_stop"() : () -> ()
    %137 = vector.shape_cast %136 : vector<4x16x8xf32> to vector<64x8xf32>
    %c16 = arith.constant 16 : index
    %c0_52 = arith.constant 0 : index
    %138 = vector.load %arg6[%c16, %c0_52] : memref<32x32xf32, #tpu.memory_space<vmem>>, vector<8x32xf32>
    %cst_53 = arith.constant dense<0.000000e+00> : vector<64x32xf32>
    %139 = tpu.matmul %137, %138, %cst_53 {dimension_numbers = #tpu.dot_dimension_numbers<[1], [0], [0], [1], [0, 0, 1, 1], [], []>} : vector<64x8xf32>, vector<8x32xf32>, vector<64x32xf32> -> vector<64x32xf32>
    %140 = arith.addf %96, %139 : vector<64x32xf32>
    %141 = vector.extract_strided_slice %7 {offsets = [0, 0, 24], sizes = [4, 16, 8], strides = [1, 1, 1]} : vector<4x16x96xf32> to vector<4x16x8xf32>
    %142 = vector.extract_strided_slice %7 {offsets = [0, 0, 56], sizes = [4, 16, 8], strides = [1, 1, 1]} : vector<4x16x96xf32> to vector<4x16x8xf32>
    %143 = vector.extract_strided_slice %7 {offsets = [0, 0, 88], sizes = [4, 16, 8], strides = [1, 1, 1]} : vector<4x16x96xf32> to vector<4x16x8xf32>
    %144 = arith.mulf %141, %141 : vector<4x16x8xf32>
    %cst_54 = arith.constant dense<0.000000e+00> : vector<4x16xf32>
    %145 = vector.multi_reduction <add>, %144, %cst_54 [2] : vector<4x16x8xf32> to vector<4x16xf32>
    %146 = vector.shape_cast %145 : vector<4x16xf32> to vector<4x16x1xf32>
    %147 = math.sqrt %146 : vector<4x16x1xf32>
    %cst_55 = arith.constant 9.99999996E-13 : f32
    %148 = vector.broadcast %cst_55 : f32 to vector<4x16x1xf32>
    %149 = arith.maximumf %147, %148 : vector<4x16x1xf32>
    %150 = vector.broadcast %149 : vector<4x16x1xf32> to vector<4x16x8xf32>
    %151 = arith.divf %141, %150 : vector<4x16x8xf32>
    %152 = arith.mulf %142, %142 : vector<4x16x8xf32>
    %cst_56 = arith.constant dense<0.000000e+00> : vector<4x16xf32>
    %153 = vector.multi_reduction <add>, %152, %cst_56 [2] : vector<4x16x8xf32> to vector<4x16xf32>
    %154 = vector.shape_cast %153 : vector<4x16xf32> to vector<4x16x1xf32>
    %155 = math.sqrt %154 : vector<4x16x1xf32>
    %cst_57 = arith.constant 9.99999996E-13 : f32
    %156 = vector.broadcast %cst_57 : f32 to vector<4x16x1xf32>
    %157 = arith.maximumf %155, %156 : vector<4x16x1xf32>
    %158 = vector.broadcast %157 : vector<4x16x1xf32> to vector<4x16x8xf32>
    %159 = arith.divf %142, %158 : vector<4x16x8xf32>
    "tpu.trace_start"() <{level = 10 : i32, message = "wnd,wmd->wnm"}> : () -> ()
    %cst_58 = arith.constant dense<0.000000e+00> : vector<4x16x16xf32>
    %160 = tpu.matmul %151, %159, %cst_58 {dimension_numbers = #tpu.dot_dimension_numbers<[2], [2], [1], [1], [0, 0, 0, 1, 1, 1], [0], [0]>} : vector<4x16x8xf32>, vector<4x16x8xf32>, vector<4x16x16xf32> -> vector<4x16x16xf32>
    "tpu.trace_stop"() : () -> ()
    %c3 = arith.constant 3 : index
    %c0_59 = arith.constant 0 : index
    %c0_60 = arith.constant 0 : index
    %161 = vector.load %arg4[%c3, %c0_59, %c0_60] : memref<4x1x16xf32, #tpu.memory_space<vmem>>, vector<1x1x16xf32>
    %162 = vector.shape_cast %161 : vector<1x1x16xf32> to vector<1x16xf32>
    %163 = vector.shape_cast %162 : vector<1x16xf32> to vector<1x1x16xf32>
    %164 = vector.broadcast %163 : vector<1x1x16xf32> to vector<4x16x16xf32>
    %165 = arith.mulf %160, %164 : vector<4x16x16xf32>
    %c3_61 = arith.constant 3 : index
    %c0_62 = arith.constant 0 : index
    %c0_63 = arith.constant 0 : index
    %166 = vector.load %arg5[%c3_61, %c0_62, %c0_63] : memref<4x16x16xf32, #tpu.memory_space<vmem>>, vector<1x16x16xf32>
    %167 = vector.shape_cast %166 : vector<1x16x16xf32> to vector<16x16xf32>
    %168 = vector.shape_cast %167 : vector<16x16xf32> to vector<1x16x16xf32>
    %169 = vector.broadcast %168 : vector<1x16x16xf32> to vector<4x16x16xf32>
    %170 = arith.addf %165, %169 : vector<4x16x16xf32>
    %cst_64 = arith.constant dense<0xFF800000> : vector<4x16xf32>
    %171 = vector.multi_reduction <maximumf>, %170, %cst_64 [2] : vector<4x16x16xf32> to vector<4x16xf32>
    %172 = vector.shape_cast %171 : vector<4x16xf32> to vector<4x16x1xf32>
    %173 = vector.broadcast %172 : vector<4x16x1xf32> to vector<4x16x16xf32>
    %174 = arith.subf %170, %173 : vector<4x16x16xf32>
    %175 = math.exp %174 : vector<4x16x16xf32>
    %cst_65 = arith.constant dense<0.000000e+00> : vector<4x16xf32>
    %176 = vector.multi_reduction <add>, %175, %cst_65 [2] : vector<4x16x16xf32> to vector<4x16xf32>
    %177 = vector.shape_cast %176 : vector<4x16xf32> to vector<4x16x1xf32>
    %178 = vector.broadcast %177 : vector<4x16x1xf32> to vector<4x16x16xf32>
    %179 = arith.divf %175, %178 : vector<4x16x16xf32>
    "tpu.trace_start"() <{level = 10 : i32, message = "wnm,wmd->wnd"}> : () -> ()
    %cst_66 = arith.constant dense<0.000000e+00> : vector<4x16x8xf32>
    %180 = tpu.matmul %179, %143, %cst_66 {dimension_numbers = #tpu.dot_dimension_numbers<[2], [1], [1], [2], [0, 0, 0, 1, 1, 2], [0], [0]>} : vector<4x16x16xf32>, vector<4x16x8xf32>, vector<4x16x8xf32> -> vector<4x16x8xf32>
    "tpu.trace_stop"() : () -> ()
    %181 = vector.shape_cast %180 : vector<4x16x8xf32> to vector<64x8xf32>
    %c24 = arith.constant 24 : index
    %c0_67 = arith.constant 0 : index
    %182 = vector.load %arg6[%c24, %c0_67] : memref<32x32xf32, #tpu.memory_space<vmem>>, vector<8x32xf32>
    %cst_68 = arith.constant dense<0.000000e+00> : vector<64x32xf32>
    %183 = tpu.matmul %181, %182, %cst_68 {dimension_numbers = #tpu.dot_dimension_numbers<[1], [0], [0], [1], [0, 0, 1, 1], [], []>} : vector<64x8xf32>, vector<8x32xf32>, vector<64x32xf32> -> vector<64x32xf32>
    %184 = arith.addf %140, %183 : vector<64x32xf32>
    %c0_69 = arith.constant 0 : index
    %c0_70 = arith.constant 0 : index
    %185 = vector.load %arg7[%c0_69, %c0_70] : memref<1x32xf32, #tpu.memory_space<vmem>>, vector<1x32xf32>
    %186 = vector.broadcast %185 : vector<1x32xf32> to vector<64x32xf32>
    %187 = arith.addf %184, %186 : vector<64x32xf32>
    %c0_71 = arith.constant 0 : index
    %c0_72 = arith.constant 0 : index
    %188 = vector.load %arg8[%c0_71, %c0_72] : memref<1x32xf32, #tpu.memory_space<vmem>>, vector<1x32xf32>
    %c0_73 = arith.constant 0 : index
    %c0_74 = arith.constant 0 : index
    %189 = vector.load %arg9[%c0_73, %c0_74] : memref<1x32xf32, #tpu.memory_space<vmem>>, vector<1x32xf32>
    %cst_75 = arith.constant dense<0.000000e+00> : vector<64xf32>
    %190 = vector.multi_reduction <add>, %187, %cst_75 [1] : vector<64x32xf32> to vector<64xf32>
    %191 = vector.shape_cast %190 : vector<64xf32> to vector<64x1xf32>
    %cst_76 = arith.constant 3.200000e+01 : f32
    %192 = vector.broadcast %cst_76 : f32 to vector<64x1xf32>
    %193 = arith.divf %191, %192 : vector<64x1xf32>
    %194 = vector.broadcast %193 : vector<64x1xf32> to vector<64x32xf32>
    %195 = arith.subf %187, %194 : vector<64x32xf32>
    %196 = arith.mulf %195, %195 : vector<64x32xf32>
    %cst_77 = arith.constant dense<0.000000e+00> : vector<64xf32>
    %197 = vector.multi_reduction <add>, %196, %cst_77 [1] : vector<64x32xf32> to vector<64xf32>
    %198 = vector.shape_cast %197 : vector<64xf32> to vector<64x1xf32>
    %cst_78 = arith.constant 3.200000e+01 : f32
    %199 = vector.broadcast %cst_78 : f32 to vector<64x1xf32>
    %200 = arith.divf %198, %199 : vector<64x1xf32>
    %cst_79 = arith.constant 9.99999974E-6 : f32
    %201 = vector.broadcast %cst_79 : f32 to vector<64x1xf32>
    %202 = arith.addf %200, %201 : vector<64x1xf32>
    %203 = math.rsqrt %202 : vector<64x1xf32>
    %204 = vector.broadcast %203 : vector<64x1xf32> to vector<64x32xf32>
    %205 = arith.mulf %195, %204 : vector<64x32xf32>
    %206 = vector.broadcast %188 : vector<1x32xf32> to vector<64x32xf32>
    %207 = arith.mulf %205, %206 : vector<64x32xf32>
    %208 = vector.broadcast %189 : vector<1x32xf32> to vector<64x32xf32>
    %209 = arith.addf %207, %208 : vector<64x32xf32>
    %210 = arith.addf %1, %209 : vector<64x32xf32>
    %c0_80 = arith.constant 0 : index
    %c0_81 = arith.constant 0 : index
    %211 = vector.load %arg10[%c0_80, %c0_81] : memref<32x128xf32, #tpu.memory_space<vmem>>, vector<32x128xf32>
    %cst_82 = arith.constant dense<0.000000e+00> : vector<64x128xf32>
    %212 = tpu.matmul %210, %211, %cst_82 {dimension_numbers = #tpu.dot_dimension_numbers<[1], [0], [0], [1], [0, 0, 1, 1], [], []>} : vector<64x32xf32>, vector<32x128xf32>, vector<64x128xf32> -> vector<64x128xf32>
    %c0_83 = arith.constant 0 : index
    %c0_84 = arith.constant 0 : index
    %213 = vector.load %arg11[%c0_83, %c0_84] : memref<1x128xf32, #tpu.memory_space<vmem>>, vector<1x128xf32>
    %214 = vector.broadcast %213 : vector<1x128xf32> to vector<64x128xf32>
    %215 = arith.addf %212, %214 : vector<64x128xf32>
    %cst_85 = arith.constant 0.000000e+00 : f32
    %216 = vector.broadcast %cst_85 : f32 to vector<64x128xf32>
    %217 = arith.subf %216, %215 : vector<64x128xf32>
    %218 = math.exp %217 : vector<64x128xf32>
    %cst_86 = arith.constant 1.000000e+00 : f32
    %219 = vector.broadcast %cst_86 : f32 to vector<64x128xf32>
    %220 = arith.addf %219, %218 : vector<64x128xf32>
    %cst_87 = arith.constant 1.000000e+00 : f32
    %221 = vector.broadcast %cst_87 : f32 to vector<64x128xf32>
    %222 = arith.divf %221, %220 : vector<64x128xf32>
    %223 = arith.mulf %215, %222 : vector<64x128xf32>
    %c0_88 = arith.constant 0 : index
    %c0_89 = arith.constant 0 : index
    %224 = vector.load %arg12[%c0_88, %c0_89] : memref<128x32xf32, #tpu.memory_space<vmem>>, vector<128x32xf32>
    %cst_90 = arith.constant dense<0.000000e+00> : vector<64x32xf32>
    %225 = tpu.matmul %223, %224, %cst_90 {dimension_numbers = #tpu.dot_dimension_numbers<[1], [0], [0], [1], [0, 0, 1, 1], [], []>} : vector<64x128xf32>, vector<128x32xf32>, vector<64x32xf32> -> vector<64x32xf32>
    %c0_91 = arith.constant 0 : index
    %c0_92 = arith.constant 0 : index
    %226 = vector.load %arg13[%c0_91, %c0_92] : memref<1x32xf32, #tpu.memory_space<vmem>>, vector<1x32xf32>
    %227 = vector.broadcast %226 : vector<1x32xf32> to vector<64x32xf32>
    %228 = arith.addf %225, %227 : vector<64x32xf32>
    %c0_93 = arith.constant 0 : index
    %c0_94 = arith.constant 0 : index
    %229 = vector.load %arg14[%c0_93, %c0_94] : memref<1x32xf32, #tpu.memory_space<vmem>>, vector<1x32xf32>
    %c0_95 = arith.constant 0 : index
    %c0_96 = arith.constant 0 : index
    %230 = vector.load %arg15[%c0_95, %c0_96] : memref<1x32xf32, #tpu.memory_space<vmem>>, vector<1x32xf32>
    %cst_97 = arith.constant dense<0.000000e+00> : vector<64xf32>
    %231 = vector.multi_reduction <add>, %228, %cst_97 [1] : vector<64x32xf32> to vector<64xf32>
    %232 = vector.shape_cast %231 : vector<64xf32> to vector<64x1xf32>
    %cst_98 = arith.constant 3.200000e+01 : f32
    %233 = vector.broadcast %cst_98 : f32 to vector<64x1xf32>
    %234 = arith.divf %232, %233 : vector<64x1xf32>
    %235 = vector.broadcast %234 : vector<64x1xf32> to vector<64x32xf32>
    %236 = arith.subf %228, %235 : vector<64x32xf32>
    %237 = arith.mulf %236, %236 : vector<64x32xf32>
    %cst_99 = arith.constant dense<0.000000e+00> : vector<64xf32>
    %238 = vector.multi_reduction <add>, %237, %cst_99 [1] : vector<64x32xf32> to vector<64xf32>
    %239 = vector.shape_cast %238 : vector<64xf32> to vector<64x1xf32>
    %cst_100 = arith.constant 3.200000e+01 : f32
    %240 = vector.broadcast %cst_100 : f32 to vector<64x1xf32>
    %241 = arith.divf %239, %240 : vector<64x1xf32>
    %cst_101 = arith.constant 9.99999974E-6 : f32
    %242 = vector.broadcast %cst_101 : f32 to vector<64x1xf32>
    %243 = arith.addf %241, %242 : vector<64x1xf32>
    %244 = math.rsqrt %243 : vector<64x1xf32>
    %245 = vector.broadcast %244 : vector<64x1xf32> to vector<64x32xf32>
    %246 = arith.mulf %236, %245 : vector<64x32xf32>
    %247 = vector.broadcast %229 : vector<1x32xf32> to vector<64x32xf32>
    %248 = arith.mulf %246, %247 : vector<64x32xf32>
    %249 = vector.broadcast %230 : vector<1x32xf32> to vector<64x32xf32>
    %250 = arith.addf %248, %249 : vector<64x32xf32>
    %251 = arith.addf %210, %250 : vector<64x32xf32>
    %252 = vector.shape_cast %251 : vector<64x32xf32> to vector<4x16x32xf32>
    %c0_102 = arith.constant 0 : index
    %c0_103 = arith.constant 0 : index
    %c0_104 = arith.constant 0 : index
    %253 = vector.load %arg16[%c0_102, %c0_103, %c0_104] : memref<4x16x32xf32, #tpu.memory_space<vmem>>, vector<4x16x32xf32>
    tpu.vector_store %arg16[%c0_102, %c0_103, %c0_104], %252 {strides = array<i32>} : memref<4x16x32xf32, #tpu.memory_space<vmem>>, vector<4x16x32xf32>,
    return
  }
  func.func @transform_0(%arg0: i32) -> (i32, i32, i32) {
    %c0_i32 = arith.constant 0 : i32
    %c0_i32_0 = arith.constant 0 : i32
    %c0_i32_1 = arith.constant 0 : i32
    return %arg0, %c0_i32, %c0_i32_0 : i32, i32, i32
  }
  func.func @transform_1(%arg0: i32) -> (i32, i32) {
    %c0_i32 = arith.constant 0 : i32
    %c0_i32_0 = arith.constant 0 : i32
    %c0_i32_1 = arith.constant 0 : i32
    return %c0_i32, %c0_i32_0 : i32, i32
  }
  func.func @transform_2(%arg0: i32) -> (i32, i32) {
    %c0_i32 = arith.constant 0 : i32
    %c0_i32_0 = arith.constant 0 : i32
    %c0_i32_1 = arith.constant 0 : i32
    return %c0_i32, %c0_i32_0 : i32, i32
  }
  func.func @transform_3(%arg0: i32) -> (i32, i32, i32) {
    %c0_i32 = arith.constant 0 : i32
    %c0_i32_0 = arith.constant 0 : i32
    %c0_i32_1 = arith.constant 0 : i32
    %c0_i32_2 = arith.constant 0 : i32
    return %c0_i32, %c0_i32_0, %c0_i32_1 : i32, i32, i32
  }
  func.func @transform_4(%arg0: i32) -> (i32, i32, i32) {
    %c0_i32 = arith.constant 0 : i32
    %c0_i32_0 = arith.constant 0 : i32
    %c0_i32_1 = arith.constant 0 : i32
    %c0_i32_2 = arith.constant 0 : i32
    return %c0_i32, %c0_i32_0, %c0_i32_1 : i32, i32, i32
  }
  func.func @transform_5(%arg0: i32) -> (i32, i32) {
    %c0_i32 = arith.constant 0 : i32
    %c0_i32_0 = arith.constant 0 : i32
    %c0_i32_1 = arith.constant 0 : i32
    return %c0_i32, %c0_i32_0 : i32, i32
  }
  func.func @transform_6(%arg0: i32) -> (i32, i32) {
    %c0_i32 = arith.constant 0 : i32
    %c0_i32_0 = arith.constant 0 : i32
    %c0_i32_1 = arith.constant 0 : i32
    return %c0_i32, %c0_i32_0 : i32, i32
  }
  func.func @transform_7(%arg0: i32) -> (i32, i32) {
    %c0_i32 = arith.constant 0 : i32
    %c0_i32_0 = arith.constant 0 : i32
    %c0_i32_1 = arith.constant 0 : i32
    return %c0_i32, %c0_i32_0 : i32, i32
  }
  func.func @transform_8(%arg0: i32) -> (i32, i32) {
    %c0_i32 = arith.constant 0 : i32
    %c0_i32_0 = arith.constant 0 : i32
    %c0_i32_1 = arith.constant 0 : i32
    return %c0_i32, %c0_i32_0 : i32, i32
  }
  func.func @transform_9(%arg0: i32) -> (i32, i32) {
    %c0_i32 = arith.constant 0 : i32
    %c0_i32_0 = arith.constant 0 : i32
    %c0_i32_1 = arith.constant 0 : i32
    return %c0_i32, %c0_i32_0 : i32, i32
  }
  func.func @transform_10(%arg0: i32) -> (i32, i32) {
    %c0_i32 = arith.constant 0 : i32
    %c0_i32_0 = arith.constant 0 : i32
    %c0_i32_1 = arith.constant 0 : i32
    return %c0_i32, %c0_i32_0 : i32, i32
  }
  func.func @transform_11(%arg0: i32) -> (i32, i32) {
    %c0_i32 = arith.constant 0 : i32
    %c0_i32_0 = arith.constant 0 : i32
    %c0_i32_1 = arith.constant 0 : i32
    return %c0_i32, %c0_i32_0 : i32, i32
  }
  func.func @transform_12(%arg0: i32) -> (i32, i32) {
    %c0_i32 = arith.constant 0 : i32
    %c0_i32_0 = arith.constant 0 : i32
    %c0_i32_1 = arith.constant 0 : i32
    return %c0_i32, %c0_i32_0 : i32, i32
  }
  func.func @transform_13(%arg0: i32) -> (i32, i32) {
    %c0_i32 = arith.constant 0 : i32
    %c0_i32_0 = arith.constant 0 : i32
    %c0_i32_1 = arith.constant 0 : i32
    return %c0_i32, %c0_i32_0 : i32, i32
  }
  func.func @transform_14(%arg0: i32) -> (i32, i32) {
    %c0_i32 = arith.constant 0 : i32
    %c0_i32_0 = arith.constant 0 : i32
    %c0_i32_1 = arith.constant 0 : i32
    return %c0_i32, %c0_i32_0 : i32, i32
  }
  func.func @transform_15(%arg0: i32) -> (i32, i32, i32) {
    %c0_i32 = arith.constant 0 : i32
    %c0_i32_0 = arith.constant 0 : i32
    %c0_i32_1 = arith.constant 0 : i32
    return %arg0, %c0_i32, %c0_i32_0 : i32, i32, i32
  }
}

</mosaic_0001>

<llo_original>
// kernel: sub.8
$region0: #{sub.8}
  %s0 = inlined_call_operand.vmem [shape: s32[2,4,4], index: 0, kind: input, shape index: {}]
  %s1 = inlined_call_operand.vmem [shape: s32[2,16], index: 1, kind: output, shape index: {}]
  $region1: #{sub.8} parent=0
    #allocation0 [shape = 'u8[4096]{0}', space=vmem, size = 0x1000, scoped, tag = 'scoped mem for output reshape']
    #allocation1 [shape = 'u8[8192]{0}', space=vmem, size = 0x2000, scoped, tag = 'scoped mem for input reshape']
    %s3 = sshllo.u32 0, 4
    %s4 = scalar_lea.vmem %s0, 4
    %v5 = vld [vmem:[%s4] sm:%s3]
    %s6 = scalar_lea.vmem [#allocation1], 8
    %7 = vst [vmem:[%s6] sm:%s3] %v5
    %v8 = vld [vmem:[%s0] sm:%s3]
    %9 = vst [vmem:[#allocation1] sm:%s3] %v8
    %s10 = smov 3
    %v11 = vld [vmem:[#allocation1] ss:$8 sm:%s10]
    %vm12 = vcmask 31744
    %13 = vst.msk [vmem:[#allocation0] sm:$0x3] %vm12, %v11
    %s14 = scalar_lea.vmem [#allocation1], 3
    %s15 = smov 3
    %v16 = vld [vmem:[%s14] ss:$8 sm:%s15]
    %17 = vrot.lane.b32.xlu0 %v16, 12
    %v18 = vpop.permute.xlu0 %17
    %vm19 = vcmask 130144
    %20 = vst.msk [vmem:[#allocation0] sm:$0x3] %vm19, %v18
    %s21 = scalar_lea.vmem [#allocation1], 2
    %s22 = smov 3
    %v23 = vld [vmem:[%s21] ss:$8 sm:%s22]
    %24 = vrot.lane.b32.xlu0 %v23, 8
    %v25 = vpop.permute.xlu0 %24
    %vm26 = vcmask 97344
    %27 = vst.msk [vmem:[#allocation0] sm:$0x3] %vm26, %v25
    %s28 = scalar_lea.vmem [#allocation1], 1
    %s29 = smov 3
    %v30 = vld [vmem:[%s28] ss:$8 sm:%s29]
    %31 = vrot.lane.b32.xlu0 %v30, 4
    %v32 = vpop.permute.xlu0 %31
    %vm33 = vcmask 64544
    %34 = vst.msk [vmem:[#allocation0] sm:$0x3] %vm33, %v32
    %s36 = sshllo.u32 0, 2
    %v38 = vld [vmem:[#allocation0] sm:%s36]
    %s39 = sshllo.u32 0, 2
    %40 = vst [vmem:[%s1] sm:%s39] %v38

// kernel: swin_layer_forward.2
$region0: #{swin_layer_forward.2}
  #allocation0 [shape = 'u32[]', space=smem, size = 0x4, offset = 0x4, fixed_abs, tag = 'smem constant byte address 0x4 - core index']
  #allocation1 [shape = 'u32[144,128]{1,0:T(1,128)}', space=vmem, size = 0x12000, scoped, tag = 'internal scratch']
  %s0 = inlined_call_operand.vmem [shape: f32[49,8], index: 0, kind: input, shape index: {}]
  %s1 = inlined_call_operand.vmem [shape: f32[8,512], index: 1, kind: input, shape index: {}]
  %s2 = inlined_call_operand.vmem [shape: f32[1,512], index: 2, kind: input, shape index: {}]
  %s3 = inlined_call_operand.vmem [shape: f32[512,4], index: 3, kind: input, shape index: {}]
  %s4 = inlined_call_operand.vmem [shape: f32[49,4], index: 4, kind: output, shape index: {}]
  %s5 = sld [smem:[#allocation0]]
  $region26: #{swin_layer_forward.2} parent=0
    _
  %s7 = ssub.s32 1, %s5
  %s8 = scalar_select 0, %s7, %s5
  // Predicated region
  $region2: #{swin_layer_forward.2} parent=0 // pred_check
    _
  $region3: #{swin_layer_forward.2} parent=0 // pred_check_branch
    %10 = sbr.rel (0) target = $region5
  $region4: #{swin_layer_forward.2} parent=0 // pred_region
    _
  $region5: #{swin_layer_forward.2} parent=0 // pred_fallthru
    _
  // Predicated region
  $region6: #{swin_layer_forward.2} parent=0 // pred_check
    _
  $region7: #{swin_layer_forward.2} parent=0 // pred_check_branch
    %12 = sbr.rel (0) target = $region9
  $region8: #{swin_layer_forward.2} parent=0 // pred_region
    _
  $region9: #{swin_layer_forward.2} parent=0 // pred_fallthru
    _
  // Predicated region
  $region10: #{swin_layer_forward.2} parent=0 // pred_check
    _
  $region11: #{swin_layer_forward.2} parent=0 // pred_check_branch
    %14 = sbr.rel (0) target = $region13
  $region12: #{swin_layer_forward.2} parent=0 // pred_region
    _
  $region13: #{swin_layer_forward.2} parent=0 // pred_fallthru
    _
  // Predicated region
  $region14: #{swin_layer_forward.2} parent=0 // pred_check
    _
  $region15: #{swin_layer_forward.2} parent=0 // pred_check_branch
    %16 = sbr.rel (0) target = $region17
  $region16: #{swin_layer_forward.2} parent=0 // pred_region
    _
  $region17: #{swin_layer_forward.2} parent=0 // pred_fallthru
    _
  %v17 = vld [vmem:[%s0] sm:$0xff]
  %v18 = vld [vmem:[%s0 + $0x8] sm:$0xff]
  %v19 = vld [vmem:[%s0 + $0x10] sm:$0xff]
  %v20 = vld [vmem:[%s0 + $0x18] sm:$0xff]
  %v21 = vld [vmem:[%s0 + $0x20] sm:$0xff]
  %v22 = vld [vmem:[%s0 + $0x28] sm:$0xff]
  %v23 = vld [vmem:[%s0 + $0x30] sm:$0x1]
  %v24 = vld [vmem:[%s1] sm:$0xff]
  %v25 = vld [vmem:[%s1 + $0x8] sm:$0xff]
  %v26 = vld [vmem:[%s1 + $0x10] sm:$0xff]
  %v27 = vld [vmem:[%s1 + $0x18] sm:$0xff]
  %v28 = vld [vmem:[%s2] sm:$0xf]
  %v30 = vlaneseq
  %v31 = vshrl.u32 %v30, 7
  %v32 = vsub.s32 0, %v31
  %v33 = vrot.slane %v28, %v32
  %v34 = vlaneseq
  %v35 = vshrl.u32 %v34, 7
  %v36 = vsub.s32 1, %v35
  %v37 = vrot.slane %v28, %v36
  %v38 = vlaneseq
  %v39 = vshrl.u32 %v38, 7
  %v40 = vsub.s32 2, %v39
  %v41 = vrot.slane %v28, %v40
  %v42 = vlaneseq
  %v43 = vshrl.u32 %v42, 7
  %v44 = vsub.s32 3, %v43
  %v45 = vrot.slane %v28, %v44
  %vm50 = vcmask 64512
  %v52 = vsel %vm50, %v17, 0
  %v55 = vsel %vm50, %v18, 0
  %v58 = vsel %vm50, %v19, 0
  %v61 = vsel %vm50, %v20, 0
  %v64 = vsel %vm50, %v21, 0
  %v67 = vsel %vm50, %v22, 0
  %v70 = vsel %vm50, %v23, 0
  %72 = vmatprep.subr.mxu0 %v25
  %73 = vmatpush1.msra.mxu0 %v24
  %74 = vmatprep.subr.mxu0 0.0
  %75 = vmatpush1.msra.mxu0 0.0
  %76 = vmatprep.subr.mxu0 0.0
  %77 = vmatpush1.msra.mxu0 0.0
  %78 = vmatprep.subr.mxu0 0.0
  %79 = vmatpush1.msra.mxu0 0.0
  %80 = vmatprep.subr.mxu0 0.0
  %81 = vmatpush1.msra.mxu0 0.0
  %82 = vmatprep.subr.mxu0 0.0
  %83 = vmatpush1.msra.mxu0 0.0
  %84 = vmatprep.subr.mxu0 0.0
  %85 = vmatpush1.msra.mxu0 0.0
  %86 = vmatprep.subr.mxu0 0.0
  %87 = vmatpush1.msra.mxu0 0.0
  %88 = vmatprep.subr.mxu0 0.0
  %89 = vmatpush1.msra.mxu0 0.0
  %90 = vmatprep.subr.mxu0 0.0
  %91 = vmatpush1.msra.mxu0 0.0
  %92 = vmatprep.subr.mxu0 0.0
  %93 = vmatpush1.msra.mxu0 0.0
  %94 = vmatprep.subr.mxu0 0.0
  %95 = vmatpush1.msra.mxu0 0.0
  %96 = vmatprep.subr.mxu0 0.0
  %97 = vmatpush1.msra.mxu0 0.0
  %98 = vmatprep.subr.mxu0 0.0
  %99 = vmatpush1.msra.mxu0 0.0
  %100 = vmatprep.subr.mxu0 0.0
  %101 = vmatpush1.msra.mxu0 0.0
  %102 = vmatprep.subr.mxu0 0.0
  %103 = vmatpush1.msra.mxu0 0.0
  %104 = vmatprep.subr.mxu0 0.0
  %105 = vmatpush1.msra.mxu0 0.0
  %106 = vmatprep.subr.mxu0 0.0
  %107 = vmatpush1.msra.mxu0 0.0
  %108 = vmatprep.subr.mxu0 0.0
  %109 = vmatpush1.msra.mxu0 0.0
  %110 = vmatprep.subr.mxu0 0.0
  %111 = vmatpush1.msra.mxu0 0.0
  %112 = vmatprep.subr.mxu0 0.0
  %113 = vmatpush1.msra.mxu0 0.0
  %114 = vmatprep.subr.mxu0 0.0
  %115 = vmatpush1.msra.mxu0 0.0
  %116 = vmatprep.subr.mxu0 0.0
  %117 = vmatpush1.msra.mxu0 0.0
  %118 = vmatprep.subr.mxu0 0.0
  %119 = vmatpush1.msra.mxu0 0.0
  %120 = vmatprep.subr.mxu0 0.0
  %121 = vmatpush1.msra.mxu0 0.0
  %122 = vmatprep.subr.mxu0 0.0
  %123 = vmatpush1.msra.mxu0 0.0
  %124 = vmatprep.subr.mxu0 0.0
  %125 = vmatpush1.msra.mxu0 0.0
  %126 = vmatprep.subr.mxu0 0.0
  %127 = vmatpush1.msra.mxu0 0.0
  %128 = vmatprep.subr.mxu0 0.0
  %129 = vmatpush1.msra.mxu0 0.0
  %130 = vmatprep.subr.mxu0 0.0
  %131 = vmatpush1.msra.mxu0 0.0
  %132 = vmatprep.subr.mxu0 0.0
  %133 = vmatpush1.msra.mxu0 0.0
  %134 = vmatprep.subr.mxu0 0.0
  %135 = vmatpush1.msra.mxu0 0.0
  %136 = vmatprep.mubr.f32.mxu0 0.0
  %137 = vmatmul.mubr.f32.gmra.mrb[0].mxu0 %v52
  %v138 = vpop.f32.mrb[0].mxu0
  %v139 = vadd.f32 %v33, %v138
  %v140 = vpop.f32.mrb[0].mxu0
  %v141 = vadd.f32 %v37, %v140
  %142 = vmatprep.mubr.f32.mxu0 0.0
  %143 = vmatmul.mubr.f32.gmra.mrb[0].mxu0 %v55
  %v144 = vpop.f32.mrb[0].mxu0
  %v145 = vadd.f32 %v33, %v144
  %v146 = vpop.f32.mrb[0].mxu0
  %v147 = vadd.f32 %v37, %v146
  %148 = vmatprep.mubr.f32.mxu0 0.0
  %149 = vmatmul.mubr.f32.gmra.mrb[0].mxu0 %v58
  %v150 = vpop.f32.mrb[0].mxu0
  %v151 = vadd.f32 %v33, %v150
  %v152 = vpop.f32.mrb[0].mxu0
  %v153 = vadd.f32 %v37, %v152
  %154 = vmatprep.mubr.f32.mxu0 0.0
  %155 = vmatmul.mubr.f32.gmra.mrb[0].mxu0 %v61
  %v156 = vpop.f32.mrb[0].mxu0
  %v157 = vadd.f32 %v33, %v156
  %v158 = vpop.f32.mrb[0].mxu0
  %v159 = vadd.f32 %v37, %v158
  %160 = vmatprep.mubr.f32.mxu0 0.0
  %161 = vmatmul.mubr.f32.gmra.mrb[0].mxu0 %v64
  %v162 = vpop.f32.mrb[0].mxu0
  %v163 = vadd.f32 %v33, %v162
  %v164 = vpop.f32.mrb[0].mxu0
  %v165 = vadd.f32 %v37, %v164
  %166 = vmatprep.mubr.f32.mxu0 0.0
  %167 = vmatmul.mubr.f32.gmra.mrb[0].mxu0 %v67
  %v168 = vpop.f32.mrb[0].mxu0
  %v169 = vadd.f32 %v33, %v168
  %v170 = vpop.f32.mrb[0].mxu0
  %v171 = vadd.f32 %v37, %v170
  %172 = vmatprep.mubr.f32.mxu0 0.0
  %173 = vmatmul.mubr.f32.gmra.mrb[0].mxu0 %v70
  %v174 = vpop.f32.mrb[0].mxu0
  %v175 = vadd.f32 %v33, %v174
  %v176 = vpop.f32.mrb[0].mxu0
  %v177 = vadd.f32 %v37, %v176
  %178 = vdwg.mxu0
  %179 = vmatprep.subr.mxu0 %v27
  %180 = vmatpush1.msra.mxu0 %v26
  %181 = vmatprep.subr.mxu0 0.0
  %182 = vmatpush1.msra.mxu0 0.0
  %183 = vmatprep.subr.mxu0 0.0
  %184 = vmatpush1.msra.mxu0 0.0
  %185 = vmatprep.subr.mxu0 0.0
  %186 = vmatpush1.msra.mxu0 0.0
  %187 = vmatprep.subr.mxu0 0.0
  %188 = vmatpush1.msra.mxu0 0.0
  %189 = vmatprep.subr.mxu0 0.0
  %190 = vmatpush1.msra.mxu0 0.0
  %191 = vmatprep.subr.mxu0 0.0
  %192 = vmatpush1.msra.mxu0 0.0
  %193 = vmatprep.subr.mxu0 0.0
  %194 = vmatpush1.msra.mxu0 0.0
  %195 = vmatprep.subr.mxu0 0.0
  %196 = vmatpush1.msra.mxu0 0.0
  %197 = vmatprep.subr.mxu0 0.0
  %198 = vmatpush1.msra.mxu0 0.0
  %199 = vmatprep.subr.mxu0 0.0
  %200 = vmatpush1.msra.mxu0 0.0
  %201 = vmatprep.subr.mxu0 0.0
  %202 = vmatpush1.msra.mxu0 0.0
  %203 = vmatprep.subr.mxu0 0.0
  %204 = vmatpush1.msra.mxu0 0.0
  %205 = vmatprep.subr.mxu0 0.0
  %206 = vmatpush1.msra.mxu0 0.0
  %207 = vmatprep.subr.mxu0 0.0
  %208 = vmatpush1.msra.mxu0 0.0
  %209 = vmatprep.subr.mxu0 0.0
  %210 = vmatpush1.msra.mxu0 0.0
  %211 = vmatprep.subr.mxu0 0.0
  %212 = vmatpush1.msra.mxu0 0.0
  %213 = vmatprep.subr.mxu0 0.0
  %214 = vmatpush1.msra.mxu0 0.0
  %215 = vmatprep.subr.mxu0 0.0
  %216 = vmatpush1.msra.mxu0 0.0
  %217 = vmatprep.subr.mxu0 0.0
  %218 = vmatpush1.msra.mxu0 0.0
  %219 = vmatprep.subr.mxu0 0.0
  %220 = vmatpush1.msra.mxu0 0.0
  %221 = vmatprep.subr.mxu0 0.0
  %222 = vmatpush1.msra.mxu0 0.0
  %223 = vmatprep.subr.mxu0 0.0
  %224 = vmatpush1.msra.mxu0 0.0
  %225 = vmatprep.subr.mxu0 0.0
  %226 = vmatpush1.msra.mxu0 0.0
  %227 = vmatprep.subr.mxu0 0.0
  %228 = vmatpush1.msra.mxu0 0.0
  %229 = vmatprep.subr.mxu0 0.0
  %230 = vmatpush1.msra.mxu0 0.0
  %231 = vmatprep.subr.mxu0 0.0
  %232 = vmatpush1.msra.mxu0 0.0
  %233 = vmatprep.subr.mxu0 0.0
  %234 = vmatpush1.msra.mxu0 0.0
  %235 = vmatprep.subr.mxu0 0.0
  %236 = vmatpush1.msra.mxu0 0.0
  %237 = vmatprep.subr.mxu0 0.0
  %238 = vmatpush1.msra.mxu0 0.0
  %239 = vmatprep.subr.mxu0 0.0
  %240 = vmatpush1.msra.mxu0 0.0
  %241 = vmatprep.subr.mxu0 0.0
  %242 = vmatpush1.msra.mxu0 0.0
  %243 = vmatprep.mubr.f32.mxu0 0.0
  %244 = vmatmul.mubr.f32.gmra.mrb[0].mxu0 %v52
  %v245 = vpop.f32.mrb[0].mxu0
  %v246 = vadd.f32 %v41, %v245
  %v247 = vpop.f32.mrb[0].mxu0
  %v248 = vadd.f32 %v45, %v247
  %249 = vmatprep.mubr.f32.mxu0 0.0
  %250 = vmatmul.mubr.f32.gmra.mrb[0].mxu0 %v55
  %v251 = vpop.f32.mrb[0].mxu0
  %v252 = vadd.f32 %v41, %v251
  %v253 = vpop.f32.mrb[0].mxu0
  %v254 = vadd.f32 %v45, %v253
  %255 = vmatprep.mubr.f32.mxu0 0.0
  %256 = vmatmul.mubr.f32.gmra.mrb[0].mxu0 %v58
  %v257 = vpop.f32.mrb[0].mxu0
  %v258 = vadd.f32 %v41, %v257
  %v259 = vpop.f32.mrb[0].mxu0
  %v260 = vadd.f32 %v45, %v259
  %261 = vmatprep.mubr.f32.mxu0 0.0
  %262 = vmatmul.mubr.f32.gmra.mrb[0].mxu0 %v61
  %v263 = vpop.f32.mrb[0].mxu0
  %v264 = vadd.f32 %v41, %v263
  %v265 = vpop.f32.mrb[0].mxu0
  %v266 = vadd.f32 %v45, %v265
  %267 = vmatprep.mubr.f32.mxu0 0.0
  %268 = vmatmul.mubr.f32.gmra.mrb[0].mxu0 %v64
  %v269 = vpop.f32.mrb[0].mxu0
  %v270 = vadd.f32 %v41, %v269
  %v271 = vpop.f32.mrb[0].mxu0
  %v272 = vadd.f32 %v45, %v271
  %273 = vmatprep.mubr.f32.mxu0 0.0
  %274 = vmatmul.mubr.f32.gmra.mrb[0].mxu0 %v67
  %v275 = vpop.f32.mrb[0].mxu0
  %v276 = vadd.f32 %v41, %v275
  %v277 = vpop.f32.mrb[0].mxu0
  %v278 = vadd.f32 %v45, %v277
  %279 = vmatprep.mubr.f32.mxu0 0.0
  %280 = vmatmul.mubr.f32.gmra.mrb[0].mxu0 %v70
  %v281 = vpop.f32.mrb[0].mxu0
  %v282 = vadd.f32 %v41, %v281
  %v283 = vpop.f32.mrb[0].mxu0
  %v284 = vadd.f32 %v45, %v283
  %285 = vdwg.mxu0
  %v286 = vmax.f32 %v139, 0.0
  %v287 = vmax.f32 %v141, 0.0
  %v288 = vmax.f32 %v246, 0.0
  %v289 = vmax.f32 %v248, 0.0
  %v290 = vmax.f32 %v145, 0.0
  %v291 = vmax.f32 %v147, 0.0
  %v292 = vmax.f32 %v252, 0.0
  %v293 = vmax.f32 %v254, 0.0
  %v294 = vmax.f32 %v151, 0.0
  %v295 = vmax.f32 %v153, 0.0
  %v296 = vmax.f32 %v258, 0.0
  %v297 = vmax.f32 %v260, 0.0
  %v298 = vmax.f32 %v157, 0.0
  %v299 = vmax.f32 %v159, 0.0
  %v300 = vmax.f32 %v264, 0.0
  %v301 = vmax.f32 %v266, 0.0
  %v302 = vmax.f32 %v163, 0.0
  %v303 = vmax.f32 %v165, 0.0
  %v304 = vmax.f32 %v270, 0.0
  %v305 = vmax.f32 %v272, 0.0
  %v306 = vmax.f32 %v169, 0.0
  %v307 = vmax.f32 %v171, 0.0
  %v308 = vmax.f32 %v276, 0.0
  %v309 = vmax.f32 %v278, 0.0
  %v310 = vmax.f32 %v175, 0.0
  %v311 = vmax.f32 %v177, 0.0
  %v312 = vmax.f32 %v282, 0.0
  %v313 = vmax.f32 %v284, 0.0
  %v314 = vld [vmem:[%s3] sm:$0xff]
  %v315 = vld [vmem:[%s3 + $0x8] sm:$0xff]
  %v316 = vld [vmem:[%s3 + $0x10] sm:$0xff]
  %v317 = vld [vmem:[%s3 + $0x18] sm:$0xff]
  %v318 = vld [vmem:[%s3 + $0x20] sm:$0xff]
  %v319 = vld [vmem:[%s3 + $0x28] sm:$0xff]
  %v320 = vld [vmem:[%s3 + $0x30] sm:$0xff]
  %v321 = vld [vmem:[%s3 + $0x38] sm:$0xff]
  %v322 = vld [vmem:[%s3 + $0x40] sm:$0xff]
  %v323 = vld [vmem:[%s3 + $0x48] sm:$0xff]
  %v324 = vld [vmem:[%s3 + $0x50] sm:$0xff]
  %v325 = vld [vmem:[%s3 + $0x58] sm:$0xff]
  %v326 = vld [vmem:[%s3 + $0x60] sm:$0xff]
  %v327 = vld [vmem:[%s3 + $0x68] sm:$0xff]
  %v328 = vld [vmem:[%s3 + $0x70] sm:$0xff]
  %v329 = vld [vmem:[%s3 + $0x78] sm:$0xff]
  %v330 = vld [vmem:[%s3 + $0x80] sm:$0xff]
  %v331 = vld [vmem:[%s3 + $0x88] sm:$0xff]
  %v332 = vld [vmem:[%s3 + $0x90] sm:$0xff]
  %v333 = vld [vmem:[%s3 + $0x98] sm:$0xff]
  %v334 = vld [vmem:[%s3 + $0xa0] sm:$0xff]
  %v335 = vld [vmem:[%s3 + $0xa8] sm:$0xff]
  %v336 = vld [vmem:[%s3 + $0xb0] sm:$0xff]
  %v337 = vld [vmem:[%s3 + $0xb8] sm:$0xff]
  %v338 = vld [vmem:[%s3 + $0xc0] sm:$0xff]
  %v339 = vld [vmem:[%s3 + $0xc8] sm:$0xff]
  %v340 = vld [vmem:[%s3 + $0xd0] sm:$0xff]
  %v341 = vld [vmem:[%s3 + $0xd8] sm:$0xff]
  %v342 = vld [vmem:[%s3 + $0xe0] sm:$0xff]
  %v343 = vld [vmem:[%s3 + $0xe8] sm:$0xff]
  %v344 = vld [vmem:[%s3 + $0xf0] sm:$0xff]
  %v345 = vld [vmem:[%s3 + $0xf8] sm:$0xff]
  %v346 = vld [vmem:[%s3 + $0x100] sm:$0xff]
  %v347 = vld [vmem:[%s3 + $0x108] sm:$0xff]
  %v348 = vld [vmem:[%s3 + $0x110] sm:$0xff]
  %v349 = vld [vmem:[%s3 + $0x118] sm:$0xff]
  %v350 = vld [vmem:[%s3 + $0x120] sm:$0xff]
  %v351 = vld [vmem:[%s3 + $0x128] sm:$0xff]
  %v352 = vld [vmem:[%s3 + $0x130] sm:$0xff]
  %v353 = vld [vmem:[%s3 + $0x138] sm:$0xff]
  %v354 = vld [vmem:[%s3 + $0x140] sm:$0xff]
  %v355 = vld [vmem:[%s3 + $0x148] sm:$0xff]
  %v356 = vld [vmem:[%s3 + $0x150] sm:$0xff]
  %v357 = vld [vmem:[%s3 + $0x158] sm:$0xff]
  %v358 = vld [vmem:[%s3 + $0x160] sm:$0xff]
  %v359 = vld [vmem:[%s3 + $0x168] sm:$0xff]
  %v360 = vld [vmem:[%s3 + $0x170] sm:$0xff]
  %v361 = vld [vmem:[%s3 + $0x178] sm:$0xff]
  %v362 = vld [vmem:[%s3 + $0x180] sm:$0xff]
  %v363 = vld [vmem:[%s3 + $0x188] sm:$0xff]
  %v364 = vld [vmem:[%s3 + $0x190] sm:$0xff]
  %v365 = vld [vmem:[%s3 + $0x198] sm:$0xff]
  %v366 = vld [vmem:[%s3 + $0x1a0] sm:$0xff]
  %v367 = vld [vmem:[%s3 + $0x1a8] sm:$0xff]
  %v368 = vld [vmem:[%s3 + $0x1b0] sm:$0xff]
  %v369 = vld [vmem:[%s3 + $0x1b8] sm:$0xff]
  %v370 = vld [vmem:[%s3 + $0x1c0] sm:$0xff]
  %v371 = vld [vmem:[%s3 + $0x1c8] sm:$0xff]
  %v372 = vld [vmem:[%s3 + $0x1d0] sm:$0xff]
  %v373 = vld [vmem:[%s3 + $0x1d8] sm:$0xff]
  %v374 = vld [vmem:[%s3 + $0x1e0] sm:$0xff]
  %v375 = vld [vmem:[%s3 + $0x1e8] sm:$0xff]
  %v376 = vld [vmem:[%s3 + $0x1f0] sm:$0xff]
  %v377 = vld [vmem:[%s3 + $0x1f8] sm:$0xff]
  %378 = vmatprep.subr.mxu0 0.0
  %379 = vmatpush1.msra.mxu0 %v314
  %380 = vmatprep.subr.mxu0 0.0
  %381 = vmatpush1.msra.mxu0 %v315
  %382 = vmatprep.subr.mxu0 0.0
  %383 = vmatpush1.msra.mxu0 %v316
  %384 = vmatprep.subr.mxu0 0.0
  %385 = vmatpush1.msra.mxu0 %v317
  %386 = vmatprep.subr.mxu0 0.0
  %387 = vmatpush1.msra.mxu0 %v318
  %388 = vmatprep.subr.mxu0 0.0
  %389 = vmatpush1.msra.mxu0 %v319
  %390 = vmatprep.subr.mxu0 0.0
  %391 = vmatpush1.msra.mxu0 %v320
  %392 = vmatprep.subr.mxu0 0.0
  %393 = vmatpush1.msra.mxu0 %v321
  %394 = vmatprep.subr.mxu0 0.0
  %395 = vmatpush1.msra.mxu0 %v322
  %396 = vmatprep.subr.mxu0 0.0
  %397 = vmatpush1.msra.mxu0 %v323
  %398 = vmatprep.subr.mxu0 0.0
  %399 = vmatpush1.msra.mxu0 %v324
  %400 = vmatprep.subr.mxu0 0.0
  %401 = vmatpush1.msra.mxu0 %v325
  %402 = vmatprep.subr.mxu0 0.0
  %403 = vmatpush1.msra.mxu0 %v326
  %404 = vmatprep.subr.mxu0 0.0
  %405 = vmatpush1.msra.mxu0 %v327
  %406 = vmatprep.subr.mxu0 0.0
  %407 = vmatpush1.msra.mxu0 %v328
  %408 = vmatprep.subr.mxu0 0.0
  %409 = vmatpush1.msra.mxu0 %v329
  %410 = vmatprep.subr.mxu0 0.0
  %411 = vmatpush1.msra.mxu0 %v330
  %412 = vmatprep.subr.mxu0 0.0
  %413 = vmatpush1.msra.mxu0 %v331
  %414 = vmatprep.subr.mxu0 0.0
  %415 = vmatpush1.msra.mxu0 %v332
  %416 = vmatprep.subr.mxu0 0.0
  %417 = vmatpush1.msra.mxu0 %v333
  %418 = vmatprep.subr.mxu0 0.0
  %419 = vmatpush1.msra.mxu0 %v334
  %420 = vmatprep.subr.mxu0 0.0
  %421 = vmatpush1.msra.mxu0 %v335
  %422 = vmatprep.subr.mxu0 0.0
  %423 = vmatpush1.msra.mxu0 %v336
  %424 = vmatprep.subr.mxu0 0.0
  %425 = vmatpush1.msra.mxu0 %v337
  %426 = vmatprep.subr.mxu0 0.0
  %427 = vmatpush1.msra.mxu0 %v338
  %428 = vmatprep.subr.mxu0 0.0
  %429 = vmatpush1.msra.mxu0 %v339
  %430 = vmatprep.subr.mxu0 0.0
  %431 = vmatpush1.msra.mxu0 %v340
  %432 = vmatprep.subr.mxu0 0.0
  %433 = vmatpush1.msra.mxu0 %v341
  %434 = vmatprep.subr.mxu0 0.0
  %435 = vmatpush1.msra.mxu0 %v342
  %436 = vmatprep.subr.mxu0 0.0
  %437 = vmatpush1.msra.mxu0 %v343
  %438 = vmatprep.subr.mxu0 0.0
  %439 = vmatpush1.msra.mxu0 %v344
  %440 = vmatprep.subr.mxu0 0.0
  %441 = vmatpush1.msra.mxu0 %v345
  %442 = vmatprep.mubr.f32.mxu0 %v287
  %443 = vmatmul.mubr.f32.gmra.mrb[0].mxu0 %v286
  %v444 = vpop.f32.mrb[0].mxu0
  %v445 = vadd.f32 0.0, %v444
  %v446 = vpop.f32.mrb[0].mxu0
  %447 = vmatprep.mubr.f32.mxu0 %v291
  %448 = vmatmul.mubr.f32.gmra.mrb[0].mxu0 %v290
  %v449 = vpop.f32.mrb[0].mxu0
  %v450 = vadd.f32 0.0, %v449
  %v451 = vpop.f32.mrb[0].mxu0
  %452 = vmatprep.mubr.f32.mxu0 %v295
  %453 = vmatmul.mubr.f32.gmra.mrb[0].mxu0 %v294
  %v454 = vpop.f32.mrb[0].mxu0
  %v455 = vadd.f32 0.0, %v454
  %v456 = vpop.f32.mrb[0].mxu0
  %457 = vmatprep.mubr.f32.mxu0 %v299
  %458 = vmatmul.mubr.f32.gmra.mrb[0].mxu0 %v298
  %v459 = vpop.f32.mrb[0].mxu0
  %v460 = vadd.f32 0.0, %v459
  %v461 = vpop.f32.mrb[0].mxu0
  %462 = vmatprep.mubr.f32.mxu0 %v303
  %463 = vmatmul.mubr.f32.gmra.mrb[0].mxu0 %v302
  %v464 = vpop.f32.mrb[0].mxu0
  %v465 = vadd.f32 0.0, %v464
  %v466 = vpop.f32.mrb[0].mxu0
  %467 = vmatprep.mubr.f32.mxu0 %v307
  %468 = vmatmul.mubr.f32.gmra.mrb[0].mxu0 %v306
  %v469 = vpop.f32.mrb[0].mxu0
  %v470 = vadd.f32 0.0, %v469
  %v471 = vpop.f32.mrb[0].mxu0
  %472 = vmatprep.mubr.f32.mxu0 %v311
  %473 = vmatmul.mubr.f32.gmra.mrb[0].mxu0 %v310
  %v474 = vpop.f32.mrb[0].mxu0
  %v475 = vadd.f32 0.0, %v474
  %v476 = vpop.f32.mrb[0].mxu0
  %477 = vdwg.mxu0
  %478 = vmatprep.subr.mxu0 0.0
  %479 = vmatpush1.msra.mxu0 %v346
  %480 = vmatprep.subr.mxu0 0.0
  %481 = vmatpush1.msra.mxu0 %v347
  %482 = vmatprep.subr.mxu0 0.0
  %483 = vmatpush1.msra.mxu0 %v348
  %484 = vmatprep.subr.mxu0 0.0
  %485 = vmatpush1.msra.mxu0 %v349
  %486 = vmatprep.subr.mxu0 0.0
  %487 = vmatpush1.msra.mxu0 %v350
  %488 = vmatprep.subr.mxu0 0.0
  %489 = vmatpush1.msra.mxu0 %v351
  %490 = vmatprep.subr.mxu0 0.0
  %491 = vmatpush1.msra.mxu0 %v352
  %492 = vmatprep.subr.mxu0 0.0
  %493 = vmatpush1.msra.mxu0 %v353
  %494 = vmatprep.subr.mxu0 0.0
  %495 = vmatpush1.msra.mxu0 %v354
  %496 = vmatprep.subr.mxu0 0.0
  %497 = vmatpush1.msra.mxu0 %v355
  %498 = vmatprep.subr.mxu0 0.0
  %499 = vmatpush1.msra.mxu0 %v356
  %500 = vmatprep.subr.mxu0 0.0
  %501 = vmatpush1.msra.mxu0 %v357
  %502 = vmatprep.subr.mxu0 0.0
  %503 = vmatpush1.msra.mxu0 %v358
  %504 = vmatprep.subr.mxu0 0.0
  %505 = vmatpush1.msra.mxu0 %v359
  %506 = vmatprep.subr.mxu0 0.0
  %507 = vmatpush1.msra.mxu0 %v360
  %508 = vmatprep.subr.mxu0 0.0
  %509 = vmatpush1.msra.mxu0 %v361
  %510 = vmatprep.subr.mxu0 0.0
  %511 = vmatpush1.msra.mxu0 %v362
  %512 = vmatprep.subr.mxu0 0.0
  %513 = vmatpush1.msra.mxu0 %v363
  %514 = vmatprep.subr.mxu0 0.0
  %515 = vmatpush1.msra.mxu0 %v364
  %516 = vmatprep.subr.mxu0 0.0
  %517 = vmatpush1.msra.mxu0 %v365
  %518 = vmatprep.subr.mxu0 0.0
  %519 = vmatpush1.msra.mxu0 %v366
  %520 = vmatprep.subr.mxu0 0.0
  %521 = vmatpush1.msra.mxu0 %v367
  %522 = vmatprep.subr.mxu0 0.0
  %523 = vmatpush1.msra.mxu0 %v368
  %524 = vmatprep.subr.mxu0 0.0
  %525 = vmatpush1.msra.mxu0 %v369
  %526 = vmatprep.subr.mxu0 0.0
  %527 = vmatpush1.msra.mxu0 %v370
  %528 = vmatprep.subr.mxu0 0.0
  %529 = vmatpush1.msra.mxu0 %v371
  %530 = vmatprep.subr.mxu0 0.0
  %531 = vmatpush1.msra.mxu0 %v372
  %532 = vmatprep.subr.mxu0 0.0
  %533 = vmatpush1.msra.mxu0 %v373
  %534 = vmatprep.subr.mxu0 0.0
  %535 = vmatpush1.msra.mxu0 %v374
  %536 = vmatprep.subr.mxu0 0.0
  %537 = vmatpush1.msra.mxu0 %v375
  %538 = vmatprep.subr.mxu0 0.0
  %539 = vmatpush1.msra.mxu0 %v376
  %540 = vmatprep.subr.mxu0 0.0
  %541 = vmatpush1.msra.mxu0 %v377
  %542 = vmatprep.mubr.f32.mxu0 %v289
  %543 = vmatmul.mubr.f32.gmra.mrb[0].mxu0 %v288
  %v544 = vpop.f32.mrb[0].mxu0
  %v545 = vadd.f32 %v445, %v544
  %v546 = vpop.f32.mrb[0].mxu0
  %547 = vmatprep.mubr.f32.mxu0 %v293
  %548 = vmatmul.mubr.f32.gmra.mrb[0].mxu0 %v292
  %v549 = vpop.f32.mrb[0].mxu0
  %v550 = vadd.f32 %v450, %v549
  %v551 = vpop.f32.mrb[0].mxu0
  %552 = vmatprep.mubr.f32.mxu0 %v297
  %553 = vmatmul.mubr.f32.gmra.mrb[0].mxu0 %v296
  %v554 = vpop.f32.mrb[0].mxu0
  %v555 = vadd.f32 %v455, %v554
  %v556 = vpop.f32.mrb[0].mxu0
  %557 = vmatprep.mubr.f32.mxu0 %v301
  %558 = vmatmul.mubr.f32.gmra.mrb[0].mxu0 %v300
  %v559 = vpop.f32.mrb[0].mxu0
  %v560 = vadd.f32 %v460, %v559
  %v561 = vpop.f32.mrb[0].mxu0
  %562 = vmatprep.mubr.f32.mxu0 %v305
  %563 = vmatmul.mubr.f32.gmra.mrb[0].mxu0 %v304
  %v564 = vpop.f32.mrb[0].mxu0
  %v565 = vadd.f32 %v465, %v564
  %v566 = vpop.f32.mrb[0].mxu0
  %567 = vmatprep.mubr.f32.mxu0 %v309
  %568 = vmatmul.mubr.f32.gmra.mrb[0].mxu0 %v308
  %v569 = vpop.f32.mrb[0].mxu0
  %v570 = vadd.f32 %v470, %v569
  %v571 = vpop.f32.mrb[0].mxu0
  %572 = vmatprep.mubr.f32.mxu0 %v313
  %573 = vmatmul.mubr.f32.gmra.mrb[0].mxu0 %v312
  %v574 = vpop.f32.mrb[0].mxu0
  %v575 = vadd.f32 %v475, %v574
  %v576 = vpop.f32.mrb[0].mxu0
  %577 = vdwg.mxu0
  %v578 = vsub.f32 0.0, %v545
  %v579 = vsub.f32 0.0, %v550
  %v580 = vsub.f32 0.0, %v555
  %v581 = vsub.f32 0.0, %v560
  %v582 = vsub.f32 0.0, %v565
  %v583 = vsub.f32 0.0, %v570
  %v584 = vsub.f32 0.0, %v575
  %v585 = vmul.f32 %v578, 1.442695
  %v586 = vpow.pop %v585
  %v587 = vmul.f32 %v579, 1.442695
  %v588 = vpow.pop %v587
  %v589 = vmul.f32 %v580, 1.442695
  %v590 = vpow.pop %v589
  %v591 = vmul.f32 %v581, 1.442695
  %v592 = vpow.pop %v591
  %v593 = vmul.f32 %v582, 1.442695
  %v594 = vpow.pop %v593
  %v595 = vmul.f32 %v583, 1.442695
  %v596 = vpow.pop %v595
  %v597 = vmul.f32 %v584, 1.442695
  %v598 = vpow.pop %v597
  %v599 = vadd.f32 %v586, 1.0
  %v600 = vadd.f32 %v588, 1.0
  %v601 = vadd.f32 %v590, 1.0
  %v602 = vadd.f32 %v592, 1.0
  %v603 = vadd.f32 %v594, 1.0
  %v604 = vadd.f32 %v596, 1.0
  %v605 = vadd.f32 %v598, 1.0
  %v606 = vrcp.pop %v599
  %v607 = vmul.f32 16.0, %v606
  %v608 = vrcp.pop %v600
  %v609 = vmul.f32 16.0, %v608
  %v610 = vrcp.pop %v601
  %v611 = vmul.f32 16.0, %v610
  %v612 = vrcp.pop %v602
  %v613 = vmul.f32 16.0, %v612
  %v614 = vrcp.pop %v603
  %v615 = vmul.f32 16.0, %v614
  %v616 = vrcp.pop %v604
  %v617 = vmul.f32 16.0, %v616
  %v618 = vrcp.pop %v605
  %v619 = vmul.f32 16.0, %v618
  %vm620 = vcmask 31744
  %621 = vst.msk [vmem:[%s4] sm:$0xff] %vm620, %v607
  %622 = vst.msk [vmem:[%s4 + $0x8] sm:$0xff] %vm620, %v609
  %623 = vst.msk [vmem:[%s4 + $0x10] sm:$0xff] %vm620, %v611
  %624 = vst.msk [vmem:[%s4 + $0x18] sm:$0xff] %vm620, %v613
  %625 = vst.msk [vmem:[%s4 + $0x20] sm:$0xff] %vm620, %v615
  %626 = vst.msk [vmem:[%s4 + $0x28] sm:$0xff] %vm620, %v617
  %vm627 = vcmask 24576
  %628 = vst.msk [vmem:[%s4 + $0x30] sm:$0x1] %vm627, %v619
  // Predicated region
  $region18: #{swin_layer_forward.2} parent=0 // pred_check
    _
  $region19: #{swin_layer_forward.2} parent=0 // pred_check_branch
    %630 = sbr.rel (0) target = $region21
  $region20: #{swin_layer_forward.2} parent=0 // pred_region
    _
  $region21: #{swin_layer_forward.2} parent=0 // pred_fallthru
    _
  // Predicated region
  $region22: #{swin_layer_forward.2} parent=0 // pred_check
    _
  $region23: #{swin_layer_forward.2} parent=0 // pred_check_branch
    %632 = sbr.rel (0) target = $region25
  $region24: #{swin_layer_forward.2} parent=0 // pred_region
    _
  $region25: #{swin_layer_forward.2} parent=0 // pred_fallthru
    _

// kernel: swin_layer_forward.3
$region0: #{swin_layer_forward.3}
  #allocation0 [shape = 'u32[]', space=smem, size = 0x4, offset = 0x4, fixed_abs, tag = 'smem constant byte address 0x4 - core index']
  #allocation1 [shape = 'u32[144,128]{1,0:T(1,128)}', space=vmem, size = 0x12000, scoped, tag = 'internal scratch']
  %s0 = inlined_call_operand.vmem [shape: f32[8,16,32], index: 0, kind: input, shape index: {}]
  %s1 = inlined_call_operand.vmem [shape: f32[32,96], index: 1, kind: input, shape index: {}]
  %s2 = inlined_call_operand.vmem [shape: f32[1,96], index: 2, kind: input, shape index: {}]
  %s3 = inlined_call_operand.vmem [shape: f32[4,1,16], index: 3, kind: input, shape index: {}]
  %s4 = inlined_call_operand.vmem [shape: f32[4,16,16], index: 4, kind: input, shape index: {}]
  %s5 = inlined_call_operand.vmem [shape: f32[32,32], index: 5, kind: input, shape index: {}]
  %s6 = inlined_call_operand.vmem [shape: f32[1,32], index: 6, kind: input, shape index: {}]
  %s7 = inlined_call_operand.vmem [shape: f32[1,32], index: 7, kind: input, shape index: {}]
  %s8 = inlined_call_operand.vmem [shape: f32[1,32], index: 8, kind: input, shape index: {}]
  %s9 = inlined_call_operand.vmem [shape: f32[32,128], index: 9, kind: input, shape index: {}]
  %s10 = inlined_call_operand.vmem [shape: f32[1,128], index: 10, kind: input, shape index: {}]
  %s11 = inlined_call_operand.vmem [shape: f32[128,32], index: 11, kind: input, shape index: {}]
  %s12 = inlined_call_operand.vmem [shape: f32[1,32], index: 12, kind: input, shape index: {}]
  %s13 = inlined_call_operand.vmem [shape: f32[1,32], index: 13, kind: input, shape index: {}]
  %s14 = inlined_call_operand.vmem [shape: f32[1,32], index: 14, kind: input, shape index: {}]
  %s15 = inlined_call_operand.vmem [shape: f32[8,16,32], index: 15, kind: output, shape index: {}]
  %s16 = sld [smem:[#allocation0]]
  $region93: #{swin_layer_forward.3} parent=0
    _
  %s18 = ssub.s32 1, %s16
  %s19 = scalar_select 0, %s18, %s16
  loop: start=0, step=1, limit=4
  $region2: #{swin_layer_forward.3} parent=0 // loop_pre_header
    _
  $region3: #{swin_layer_forward.3} parent=0 // loop_header
    %s21 = sphi 0, %s25
    %p22 = scmp.ge.s32.totalorder %s21, 4
    %s31 = sphi 0, %s33
    %s34 = sphi 0, %s31
    %s35 = sphi 0, %s34
    %s51 = sphi 0, %s35
    %s55 = sphi 0, %s55
    %s57 = sphi 0, %s55
    %s58 = sphi 0, %s57
    %s72 = sphi 0, %s58
    %s76 = sphi 0, %s76
    %s78 = sphi 0, %s76
    %s79 = sphi 0, %s78
    %s93 = sphi 0, %s79
    %s97 = sphi 0, %s97
    %s99 = sphi 0, %s97
    %s100 = sphi 0, %s99
    %s114 = sphi 0, %s100
    %s118 = sphi 0, %s118
    %s120 = sphi 0, %s118
    %s121 = sphi 0, %s120
    %s135 = sphi 0, %s121
    %s139 = sphi 0, %s139
    %s141 = sphi 0, %s139
    %s142 = sphi 0, %s141
    %s156 = sphi 0, %s142
    %s160 = sphi 0, %s160
    %s162 = sphi 0, %s160
    %s163 = sphi 0, %s162
    %s177 = sphi 0, %s163
    %s181 = sphi 0, %s181
    %s183 = sphi 0, %s181
    %s184 = sphi 0, %s183
    %s198 = sphi 0, %s184
    %s202 = sphi 0, %s202
    %s204 = sphi 0, %s202
    %s205 = sphi 0, %s204
    %s219 = sphi 0, %s205
    %s223 = sphi 0, %s223
    %s225 = sphi 0, %s223
    %s226 = sphi 0, %s225
    %s240 = sphi 0, %s226
    %s244 = sphi 0, %s244
    %s246 = sphi 0, %s244
    %s247 = sphi 0, %s246
    %s261 = sphi 0, %s247
    %s265 = sphi 0, %s265
    %s267 = sphi 0, %s265
    %s268 = sphi 0, %s267
    %s282 = sphi 0, %s268
    %s286 = sphi 0, %s286
    %s288 = sphi 0, %s286
    %s289 = sphi 0, %s288
    %s303 = sphi 0, %s289
    %s307 = sphi 0, %s307
    %s309 = sphi 0, %s307
    %s310 = sphi 0, %s309
    %s324 = sphi 0, %s310
    %s328 = sphi 0, %s328
    %s330 = sphi 0, %s328
    %s331 = sphi 0, %s330
    %s345 = sphi 0, %s331
    %s351 = sphi 0, %s353
    %s354 = sphi 0, %s351
    %s355 = sphi 0, %s354
    %s371 = sphi 0, %s355
  $region4: #{swin_layer_forward.3} parent=0 // loop_header_branch
    %24 = sbr.rel (%p22) target = $region8
  $region5: #{swin_layer_forward.3} parent=0 // loop_body
    %s26 = ssub.s32 %s21, 1
    %s27 = ssub.s32 %s21, 2
    %s28 = sadd.s32 %s21, 1
    %s29 = ssub.s32 %s21, %s28
    %p30 = scmp.eq.s32.totalorder %s29, 0
    %s32 = sadd.s32 %s31, 1
    %s33 = scalar_select %p30, %s31, %s32
    %p36 = pneg %p30
    %p37 = scmp.eq.s32.totalorder %s21, 1
    %p38 = por %p36, %p37
    %p39 = scmp.ne.s32.totalorder %s31, %s34
    %p40 = scmp.eq.s32.totalorder %s21, 0
    %p41 = por %p39, %p40
    %p42 = scmp.ne.s32.totalorder %s31, %s34
    %p43 = scmp.eq.s32.totalorder %s26, 1
    %p44 = por %p42, %p43
    %p45 = scmp.ne.s32.totalorder %s34, %s35
    %p46 = scmp.eq.s32.totalorder %s26, 0
    %p47 = por %p45, %p46
    %p48 = scmp.ne.s32.totalorder %s34, %s35
    %p49 = scmp.eq.s32.totalorder %s27, 1
    %p50 = por %p48, %p49
    %p52 = scmp.ne.s32.totalorder %s35, %s51
    %p53 = scmp.eq.s32.totalorder %s27, 0
    %p54 = por %p52, %p53
    %s56 = sadd.s32 %s55, 1
    %p59 = scmp.eq.s32.totalorder %s21, 1
    %p60 = scmp.ne.s32.totalorder %s55, %s57
    %p61 = scmp.eq.s32.totalorder %s21, 0
    %p62 = por %p60, %p61
    %p63 = scmp.ne.s32.totalorder %s55, %s57
    %p64 = scmp.eq.s32.totalorder %s26, 1
    %p65 = por %p63, %p64
    %p66 = scmp.ne.s32.totalorder %s57, %s58
    %p67 = scmp.eq.s32.totalorder %s26, 0
    %p68 = por %p66, %p67
    %p69 = scmp.ne.s32.totalorder %s57, %s58
    %p70 = scmp.eq.s32.totalorder %s27, 1
    %p71 = por %p69, %p70
    %p73 = scmp.ne.s32.totalorder %s58, %s72
    %p74 = scmp.eq.s32.totalorder %s27, 0
    %p75 = por %p73, %p74
    %s77 = sadd.s32 %s76, 1
    %p80 = scmp.eq.s32.totalorder %s21, 1
    %p81 = scmp.ne.s32.totalorder %s76, %s78
    %p82 = scmp.eq.s32.totalorder %s21, 0
    %p83 = por %p81, %p82
    %p84 = scmp.ne.s32.totalorder %s76, %s78
    %p85 = scmp.eq.s32.totalorder %s26, 1
    %p86 = por %p84, %p85
    %p87 = scmp.ne.s32.totalorder %s78, %s79
    %p88 = scmp.eq.s32.totalorder %s26, 0
    %p89 = por %p87, %p88
    %p90 = scmp.ne.s32.totalorder %s78, %s79
    %p91 = scmp.eq.s32.totalorder %s27, 1
    %p92 = por %p90, %p91
    %p94 = scmp.ne.s32.totalorder %s79, %s93
    %p95 = scmp.eq.s32.totalorder %s27, 0
    %p96 = por %p94, %p95
    %s98 = sadd.s32 %s97, 1
    %p101 = scmp.eq.s32.totalorder %s21, 1
    %p102 = scmp.ne.s32.totalorder %s97, %s99
    %p103 = scmp.eq.s32.totalorder %s21, 0
    %p104 = por %p102, %p103
    %p105 = scmp.ne.s32.totalorder %s97, %s99
    %p106 = scmp.eq.s32.totalorder %s26, 1
    %p107 = por %p105, %p106
    %p108 = scmp.ne.s32.totalorder %s99, %s100
    %p109 = scmp.eq.s32.totalorder %s26, 0
    %p110 = por %p108, %p109
    %p111 = scmp.ne.s32.totalorder %s99, %s100
    %p112 = scmp.eq.s32.totalorder %s27, 1
    %p113 = por %p111, %p112
    %p115 = scmp.ne.s32.totalorder %s100, %s114
    %p116 = scmp.eq.s32.totalorder %s27, 0
    %p117 = por %p115, %p116
    %s119 = sadd.s32 %s118, 1
    %p122 = scmp.eq.s32.totalorder %s21, 1
    %p123 = scmp.ne.s32.totalorder %s118, %s120
    %p124 = scmp.eq.s32.totalorder %s21, 0
    %p125 = por %p123, %p124
    %p126 = scmp.ne.s32.totalorder %s118, %s120
    %p127 = scmp.eq.s32.totalorder %s26, 1
    %p128 = por %p126, %p127
    %p129 = scmp.ne.s32.totalorder %s120, %s121
    %p130 = scmp.eq.s32.totalorder %s26, 0
    %p131 = por %p129, %p130
    %p132 = scmp.ne.s32.totalorder %s120, %s121
    %p133 = scmp.eq.s32.totalorder %s27, 1
    %p134 = por %p132, %p133
    %p136 = scmp.ne.s32.totalorder %s121, %s135
    %p137 = scmp.eq.s32.totalorder %s27, 0
    %p138 = por %p136, %p137
    %s140 = sadd.s32 %s139, 1
    %p143 = scmp.eq.s32.totalorder %s21, 1
    %p144 = scmp.ne.s32.totalorder %s139, %s141
    %p145 = scmp.eq.s32.totalorder %s21, 0
    %p146 = por %p144, %p145
    %p147 = scmp.ne.s32.totalorder %s139, %s141
    %p148 = scmp.eq.s32.totalorder %s26, 1
    %p149 = por %p147, %p148
    %p150 = scmp.ne.s32.totalorder %s141, %s142
    %p151 = scmp.eq.s32.totalorder %s26, 0
    %p152 = por %p150, %p151
    %p153 = scmp.ne.s32.totalorder %s141, %s142
    %p154 = scmp.eq.s32.totalorder %s27, 1
    %p155 = por %p153, %p154
    %p157 = scmp.ne.s32.totalorder %s142, %s156
    %p158 = scmp.eq.s32.totalorder %s27, 0
    %p159 = por %p157, %p158
    %s161 = sadd.s32 %s160, 1
    %p164 = scmp.eq.s32.totalorder %s21, 1
    %p165 = scmp.ne.s32.totalorder %s160, %s162
    %p166 = scmp.eq.s32.totalorder %s21, 0
    %p167 = por %p165, %p166
    %p168 = scmp.ne.s32.totalorder %s160, %s162
    %p169 = scmp.eq.s32.totalorder %s26, 1
    %p170 = por %p168, %p169
    %p171 = scmp.ne.s32.totalorder %s162, %s163
    %p172 = scmp.eq.s32.totalorder %s26, 0
    %p173 = por %p171, %p172
    %p174 = scmp.ne.s32.totalorder %s162, %s163
    %p175 = scmp.eq.s32.totalorder %s27, 1
    %p176 = por %p174, %p175
    %p178 = scmp.ne.s32.totalorder %s163, %s177
    %p179 = scmp.eq.s32.totalorder %s27, 0
    %p180 = por %p178, %p179
    %s182 = sadd.s32 %s181, 1
    %p185 = scmp.eq.s32.totalorder %s21, 1
    %p186 = scmp.ne.s32.totalorder %s181, %s183
    %p187 = scmp.eq.s32.totalorder %s21, 0
    %p188 = por %p186, %p187
    %p189 = scmp.ne.s32.totalorder %s181, %s183
    %p190 = scmp.eq.s32.totalorder %s26, 1
    %p191 = por %p189, %p190
    %p192 = scmp.ne.s32.totalorder %s183, %s184
    %p193 = scmp.eq.s32.totalorder %s26, 0
    %p194 = por %p192, %p193
    %p195 = scmp.ne.s32.totalorder %s183, %s184
    %p196 = scmp.eq.s32.totalorder %s27, 1
    %p197 = por %p195, %p196
    %p199 = scmp.ne.s32.totalorder %s184, %s198
    %p200 = scmp.eq.s32.totalorder %s27, 0
    %p201 = por %p199, %p200
    %s203 = sadd.s32 %s202, 1
    %p206 = scmp.eq.s32.totalorder %s21, 1
    %p207 = scmp.ne.s32.totalorder %s202, %s204
    %p208 = scmp.eq.s32.totalorder %s21, 0
    %p209 = por %p207, %p208
    %p210 = scmp.ne.s32.totalorder %s202, %s204
    %p211 = scmp.eq.s32.totalorder %s26, 1
    %p212 = por %p210, %p211
    %p213 = scmp.ne.s32.totalorder %s204, %s205
    %p214 = scmp.eq.s32.totalorder %s26, 0
    %p215 = por %p213, %p214
    %p216 = scmp.ne.s32.totalorder %s204, %s205
    %p217 = scmp.eq.s32.totalorder %s27, 1
    %p218 = por %p216, %p217
    %p220 = scmp.ne.s32.totalorder %s205, %s219
    %p221 = scmp.eq.s32.totalorder %s27, 0
    %p222 = por %p220, %p221
    %s224 = sadd.s32 %s223, 1
    %p227 = scmp.eq.s32.totalorder %s21, 1
    %p228 = scmp.ne.s32.totalorder %s223, %s225
    %p229 = scmp.eq.s32.totalorder %s21, 0
    %p230 = por %p228, %p229
    %p231 = scmp.ne.s32.totalorder %s223, %s225
    %p232 = scmp.eq.s32.totalorder %s26, 1
    %p233 = por %p231, %p232
    %p234 = scmp.ne.s32.totalorder %s225, %s226
    %p235 = scmp.eq.s32.totalorder %s26, 0
    %p236 = por %p234, %p235
    %p237 = scmp.ne.s32.totalorder %s225, %s226
    %p238 = scmp.eq.s32.totalorder %s27, 1
    %p239 = por %p237, %p238
    %p241 = scmp.ne.s32.totalorder %s226, %s240
    %p242 = scmp.eq.s32.totalorder %s27, 0
    %p243 = por %p241, %p242
    %s245 = sadd.s32 %s244, 1
    %p248 = scmp.eq.s32.totalorder %s21, 1
    %p249 = scmp.ne.s32.totalorder %s244, %s246
    %p250 = scmp.eq.s32.totalorder %s21, 0
    %p251 = por %p249, %p250
    %p252 = scmp.ne.s32.totalorder %s244, %s246
    %p253 = scmp.eq.s32.totalorder %s26, 1
    %p254 = por %p252, %p253
    %p255 = scmp.ne.s32.totalorder %s246, %s247
    %p256 = scmp.eq.s32.totalorder %s26, 0
    %p257 = por %p255, %p256
    %p258 = scmp.ne.s32.totalorder %s246, %s247
    %p259 = scmp.eq.s32.totalorder %s27, 1
    %p260 = por %p258, %p259
    %p262 = scmp.ne.s32.totalorder %s247, %s261
    %p263 = scmp.eq.s32.totalorder %s27, 0
    %p264 = por %p262, %p263
    %s266 = sadd.s32 %s265, 1
    %p269 = scmp.eq.s32.totalorder %s21, 1
    %p270 = scmp.ne.s32.totalorder %s265, %s267
    %p271 = scmp.eq.s32.totalorder %s21, 0
    %p272 = por %p270, %p271
    %p273 = scmp.ne.s32.totalorder %s265, %s267
    %p274 = scmp.eq.s32.totalorder %s26, 1
    %p275 = por %p273, %p274
    %p276 = scmp.ne.s32.totalorder %s267, %s268
    %p277 = scmp.eq.s32.totalorder %s26, 0
    %p278 = por %p276, %p277
    %p279 = scmp.ne.s32.totalorder %s267, %s268
    %p280 = scmp.eq.s32.totalorder %s27, 1
    %p281 = por %p279, %p280
    %p283 = scmp.ne.s32.totalorder %s268, %s282
    %p284 = scmp.eq.s32.totalorder %s27, 0
    %p285 = por %p283, %p284
    %s287 = sadd.s32 %s286, 1
    %p290 = scmp.eq.s32.totalorder %s21, 1
    %p291 = scmp.ne.s32.totalorder %s286, %s288
    %p292 = scmp.eq.s32.totalorder %s21, 0
    %p293 = por %p291, %p292
    %p294 = scmp.ne.s32.totalorder %s286, %s288
    %p295 = scmp.eq.s32.totalorder %s26, 1
    %p296 = por %p294, %p295
    %p297 = scmp.ne.s32.totalorder %s288, %s289
    %p298 = scmp.eq.s32.totalorder %s26, 0
    %p299 = por %p297, %p298
    %p300 = scmp.ne.s32.totalorder %s288, %s289
    %p301 = scmp.eq.s32.totalorder %s27, 1
    %p302 = por %p300, %p301
    %p304 = scmp.ne.s32.totalorder %s289, %s303
    %p305 = scmp.eq.s32.totalorder %s27, 0
    %p306 = por %p304, %p305
    %s308 = sadd.s32 %s307, 1
    %p311 = scmp.eq.s32.totalorder %s21, 1
    %p312 = scmp.ne.s32.totalorder %s307, %s309
    %p313 = scmp.eq.s32.totalorder %s21, 0
    %p314 = por %p312, %p313
    %p315 = scmp.ne.s32.totalorder %s307, %s309
    %p316 = scmp.eq.s32.totalorder %s26, 1
    %p317 = por %p315, %p316
    %p318 = scmp.ne.s32.totalorder %s309, %s310
    %p319 = scmp.eq.s32.totalorder %s26, 0
    %p320 = por %p318, %p319
    %p321 = scmp.ne.s32.totalorder %s309, %s310
    %p322 = scmp.eq.s32.totalorder %s27, 1
    %p323 = por %p321, %p322
    %p325 = scmp.ne.s32.totalorder %s310, %s324
    %p326 = scmp.eq.s32.totalorder %s27, 0
    %p327 = por %p325, %p326
    %s329 = sadd.s32 %s328, 1
    %p332 = scmp.eq.s32.totalorder %s21, 1
    %p333 = scmp.ne.s32.totalorder %s328, %s330
    %p334 = scmp.eq.s32.totalorder %s21, 0
    %p335 = por %p333, %p334
    %p336 = scmp.ne.s32.totalorder %s328, %s330
    %p337 = scmp.eq.s32.totalorder %s26, 1
    %p338 = por %p336, %p337
    %p339 = scmp.ne.s32.totalorder %s330, %s331
    %p340 = scmp.eq.s32.totalorder %s26, 0
    %p341 = por %p339, %p340
    %p342 = scmp.ne.s32.totalorder %s330, %s331
    %p343 = scmp.eq.s32.totalorder %s27, 1
    %p344 = por %p342, %p343
    %p346 = scmp.ne.s32.totalorder %s331, %s345
    %p347 = scmp.eq.s32.totalorder %s27, 0
    %p348 = por %p346, %p347
    %s349 = ssub.s32 %s21, %s28
    %p350 = scmp.eq.s32.totalorder %s349, 0
    %s352 = sadd.s32 %s351, 1
    %s353 = scalar_select %p350, %s351, %s352
    %p356 = pneg %p350
    %p357 = scmp.eq.s32.totalorder %s21, 1
    %p358 = por %p356, %p357
    %p359 = scmp.ne.s32.totalorder %s351, %s354
    %p360 = scmp.eq.s32.totalorder %s21, 0
    %p361 = por %p359, %p360
    %p362 = scmp.ne.s32.totalorder %s351, %s354
    %p363 = scmp.eq.s32.totalorder %s26, 1
    %p364 = por %p362, %p363
    %p365 = scmp.ne.s32.totalorder %s354, %s355
    %p366 = scmp.eq.s32.totalorder %s26, 0
    %p367 = por %p365, %p366
    %p368 = scmp.ne.s32.totalorder %s354, %s355
    %p369 = scmp.eq.s32.totalorder %s27, 1
    %p370 = por %p368, %p369
    %p372 = scmp.ne.s32.totalorder %s355, %s371
    %p373 = scmp.eq.s32.totalorder %s27, 0
    %p374 = por %p372, %p373
    %p375 = scmp.le.s32.totalorder 1, %s21
    %p376 = scmp.lt.s32.totalorder %s21, 3
    %p377 = pnand %p375, %p376
    %p378 = pneg %p377
    // Predicated region
    $region9: #{swin_layer_forward.3} parent=5 // pred_check
      _
    $region10: #{swin_layer_forward.3} parent=5 // pred_check_branch
      %380 = sbr.rel (%p377) target = $region12
    $region11: #{swin_layer_forward.3} parent=5 // pred_region
      %s381 = ssub.s32 %s21, 1
      // Predicated region
      $region13: #{swin_layer_forward.3} parent=11 // pred_check
        %p382 = pneg %p68
      $region14: #{swin_layer_forward.3} parent=11 // pred_check_branch
        %384 = sbr.rel (%p382) target = $region16
      $region15: #{swin_layer_forward.3} parent=11 // pred_region
        _
      $region16: #{swin_layer_forward.3} parent=11 // pred_fallthru
        _
      // Predicated region
      $region17: #{swin_layer_forward.3} parent=11 // pred_check
        %p385 = pneg %p89
      $region18: #{swin_layer_forward.3} parent=11 // pred_check_branch
        %387 = sbr.rel (%p385) target = $region20
      $region19: #{swin_layer_forward.3} parent=11 // pred_region
        _
      $region20: #{swin_layer_forward.3} parent=11 // pred_fallthru
        _
      // Predicated region
      $region21: #{swin_layer_forward.3} parent=11 // pred_check
        %p388 = pneg %p110
      $region22: #{swin_layer_forward.3} parent=11 // pred_check_branch
        %390 = sbr.rel (%p388) target = $region24
      $region23: #{swin_layer_forward.3} parent=11 // pred_region
        _
      $region24: #{swin_layer_forward.3} parent=11 // pred_fallthru
        _
      // Predicated region
      $region25: #{swin_layer_forward.3} parent=11 // pred_check
        %p391 = pneg %p131
      $region26: #{swin_layer_forward.3} parent=11 // pred_check_branch
        %393 = sbr.rel (%p391) target = $region28
      $region27: #{swin_layer_forward.3} parent=11 // pred_region
        _
      $region28: #{swin_layer_forward.3} parent=11 // pred_fallthru
        _
      // Predicated region
      $region29: #{swin_layer_forward.3} parent=11 // pred_check
        %p394 = pneg %p152
      $region30: #{swin_layer_forward.3} parent=11 // pred_check_branch
        %396 = sbr.rel (%p394) target = $region32
      $region31: #{swin_layer_forward.3} parent=11 // pred_region
        _
      $region32: #{swin_layer_forward.3} parent=11 // pred_fallthru
        _
      // Predicated region
      $region33: #{swin_layer_forward.3} parent=11 // pred_check
        %p397 = pneg %p173
      $region34: #{swin_layer_forward.3} parent=11 // pred_check_branch
        %399 = sbr.rel (%p397) target = $region36
      $region35: #{swin_layer_forward.3} parent=11 // pred_region
        _
      $region36: #{swin_layer_forward.3} parent=11 // pred_fallthru
        _
      // Predicated region
      $region37: #{swin_layer_forward.3} parent=11 // pred_check
        %p400 = pneg %p194
      $region38: #{swin_layer_forward.3} parent=11 // pred_check_branch
        %402 = sbr.rel (%p400) target = $region40
      $region39: #{swin_layer_forward.3} parent=11 // pred_region
        _
      $region40: #{swin_layer_forward.3} parent=11 // pred_fallthru
        _
      // Predicated region
      $region41: #{swin_layer_forward.3} parent=11 // pred_check
        %p403 = pneg %p215
      $region42: #{swin_layer_forward.3} parent=11 // pred_check_branch
        %405 = sbr.rel (%p403) target = $region44
      $region43: #{swin_layer_forward.3} parent=11 // pred_region
        _
      $region44: #{swin_layer_forward.3} parent=11 // pred_fallthru
        _
      // Predicated region
      $region45: #{swin_layer_forward.3} parent=11 // pred_check
        %p406 = pneg %p236
      $region46: #{swin_layer_forward.3} parent=11 // pred_check_branch
        %408 = sbr.rel (%p406) target = $region48
      $region47: #{swin_layer_forward.3} parent=11 // pred_region
        _
      $region48: #{swin_layer_forward.3} parent=11 // pred_fallthru
        _
      // Predicated region
      $region49: #{swin_layer_forward.3} parent=11 // pred_check
        %p409 = pneg %p257
      $region50: #{swin_layer_forward.3} parent=11 // pred_check_branch
        %411 = sbr.rel (%p409) target = $region52
      $region51: #{swin_layer_forward.3} parent=11 // pred_region
        _
      $region52: #{swin_layer_forward.3} parent=11 // pred_fallthru
        _
      // Predicated region
      $region53: #{swin_layer_forward.3} parent=11 // pred_check
        %p412 = pneg %p278
      $region54: #{swin_layer_forward.3} parent=11 // pred_check_branch
        %414 = sbr.rel (%p412) target = $region56
      $region55: #{swin_layer_forward.3} parent=11 // pred_region
        _
      $region56: #{swin_layer_forward.3} parent=11 // pred_fallthru
        _
      // Predicated region
      $region57: #{swin_layer_forward.3} parent=11 // pred_check
        %p415 = pneg %p299
      $region58: #{swin_layer_forward.3} parent=11 // pred_check_branch
        %417 = sbr.rel (%p415) target = $region60
      $region59: #{swin_layer_forward.3} parent=11 // pred_region
        _
      $region60: #{swin_layer_forward.3} parent=11 // pred_fallthru
        _
      // Predicated region
      $region61: #{swin_layer_forward.3} parent=11 // pred_check
        %p418 = pneg %p320
      $region62: #{swin_layer_forward.3} parent=11 // pred_check_branch
        %420 = sbr.rel (%p418) target = $region64
      $region63: #{swin_layer_forward.3} parent=11 // pred_region
        _
      $region64: #{swin_layer_forward.3} parent=11 // pred_fallthru
        _
      // Predicated region
      $region65: #{swin_layer_forward.3} parent=11 // pred_check
        %p421 = pneg %p341
      $region66: #{swin_layer_forward.3} parent=11 // pred_check_branch
        %423 = sbr.rel (%p421) target = $region68
      $region67: #{swin_layer_forward.3} parent=11 // pred_region
        _
      $region68: #{swin_layer_forward.3} parent=11 // pred_fallthru
        _
    $region12: #{swin_layer_forward.3} parent=5 // pred_fallthru
      _
    %p424 = scmp.lt.s32.totalorder %s21, 2
    // Predicated region
    $region69: #{swin_layer_forward.3} parent=5 // pred_check
      %p425 = pneg %p424
    $region70: #{swin_layer_forward.3} parent=5 // pred_check_branch
      %427 = sbr.rel (%p425) target = $region72
    $region71: #{swin_layer_forward.3} parent=5 // pred_region
      // Predicated region
      $region73: #{swin_layer_forward.3} parent=71 // pred_check
        %p428 = pneg %p41
      $region74: #{swin_layer_forward.3} parent=71 // pred_check_branch
        %430 = sbr.rel (%p428) target = $region76
      $region75: #{swin_layer_forward.3} parent=71 // pred_region
        %s431 = smul.u32 4, %s21
        %p432 = scmp.lt.s32.totalorder %s431, 7
        %s433 = scalar_select %p432, %s431, 7
        %s434 = smul.addr %s433, 2
        %s435 = smul.addr %s434, 8
        %s436 = scalar_lea.vmem %s0, %s435
        %s437 = smul.u32 4, %s21
      $region76: #{swin_layer_forward.3} parent=71 // pred_fallthru
        _
    $region72: #{swin_layer_forward.3} parent=5 // pred_fallthru
      _
    %p438 = scmp.le.s32.totalorder 1, %s21
    %p439 = scmp.lt.s32.totalorder %s21, 3
    %p440 = pnand %p438, %p439
    %p441 = pneg %p440
    // Predicated region
    $region77: #{swin_layer_forward.3} parent=5 // pred_check
      _
    $region78: #{swin_layer_forward.3} parent=5 // pred_check_branch
      %443 = sbr.rel (%p440) target = $region80
    $region79: #{swin_layer_forward.3} parent=5 // pred_region
      %s444 = ssub.s32 %s21, 1
      %s445 = smul.u32 4, %s26
      %p446 = scmp.lt.s32.totalorder %s445, 7
      %s447 = scalar_select %p446, %s445, 7
      %s448 = smul.addr %s447, 2
      %s449 = smul.addr %s448, 8
      %s450 = scalar_lea.vmem %s0, %s449
      %p451 = pneg %p47
      %p452 = pneg %p44
      %p453 = pneg %p68
      %p454 = pneg %p65
      %p455 = pneg %p89
      %p456 = pneg %p86
      %p457 = pneg %p110
      %p458 = pneg %p107
      %p459 = pneg %p131
      %p460 = pneg %p128
      %p461 = pneg %p152
      %p462 = pneg %p149
      %p463 = pneg %p173
      %p464 = pneg %p170
      %p465 = pneg %p194
      %p466 = pneg %p191
      %p467 = pneg %p215
      %p468 = pneg %p212
      %p469 = pneg %p236
      %p470 = pneg %p233
      %p471 = pneg %p257
      %p472 = pneg %p254
      %p473 = pneg %p278
      %p474 = pneg %p275
      %p475 = pneg %p299
      %p476 = pneg %p296
      %p477 = pneg %p320
      %p478 = pneg %p317
      %p479 = pneg %p341
      %p480 = pneg %p338
      %p481 = pneg %p367
      %p482 = pneg %p364
      %s483 = smul.u32 4, %s26
      %p484 = scmp.lt.s32.totalorder %s483, 7
      %s485 = scalar_select %p484, %s483, 7
      %s486 = smul.addr %s485, 2
      %s487 = smul.addr %s486, 8
      %s488 = scalar_lea.vmem %s15, %s487
      %s489 = smul.u32 4, %s26
      %p490 = scmp.lt.s32.totalorder %s489, 7
      %s491 = scalar_select %p490, %s489, 7
      %s492 = smul.addr %s491, 2
      %s493 = smul.addr %s492, 8
      %s494 = scalar_lea.vmem %s0, %s493
      %s495 = smul.u32 4, %s26
      %s496 = smul.u32 4, %s26
      %p497 = scmp.lt.s32.totalorder %s496, 7
      %s498 = scalar_select %p497, %s496, 7
      %s499 = smul.addr %s498, 2
      %s500 = smul.addr %s499, 8
      %s501 = scalar_lea.vmem %s15, %s500
      %s502 = smul.u32 4, %s26
      %v503 = vld [vmem:[%s494] sm:$0xff]
      %v504 = vld [vmem:[%s494 + $0x8] sm:$0xff]
      %v505 = vld [vmem:[%s494 + $0x10] sm:$0xff]
      %v506 = vld [vmem:[%s494 + $0x18] sm:$0xff]
      %v507 = vld [vmem:[%s494 + $0x20] sm:$0xff]
      %v508 = vld [vmem:[%s494 + $0x28] sm:$0xff]
      %v509 = vld [vmem:[%s494 + $0x30] sm:$0xff]
      %v510 = vld [vmem:[%s494 + $0x38] sm:$0xff]
      %v511 = vld [vmem:[%s1] sm:$0xff]
      %v512 = vld [vmem:[%s1 + $0x8] sm:$0xff]
      %v513 = vld [vmem:[%s1 + $0x10] sm:$0xff]
      %v514 = vld [vmem:[%s1 + $0x18] sm:$0xff]
      %v515 = vld [vmem:[%s2] sm:$0x1]
      %v517 = vlaneseq
      %v518 = vshrl.u32 %v517, 7
      %v519 = vsub.s32 0, %v518
      %v520 = vrot.slane %v515, %v519
      %vm522 = vcmask 261120
      %v524 = vsel %vm522, %v503, 0
      %v527 = vsel %vm522, %v504, 0
      %v530 = vsel %vm522, %v505, 0
      %v533 = vsel %vm522, %v506, 0
      %v536 = vsel %vm522, %v507, 0
      %v539 = vsel %vm522, %v508, 0
      %v542 = vsel %vm522, %v509, 0
      %v545 = vsel %vm522, %v510, 0
      %547 = vmatprep.subr.mxu0 0.0
      %548 = vmatpush1.msra.mxu0 %v511
      %549 = vmatprep.subr.mxu0 0.0
      %550 = vmatpush1.msra.mxu0 %v512
      %551 = vmatprep.subr.mxu0 0.0
      %552 = vmatpush1.msra.mxu0 %v513
      %553 = vmatprep.subr.mxu0 0.0
      %554 = vmatpush1.msra.mxu0 %v514
      %555 = vmatprep.subr.mxu0 0.0
      %556 = vmatpush1.msra.mxu0 0.0
      %557 = vmatprep.subr.mxu0 0.0
      %558 = vmatpush1.msra.mxu0 0.0
      %559 = vmatprep.subr.mxu0 0.0
      %560 = vmatpush1.msra.mxu0 0.0
      %561 = vmatprep.subr.mxu0 0.0
      %562 = vmatpush1.msra.mxu0 0.0
      %563 = vmatprep.subr.mxu0 0.0
      %564 = vmatpush1.msra.mxu0 0.0
      %565 = vmatprep.subr.mxu0 0.0
      %566 = vmatpush1.msra.mxu0 0.0
      %567 = vmatprep.subr.mxu0 0.0
      %568 = vmatpush1.msra.mxu0 0.0
      %569 = vmatprep.subr.mxu0 0.0
      %570 = vmatpush1.msra.mxu0 0.0
      %571 = vmatprep.subr.mxu0 0.0
      %572 = vmatpush1.msra.mxu0 0.0
      %573 = vmatprep.subr.mxu0 0.0
      %574 = vmatpush1.msra.mxu0 0.0
      %575 = vmatprep.subr.mxu0 0.0
      %576 = vmatpush1.msra.mxu0 0.0
      %577 = vmatprep.subr.mxu0 0.0
      %578 = vmatpush1.msra.mxu0 0.0
      %579 = vmatprep.subr.mxu0 0.0
      %580 = vmatpush1.msra.mxu0 0.0
      %581 = vmatprep.subr.mxu0 0.0
      %582 = vmatpush1.msra.mxu0 0.0
      %583 = vmatprep.subr.mxu0 0.0
      %584 = vmatpush1.msra.mxu0 0.0
      %585 = vmatprep.subr.mxu0 0.0
      %586 = vmatpush1.msra.mxu0 0.0
      %587 = vmatprep.subr.mxu0 0.0
      %588 = vmatpush1.msra.mxu0 0.0
      %589 = vmatprep.subr.mxu0 0.0
      %590 = vmatpush1.msra.mxu0 0.0
      %591 = vmatprep.subr.mxu0 0.0
      %592 = vmatpush1.msra.mxu0 0.0
      %593 = vmatprep.subr.mxu0 0.0
      %594 = vmatpush1.msra.mxu0 0.0
      %595 = vmatprep.subr.mxu0 0.0
      %596 = vmatpush1.msra.mxu0 0.0
      %597 = vmatprep.subr.mxu0 0.0
      %598 = vmatpush1.msra.mxu0 0.0
      %599 = vmatprep.subr.mxu0 0.0
      %600 = vmatpush1.msra.mxu0 0.0
      %601 = vmatprep.subr.mxu0 0.0
      %602 = vmatpush1.msra.mxu0 0.0
      %603 = vmatprep.subr.mxu0 0.0
      %604 = vmatpush1.msra.mxu0 0.0
      %605 = vmatprep.subr.mxu0 0.0
      %606 = vmatpush1.msra.mxu0 0.0
      %607 = vmatprep.subr.mxu0 0.0
      %608 = vmatpush1.msra.mxu0 0.0
      %609 = vmatprep.subr.mxu0 0.0
      %610 = vmatpush1.msra.mxu0 0.0
      %611 = vmatprep.mubr.f32.mxu0 0.0
      %612 = vmatmul.mubr.f32.gmra.mrb[0].mxu0 %v524
      %v613 = vpop.f32.mrb[0].mxu0
      %v614 = vadd.f32 %v520, %v613
      %v615 = vpop.f32.mrb[0].mxu0
      %616 = vmatprep.mubr.f32.mxu0 0.0
      %617 = vmatmul.mubr.f32.gmra.mrb[0].mxu0 %v527
      %v618 = vpop.f32.mrb[0].mxu0
      %v619 = vadd.f32 %v520, %v618
      %v620 = vpop.f32.mrb[0].mxu0
      %621 = vmatprep.mubr.f32.mxu0 0.0
      %622 = vmatmul.mubr.f32.gmra.mrb[0].mxu0 %v530
      %v623 = vpop.f32.mrb[0].mxu0
      %v624 = vadd.f32 %v520, %v623
      %v625 = vpop.f32.mrb[0].mxu0
      %626 = vmatprep.mubr.f32.mxu0 0.0
      %627 = vmatmul.mubr.f32.gmra.mrb[0].mxu0 %v533
      %v628 = vpop.f32.mrb[0].mxu0
      %v629 = vadd.f32 %v520, %v628
      %v630 = vpop.f32.mrb[0].mxu0
      %631 = vmatprep.mubr.f32.mxu0 0.0
      %632 = vmatmul.mubr.f32.gmra.mrb[0].mxu0 %v536
      %v633 = vpop.f32.mrb[0].mxu0
      %v634 = vadd.f32 %v520, %v633
      %v635 = vpop.f32.mrb[0].mxu0
      %636 = vmatprep.mubr.f32.mxu0 0.0
      %637 = vmatmul.mubr.f32.gmra.mrb[0].mxu0 %v539
      %v638 = vpop.f32.mrb[0].mxu0
      %v639 = vadd.f32 %v520, %v638
      %v640 = vpop.f32.mrb[0].mxu0
      %641 = vmatprep.mubr.f32.mxu0 0.0
      %642 = vmatmul.mubr.f32.gmra.mrb[0].mxu0 %v542
      %v643 = vpop.f32.mrb[0].mxu0
      %v644 = vadd.f32 %v520, %v643
      %v645 = vpop.f32.mrb[0].mxu0
      %646 = vmatprep.mubr.f32.mxu0 0.0
      %647 = vmatmul.mubr.f32.gmra.mrb[0].mxu0 %v545
      %v648 = vpop.f32.mrb[0].mxu0
      %v649 = vadd.f32 %v520, %v648
      %v650 = vpop.f32.mrb[0].mxu0
      %651 = vdwg.mxu0
      %v652 = vmul.f32 %v614, %v614
      %v653 = vmul.f32 %v619, %v619
      %v654 = vmul.f32 %v624, %v624
      %v655 = vmul.f32 %v629, %v629
      %v656 = vmul.f32 %v634, %v634
      %v657 = vmul.f32 %v639, %v639
      %v658 = vmul.f32 %v644, %v644
      %v659 = vmul.f32 %v649, %v649
      %vm660 = vcmask 64512
      %v661 = vsel %vm660, %v652, 0.0
      %662 = vadd.xlane.f32.xlu0 %v661
      %v663 = vpop.xlane.xlu0 %662
      %v664 = vsel %vm660, %v653, 0.0
      %665 = vadd.xlane.f32.xlu0 %v664
      %v666 = vpop.xlane.xlu0 %665
      %v667 = vsel %vm660, %v654, 0.0
      %668 = vadd.xlane.f32.xlu0 %v667
      %v669 = vpop.xlane.xlu0 %668
      %v670 = vsel %vm660, %v655, 0.0
      %671 = vadd.xlane.f32.xlu0 %v670
      %v672 = vpop.xlane.xlu0 %671
      %v673 = vsel %vm660, %v656, 0.0
      %674 = vadd.xlane.f32.xlu0 %v673
      %v675 = vpop.xlane.xlu0 %674
      %v676 = vsel %vm660, %v657, 0.0
      %677 = vadd.xlane.f32.xlu0 %v676
      %v678 = vpop.xlane.xlu0 %677
      %v679 = vsel %vm660, %v658, 0.0
      %680 = vadd.xlane.f32.xlu0 %v679
      %v681 = vpop.xlane.xlu0 %680
      %v682 = vsel %vm660, %v659, 0.0
      %683 = vadd.xlane.f32.xlu0 %v682
      %v684 = vpop.xlane.xlu0 %683
      %v685 = vrsqrt.pop %v663
      %v686 = vmul.f32 %v663, %v685
      %vm687 = vcmp.eq.f32.partialorder %v663, inf
      %v688 = vsel %vm687, %v663, %v686
      %vm689 = vcmp.eq.f32.partialorder %v663, 0.0
      %v690 = vand.u32 %v663, 2147483648
      %v691 = vsel %vm689, %v690, %v688
      %v692 = vrsqrt.pop %v666
      %v693 = vmul.f32 %v666, %v692
      %vm694 = vcmp.eq.f32.partialorder %v666, inf
      %v695 = vsel %vm694, %v666, %v693
      %vm696 = vcmp.eq.f32.partialorder %v666, 0.0
      %v697 = vand.u32 %v666, 2147483648
      %v698 = vsel %vm696, %v697, %v695
      %v699 = vrsqrt.pop %v669
      %v700 = vmul.f32 %v669, %v699
      %vm701 = vcmp.eq.f32.partialorder %v669, inf
      %v702 = vsel %vm701, %v669, %v700
      %vm703 = vcmp.eq.f32.partialorder %v669, 0.0
      %v704 = vand.u32 %v669, 2147483648
      %v705 = vsel %vm703, %v704, %v702
      %v706 = vrsqrt.pop %v672
      %v707 = vmul.f32 %v672, %v706
      %vm708 = vcmp.eq.f32.partialorder %v672, inf
      %v709 = vsel %vm708, %v672, %v707
      %vm710 = vcmp.eq.f32.partialorder %v672, 0.0
      %v711 = vand.u32 %v672, 2147483648
      %v712 = vsel %vm710, %v711, %v709
      %v713 = vrsqrt.pop %v675
      %v714 = vmul.f32 %v675, %v713
      %vm715 = vcmp.eq.f32.partialorder %v675, inf
      %v716 = vsel %vm715, %v675, %v714
      %vm717 = vcmp.eq.f32.partialorder %v675, 0.0
      %v718 = vand.u32 %v675, 2147483648
      %v719 = vsel %vm717, %v718, %v716
      %v720 = vrsqrt.pop %v678
      %v721 = vmul.f32 %v678, %v720
      %vm722 = vcmp.eq.f32.partialorder %v678, inf
      %v723 = vsel %vm722, %v678, %v721
      %vm724 = vcmp.eq.f32.partialorder %v678, 0.0
      %v725 = vand.u32 %v678, 2147483648
      %v726 = vsel %vm724, %v725, %v723
      %v727 = vrsqrt.pop %v681
      %v728 = vmul.f32 %v681, %v727
      %vm729 = vcmp.eq.f32.partialorder %v681, inf
      %v730 = vsel %vm729, %v681, %v728
      %vm731 = vcmp.eq.f32.partialorder %v681, 0.0
      %v732 = vand.u32 %v681, 2147483648
      %v733 = vsel %vm731, %v732, %v730
      %v734 = vrsqrt.pop %v684
      %v735 = vmul.f32 %v684, %v734
      %vm736 = vcmp.eq.f32.partialorder %v684, inf
      %v737 = vsel %vm736, %v684, %v735
      %vm738 = vcmp.eq.f32.partialorder %v684, 0.0
      %v739 = vand.u32 %v684, 2147483648
      %v740 = vsel %vm738, %v739, %v737
      %v741 = vmax.f32 %v691, 1e-12
      %v742 = vmax.f32 %v698, 1e-12
      %v743 = vmax.f32 %v705, 1e-12
      %v744 = vmax.f32 %v712, 1e-12
      %v745 = vmax.f32 %v719, 1e-12
      %v746 = vmax.f32 %v726, 1e-12
      %v747 = vmax.f32 %v733, 1e-12
      %v748 = vmax.f32 %v740, 1e-12
      %v749 = vrcp.pop %v741
      %v750 = vmul.f32 %v614, %v749
      %v751 = vrcp.pop %v742
      %v752 = vmul.f32 %v619, %v751
      %v753 = vrcp.pop %v743
      %v754 = vmul.f32 %v624, %v753
      %v755 = vrcp.pop %v744
      %v756 = vmul.f32 %v629, %v755
      %v757 = vrcp.pop %v745
      %v758 = vmul.f32 %v634, %v757
      %v759 = vrcp.pop %v746
      %v760 = vmul.f32 %v639, %v759
      %v761 = vrcp.pop %v747
      %v762 = vmul.f32 %v644, %v761
      %v763 = vrcp.pop %v748
      %v764 = vmul.f32 %v649, %v763
      %773 = vrot.lane.b32.xlu0 %v652, 96
      %v774 = vpop.permute.xlu0 %773
      %775 = vrot.lane.b32.xlu0 %v653, 96
      %v776 = vpop.permute.xlu0 %775
      %777 = vrot.lane.b32.xlu0 %v654, 96
      %v778 = vpop.permute.xlu0 %777
      %779 = vrot.lane.b32.xlu0 %v655, 96
      %v780 = vpop.permute.xlu0 %779
      %781 = vrot.lane.b32.xlu0 %v656, 96
      %v782 = vpop.permute.xlu0 %781
      %783 = vrot.lane.b32.xlu0 %v657, 96
      %v784 = vpop.permute.xlu0 %783
      %785 = vrot.lane.b32.xlu0 %v658, 96
      %v786 = vpop.permute.xlu0 %785
      %787 = vrot.lane.b32.xlu0 %v659, 96
      %v788 = vpop.permute.xlu0 %787
      %v797 = vsel %vm660, %v774, 0.0
      %798 = vadd.xlane.f32.xlu0 %v797
      %v799 = vpop.xlane.xlu0 %798
      %v800 = vsel %vm660, %v776, 0.0
      %801 = vadd.xlane.f32.xlu0 %v800
      %v802 = vpop.xlane.xlu0 %801
      %v803 = vsel %vm660, %v778, 0.0
      %804 = vadd.xlane.f32.xlu0 %v803
      %v805 = vpop.xlane.xlu0 %804
      %v806 = vsel %vm660, %v780, 0.0
      %807 = vadd.xlane.f32.xlu0 %v806
      %v808 = vpop.xlane.xlu0 %807
      %v809 = vsel %vm660, %v782, 0.0
      %810 = vadd.xlane.f32.xlu0 %v809
      %v811 = vpop.xlane.xlu0 %810
      %v812 = vsel %vm660, %v784, 0.0
      %813 = vadd.xlane.f32.xlu0 %v812
      %v814 = vpop.xlane.xlu0 %813
      %v815 = vsel %vm660, %v786, 0.0
      %816 = vadd.xlane.f32.xlu0 %v815
      %v817 = vpop.xlane.xlu0 %816
      %v818 = vsel %vm660, %v788, 0.0
      %819 = vadd.xlane.f32.xlu0 %v818
      %v820 = vpop.xlane.xlu0 %819
      %v821 = vrsqrt.pop %v799
      %v822 = vmul.f32 %v799, %v821
      %vm823 = vcmp.eq.f32.partialorder %v799, inf
      %v824 = vsel %vm823, %v799, %v822
      %vm825 = vcmp.eq.f32.partialorder %v799, 0.0
      %v826 = vand.u32 %v799, 2147483648
      %v827 = vsel %vm825, %v826, %v824
      %v828 = vrsqrt.pop %v802
      %v829 = vmul.f32 %v802, %v828
      %vm830 = vcmp.eq.f32.partialorder %v802, inf
      %v831 = vsel %vm830, %v802, %v829
      %vm832 = vcmp.eq.f32.partialorder %v802, 0.0
      %v833 = vand.u32 %v802, 2147483648
      %v834 = vsel %vm832, %v833, %v831
      %v835 = vrsqrt.pop %v805
      %v836 = vmul.f32 %v805, %v835
      %vm837 = vcmp.eq.f32.partialorder %v805, inf
      %v838 = vsel %vm837, %v805, %v836
      %vm839 = vcmp.eq.f32.partialorder %v805, 0.0
      %v840 = vand.u32 %v805, 2147483648
      %v841 = vsel %vm839, %v840, %v838
      %v842 = vrsqrt.pop %v808
      %v843 = vmul.f32 %v808, %v842
      %vm844 = vcmp.eq.f32.partialorder %v808, inf
      %v845 = vsel %vm844, %v808, %v843
      %vm846 = vcmp.eq.f32.partialorder %v808, 0.0
      %v847 = vand.u32 %v808, 2147483648
      %v848 = vsel %vm846, %v847, %v845
      %v849 = vrsqrt.pop %v811
      %v850 = vmul.f32 %v811, %v849
      %vm851 = vcmp.eq.f32.partialorder %v811, inf
      %v852 = vsel %vm851, %v811, %v850
      %vm853 = vcmp.eq.f32.partialorder %v811, 0.0
      %v854 = vand.u32 %v811, 2147483648
      %v855 = vsel %vm853, %v854, %v852
      %v856 = vrsqrt.pop %v814
      %v857 = vmul.f32 %v814, %v856
      %vm858 = vcmp.eq.f32.partialorder %v814, inf
      %v859 = vsel %vm858, %v814, %v857
      %vm860 = vcmp.eq.f32.partialorder %v814, 0.0
      %v861 = vand.u32 %v814, 2147483648
      %v862 = vsel %vm860, %v861, %v859
      %v863 = vrsqrt.pop %v817
      %v864 = vmul.f32 %v817, %v863
      %vm865 = vcmp.eq.f32.partialorder %v817, inf
      %v866 = vsel %vm865, %v817, %v864
      %vm867 = vcmp.eq.f32.partialorder %v817, 0.0
      %v868 = vand.u32 %v817, 2147483648
      %v869 = vsel %vm867, %v868, %v866
      %v870 = vrsqrt.pop %v820
      %v871 = vmul.f32 %v820, %v870
      %vm872 = vcmp.eq.f32.partialorder %v820, inf
      %v873 = vsel %vm872, %v820, %v871
      %vm874 = vcmp.eq.f32.partialorder %v820, 0.0
      %v875 = vand.u32 %v820, 2147483648
      %v876 = vsel %vm874, %v875, %v873
      %v877 = vmax.f32 %v827, 1e-12
      %v878 = vmax.f32 %v834, 1e-12
      %v879 = vmax.f32 %v841, 1e-12
      %v880 = vmax.f32 %v848, 1e-12
      %v881 = vmax.f32 %v855, 1e-12
      %v882 = vmax.f32 %v862, 1e-12
      %v883 = vmax.f32 %v869, 1e-12
      %v884 = vmax.f32 %v876, 1e-12
      %v885 = vrcp.pop %v877
      %v886 = vmul.f32 %v614, %v885
      %v887 = vrcp.pop %v878
      %v888 = vmul.f32 %v619, %v887
      %v889 = vrcp.pop %v879
      %v890 = vmul.f32 %v624, %v889
      %v891 = vrcp.pop %v880
      %v892 = vmul.f32 %v629, %v891
      %v893 = vrcp.pop %v881
      %v894 = vmul.f32 %v634, %v893
      %v895 = vrcp.pop %v882
      %v896 = vmul.f32 %v639, %v895
      %v897 = vrcp.pop %v883
      %v898 = vmul.f32 %v644, %v897
      %v899 = vrcp.pop %v884
      %v900 = vmul.f32 %v649, %v899
      %903 = vrot.lane.b32.xlu0 %v886, 96
      %v904 = vpop.permute.xlu0 %903
      %905 = vrot.lane.b32.xlu0 %v888, 96
      %v906 = vpop.permute.xlu0 %905
      %v908 = vsel %vm660, %v750, 0
      %v911 = vsel %vm660, %v752, 0
      %v913 = vsel %vm660, %v904, 0
      %v915 = vsel %vm660, %v906, 0
      %917 = vmatprep.subr.mxu0 0.0
      %918 = vmatpush1.xpose.msra.mxu0 %v913
      %919 = vmatprep.subr.mxu0 0.0
      %920 = vmatpush1.xpose.msra.mxu0 %v915
      %921 = vmatprep.subr.mxu0 0.0
      %922 = vmatpush1.xpose.msra.mxu0 0.0
      %923 = vmatprep.subr.mxu0 0.0
      %924 = vmatpush1.xpose.msra.mxu0 0.0
      %925 = vmatprep.subr.mxu0 0.0
      %926 = vmatpush1.xpose.msra.mxu0 0.0
      %927 = vmatprep.subr.mxu0 0.0
      %928 = vmatpush1.xpose.msra.mxu0 0.0
      %929 = vmatprep.subr.mxu0 0.0
      %930 = vmatpush1.xpose.msra.mxu0 0.0
      %931 = vmatprep.subr.mxu0 0.0
      %932 = vmatpush1.xpose.msra.mxu0 0.0
      %933 = vmatprep.subr.mxu0 0.0
      %934 = vmatpush1.xpose.msra.mxu0 0.0
      %935 = vmatprep.subr.mxu0 0.0
      %936 = vmatpush1.xpose.msra.mxu0 0.0
      %937 = vmatprep.subr.mxu0 0.0
      %938 = vmatpush1.xpose.msra.mxu0 0.0
      %939 = vmatprep.subr.mxu0 0.0
      %940 = vmatpush1.xpose.msra.mxu0 0.0
      %941 = vmatprep.subr.mxu0 0.0
      %942 = vmatpush1.xpose.msra.mxu0 0.0
      %943 = vmatprep.subr.mxu0 0.0
      %944 = vmatpush1.xpose.msra.mxu0 0.0
      %945 = vmatprep.subr.mxu0 0.0
      %946 = vmatpush1.xpose.msra.mxu0 0.0
      %947 = vmatprep.subr.mxu0 0.0
      %948 = vmatpush1.xpose.msra.mxu0 0.0
      %949 = vmatprep.subr.mxu0 0.0
      %950 = vmatpush1.xpose.msra.mxu0 0.0
      %951 = vmatprep.subr.mxu0 0.0
      %952 = vmatpush1.xpose.msra.mxu0 0.0
      %953 = vmatprep.subr.mxu0 0.0
      %954 = vmatpush1.xpose.msra.mxu0 0.0
      %955 = vmatprep.subr.mxu0 0.0
      %956 = vmatpush1.xpose.msra.mxu0 0.0
      %957 = vmatprep.subr.mxu0 0.0
      %958 = vmatpush1.xpose.msra.mxu0 0.0
      %959 = vmatprep.subr.mxu0 0.0
      %960 = vmatpush1.xpose.msra.mxu0 0.0
      %961 = vmatprep.subr.mxu0 0.0
      %962 = vmatpush1.xpose.msra.mxu0 0.0
      %963 = vmatprep.subr.mxu0 0.0
      %964 = vmatpush1.xpose.msra.mxu0 0.0
      %965 = vmatprep.subr.mxu0 0.0
      %966 = vmatpush1.xpose.msra.mxu0 0.0
      %967 = vmatprep.subr.mxu0 0.0
      %968 = vmatpush1.xpose.msra.mxu0 0.0
      %969 = vmatprep.subr.mxu0 0.0
      %970 = vmatpush1.xpose.msra.mxu0 0.0
      %971 = vmatprep.subr.mxu0 0.0
      %972 = vmatpush1.xpose.msra.mxu0 0.0
      %973 = vmatprep.subr.mxu0 0.0
      %974 = vmatpush1.xpose.msra.mxu0 0.0
      %975 = vmatprep.subr.mxu0 0.0
      %976 = vmatpush1.xpose.msra.mxu0 0.0
      %977 = vmatprep.subr.mxu0 0.0
      %978 = vmatpush1.xpose.msra.mxu0 0.0
      %979 = vmatprep.subr.mxu0 0.0
      %980 = vmatpush1.xpose.msra.mxu0 0.0
      %981 = vmatprep.mubr.f32.mxu0 0.0
      %982 = vmatmul.mubr.f32.gmra.mrb[0].mxu0 %v908
      %v983 = vpop.f32.mrb[0].mxu0
      %v984 = vadd.f32 0.0, %v983
      %v985 = vpop.f32.mrb[0].mxu0
      %986 = vmatprep.mubr.f32.mxu0 0.0
      %987 = vmatmul.mubr.f32.gmra.mrb[0].mxu0 %v911
      %v988 = vpop.f32.mrb[0].mxu0
      %v989 = vadd.f32 0.0, %v988
      %v990 = vpop.f32.mrb[0].mxu0
      %991 = vdwg.mxu0
      %994 = vrot.lane.b32.xlu0 %v890, 96
      %v995 = vpop.permute.xlu0 %994
      %996 = vrot.lane.b32.xlu0 %v892, 96
      %v997 = vpop.permute.xlu0 %996
      %v999 = vsel %vm660, %v754, 0
      %v1002 = vsel %vm660, %v756, 0
      %v1004 = vsel %vm660, %v995, 0
      %v1006 = vsel %vm660, %v997, 0
      %1008 = vmatprep.subr.mxu0 0.0
      %1009 = vmatpush1.xpose.msra.mxu0 %v1004
      %1010 = vmatprep.subr.mxu0 0.0
      %1011 = vmatpush1.xpose.msra.mxu0 %v1006
      %1012 = vmatprep.subr.mxu0 0.0
      %1013 = vmatpush1.xpose.msra.mxu0 0.0
      %1014 = vmatprep.subr.mxu0 0.0
      %1015 = vmatpush1.xpose.msra.mxu0 0.0
      %1016 = vmatprep.subr.mxu0 0.0
      %1017 = vmatpush1.xpose.msra.mxu0 0.0
      %1018 = vmatprep.subr.mxu0 0.0
      %1019 = vmatpush1.xpose.msra.mxu0 0.0
      %1020 = vmatprep.subr.mxu0 0.0
      %1021 = vmatpush1.xpose.msra.mxu0 0.0
      %1022 = vmatprep.subr.mxu0 0.0
      %1023 = vmatpush1.xpose.msra.mxu0 0.0
      %1024 = vmatprep.subr.mxu0 0.0
      %1025 = vmatpush1.xpose.msra.mxu0 0.0
      %1026 = vmatprep.subr.mxu0 0.0
      %1027 = vmatpush1.xpose.msra.mxu0 0.0
      %1028 = vmatprep.subr.mxu0 0.0
      %1029 = vmatpush1.xpose.msra.mxu0 0.0
      %1030 = vmatprep.subr.mxu0 0.0
      %1031 = vmatpush1.xpose.msra.mxu0 0.0
      %1032 = vmatprep.subr.mxu0 0.0
      %1033 = vmatpush1.xpose.msra.mxu0 0.0
      %1034 = vmatprep.subr.mxu0 0.0
      %1035 = vmatpush1.xpose.msra.mxu0 0.0
      %1036 = vmatprep.subr.mxu0 0.0
      %1037 = vmatpush1.xpose.msra.mxu0 0.0
      %1038 = vmatprep.subr.mxu0 0.0
      %1039 = vmatpush1.xpose.msra.mxu0 0.0
      %1040 = vmatprep.subr.mxu0 0.0
      %1041 = vmatpush1.xpose.msra.mxu0 0.0
      %1042 = vmatprep.subr.mxu0 0.0
      %1043 = vmatpush1.xpose.msra.mxu0 0.0
      %1044 = vmatprep.subr.mxu0 0.0
      %1045 = vmatpush1.xpose.msra.mxu0 0.0
      %1046 = vmatprep.subr.mxu0 0.0
      %1047 = vmatpush1.xpose.msra.mxu0 0.0
      %1048 = vmatprep.subr.mxu0 0.0
      %1049 = vmatpush1.xpose.msra.mxu0 0.0
      %1050 = vmatprep.subr.mxu0 0.0
      %1051 = vmatpush1.xpose.msra.mxu0 0.0
      %1052 = vmatprep.subr.mxu0 0.0
      %1053 = vmatpush1.xpose.msra.mxu0 0.0
      %1054 = vmatprep.subr.mxu0 0.0
      %1055 = vmatpush1.xpose.msra.mxu0 0.0
      %1056 = vmatprep.subr.mxu0 0.0
      %1057 = vmatpush1.xpose.msra.mxu0 0.0
      %1058 = vmatprep.subr.mxu0 0.0
      %1059 = vmatpush1.xpose.msra.mxu0 0.0
      %1060 = vmatprep.subr.mxu0 0.0
      %1061 = vmatpush1.xpose.msra.mxu0 0.0
      %1062 = vmatprep.subr.mxu0 0.0
      %1063 = vmatpush1.xpose.msra.mxu0 0.0
      %1064 = vmatprep.subr.mxu0 0.0
      %1065 = vmatpush1.xpose.msra.mxu0 0.0
      %1066 = vmatprep.subr.mxu0 0.0
      %1067 = vmatpush1.xpose.msra.mxu0 0.0
      %1068 = vmatprep.subr.mxu0 0.0
      %1069 = vmatpush1.xpose.msra.mxu0 0.0
      %1070 = vmatprep.subr.mxu0 0.0
      %1071 = vmatpush1.xpose.msra.mxu0 0.0
      %1072 = vmatprep.mubr.f32.mxu0 0.0
      %1073 = vmatmul.mubr.f32.gmra.mrb[0].mxu0 %v999
      %v1074 = vpop.f32.mrb[0].mxu0
      %v1075 = vadd.f32 0.0, %v1074
      %v1076 = vpop.f32.mrb[0].mxu0
      %1077 = vmatprep.mubr.f32.mxu0 0.0
      %1078 = vmatmul.mubr.f32.gmra.mrb[0].mxu0 %v1002
      %v1079 = vpop.f32.mrb[0].mxu0
      %v1080 = vadd.f32 0.0, %v1079
      %v1081 = vpop.f32.mrb[0].mxu0
      %1082 = vdwg.mxu0
      %1085 = vrot.lane.b32.xlu0 %v894, 96
      %v1086 = vpop.permute.xlu0 %1085
      %1087 = vrot.lane.b32.xlu0 %v896, 96
      %v1088 = vpop.permute.xlu0 %1087
      %v1090 = vsel %vm660, %v758, 0
      %v1093 = vsel %vm660, %v760, 0
      %v1095 = vsel %vm660, %v1086, 0
      %v1097 = vsel %vm660, %v1088, 0
      %1099 = vmatprep.subr.mxu0 0.0
      %1100 = vmatpush1.xpose.msra.mxu0 %v1095
      %1101 = vmatprep.subr.mxu0 0.0
      %1102 = vmatpush1.xpose.msra.mxu0 %v1097
      %1103 = vmatprep.subr.mxu0 0.0
      %1104 = vmatpush1.xpose.msra.mxu0 0.0
      %1105 = vmatprep.subr.mxu0 0.0
      %1106 = vmatpush1.xpose.msra.mxu0 0.0
      %1107 = vmatprep.subr.mxu0 0.0
      %1108 = vmatpush1.xpose.msra.mxu0 0.0
      %1109 = vmatprep.subr.mxu0 0.0
      %1110 = vmatpush1.xpose.msra.mxu0 0.0
      %1111 = vmatprep.subr.mxu0 0.0
      %1112 = vmatpush1.xpose.msra.mxu0 0.0
      %1113 = vmatprep.subr.mxu0 0.0
      %1114 = vmatpush1.xpose.msra.mxu0 0.0
      %1115 = vmatprep.subr.mxu0 0.0
      %1116 = vmatpush1.xpose.msra.mxu0 0.0
      %1117 = vmatprep.subr.mxu0 0.0
      %1118 = vmatpush1.xpose.msra.mxu0 0.0
      %1119 = vmatprep.subr.mxu0 0.0
      %1120 = vmatpush1.xpose.msra.mxu0 0.0
      %1121 = vmatprep.subr.mxu0 0.0
      %1122 = vmatpush1.xpose.msra.mxu0 0.0
      %1123 = vmatprep.subr.mxu0 0.0
      %1124 = vmatpush1.xpose.msra.mxu0 0.0
      %1125 = vmatprep.subr.mxu0 0.0
      %1126 = vmatpush1.xpose.msra.mxu0 0.0
      %1127 = vmatprep.subr.mxu0 0.0
      %1128 = vmatpush1.xpose.msra.mxu0 0.0
      %1129 = vmatprep.subr.mxu0 0.0
      %1130 = vmatpush1.xpose.msra.mxu0 0.0
      %1131 = vmatprep.subr.mxu0 0.0
      %1132 = vmatpush1.xpose.msra.mxu0 0.0
      %1133 = vmatprep.subr.mxu0 0.0
      %1134 = vmatpush1.xpose.msra.mxu0 0.0
      %1135 = vmatprep.subr.mxu0 0.0
      %1136 = vmatpush1.xpose.msra.mxu0 0.0
      %1137 = vmatprep.subr.mxu0 0.0
      %1138 = vmatpush1.xpose.msra.mxu0 0.0
      %1139 = vmatprep.subr.mxu0 0.0
      %1140 = vmatpush1.xpose.msra.mxu0 0.0
      %1141 = vmatprep.subr.mxu0 0.0
      %1142 = vmatpush1.xpose.msra.mxu0 0.0
      %1143 = vmatprep.subr.mxu0 0.0
      %1144 = vmatpush1.xpose.msra.mxu0 0.0
      %1145 = vmatprep.subr.mxu0 0.0
      %1146 = vmatpush1.xpose.msra.mxu0 0.0
      %1147 = vmatprep.subr.mxu0 0.0
      %1148 = vmatpush1.xpose.msra.mxu0 0.0
      %1149 = vmatprep.subr.mxu0 0.0
      %1150 = vmatpush1.xpose.msra.mxu0 0.0
      %1151 = vmatprep.subr.mxu0 0.0
      %1152 = vmatpush1.xpose.msra.mxu0 0.0
      %1153 = vmatprep.subr.mxu0 0.0
      %1154 = vmatpush1.xpose.msra.mxu0 0.0
      %1155 = vmatprep.subr.mxu0 0.0
      %1156 = vmatpush1.xpose.msra.mxu0 0.0
      %1157 = vmatprep.subr.mxu0 0.0
      %1158 = vmatpush1.xpose.msra.mxu0 0.0
      %1159 = vmatprep.subr.mxu0 0.0
      %1160 = vmatpush1.xpose.msra.mxu0 0.0
      %1161 = vmatprep.subr.mxu0 0.0
      %1162 = vmatpush1.xpose.msra.mxu0 0.0
      %1163 = vmatprep.mubr.f32.mxu0 0.0
      %1164 = vmatmul.mubr.f32.gmra.mrb[0].mxu0 %v1090
      %v1165 = vpop.f32.mrb[0].mxu0
      %v1166 = vadd.f32 0.0, %v1165
      %v1167 = vpop.f32.mrb[0].mxu0
      %1168 = vmatprep.mubr.f32.mxu0 0.0
      %1169 = vmatmul.mubr.f32.gmra.mrb[0].mxu0 %v1093
      %v1170 = vpop.f32.mrb[0].mxu0
      %v1171 = vadd.f32 0.0, %v1170
      %v1172 = vpop.f32.mrb[0].mxu0
      %1173 = vdwg.mxu0
      %1176 = vrot.lane.b32.xlu0 %v898, 96
      %v1177 = vpop.permute.xlu0 %1176
      %1178 = vrot.lane.b32.xlu0 %v900, 96
      %v1179 = vpop.permute.xlu0 %1178
      %v1181 = vsel %vm660, %v762, 0
      %v1184 = vsel %vm660, %v764, 0
      %v1186 = vsel %vm660, %v1177, 0
      %v1188 = vsel %vm660, %v1179, 0
      %1190 = vmatprep.subr.mxu0 0.0
      %1191 = vmatpush1.xpose.msra.mxu0 %v1186
      %1192 = vmatprep.subr.mxu0 0.0
      %1193 = vmatpush1.xpose.msra.mxu0 %v1188
      %1194 = vmatprep.subr.mxu0 0.0
      %1195 = vmatpush1.xpose.msra.mxu0 0.0
      %1196 = vmatprep.subr.mxu0 0.0
      %1197 = vmatpush1.xpose.msra.mxu0 0.0
      %1198 = vmatprep.subr.mxu0 0.0
      %1199 = vmatpush1.xpose.msra.mxu0 0.0
      %1200 = vmatprep.subr.mxu0 0.0
      %1201 = vmatpush1.xpose.msra.mxu0 0.0
      %1202 = vmatprep.subr.mxu0 0.0
      %1203 = vmatpush1.xpose.msra.mxu0 0.0
      %1204 = vmatprep.subr.mxu0 0.0
      %1205 = vmatpush1.xpose.msra.mxu0 0.0
      %1206 = vmatprep.subr.mxu0 0.0
      %1207 = vmatpush1.xpose.msra.mxu0 0.0
      %1208 = vmatprep.subr.mxu0 0.0
      %1209 = vmatpush1.xpose.msra.mxu0 0.0
      %1210 = vmatprep.subr.mxu0 0.0
      %1211 = vmatpush1.xpose.msra.mxu0 0.0
      %1212 = vmatprep.subr.mxu0 0.0
      %1213 = vmatpush1.xpose.msra.mxu0 0.0
      %1214 = vmatprep.subr.mxu0 0.0
      %1215 = vmatpush1.xpose.msra.mxu0 0.0
      %1216 = vmatprep.subr.mxu0 0.0
      %1217 = vmatpush1.xpose.msra.mxu0 0.0
      %1218 = vmatprep.subr.mxu0 0.0
      %1219 = vmatpush1.xpose.msra.mxu0 0.0
      %1220 = vmatprep.subr.mxu0 0.0
      %1221 = vmatpush1.xpose.msra.mxu0 0.0
      %1222 = vmatprep.subr.mxu0 0.0
      %1223 = vmatpush1.xpose.msra.mxu0 0.0
      %1224 = vmatprep.subr.mxu0 0.0
      %1225 = vmatpush1.xpose.msra.mxu0 0.0
      %1226 = vmatprep.subr.mxu0 0.0
      %1227 = vmatpush1.xpose.msra.mxu0 0.0
      %1228 = vmatprep.subr.mxu0 0.0
      %1229 = vmatpush1.xpose.msra.mxu0 0.0
      %1230 = vmatprep.subr.mxu0 0.0
      %1231 = vmatpush1.xpose.msra.mxu0 0.0
      %1232 = vmatprep.subr.mxu0 0.0
      %1233 = vmatpush1.xpose.msra.mxu0 0.0
      %1234 = vmatprep.subr.mxu0 0.0
      %1235 = vmatpush1.xpose.msra.mxu0 0.0
      %1236 = vmatprep.subr.mxu0 0.0
      %1237 = vmatpush1.xpose.msra.mxu0 0.0
      %1238 = vmatprep.subr.mxu0 0.0
      %1239 = vmatpush1.xpose.msra.mxu0 0.0
      %1240 = vmatprep.subr.mxu0 0.0
      %1241 = vmatpush1.xpose.msra.mxu0 0.0
      %1242 = vmatprep.subr.mxu0 0.0
      %1243 = vmatpush1.xpose.msra.mxu0 0.0
      %1244 = vmatprep.subr.mxu0 0.0
      %1245 = vmatpush1.xpose.msra.mxu0 0.0
      %1246 = vmatprep.subr.mxu0 0.0
      %1247 = vmatpush1.xpose.msra.mxu0 0.0
      %1248 = vmatprep.subr.mxu0 0.0
      %1249 = vmatpush1.xpose.msra.mxu0 0.0
      %1250 = vmatprep.subr.mxu0 0.0
      %1251 = vmatpush1.xpose.msra.mxu0 0.0
      %1252 = vmatprep.subr.mxu0 0.0
      %1253 = vmatpush1.xpose.msra.mxu0 0.0
      %1254 = vmatprep.mubr.f32.mxu0 0.0
      %1255 = vmatmul.mubr.f32.gmra.mrb[0].mxu0 %v1181
      %v1256 = vpop.f32.mrb[0].mxu0
      %v1257 = vadd.f32 0.0, %v1256
      %v1258 = vpop.f32.mrb[0].mxu0
      %1259 = vmatprep.mubr.f32.mxu0 0.0
      %1260 = vmatmul.mubr.f32.gmra.mrb[0].mxu0 %v1184
      %v1261 = vpop.f32.mrb[0].mxu0
      %v1262 = vadd.f32 0.0, %v1261
      %v1263 = vpop.f32.mrb[0].mxu0
      %1264 = vdwg.mxu0
      %v1265 = vld [vmem:[%s3] sm:$0x1]
      %v1267 = vlaneseq
      %v1268 = vshrl.u32 %v1267, 7
      %v1269 = vsub.s32 0, %v1268
      %v1270 = vrot.slane %v1265, %v1269
      %v1272 = vmul.f32 %v984, %v1270
      %v1273 = vmul.f32 %v989, %v1270
      %v1274 = vmul.f32 %v1075, %v1270
      %v1275 = vmul.f32 %v1080, %v1270
      %v1276 = vmul.f32 %v1166, %v1270
      %v1277 = vmul.f32 %v1171, %v1270
      %v1278 = vmul.f32 %v1257, %v1270
      %v1279 = vmul.f32 %v1262, %v1270
      %v1280 = vld [vmem:[%s4] sm:$0xff]
      %v1281 = vld [vmem:[%s4 + $0x8] sm:$0xff]
      %v1282 = vadd.f32 %v1272, %v1280
      %v1283 = vadd.f32 %v1273, %v1281
      %v1284 = vadd.f32 %v1274, %v1280
      %v1285 = vadd.f32 %v1275, %v1281
      %v1286 = vadd.f32 %v1276, %v1280
      %v1287 = vadd.f32 %v1277, %v1281
      %v1288 = vadd.f32 %v1278, %v1280
      %v1289 = vadd.f32 %v1279, %v1281
      %vm1290 = vcmask 130048
      %v1291 = vsel %vm1290, %v1282, -inf
      %1292 = vmax.xlane.f32.xlu0 %v1291
      %v1293 = vpop.xlane.xlu0 %1292
      %v1294 = vsel %vm1290, %v1283, -inf
      %1295 = vmax.xlane.f32.xlu0 %v1294
      %v1296 = vpop.xlane.xlu0 %1295
      %v1297 = vsel %vm1290, %v1284, -inf
      %1298 = vmax.xlane.f32.xlu0 %v1297
      %v1299 = vpop.xlane.xlu0 %1298
      %v1300 = vsel %vm1290, %v1285, -inf
      %1301 = vmax.xlane.f32.xlu0 %v1300
      %v1302 = vpop.xlane.xlu0 %1301
      %v1303 = vsel %vm1290, %v1286, -inf
      %1304 = vmax.xlane.f32.xlu0 %v1303
      %v1305 = vpop.xlane.xlu0 %1304
      %v1306 = vsel %vm1290, %v1287, -inf
      %1307 = vmax.xlane.f32.xlu0 %v1306
      %v1308 = vpop.xlane.xlu0 %1307
      %v1309 = vsel %vm1290, %v1288, -inf
      %1310 = vmax.xlane.f32.xlu0 %v1309
      %v1311 = vpop.xlane.xlu0 %1310
      %v1312 = vsel %vm1290, %v1289, -inf
      %1313 = vmax.xlane.f32.xlu0 %v1312
      %v1314 = vpop.xlane.xlu0 %1313
      %v1315 = vsub.f32 %v1282, %v1293
      %v1316 = vsub.f32 %v1283, %v1296
      %v1317 = vsub.f32 %v1284, %v1299
      %v1318 = vsub.f32 %v1285, %v1302
      %v1319 = vsub.f32 %v1286, %v1305
      %v1320 = vsub.f32 %v1287, %v1308
      %v1321 = vsub.f32 %v1288, %v1311
      %v1322 = vsub.f32 %v1289, %v1314
      %v1323 = vmul.f32 %v1315, 1.442695
      %v1324 = vpow.pop %v1323
      %v1325 = vmul.f32 %v1316, 1.442695
      %v1326 = vpow.pop %v1325
      %v1327 = vmul.f32 %v1317, 1.442695
      %v1328 = vpow.pop %v1327
      %v1329 = vmul.f32 %v1318, 1.442695
      %v1330 = vpow.pop %v1329
      %v1331 = vmul.f32 %v1319, 1.442695
      %v1332 = vpow.pop %v1331
      %v1333 = vmul.f32 %v1320, 1.442695
      %v1334 = vpow.pop %v1333
      %v1335 = vmul.f32 %v1321, 1.442695
      %v1336 = vpow.pop %v1335
      %v1337 = vmul.f32 %v1322, 1.442695
      %v1338 = vpow.pop %v1337
      %v1339 = vsel %vm1290, %v1324, 0.0
      %1340 = vadd.xlane.f32.xlu0 %v1339
      %v1341 = vpop.xlane.xlu0 %1340
      %v1342 = vsel %vm1290, %v1326, 0.0
      %1343 = vadd.xlane.f32.xlu0 %v1342
      %v1344 = vpop.xlane.xlu0 %1343
      %v1345 = vsel %vm1290, %v1328, 0.0
      %1346 = vadd.xlane.f32.xlu0 %v1345
      %v1347 = vpop.xlane.xlu0 %1346
      %v1348 = vsel %vm1290, %v1330, 0.0
      %1349 = vadd.xlane.f32.xlu0 %v1348
      %v1350 = vpop.xlane.xlu0 %1349
      %v1351 = vsel %vm1290, %v1332, 0.0
      %1352 = vadd.xlane.f32.xlu0 %v1351
      %v1353 = vpop.xlane.xlu0 %1352
      %v1354 = vsel %vm1290, %v1334, 0.0
      %1355 = vadd.xlane.f32.xlu0 %v1354
      %v1356 = vpop.xlane.xlu0 %1355
      %v1357 = vsel %vm1290, %v1336, 0.0
      %1358 = vadd.xlane.f32.xlu0 %v1357
      %v1359 = vpop.xlane.xlu0 %1358
      %v1360 = vsel %vm1290, %v1338, 0.0
      %1361 = vadd.xlane.f32.xlu0 %v1360
      %v1362 = vpop.xlane.xlu0 %1361
      %v1363 = vrcp.pop %v1341
      %v1364 = vmul.f32 %v1324, %v1363
      %v1365 = vrcp.pop %v1344
      %v1366 = vmul.f32 %v1326, %v1365
      %v1367 = vrcp.pop %v1347
      %v1368 = vmul.f32 %v1328, %v1367
      %v1369 = vrcp.pop %v1350
      %v1370 = vmul.f32 %v1330, %v1369
      %v1371 = vrcp.pop %v1353
      %v1372 = vmul.f32 %v1332, %v1371
      %v1373 = vrcp.pop %v1356
      %v1374 = vmul.f32 %v1334, %v1373
      %v1375 = vrcp.pop %v1359
      %v1376 = vmul.f32 %v1336, %v1375
      %v1377 = vrcp.pop %v1362
      %v1378 = vmul.f32 %v1338, %v1377
      %1381 = vrot.lane.b32.xlu0 %v614, 64
      %v1382 = vpop.permute.xlu0 %1381
      %1383 = vrot.lane.b32.xlu0 %v619, 64
      %v1384 = vpop.permute.xlu0 %1383
      %v1388 = vsel %vm1290, %v1364, 0
      %v1391 = vsel %vm1290, %v1366, 0
      %1393 = vmatprep.subr.mxu0 0.0
      %1394 = vmatpush1.msra.mxu0 %v1382
      %1395 = vmatprep.subr.mxu0 0.0
      %1396 = vmatpush1.msra.mxu0 %v1384
      %1397 = vmatprep.subr.mxu0 0.0
      %1398 = vmatpush1.msra.mxu0 0.0
      %1399 = vmatprep.subr.mxu0 0.0
      %1400 = vmatpush1.msra.mxu0 0.0
      %1401 = vmatprep.subr.mxu0 0.0
      %1402 = vmatpush1.msra.mxu0 0.0
      %1403 = vmatprep.subr.mxu0 0.0
      %1404 = vmatpush1.msra.mxu0 0.0
      %1405 = vmatprep.subr.mxu0 0.0
      %1406 = vmatpush1.msra.mxu0 0.0
      %1407 = vmatprep.subr.mxu0 0.0
      %1408 = vmatpush1.msra.mxu0 0.0
      %1409 = vmatprep.subr.mxu0 0.0
      %1410 = vmatpush1.msra.mxu0 0.0
      %1411 = vmatprep.subr.mxu0 0.0
      %1412 = vmatpush1.msra.mxu0 0.0
      %1413 = vmatprep.subr.mxu0 0.0
      %1414 = vmatpush1.msra.mxu0 0.0
      %1415 = vmatprep.subr.mxu0 0.0
      %1416 = vmatpush1.msra.mxu0 0.0
      %1417 = vmatprep.subr.mxu0 0.0
      %1418 = vmatpush1.msra.mxu0 0.0
      %1419 = vmatprep.subr.mxu0 0.0
      %1420 = vmatpush1.msra.mxu0 0.0
      %1421 = vmatprep.subr.mxu0 0.0
      %1422 = vmatpush1.msra.mxu0 0.0
      %1423 = vmatprep.subr.mxu0 0.0
      %1424 = vmatpush1.msra.mxu0 0.0
      %1425 = vmatprep.subr.mxu0 0.0
      %1426 = vmatpush1.msra.mxu0 0.0
      %1427 = vmatprep.subr.mxu0 0.0
      %1428 = vmatpush1.msra.mxu0 0.0
      %1429 = vmatprep.subr.mxu0 0.0
      %1430 = vmatpush1.msra.mxu0 0.0
      %1431 = vmatprep.subr.mxu0 0.0
      %1432 = vmatpush1.msra.mxu0 0.0
      %1433 = vmatprep.subr.mxu0 0.0
      %1434 = vmatpush1.msra.mxu0 0.0
      %1435 = vmatprep.subr.mxu0 0.0
      %1436 = vmatpush1.msra.mxu0 0.0
      %1437 = vmatprep.subr.mxu0 0.0
      %1438 = vmatpush1.msra.mxu0 0.0
      %1439 = vmatprep.subr.mxu0 0.0
      %1440 = vmatpush1.msra.mxu0 0.0
      %1441 = vmatprep.subr.mxu0 0.0
      %1442 = vmatpush1.msra.mxu0 0.0
      %1443 = vmatprep.subr.mxu0 0.0
      %1444 = vmatpush1.msra.mxu0 0.0
      %1445 = vmatprep.subr.mxu0 0.0
      %1446 = vmatpush1.msra.mxu0 0.0
      %1447 = vmatprep.subr.mxu0 0.0
      %1448 = vmatpush1.msra.mxu0 0.0
      %1449 = vmatprep.subr.mxu0 0.0
      %1450 = vmatpush1.msra.mxu0 0.0
      %1451 = vmatprep.subr.mxu0 0.0
      %1452 = vmatpush1.msra.mxu0 0.0
      %1453 = vmatprep.subr.mxu0 0.0
      %1454 = vmatpush1.msra.mxu0 0.0
      %1455 = vmatprep.subr.mxu0 0.0
      %1456 = vmatpush1.msra.mxu0 0.0
      %1457 = vmatprep.mubr.f32.mxu0 0.0
      %1458 = vmatmul.mubr.f32.gmra.mrb[0].mxu0 %v1388
      %v1459 = vpop.f32.mrb[0].mxu0
      %v1460 = vadd.f32 0.0, %v1459
      %v1461 = vpop.f32.mrb[0].mxu0
      %1462 = vmatprep.mubr.f32.mxu0 0.0
      %1463 = vmatmul.mubr.f32.gmra.mrb[0].mxu0 %v1391
      %v1464 = vpop.f32.mrb[0].mxu0
      %v1465 = vadd.f32 0.0, %v1464
      %v1466 = vpop.f32.mrb[0].mxu0
      %1467 = vdwg.mxu0
      %1470 = vrot.lane.b32.xlu0 %v624, 64
      %v1471 = vpop.permute.xlu0 %1470
      %1472 = vrot.lane.b32.xlu0 %v629, 64
      %v1473 = vpop.permute.xlu0 %1472
      %v1477 = vsel %vm1290, %v1368, 0
      %v1480 = vsel %vm1290, %v1370, 0
      %1482 = vmatprep.subr.mxu0 0.0
      %1483 = vmatpush1.msra.mxu0 %v1471
      %1484 = vmatprep.subr.mxu0 0.0
      %1485 = vmatpush1.msra.mxu0 %v1473
      %1486 = vmatprep.subr.mxu0 0.0
      %1487 = vmatpush1.msra.mxu0 0.0
      %1488 = vmatprep.subr.mxu0 0.0
      %1489 = vmatpush1.msra.mxu0 0.0
      %1490 = vmatprep.subr.mxu0 0.0
      %1491 = vmatpush1.msra.mxu0 0.0
      %1492 = vmatprep.subr.mxu0 0.0
      %1493 = vmatpush1.msra.mxu0 0.0
      %1494 = vmatprep.subr.mxu0 0.0
      %1495 = vmatpush1.msra.mxu0 0.0
      %1496 = vmatprep.subr.mxu0 0.0
      %1497 = vmatpush1.msra.mxu0 0.0
      %1498 = vmatprep.subr.mxu0 0.0
      %1499 = vmatpush1.msra.mxu0 0.0
      %1500 = vmatprep.subr.mxu0 0.0
      %1501 = vmatpush1.msra.mxu0 0.0
      %1502 = vmatprep.subr.mxu0 0.0
      %1503 = vmatpush1.msra.mxu0 0.0
      %1504 = vmatprep.subr.mxu0 0.0
      %1505 = vmatpush1.msra.mxu0 0.0
      %1506 = vmatprep.subr.mxu0 0.0
      %1507 = vmatpush1.msra.mxu0 0.0
      %1508 = vmatprep.subr.mxu0 0.0
      %1509 = vmatpush1.msra.mxu0 0.0
      %1510 = vmatprep.subr.mxu0 0.0
      %1511 = vmatpush1.msra.mxu0 0.0
      %1512 = vmatprep.subr.mxu0 0.0
      %1513 = vmatpush1.msra.mxu0 0.0
      %1514 = vmatprep.subr.mxu0 0.0
      %1515 = vmatpush1.msra.mxu0 0.0
      %1516 = vmatprep.subr.mxu0 0.0
      %1517 = vmatpush1.msra.mxu0 0.0
      %1518 = vmatprep.subr.mxu0 0.0
      %1519 = vmatpush1.msra.mxu0 0.0
      %1520 = vmatprep.subr.mxu0 0.0
      %1521 = vmatpush1.msra.mxu0 0.0
      %1522 = vmatprep.subr.mxu0 0.0
      %1523 = vmatpush1.msra.mxu0 0.0
      %1524 = vmatprep.subr.mxu0 0.0
      %1525 = vmatpush1.msra.mxu0 0.0
      %1526 = vmatprep.subr.mxu0 0.0
      %1527 = vmatpush1.msra.mxu0 0.0
      %1528 = vmatprep.subr.mxu0 0.0
      %1529 = vmatpush1.msra.mxu0 0.0
      %1530 = vmatprep.subr.mxu0 0.0
      %1531 = vmatpush1.msra.mxu0 0.0
      %1532 = vmatprep.subr.mxu0 0.0
      %1533 = vmatpush1.msra.mxu0 0.0
      %1534 = vmatprep.subr.mxu0 0.0
      %1535 = vmatpush1.msra.mxu0 0.0
      %1536 = vmatprep.subr.mxu0 0.0
      %1537 = vmatpush1.msra.mxu0 0.0
      %1538 = vmatprep.subr.mxu0 0.0
      %1539 = vmatpush1.msra.mxu0 0.0
      %1540 = vmatprep.subr.mxu0 0.0
      %1541 = vmatpush1.msra.mxu0 0.0
      %1542 = vmatprep.subr.mxu0 0.0
      %1543 = vmatpush1.msra.mxu0 0.0
      %1544 = vmatprep.subr.mxu0 0.0
      %1545 = vmatpush1.msra.mxu0 0.0
      %1546 = vmatprep.mubr.f32.mxu0 0.0
      %1547 = vmatmul.mubr.f32.gmra.mrb[0].mxu0 %v1477
      %v1548 = vpop.f32.mrb[0].mxu0
      %v1549 = vadd.f32 0.0, %v1548
      %v1550 = vpop.f32.mrb[0].mxu0
      %1551 = vmatprep.mubr.f32.mxu0 0.0
      %1552 = vmatmul.mubr.f32.gmra.mrb[0].mxu0 %v1480
      %v1553 = vpop.f32.mrb[0].mxu0
      %v1554 = vadd.f32 0.0, %v1553
      %v1555 = vpop.f32.mrb[0].mxu0
      %1556 = vdwg.mxu0
      %1559 = vrot.lane.b32.xlu0 %v634, 64
      %v1560 = vpop.permute.xlu0 %1559
      %1561 = vrot.lane.b32.xlu0 %v639, 64
      %v1562 = vpop.permute.xlu0 %1561
      %v1566 = vsel %vm1290, %v1372, 0
      %v1569 = vsel %vm1290, %v1374, 0
      %1571 = vmatprep.subr.mxu0 0.0
      %1572 = vmatpush1.msra.mxu0 %v1560
      %1573 = vmatprep.subr.mxu0 0.0
      %1574 = vmatpush1.msra.mxu0 %v1562
      %1575 = vmatprep.subr.mxu0 0.0
      %1576 = vmatpush1.msra.mxu0 0.0
      %1577 = vmatprep.subr.mxu0 0.0
      %1578 = vmatpush1.msra.mxu0 0.0
      %1579 = vmatprep.subr.mxu0 0.0
      %1580 = vmatpush1.msra.mxu0 0.0
      %1581 = vmatprep.subr.mxu0 0.0
      %1582 = vmatpush1.msra.mxu0 0.0
      %1583 = vmatprep.subr.mxu0 0.0
      %1584 = vmatpush1.msra.mxu0 0.0
      %1585 = vmatprep.subr.mxu0 0.0
      %1586 = vmatpush1.msra.mxu0 0.0
      %1587 = vmatprep.subr.mxu0 0.0
      %1588 = vmatpush1.msra.mxu0 0.0
      %1589 = vmatprep.subr.mxu0 0.0
      %1590 = vmatpush1.msra.mxu0 0.0
      %1591 = vmatprep.subr.mxu0 0.0
      %1592 = vmatpush1.msra.mxu0 0.0
      %1593 = vmatprep.subr.mxu0 0.0
      %1594 = vmatpush1.msra.mxu0 0.0
      %1595 = vmatprep.subr.mxu0 0.0
      %1596 = vmatpush1.msra.mxu0 0.0
      %1597 = vmatprep.subr.mxu0 0.0
      %1598 = vmatpush1.msra.mxu0 0.0
      %1599 = vmatprep.subr.mxu0 0.0
      %1600 = vmatpush1.msra.mxu0 0.0
      %1601 = vmatprep.subr.mxu0 0.0
      %1602 = vmatpush1.msra.mxu0 0.0
      %1603 = vmatprep.subr.mxu0 0.0
      %1604 = vmatpush1.msra.mxu0 0.0
      %1605 = vmatprep.subr.mxu0 0.0
      %1606 = vmatpush1.msra.mxu0 0.0
      %1607 = vmatprep.subr.mxu0 0.0
      %1608 = vmatpush1.msra.mxu0 0.0
      %1609 = vmatprep.subr.mxu0 0.0
      %1610 = vmatpush1.msra.mxu0 0.0
      %1611 = vmatprep.subr.mxu0 0.0
      %1612 = vmatpush1.msra.mxu0 0.0
      %1613 = vmatprep.subr.mxu0 0.0
      %1614 = vmatpush1.msra.mxu0 0.0
      %1615 = vmatprep.subr.mxu0 0.0
      %1616 = vmatpush1.msra.mxu0 0.0
      %1617 = vmatprep.subr.mxu0 0.0
      %1618 = vmatpush1.msra.mxu0 0.0
      %1619 = vmatprep.subr.mxu0 0.0
      %1620 = vmatpush1.msra.mxu0 0.0
      %1621 = vmatprep.subr.mxu0 0.0
      %1622 = vmatpush1.msra.mxu0 0.0
      %1623 = vmatprep.subr.mxu0 0.0
      %1624 = vmatpush1.msra.mxu0 0.0
      %1625 = vmatprep.subr.mxu0 0.0
      %1626 = vmatpush1.msra.mxu0 0.0
      %1627 = vmatprep.subr.mxu0 0.0
      %1628 = vmatpush1.msra.mxu0 0.0
      %1629 = vmatprep.subr.mxu0 0.0
      %1630 = vmatpush1.msra.mxu0 0.0
      %1631 = vmatprep.subr.mxu0 0.0
      %1632 = vmatpush1.msra.mxu0 0.0
      %1633 = vmatprep.subr.mxu0 0.0
      %1634 = vmatpush1.msra.mxu0 0.0
      %1635 = vmatprep.mubr.f32.mxu0 0.0
      %1636 = vmatmul.mubr.f32.gmra.mrb[0].mxu0 %v1566
      %v1637 = vpop.f32.mrb[0].mxu0
      %v1638 = vadd.f32 0.0, %v1637
      %v1639 = vpop.f32.mrb[0].mxu0
      %1640 = vmatprep.mubr.f32.mxu0 0.0
      %1641 = vmatmul.mubr.f32.gmra.mrb[0].mxu0 %v1569
      %v1642 = vpop.f32.mrb[0].mxu0
      %v1643 = vadd.f32 0.0, %v1642
      %v1644 = vpop.f32.mrb[0].mxu0
      %1645 = vdwg.mxu0
      %1648 = vrot.lane.b32.xlu0 %v644, 64
      %v1649 = vpop.permute.xlu0 %1648
      %1650 = vrot.lane.b32.xlu0 %v649, 64
      %v1651 = vpop.permute.xlu0 %1650
      %v1655 = vsel %vm1290, %v1376, 0
      %v1658 = vsel %vm1290, %v1378, 0
      %1660 = vmatprep.subr.mxu0 0.0
      %1661 = vmatpush1.msra.mxu0 %v1649
      %1662 = vmatprep.subr.mxu0 0.0
      %1663 = vmatpush1.msra.mxu0 %v1651
      %1664 = vmatprep.subr.mxu0 0.0
      %1665 = vmatpush1.msra.mxu0 0.0
      %1666 = vmatprep.subr.mxu0 0.0
      %1667 = vmatpush1.msra.mxu0 0.0
      %1668 = vmatprep.subr.mxu0 0.0
      %1669 = vmatpush1.msra.mxu0 0.0
      %1670 = vmatprep.subr.mxu0 0.0
      %1671 = vmatpush1.msra.mxu0 0.0
      %1672 = vmatprep.subr.mxu0 0.0
      %1673 = vmatpush1.msra.mxu0 0.0
      %1674 = vmatprep.subr.mxu0 0.0
      %1675 = vmatpush1.msra.mxu0 0.0
      %1676 = vmatprep.subr.mxu0 0.0
      %1677 = vmatpush1.msra.mxu0 0.0
      %1678 = vmatprep.subr.mxu0 0.0
      %1679 = vmatpush1.msra.mxu0 0.0
      %1680 = vmatprep.subr.mxu0 0.0
      %1681 = vmatpush1.msra.mxu0 0.0
      %1682 = vmatprep.subr.mxu0 0.0
      %1683 = vmatpush1.msra.mxu0 0.0
      %1684 = vmatprep.subr.mxu0 0.0
      %1685 = vmatpush1.msra.mxu0 0.0
      %1686 = vmatprep.subr.mxu0 0.0
      %1687 = vmatpush1.msra.mxu0 0.0
      %1688 = vmatprep.subr.mxu0 0.0
      %1689 = vmatpush1.msra.mxu0 0.0
      %1690 = vmatprep.subr.mxu0 0.0
      %1691 = vmatpush1.msra.mxu0 0.0
      %1692 = vmatprep.subr.mxu0 0.0
      %1693 = vmatpush1.msra.mxu0 0.0
      %1694 = vmatprep.subr.mxu0 0.0
      %1695 = vmatpush1.msra.mxu0 0.0
      %1696 = vmatprep.subr.mxu0 0.0
      %1697 = vmatpush1.msra.mxu0 0.0
      %1698 = vmatprep.subr.mxu0 0.0
      %1699 = vmatpush1.msra.mxu0 0.0
      %1700 = vmatprep.subr.mxu0 0.0
      %1701 = vmatpush1.msra.mxu0 0.0
      %1702 = vmatprep.subr.mxu0 0.0
      %1703 = vmatpush1.msra.mxu0 0.0
      %1704 = vmatprep.subr.mxu0 0.0
      %1705 = vmatpush1.msra.mxu0 0.0
      %1706 = vmatprep.subr.mxu0 0.0
      %1707 = vmatpush1.msra.mxu0 0.0
      %1708 = vmatprep.subr.mxu0 0.0
      %1709 = vmatpush1.msra.mxu0 0.0
      %1710 = vmatprep.subr.mxu0 0.0
      %1711 = vmatpush1.msra.mxu0 0.0
      %1712 = vmatprep.subr.mxu0 0.0
      %1713 = vmatpush1.msra.mxu0 0.0
      %1714 = vmatprep.subr.mxu0 0.0
      %1715 = vmatpush1.msra.mxu0 0.0
      %1716 = vmatprep.subr.mxu0 0.0
      %1717 = vmatpush1.msra.mxu0 0.0
      %1718 = vmatprep.subr.mxu0 0.0
      %1719 = vmatpush1.msra.mxu0 0.0
      %1720 = vmatprep.subr.mxu0 0.0
      %1721 = vmatpush1.msra.mxu0 0.0
      %1722 = vmatprep.subr.mxu0 0.0
      %1723 = vmatpush1.msra.mxu0 0.0
      %1724 = vmatprep.mubr.f32.mxu0 0.0
      %1725 = vmatmul.mubr.f32.gmra.mrb[0].mxu0 %v1655
      %v1726 = vpop.f32.mrb[0].mxu0
      %v1727 = vadd.f32 0.0, %v1726
      %v1728 = vpop.f32.mrb[0].mxu0
      %1729 = vmatprep.mubr.f32.mxu0 0.0
      %1730 = vmatmul.mubr.f32.gmra.mrb[0].mxu0 %v1658
      %v1731 = vpop.f32.mrb[0].mxu0
      %v1732 = vadd.f32 0.0, %v1731
      %v1733 = vpop.f32.mrb[0].mxu0
      %1734 = vdwg.mxu0
      %v1735 = vld [vmem:[%s5] sm:$0xff]
      %1736 = vrot.lane.b32.xlu0 %v652, 120
      %v1737 = vpop.permute.xlu0 %1736
      %1738 = vrot.lane.b32.xlu0 %v653, 120
      %v1739 = vpop.permute.xlu0 %1738
      %1740 = vrot.lane.b32.xlu0 %v654, 120
      %v1741 = vpop.permute.xlu0 %1740
      %1742 = vrot.lane.b32.xlu0 %v655, 120
      %v1743 = vpop.permute.xlu0 %1742
      %1744 = vrot.lane.b32.xlu0 %v656, 120
      %v1745 = vpop.permute.xlu0 %1744
      %1746 = vrot.lane.b32.xlu0 %v657, 120
      %v1747 = vpop.permute.xlu0 %1746
      %1748 = vrot.lane.b32.xlu0 %v658, 120
      %v1749 = vpop.permute.xlu0 %1748
      %1750 = vrot.lane.b32.xlu0 %v659, 120
      %v1751 = vpop.permute.xlu0 %1750
      %v1760 = vsel %vm660, %v1737, 0.0
      %1761 = vadd.xlane.f32.xlu0 %v1760
      %v1762 = vpop.xlane.xlu0 %1761
      %v1763 = vsel %vm660, %v1739, 0.0
      %1764 = vadd.xlane.f32.xlu0 %v1763
      %v1765 = vpop.xlane.xlu0 %1764
      %v1766 = vsel %vm660, %v1741, 0.0
      %1767 = vadd.xlane.f32.xlu0 %v1766
      %v1768 = vpop.xlane.xlu0 %1767
      %v1769 = vsel %vm660, %v1743, 0.0
      %1770 = vadd.xlane.f32.xlu0 %v1769
      %v1771 = vpop.xlane.xlu0 %1770
      %v1772 = vsel %vm660, %v1745, 0.0
      %1773 = vadd.xlane.f32.xlu0 %v1772
      %v1774 = vpop.xlane.xlu0 %1773
      %v1775 = vsel %vm660, %v1747, 0.0
      %1776 = vadd.xlane.f32.xlu0 %v1775
      %v1777 = vpop.xlane.xlu0 %1776
      %v1778 = vsel %vm660, %v1749, 0.0
      %1779 = vadd.xlane.f32.xlu0 %v1778
      %v1780 = vpop.xlane.xlu0 %1779
      %v1781 = vsel %vm660, %v1751, 0.0
      %1782 = vadd.xlane.f32.xlu0 %v1781
      %v1783 = vpop.xlane.xlu0 %1782
      %v1784 = vrsqrt.pop %v1762
      %v1785 = vmul.f32 %v1762, %v1784
      %vm1786 = vcmp.eq.f32.partialorder %v1762, inf
      %v1787 = vsel %vm1786, %v1762, %v1785
      %vm1788 = vcmp.eq.f32.partialorder %v1762, 0.0
      %v1789 = vand.u32 %v1762, 2147483648
      %v1790 = vsel %vm1788, %v1789, %v1787
      %v1791 = vrsqrt.pop %v1765
      %v1792 = vmul.f32 %v1765, %v1791
      %vm1793 = vcmp.eq.f32.partialorder %v1765, inf
      %v1794 = vsel %vm1793, %v1765, %v1792
      %vm1795 = vcmp.eq.f32.partialorder %v1765, 0.0
      %v1796 = vand.u32 %v1765, 2147483648
      %v1797 = vsel %vm1795, %v1796, %v1794
      %v1798 = vrsqrt.pop %v1768
      %v1799 = vmul.f32 %v1768, %v1798
      %vm1800 = vcmp.eq.f32.partialorder %v1768, inf
      %v1801 = vsel %vm1800, %v1768, %v1799
      %vm1802 = vcmp.eq.f32.partialorder %v1768, 0.0
      %v1803 = vand.u32 %v1768, 2147483648
      %v1804 = vsel %vm1802, %v1803, %v1801
      %v1805 = vrsqrt.pop %v1771
      %v1806 = vmul.f32 %v1771, %v1805
      %vm1807 = vcmp.eq.f32.partialorder %v1771, inf
      %v1808 = vsel %vm1807, %v1771, %v1806
      %vm1809 = vcmp.eq.f32.partialorder %v1771, 0.0
      %v1810 = vand.u32 %v1771, 2147483648
      %v1811 = vsel %vm1809, %v1810, %v1808
      %v1812 = vrsqrt.pop %v1774
      %v1813 = vmul.f32 %v1774, %v1812
      %vm1814 = vcmp.eq.f32.partialorder %v1774, inf
      %v1815 = vsel %vm1814, %v1774, %v1813
      %vm1816 = vcmp.eq.f32.partialorder %v1774, 0.0
      %v1817 = vand.u32 %v1774, 2147483648
      %v1818 = vsel %vm1816, %v1817, %v1815
      %v1819 = vrsqrt.pop %v1777
      %v1820 = vmul.f32 %v1777, %v1819
      %vm1821 = vcmp.eq.f32.partialorder %v1777, inf
      %v1822 = vsel %vm1821, %v1777, %v1820
      %vm1823 = vcmp.eq.f32.partialorder %v1777, 0.0
      %v1824 = vand.u32 %v1777, 2147483648
      %v1825 = vsel %vm1823, %v1824, %v1822
      %v1826 = vrsqrt.pop %v1780
      %v1827 = vmul.f32 %v1780, %v1826
      %vm1828 = vcmp.eq.f32.partialorder %v1780, inf
      %v1829 = vsel %vm1828, %v1780, %v1827
      %vm1830 = vcmp.eq.f32.partialorder %v1780, 0.0
      %v1831 = vand.u32 %v1780, 2147483648
      %v1832 = vsel %vm1830, %v1831, %v1829
      %v1833 = vrsqrt.pop %v1783
      %v1834 = vmul.f32 %v1783, %v1833
      %vm1835 = vcmp.eq.f32.partialorder %v1783, inf
      %v1836 = vsel %vm1835, %v1783, %v1834
      %vm1837 = vcmp.eq.f32.partialorder %v1783, 0.0
      %v1838 = vand.u32 %v1783, 2147483648
      %v1839 = vsel %vm1837, %v1838, %v1836
      %v1840 = vmax.f32 %v1790, 1e-12
      %v1841 = vmax.f32 %v1797, 1e-12
      %v1842 = vmax.f32 %v1804, 1e-12
      %v1843 = vmax.f32 %v1811, 1e-12
      %v1844 = vmax.f32 %v1818, 1e-12
      %v1845 = vmax.f32 %v1825, 1e-12
      %v1846 = vmax.f32 %v1832, 1e-12
      %v1847 = vmax.f32 %v1839, 1e-12
      %v1848 = vrcp.pop %v1840
      %v1849 = vmul.f32 %v614, %v1848
      %v1850 = vrcp.pop %v1841
      %v1851 = vmul.f32 %v619, %v1850
      %v1852 = vrcp.pop %v1842
      %v1853 = vmul.f32 %v624, %v1852
      %v1854 = vrcp.pop %v1843
      %v1855 = vmul.f32 %v629, %v1854
      %v1856 = vrcp.pop %v1844
      %v1857 = vmul.f32 %v634, %v1856
      %v1858 = vrcp.pop %v1845
      %v1859 = vmul.f32 %v639, %v1858
      %v1860 = vrcp.pop %v1846
      %v1861 = vmul.f32 %v644, %v1860
      %v1862 = vrcp.pop %v1847
      %v1863 = vmul.f32 %v649, %v1862
      %1864 = vrot.lane.b32.xlu0 %v652, 88
      %v1865 = vpop.permute.xlu0 %1864
      %1866 = vrot.lane.b32.xlu0 %v653, 88
      %v1867 = vpop.permute.xlu0 %1866
      %1868 = vrot.lane.b32.xlu0 %v654, 88
      %v1869 = vpop.permute.xlu0 %1868
      %1870 = vrot.lane.b32.xlu0 %v655, 88
      %v1871 = vpop.permute.xlu0 %1870
      %1872 = vrot.lane.b32.xlu0 %v656, 88
      %v1873 = vpop.permute.xlu0 %1872
      %1874 = vrot.lane.b32.xlu0 %v657, 88
      %v1875 = vpop.permute.xlu0 %1874
      %1876 = vrot.lane.b32.xlu0 %v658, 88
      %v1877 = vpop.permute.xlu0 %1876
      %1878 = vrot.lane.b32.xlu0 %v659, 88
      %v1879 = vpop.permute.xlu0 %1878
      %v1888 = vsel %vm660, %v1865, 0.0
      %1889 = vadd.xlane.f32.xlu0 %v1888
      %v1890 = vpop.xlane.xlu0 %1889
      %v1891 = vsel %vm660, %v1867, 0.0
      %1892 = vadd.xlane.f32.xlu0 %v1891
      %v1893 = vpop.xlane.xlu0 %1892
      %v1894 = vsel %vm660, %v1869, 0.0
      %1895 = vadd.xlane.f32.xlu0 %v1894
      %v1896 = vpop.xlane.xlu0 %1895
      %v1897 = vsel %vm660, %v1871, 0.0
      %1898 = vadd.xlane.f32.xlu0 %v1897
      %v1899 = vpop.xlane.xlu0 %1898
      %v1900 = vsel %vm660, %v1873, 0.0
      %1901 = vadd.xlane.f32.xlu0 %v1900
      %v1902 = vpop.xlane.xlu0 %1901
      %v1903 = vsel %vm660, %v1875, 0.0
      %1904 = vadd.xlane.f32.xlu0 %v1903
      %v1905 = vpop.xlane.xlu0 %1904
      %v1906 = vsel %vm660, %v1877, 0.0
      %1907 = vadd.xlane.f32.xlu0 %v1906
      %v1908 = vpop.xlane.xlu0 %1907
      %v1909 = vsel %vm660, %v1879, 0.0
      %1910 = vadd.xlane.f32.xlu0 %v1909
      %v1911 = vpop.xlane.xlu0 %1910
      %v1912 = vrsqrt.pop %v1890
      %v1913 = vmul.f32 %v1890, %v1912
      %vm1914 = vcmp.eq.f32.partialorder %v1890, inf
      %v1915 = vsel %vm1914, %v1890, %v1913
      %vm1916 = vcmp.eq.f32.partialorder %v1890, 0.0
      %v1917 = vand.u32 %v1890, 2147483648
      %v1918 = vsel %vm1916, %v1917, %v1915
      %v1919 = vrsqrt.pop %v1893
      %v1920 = vmul.f32 %v1893, %v1919
      %vm1921 = vcmp.eq.f32.partialorder %v1893, inf
      %v1922 = vsel %vm1921, %v1893, %v1920
      %vm1923 = vcmp.eq.f32.partialorder %v1893, 0.0
      %v1924 = vand.u32 %v1893, 2147483648
      %v1925 = vsel %vm1923, %v1924, %v1922
      %v1926 = vrsqrt.pop %v1896
      %v1927 = vmul.f32 %v1896, %v1926
      %vm1928 = vcmp.eq.f32.partialorder %v1896, inf
      %v1929 = vsel %vm1928, %v1896, %v1927
      %vm1930 = vcmp.eq.f32.partialorder %v1896, 0.0
      %v1931 = vand.u32 %v1896, 2147483648
      %v1932 = vsel %vm1930, %v1931, %v1929
      %v1933 = vrsqrt.pop %v1899
      %v1934 = vmul.f32 %v1899, %v1933
      %vm1935 = vcmp.eq.f32.partialorder %v1899, inf
      %v1936 = vsel %vm1935, %v1899, %v1934
      %vm1937 = vcmp.eq.f32.partialorder %v1899, 0.0
      %v1938 = vand.u32 %v1899, 2147483648
      %v1939 = vsel %vm1937, %v1938, %v1936
      %v1940 = vrsqrt.pop %v1902
      %v1941 = vmul.f32 %v1902, %v1940
      %vm1942 = vcmp.eq.f32.partialorder %v1902, inf
      %v1943 = vsel %vm1942, %v1902, %v1941
      %vm1944 = vcmp.eq.f32.partialorder %v1902, 0.0
      %v1945 = vand.u32 %v1902, 2147483648
      %v1946 = vsel %vm1944, %v1945, %v1943
      %v1947 = vrsqrt.pop %v1905
      %v1948 = vmul.f32 %v1905, %v1947
      %vm1949 = vcmp.eq.f32.partialorder %v1905, inf
      %v1950 = vsel %vm1949, %v1905, %v1948
      %vm1951 = vcmp.eq.f32.partialorder %v1905, 0.0
      %v1952 = vand.u32 %v1905, 2147483648
      %v1953 = vsel %vm1951, %v1952, %v1950
      %v1954 = vrsqrt.pop %v1908
      %v1955 = vmul.f32 %v1908, %v1954
      %vm1956 = vcmp.eq.f32.partialorder %v1908, inf
      %v1957 = vsel %vm1956, %v1908, %v1955
      %vm1958 = vcmp.eq.f32.partialorder %v1908, 0.0
      %v1959 = vand.u32 %v1908, 2147483648
      %v1960 = vsel %vm1958, %v1959, %v1957
      %v1961 = vrsqrt.pop %v1911
      %v1962 = vmul.f32 %v1911, %v1961
      %vm1963 = vcmp.eq.f32.partialorder %v1911, inf
      %v1964 = vsel %vm1963, %v1911, %v1962
      %vm1965 = vcmp.eq.f32.partialorder %v1911, 0.0
      %v1966 = vand.u32 %v1911, 2147483648
      %v1967 = vsel %vm1965, %v1966, %v1964
      %v1968 = vmax.f32 %v1918, 1e-12
      %v1969 = vmax.f32 %v1925, 1e-12
      %v1970 = vmax.f32 %v1932, 1e-12
      %v1971 = vmax.f32 %v1939, 1e-12
      %v1972 = vmax.f32 %v1946, 1e-12
      %v1973 = vmax.f32 %v1953, 1e-12
      %v1974 = vmax.f32 %v1960, 1e-12
      %v1975 = vmax.f32 %v1967, 1e-12
      %v1976 = vrcp.pop %v1968
      %v1977 = vmul.f32 %v614, %v1976
      %v1978 = vrcp.pop %v1969
      %v1979 = vmul.f32 %v619, %v1978
      %v1980 = vrcp.pop %v1970
      %v1981 = vmul.f32 %v624, %v1980
      %v1982 = vrcp.pop %v1971
      %v1983 = vmul.f32 %v629, %v1982
      %v1984 = vrcp.pop %v1972
      %v1985 = vmul.f32 %v634, %v1984
      %v1986 = vrcp.pop %v1973
      %v1987 = vmul.f32 %v639, %v1986
      %v1988 = vrcp.pop %v1974
      %v1989 = vmul.f32 %v644, %v1988
      %v1990 = vrcp.pop %v1975
      %v1991 = vmul.f32 %v649, %v1990
      %1994 = vrot.lane.b32.xlu0 %v1849, 120
      %v1995 = vpop.permute.xlu0 %1994
      %1996 = vrot.lane.b32.xlu0 %v1851, 120
      %v1997 = vpop.permute.xlu0 %1996
      %2000 = vrot.lane.b32.xlu0 %v1977, 88
      %v2001 = vpop.permute.xlu0 %2000
      %2002 = vrot.lane.b32.xlu0 %v1979, 88
      %v2003 = vpop.permute.xlu0 %2002
      %v2004 = vsel %vm660, %v1995, 0
      %v2006 = vsel %vm660, %v1997, 0
      %v2008 = vsel %vm660, %v2001, 0
      %v2010 = vsel %vm660, %v2003, 0
      %2012 = vmatprep.subr.mxu0 0.0
      %2013 = vmatpush1.xpose.msra.mxu0 %v2008
      %2014 = vmatprep.subr.mxu0 0.0
      %2015 = vmatpush1.xpose.msra.mxu0 %v2010
      %2016 = vmatprep.subr.mxu0 0.0
      %2017 = vmatpush1.xpose.msra.mxu0 0.0
      %2018 = vmatprep.subr.mxu0 0.0
      %2019 = vmatpush1.xpose.msra.mxu0 0.0
      %2020 = vmatprep.subr.mxu0 0.0
      %2021 = vmatpush1.xpose.msra.mxu0 0.0
      %2022 = vmatprep.subr.mxu0 0.0
      %2023 = vmatpush1.xpose.msra.mxu0 0.0
      %2024 = vmatprep.subr.mxu0 0.0
      %2025 = vmatpush1.xpose.msra.mxu0 0.0
      %2026 = vmatprep.subr.mxu0 0.0
      %2027 = vmatpush1.xpose.msra.mxu0 0.0
      %2028 = vmatprep.subr.mxu0 0.0
      %2029 = vmatpush1.xpose.msra.mxu0 0.0
      %2030 = vmatprep.subr.mxu0 0.0
      %2031 = vmatpush1.xpose.msra.mxu0 0.0
      %2032 = vmatprep.subr.mxu0 0.0
      %2033 = vmatpush1.xpose.msra.mxu0 0.0
      %2034 = vmatprep.subr.mxu0 0.0
      %2035 = vmatpush1.xpose.msra.mxu0 0.0
      %2036 = vmatprep.subr.mxu0 0.0
      %2037 = vmatpush1.xpose.msra.mxu0 0.0
      %2038 = vmatprep.subr.mxu0 0.0
      %2039 = vmatpush1.xpose.msra.mxu0 0.0
      %2040 = vmatprep.subr.mxu0 0.0
      %2041 = vmatpush1.xpose.msra.mxu0 0.0
      %2042 = vmatprep.subr.mxu0 0.0
      %2043 = vmatpush1.xpose.msra.mxu0 0.0
      %2044 = vmatprep.subr.mxu0 0.0
      %2045 = vmatpush1.xpose.msra.mxu0 0.0
      %2046 = vmatprep.subr.mxu0 0.0
      %2047 = vmatpush1.xpose.msra.mxu0 0.0
      %2048 = vmatprep.subr.mxu0 0.0
      %2049 = vmatpush1.xpose.msra.mxu0 0.0
      %2050 = vmatprep.subr.mxu0 0.0
      %2051 = vmatpush1.xpose.msra.mxu0 0.0
      %2052 = vmatprep.subr.mxu0 0.0
      %2053 = vmatpush1.xpose.msra.mxu0 0.0
      %2054 = vmatprep.subr.mxu0 0.0
      %2055 = vmatpush1.xpose.msra.mxu0 0.0
      %2056 = vmatprep.subr.mxu0 0.0
      %2057 = vmatpush1.xpose.msra.mxu0 0.0
      %2058 = vmatprep.subr.mxu0 0.0
      %2059 = vmatpush1.xpose.msra.mxu0 0.0
      %2060 = vmatprep.subr.mxu0 0.0
      %2061 = vmatpush1.xpose.msra.mxu0 0.0
      %2062 = vmatprep.subr.mxu0 0.0
      %2063 = vmatpush1.xpose.msra.mxu0 0.0
      %2064 = vmatprep.subr.mxu0 0.0
      %2065 = vmatpush1.xpose.msra.mxu0 0.0
      %2066 = vmatprep.subr.mxu0 0.0
      %2067 = vmatpush1.xpose.msra.mxu0 0.0
      %2068 = vmatprep.subr.mxu0 0.0
      %2069 = vmatpush1.xpose.msra.mxu0 0.0
      %2070 = vmatprep.subr.mxu0 0.0
      %2071 = vmatpush1.xpose.msra.mxu0 0.0
      %2072 = vmatprep.subr.mxu0 0.0
      %2073 = vmatpush1.xpose.msra.mxu0 0.0
      %2074 = vmatprep.subr.mxu0 0.0
      %2075 = vmatpush1.xpose.msra.mxu0 0.0
      %2076 = vmatprep.mubr.f32.mxu0 0.0
      %2077 = vmatmul.mubr.f32.gmra.mrb[0].mxu0 %v2004
      %v2078 = vpop.f32.mrb[0].mxu0
      %v2079 = vadd.f32 0.0, %v2078
      %v2080 = vpop.f32.mrb[0].mxu0
      %2081 = vmatprep.mubr.f32.mxu0 0.0
      %2082 = vmatmul.mubr.f32.gmra.mrb[0].mxu0 %v2006
      %v2083 = vpop.f32.mrb[0].mxu0
      %v2084 = vadd.f32 0.0, %v2083
      %v2085 = vpop.f32.mrb[0].mxu0
      %2086 = vdwg.mxu0
      %2089 = vrot.lane.b32.xlu0 %v1853, 120
      %v2090 = vpop.permute.xlu0 %2089
      %2091 = vrot.lane.b32.xlu0 %v1855, 120
      %v2092 = vpop.permute.xlu0 %2091
      %2095 = vrot.lane.b32.xlu0 %v1981, 88
      %v2096 = vpop.permute.xlu0 %2095
      %2097 = vrot.lane.b32.xlu0 %v1983, 88
      %v2098 = vpop.permute.xlu0 %2097
      %v2099 = vsel %vm660, %v2090, 0
      %v2101 = vsel %vm660, %v2092, 0
      %v2103 = vsel %vm660, %v2096, 0
      %v2105 = vsel %vm660, %v2098, 0
      %2107 = vmatprep.subr.mxu0 0.0
      %2108 = vmatpush1.xpose.msra.mxu0 %v2103
      %2109 = vmatprep.subr.mxu0 0.0
      %2110 = vmatpush1.xpose.msra.mxu0 %v2105
      %2111 = vmatprep.subr.mxu0 0.0
      %2112 = vmatpush1.xpose.msra.mxu0 0.0
      %2113 = vmatprep.subr.mxu0 0.0
      %2114 = vmatpush1.xpose.msra.mxu0 0.0
      %2115 = vmatprep.subr.mxu0 0.0
      %2116 = vmatpush1.xpose.msra.mxu0 0.0
      %2117 = vmatprep.subr.mxu0 0.0
      %2118 = vmatpush1.xpose.msra.mxu0 0.0
      %2119 = vmatprep.subr.mxu0 0.0
      %2120 = vmatpush1.xpose.msra.mxu0 0.0
      %2121 = vmatprep.subr.mxu0 0.0
      %2122 = vmatpush1.xpose.msra.mxu0 0.0
      %2123 = vmatprep.subr.mxu0 0.0
      %2124 = vmatpush1.xpose.msra.mxu0 0.0
      %2125 = vmatprep.subr.mxu0 0.0
      %2126 = vmatpush1.xpose.msra.mxu0 0.0
      %2127 = vmatprep.subr.mxu0 0.0
      %2128 = vmatpush1.xpose.msra.mxu0 0.0
      %2129 = vmatprep.subr.mxu0 0.0
      %2130 = vmatpush1.xpose.msra.mxu0 0.0
      %2131 = vmatprep.subr.mxu0 0.0
      %2132 = vmatpush1.xpose.msra.mxu0 0.0
      %2133 = vmatprep.subr.mxu0 0.0
      %2134 = vmatpush1.xpose.msra.mxu0 0.0
      %2135 = vmatprep.subr.mxu0 0.0
      %2136 = vmatpush1.xpose.msra.mxu0 0.0
      %2137 = vmatprep.subr.mxu0 0.0
      %2138 = vmatpush1.xpose.msra.mxu0 0.0
      %2139 = vmatprep.subr.mxu0 0.0
      %2140 = vmatpush1.xpose.msra.mxu0 0.0
      %2141 = vmatprep.subr.mxu0 0.0
      %2142 = vmatpush1.xpose.msra.mxu0 0.0
      %2143 = vmatprep.subr.mxu0 0.0
      %2144 = vmatpush1.xpose.msra.mxu0 0.0
      %2145 = vmatprep.subr.mxu0 0.0
      %2146 = vmatpush1.xpose.msra.mxu0 0.0
      %2147 = vmatprep.subr.mxu0 0.0
      %2148 = vmatpush1.xpose.msra.mxu0 0.0
      %2149 = vmatprep.subr.mxu0 0.0
      %2150 = vmatpush1.xpose.msra.mxu0 0.0
      %2151 = vmatprep.subr.mxu0 0.0
      %2152 = vmatpush1.xpose.msra.mxu0 0.0
      %2153 = vmatprep.subr.mxu0 0.0
      %2154 = vmatpush1.xpose.msra.mxu0 0.0
      %2155 = vmatprep.subr.mxu0 0.0
      %2156 = vmatpush1.xpose.msra.mxu0 0.0
      %2157 = vmatprep.subr.mxu0 0.0
      %2158 = vmatpush1.xpose.msra.mxu0 0.0
      %2159 = vmatprep.subr.mxu0 0.0
      %2160 = vmatpush1.xpose.msra.mxu0 0.0
      %2161 = vmatprep.subr.mxu0 0.0
      %2162 = vmatpush1.xpose.msra.mxu0 0.0
      %2163 = vmatprep.subr.mxu0 0.0
      %2164 = vmatpush1.xpose.msra.mxu0 0.0
      %2165 = vmatprep.subr.mxu0 0.0
      %2166 = vmatpush1.xpose.msra.mxu0 0.0
      %2167 = vmatprep.subr.mxu0 0.0
      %2168 = vmatpush1.xpose.msra.mxu0 0.0
      %2169 = vmatprep.subr.mxu0 0.0
      %2170 = vmatpush1.xpose.msra.mxu0 0.0
      %2171 = vmatprep.mubr.f32.mxu0 0.0
      %2172 = vmatmul.mubr.f32.gmra.mrb[0].mxu0 %v2099
      %v2173 = vpop.f32.mrb[0].mxu0
      %v2174 = vadd.f32 0.0, %v2173
      %v2175 = vpop.f32.mrb[0].mxu0
      %2176 = vmatprep.mubr.f32.mxu0 0.0
      %2177 = vmatmul.mubr.f32.gmra.mrb[0].mxu0 %v2101
      %v2178 = vpop.f32.mrb[0].mxu0
      %v2179 = vadd.f32 0.0, %v2178
      %v2180 = vpop.f32.mrb[0].mxu0
      %2181 = vdwg.mxu0
      %2184 = vrot.lane.b32.xlu0 %v1857, 120
      %v2185 = vpop.permute.xlu0 %2184
      %2186 = vrot.lane.b32.xlu0 %v1859, 120
      %v2187 = vpop.permute.xlu0 %2186
      %2190 = vrot.lane.b32.xlu0 %v1985, 88
      %v2191 = vpop.permute.xlu0 %2190
      %2192 = vrot.lane.b32.xlu0 %v1987, 88
      %v2193 = vpop.permute.xlu0 %2192
      %v2194 = vsel %vm660, %v2185, 0
      %v2196 = vsel %vm660, %v2187, 0
      %v2198 = vsel %vm660, %v2191, 0
      %v2200 = vsel %vm660, %v2193, 0
      %2202 = vmatprep.subr.mxu0 0.0
      %2203 = vmatpush1.xpose.msra.mxu0 %v2198
      %2204 = vmatprep.subr.mxu0 0.0
      %2205 = vmatpush1.xpose.msra.mxu0 %v2200
      %2206 = vmatprep.subr.mxu0 0.0
      %2207 = vmatpush1.xpose.msra.mxu0 0.0
      %2208 = vmatprep.subr.mxu0 0.0
      %2209 = vmatpush1.xpose.msra.mxu0 0.0
      %2210 = vmatprep.subr.mxu0 0.0
      %2211 = vmatpush1.xpose.msra.mxu0 0.0
      %2212 = vmatprep.subr.mxu0 0.0
      %2213 = vmatpush1.xpose.msra.mxu0 0.0
      %2214 = vmatprep.subr.mxu0 0.0
      %2215 = vmatpush1.xpose.msra.mxu0 0.0
      %2216 = vmatprep.subr.mxu0 0.0
      %2217 = vmatpush1.xpose.msra.mxu0 0.0
      %2218 = vmatprep.subr.mxu0 0.0
      %2219 = vmatpush1.xpose.msra.mxu0 0.0
      %2220 = vmatprep.subr.mxu0 0.0
      %2221 = vmatpush1.xpose.msra.mxu0 0.0
      %2222 = vmatprep.subr.mxu0 0.0
      %2223 = vmatpush1.xpose.msra.mxu0 0.0
      %2224 = vmatprep.subr.mxu0 0.0
      %2225 = vmatpush1.xpose.msra.mxu0 0.0
      %2226 = vmatprep.subr.mxu0 0.0
      %2227 = vmatpush1.xpose.msra.mxu0 0.0
      %2228 = vmatprep.subr.mxu0 0.0
      %2229 = vmatpush1.xpose.msra.mxu0 0.0
      %2230 = vmatprep.subr.mxu0 0.0
      %2231 = vmatpush1.xpose.msra.mxu0 0.0
      %2232 = vmatprep.subr.mxu0 0.0
      %2233 = vmatpush1.xpose.msra.mxu0 0.0
      %2234 = vmatprep.subr.mxu0 0.0
      %2235 = vmatpush1.xpose.msra.mxu0 0.0
      %2236 = vmatprep.subr.mxu0 0.0
      %2237 = vmatpush1.xpose.msra.mxu0 0.0
      %2238 = vmatprep.subr.mxu0 0.0
      %2239 = vmatpush1.xpose.msra.mxu0 0.0
      %2240 = vmatprep.subr.mxu0 0.0
      %2241 = vmatpush1.xpose.msra.mxu0 0.0
      %2242 = vmatprep.subr.mxu0 0.0
      %2243 = vmatpush1.xpose.msra.mxu0 0.0
      %2244 = vmatprep.subr.mxu0 0.0
      %2245 = vmatpush1.xpose.msra.mxu0 0.0
      %2246 = vmatprep.subr.mxu0 0.0
      %2247 = vmatpush1.xpose.msra.mxu0 0.0
      %2248 = vmatprep.subr.mxu0 0.0
      %2249 = vmatpush1.xpose.msra.mxu0 0.0
      %2250 = vmatprep.subr.mxu0 0.0
      %2251 = vmatpush1.xpose.msra.mxu0 0.0
      %2252 = vmatprep.subr.mxu0 0.0
      %2253 = vmatpush1.xpose.msra.mxu0 0.0
      %2254 = vmatprep.subr.mxu0 0.0
      %2255 = vmatpush1.xpose.msra.mxu0 0.0
      %2256 = vmatprep.subr.mxu0 0.0
      %2257 = vmatpush1.xpose.msra.mxu0 0.0
      %2258 = vmatprep.subr.mxu0 0.0
      %2259 = vmatpush1.xpose.msra.mxu0 0.0
      %2260 = vmatprep.subr.mxu0 0.0
      %2261 = vmatpush1.xpose.msra.mxu0 0.0
      %2262 = vmatprep.subr.mxu0 0.0
      %2263 = vmatpush1.xpose.msra.mxu0 0.0
      %2264 = vmatprep.subr.mxu0 0.0
      %2265 = vmatpush1.xpose.msra.mxu0 0.0
      %2266 = vmatprep.mubr.f32.mxu0 0.0
      %2267 = vmatmul.mubr.f32.gmra.mrb[0].mxu0 %v2194
      %v2268 = vpop.f32.mrb[0].mxu0
      %v2269 = vadd.f32 0.0, %v2268
      %v2270 = vpop.f32.mrb[0].mxu0
      %2271 = vmatprep.mubr.f32.mxu0 0.0
      %2272 = vmatmul.mubr.f32.gmra.mrb[0].mxu0 %v2196
      %v2273 = vpop.f32.mrb[0].mxu0
      %v2274 = vadd.f32 0.0, %v2273
      %v2275 = vpop.f32.mrb[0].mxu0
      %2276 = vdwg.mxu0
      %2279 = vrot.lane.b32.xlu0 %v1861, 120
      %v2280 = vpop.permute.xlu0 %2279
      %2281 = vrot.lane.b32.xlu0 %v1863, 120
      %v2282 = vpop.permute.xlu0 %2281
      %2285 = vrot.lane.b32.xlu0 %v1989, 88
      %v2286 = vpop.permute.xlu0 %2285
      %2287 = vrot.lane.b32.xlu0 %v1991, 88
      %v2288 = vpop.permute.xlu0 %2287
      %v2289 = vsel %vm660, %v2280, 0
      %v2291 = vsel %vm660, %v2282, 0
      %v2293 = vsel %vm660, %v2286, 0
      %v2295 = vsel %vm660, %v2288, 0
      %2297 = vmatprep.subr.mxu0 0.0
      %2298 = vmatpush1.xpose.msra.mxu0 %v2293
      %2299 = vmatprep.subr.mxu0 0.0
      %2300 = vmatpush1.xpose.msra.mxu0 %v2295
      %2301 = vmatprep.subr.mxu0 0.0
      %2302 = vmatpush1.xpose.msra.mxu0 0.0
      %2303 = vmatprep.subr.mxu0 0.0
      %2304 = vmatpush1.xpose.msra.mxu0 0.0
      %2305 = vmatprep.subr.mxu0 0.0
      %2306 = vmatpush1.xpose.msra.mxu0 0.0
      %2307 = vmatprep.subr.mxu0 0.0
      %2308 = vmatpush1.xpose.msra.mxu0 0.0
      %2309 = vmatprep.subr.mxu0 0.0
      %2310 = vmatpush1.xpose.msra.mxu0 0.0
      %2311 = vmatprep.subr.mxu0 0.0
      %2312 = vmatpush1.xpose.msra.mxu0 0.0
      %2313 = vmatprep.subr.mxu0 0.0
      %2314 = vmatpush1.xpose.msra.mxu0 0.0
      %2315 = vmatprep.subr.mxu0 0.0
      %2316 = vmatpush1.xpose.msra.mxu0 0.0
      %2317 = vmatprep.subr.mxu0 0.0
      %2318 = vmatpush1.xpose.msra.mxu0 0.0
      %2319 = vmatprep.subr.mxu0 0.0
      %2320 = vmatpush1.xpose.msra.mxu0 0.0
      %2321 = vmatprep.subr.mxu0 0.0
      %2322 = vmatpush1.xpose.msra.mxu0 0.0
      %2323 = vmatprep.subr.mxu0 0.0
      %2324 = vmatpush1.xpose.msra.mxu0 0.0
      %2325 = vmatprep.subr.mxu0 0.0
      %2326 = vmatpush1.xpose.msra.mxu0 0.0
      %2327 = vmatprep.subr.mxu0 0.0
      %2328 = vmatpush1.xpose.msra.mxu0 0.0
      %2329 = vmatprep.subr.mxu0 0.0
      %2330 = vmatpush1.xpose.msra.mxu0 0.0
      %2331 = vmatprep.subr.mxu0 0.0
      %2332 = vmatpush1.xpose.msra.mxu0 0.0
      %2333 = vmatprep.subr.mxu0 0.0
      %2334 = vmatpush1.xpose.msra.mxu0 0.0
      %2335 = vmatprep.subr.mxu0 0.0
      %2336 = vmatpush1.xpose.msra.mxu0 0.0
      %2337 = vmatprep.subr.mxu0 0.0
      %2338 = vmatpush1.xpose.msra.mxu0 0.0
      %2339 = vmatprep.subr.mxu0 0.0
      %2340 = vmatpush1.xpose.msra.mxu0 0.0
      %2341 = vmatprep.subr.mxu0 0.0
      %2342 = vmatpush1.xpose.msra.mxu0 0.0
      %2343 = vmatprep.subr.mxu0 0.0
      %2344 = vmatpush1.xpose.msra.mxu0 0.0
      %2345 = vmatprep.subr.mxu0 0.0
      %2346 = vmatpush1.xpose.msra.mxu0 0.0
      %2347 = vmatprep.subr.mxu0 0.0
      %2348 = vmatpush1.xpose.msra.mxu0 0.0
      %2349 = vmatprep.subr.mxu0 0.0
      %2350 = vmatpush1.xpose.msra.mxu0 0.0
      %2351 = vmatprep.subr.mxu0 0.0
      %2352 = vmatpush1.xpose.msra.mxu0 0.0
      %2353 = vmatprep.subr.mxu0 0.0
      %2354 = vmatpush1.xpose.msra.mxu0 0.0
      %2355 = vmatprep.subr.mxu0 0.0
      %2356 = vmatpush1.xpose.msra.mxu0 0.0
      %2357 = vmatprep.subr.mxu0 0.0
      %2358 = vmatpush1.xpose.msra.mxu0 0.0
      %2359 = vmatprep.subr.mxu0 0.0
      %2360 = vmatpush1.xpose.msra.mxu0 0.0
      %2361 = vmatprep.mubr.f32.mxu0 0.0
      %2362 = vmatmul.mubr.f32.gmra.mrb[0].mxu0 %v2289
      %v2363 = vpop.f32.mrb[0].mxu0
      %v2364 = vadd.f32 0.0, %v2363
      %v2365 = vpop.f32.mrb[0].mxu0
      %2366 = vmatprep.mubr.f32.mxu0 0.0
      %2367 = vmatmul.mubr.f32.gmra.mrb[0].mxu0 %v2291
      %v2368 = vpop.f32.mrb[0].mxu0
      %v2369 = vadd.f32 0.0, %v2368
      %v2370 = vpop.f32.mrb[0].mxu0
      %2371 = vdwg.mxu0
      %s2372 = scalar_lea.vmem %s3, 1
      %v2373 = vld [vmem:[%s2372] sm:$0x1]
      %v2375 = vlaneseq
      %v2376 = vshrl.u32 %v2375, 7
      %v2377 = vsub.s32 0, %v2376
      %v2378 = vrot.slane %v2373, %v2377
      %v2380 = vmul.f32 %v2079, %v2378
      %v2381 = vmul.f32 %v2084, %v2378
      %v2382 = vmul.f32 %v2174, %v2378
      %v2383 = vmul.f32 %v2179, %v2378
      %v2384 = vmul.f32 %v2269, %v2378
      %v2385 = vmul.f32 %v2274, %v2378
      %v2386 = vmul.f32 %v2364, %v2378
      %v2387 = vmul.f32 %v2369, %v2378
      %s2388 = scalar_lea.vmem %s4, 16
      %v2389 = vld [vmem:[%s2388] sm:$0xff]
      %v2390 = vld [vmem:[%s2388 + $0x8] sm:$0xff]
      %v2391 = vadd.f32 %v2380, %v2389
      %v2392 = vadd.f32 %v2381, %v2390
      %v2393 = vadd.f32 %v2382, %v2389
      %v2394 = vadd.f32 %v2383, %v2390
      %v2395 = vadd.f32 %v2384, %v2389
      %v2396 = vadd.f32 %v2385, %v2390
      %v2397 = vadd.f32 %v2386, %v2389
      %v2398 = vadd.f32 %v2387, %v2390
      %v2399 = vsel %vm1290, %v2391, -inf
      %2400 = vmax.xlane.f32.xlu0 %v2399
      %v2401 = vpop.xlane.xlu0 %2400
      %v2402 = vsel %vm1290, %v2392, -inf
      %2403 = vmax.xlane.f32.xlu0 %v2402
      %v2404 = vpop.xlane.xlu0 %2403
      %v2405 = vsel %vm1290, %v2393, -inf
      %2406 = vmax.xlane.f32.xlu0 %v2405
      %v2407 = vpop.xlane.xlu0 %2406
      %v2408 = vsel %vm1290, %v2394, -inf
      %2409 = vmax.xlane.f32.xlu0 %v2408
      %v2410 = vpop.xlane.xlu0 %2409
      %v2411 = vsel %vm1290, %v2395, -inf
      %2412 = vmax.xlane.f32.xlu0 %v2411
      %v2413 = vpop.xlane.xlu0 %2412
      %v2414 = vsel %vm1290, %v2396, -inf
      %2415 = vmax.xlane.f32.xlu0 %v2414
      %v2416 = vpop.xlane.xlu0 %2415
      %v2417 = vsel %vm1290, %v2397, -inf
      %2418 = vmax.xlane.f32.xlu0 %v2417
      %v2419 = vpop.xlane.xlu0 %2418
      %v2420 = vsel %vm1290, %v2398, -inf
      %2421 = vmax.xlane.f32.xlu0 %v2420
      %v2422 = vpop.xlane.xlu0 %2421
      %v2423 = vsub.f32 %v2391, %v2401
      %v2424 = vsub.f32 %v2392, %v2404
      %v2425 = vsub.f32 %v2393, %v2407
      %v2426 = vsub.f32 %v2394, %v2410
      %v2427 = vsub.f32 %v2395, %v2413
      %v2428 = vsub.f32 %v2396, %v2416
      %v2429 = vsub.f32 %v2397, %v2419
      %v2430 = vsub.f32 %v2398, %v2422
      %v2431 = vmul.f32 %v2423, 1.442695
      %v2432 = vpow.pop %v2431
      %v2433 = vmul.f32 %v2424, 1.442695
      %v2434 = vpow.pop %v2433
      %v2435 = vmul.f32 %v2425, 1.442695
      %v2436 = vpow.pop %v2435
      %v2437 = vmul.f32 %v2426, 1.442695
      %v2438 = vpow.pop %v2437
      %v2439 = vmul.f32 %v2427, 1.442695
      %v2440 = vpow.pop %v2439
      %v2441 = vmul.f32 %v2428, 1.442695
      %v2442 = vpow.pop %v2441
      %v2443 = vmul.f32 %v2429, 1.442695
      %v2444 = vpow.pop %v2443
      %v2445 = vmul.f32 %v2430, 1.442695
      %v2446 = vpow.pop %v2445
      %v2447 = vsel %vm1290, %v2432, 0.0
      %2448 = vadd.xlane.f32.xlu0 %v2447
      %v2449 = vpop.xlane.xlu0 %2448
      %v2450 = vsel %vm1290, %v2434, 0.0
      %2451 = vadd.xlane.f32.xlu0 %v2450
      %v2452 = vpop.xlane.xlu0 %2451
      %v2453 = vsel %vm1290, %v2436, 0.0
      %2454 = vadd.xlane.f32.xlu0 %v2453
      %v2455 = vpop.xlane.xlu0 %2454
      %v2456 = vsel %vm1290, %v2438, 0.0
      %2457 = vadd.xlane.f32.xlu0 %v2456
      %v2458 = vpop.xlane.xlu0 %2457
      %v2459 = vsel %vm1290, %v2440, 0.0
      %2460 = vadd.xlane.f32.xlu0 %v2459
      %v2461 = vpop.xlane.xlu0 %2460
      %v2462 = vsel %vm1290, %v2442, 0.0
      %2463 = vadd.xlane.f32.xlu0 %v2462
      %v2464 = vpop.xlane.xlu0 %2463
      %v2465 = vsel %vm1290, %v2444, 0.0
      %2466 = vadd.xlane.f32.xlu0 %v2465
      %v2467 = vpop.xlane.xlu0 %2466
      %v2468 = vsel %vm1290, %v2446, 0.0
      %2469 = vadd.xlane.f32.xlu0 %v2468
      %v2470 = vpop.xlane.xlu0 %2469
      %v2471 = vrcp.pop %v2449
      %v2472 = vmul.f32 %v2432, %v2471
      %v2473 = vrcp.pop %v2452
      %v2474 = vmul.f32 %v2434, %v2473
      %v2475 = vrcp.pop %v2455
      %v2476 = vmul.f32 %v2436, %v2475
      %v2477 = vrcp.pop %v2458
      %v2478 = vmul.f32 %v2438, %v2477
      %v2479 = vrcp.pop %v2461
      %v2480 = vmul.f32 %v2440, %v2479
      %v2481 = vrcp.pop %v2464
      %v2482 = vmul.f32 %v2442, %v2481
      %v2483 = vrcp.pop %v2467
      %v2484 = vmul.f32 %v2444, %v2483
      %v2485 = vrcp.pop %v2470
      %v2486 = vmul.f32 %v2446, %v2485
      %2487 = vrot.lane.b32.xlu0 %v614, 56
      %v2488 = vpop.permute.xlu0 %2487
      %2489 = vrot.lane.b32.xlu0 %v619, 56
      %v2490 = vpop.permute.xlu0 %2489
      %v2494 = vsel %vm1290, %v2472, 0
      %v2497 = vsel %vm1290, %v2474, 0
      %2499 = vmatprep.subr.mxu0 0.0
      %2500 = vmatpush1.msra.mxu0 %v2488
      %2501 = vmatprep.subr.mxu0 0.0
      %2502 = vmatpush1.msra.mxu0 %v2490
      %2503 = vmatprep.subr.mxu0 0.0
      %2504 = vmatpush1.msra.mxu0 0.0
      %2505 = vmatprep.subr.mxu0 0.0
      %2506 = vmatpush1.msra.mxu0 0.0
      %2507 = vmatprep.subr.mxu0 0.0
      %2508 = vmatpush1.msra.mxu0 0.0
      %2509 = vmatprep.subr.mxu0 0.0
      %2510 = vmatpush1.msra.mxu0 0.0
      %2511 = vmatprep.subr.mxu0 0.0
      %2512 = vmatpush1.msra.mxu0 0.0
      %2513 = vmatprep.subr.mxu0 0.0
      %2514 = vmatpush1.msra.mxu0 0.0
      %2515 = vmatprep.subr.mxu0 0.0
      %2516 = vmatpush1.msra.mxu0 0.0
      %2517 = vmatprep.subr.mxu0 0.0
      %2518 = vmatpush1.msra.mxu0 0.0
      %2519 = vmatprep.subr.mxu0 0.0
      %2520 = vmatpush1.msra.mxu0 0.0
      %2521 = vmatprep.subr.mxu0 0.0
      %2522 = vmatpush1.msra.mxu0 0.0
      %2523 = vmatprep.subr.mxu0 0.0
      %2524 = vmatpush1.msra.mxu0 0.0
      %2525 = vmatprep.subr.mxu0 0.0
      %2526 = vmatpush1.msra.mxu0 0.0
      %2527 = vmatprep.subr.mxu0 0.0
      %2528 = vmatpush1.msra.mxu0 0.0
      %2529 = vmatprep.subr.mxu0 0.0
      %2530 = vmatpush1.msra.mxu0 0.0
      %2531 = vmatprep.subr.mxu0 0.0
      %2532 = vmatpush1.msra.mxu0 0.0
      %2533 = vmatprep.subr.mxu0 0.0
      %2534 = vmatpush1.msra.mxu0 0.0
      %2535 = vmatprep.subr.mxu0 0.0
      %2536 = vmatpush1.msra.mxu0 0.0
      %2537 = vmatprep.subr.mxu0 0.0
      %2538 = vmatpush1.msra.mxu0 0.0
      %2539 = vmatprep.subr.mxu0 0.0
      %2540 = vmatpush1.msra.mxu0 0.0
      %2541 = vmatprep.subr.mxu0 0.0
      %2542 = vmatpush1.msra.mxu0 0.0
      %2543 = vmatprep.subr.mxu0 0.0
      %2544 = vmatpush1.msra.mxu0 0.0
      %2545 = vmatprep.subr.mxu0 0.0
      %2546 = vmatpush1.msra.mxu0 0.0
      %2547 = vmatprep.subr.mxu0 0.0
      %2548 = vmatpush1.msra.mxu0 0.0
      %2549 = vmatprep.subr.mxu0 0.0
      %2550 = vmatpush1.msra.mxu0 0.0
      %2551 = vmatprep.subr.mxu0 0.0
      %2552 = vmatpush1.msra.mxu0 0.0
      %2553 = vmatprep.subr.mxu0 0.0
      %2554 = vmatpush1.msra.mxu0 0.0
      %2555 = vmatprep.subr.mxu0 0.0
      %2556 = vmatpush1.msra.mxu0 0.0
      %2557 = vmatprep.subr.mxu0 0.0
      %2558 = vmatpush1.msra.mxu0 0.0
      %2559 = vmatprep.subr.mxu0 0.0
      %2560 = vmatpush1.msra.mxu0 0.0
      %2561 = vmatprep.subr.mxu0 0.0
      %2562 = vmatpush1.msra.mxu0 0.0
      %2563 = vmatprep.mubr.f32.mxu0 0.0
      %2564 = vmatmul.mubr.f32.gmra.mrb[0].mxu0 %v2494
      %v2565 = vpop.f32.mrb[0].mxu0
      %v2566 = vadd.f32 0.0, %v2565
      %v2567 = vpop.f32.mrb[0].mxu0
      %2568 = vmatprep.mubr.f32.mxu0 0.0
      %2569 = vmatmul.mubr.f32.gmra.mrb[0].mxu0 %v2497
      %v2570 = vpop.f32.mrb[0].mxu0
      %v2571 = vadd.f32 0.0, %v2570
      %v2572 = vpop.f32.mrb[0].mxu0
      %2573 = vdwg.mxu0
      %2574 = vrot.lane.b32.xlu0 %v624, 56
      %v2575 = vpop.permute.xlu0 %2574
      %2576 = vrot.lane.b32.xlu0 %v629, 56
      %v2577 = vpop.permute.xlu0 %2576
      %v2581 = vsel %vm1290, %v2476, 0
      %v2584 = vsel %vm1290, %v2478, 0
      %2586 = vmatprep.subr.mxu0 0.0
      %2587 = vmatpush1.msra.mxu0 %v2575
      %2588 = vmatprep.subr.mxu0 0.0
      %2589 = vmatpush1.msra.mxu0 %v2577
      %2590 = vmatprep.subr.mxu0 0.0
      %2591 = vmatpush1.msra.mxu0 0.0
      %2592 = vmatprep.subr.mxu0 0.0
      %2593 = vmatpush1.msra.mxu0 0.0
      %2594 = vmatprep.subr.mxu0 0.0
      %2595 = vmatpush1.msra.mxu0 0.0
      %2596 = vmatprep.subr.mxu0 0.0
      %2597 = vmatpush1.msra.mxu0 0.0
      %2598 = vmatprep.subr.mxu0 0.0
      %2599 = vmatpush1.msra.mxu0 0.0
      %2600 = vmatprep.subr.mxu0 0.0
      %2601 = vmatpush1.msra.mxu0 0.0
      %2602 = vmatprep.subr.mxu0 0.0
      %2603 = vmatpush1.msra.mxu0 0.0
      %2604 = vmatprep.subr.mxu0 0.0
      %2605 = vmatpush1.msra.mxu0 0.0
      %2606 = vmatprep.subr.mxu0 0.0
      %2607 = vmatpush1.msra.mxu0 0.0
      %2608 = vmatprep.subr.mxu0 0.0
      %2609 = vmatpush1.msra.mxu0 0.0
      %2610 = vmatprep.subr.mxu0 0.0
      %2611 = vmatpush1.msra.mxu0 0.0
      %2612 = vmatprep.subr.mxu0 0.0
      %2613 = vmatpush1.msra.mxu0 0.0
      %2614 = vmatprep.subr.mxu0 0.0
      %2615 = vmatpush1.msra.mxu0 0.0
      %2616 = vmatprep.subr.mxu0 0.0
      %2617 = vmatpush1.msra.mxu0 0.0
      %2618 = vmatprep.subr.mxu0 0.0
      %2619 = vmatpush1.msra.mxu0 0.0
      %2620 = vmatprep.subr.mxu0 0.0
      %2621 = vmatpush1.msra.mxu0 0.0
      %2622 = vmatprep.subr.mxu0 0.0
      %2623 = vmatpush1.msra.mxu0 0.0
      %2624 = vmatprep.subr.mxu0 0.0
      %2625 = vmatpush1.msra.mxu0 0.0
      %2626 = vmatprep.subr.mxu0 0.0
      %2627 = vmatpush1.msra.mxu0 0.0
      %2628 = vmatprep.subr.mxu0 0.0
      %2629 = vmatpush1.msra.mxu0 0.0
      %2630 = vmatprep.subr.mxu0 0.0
      %2631 = vmatpush1.msra.mxu0 0.0
      %2632 = vmatprep.subr.mxu0 0.0
      %2633 = vmatpush1.msra.mxu0 0.0
      %2634 = vmatprep.subr.mxu0 0.0
      %2635 = vmatpush1.msra.mxu0 0.0
      %2636 = vmatprep.subr.mxu0 0.0
      %2637 = vmatpush1.msra.mxu0 0.0
      %2638 = vmatprep.subr.mxu0 0.0
      %2639 = vmatpush1.msra.mxu0 0.0
      %2640 = vmatprep.subr.mxu0 0.0
      %2641 = vmatpush1.msra.mxu0 0.0
      %2642 = vmatprep.subr.mxu0 0.0
      %2643 = vmatpush1.msra.mxu0 0.0
      %2644 = vmatprep.subr.mxu0 0.0
      %2645 = vmatpush1.msra.mxu0 0.0
      %2646 = vmatprep.subr.mxu0 0.0
      %2647 = vmatpush1.msra.mxu0 0.0
      %2648 = vmatprep.subr.mxu0 0.0
      %2649 = vmatpush1.msra.mxu0 0.0
      %2650 = vmatprep.mubr.f32.mxu0 0.0
      %2651 = vmatmul.mubr.f32.gmra.mrb[0].mxu0 %v2581
      %v2652 = vpop.f32.mrb[0].mxu0
      %v2653 = vadd.f32 0.0, %v2652
      %v2654 = vpop.f32.mrb[0].mxu0
      %2655 = vmatprep.mubr.f32.mxu0 0.0
      %2656 = vmatmul.mubr.f32.gmra.mrb[0].mxu0 %v2584
      %v2657 = vpop.f32.mrb[0].mxu0
      %v2658 = vadd.f32 0.0, %v2657
      %v2659 = vpop.f32.mrb[0].mxu0
      %2660 = vdwg.mxu0
      %2661 = vrot.lane.b32.xlu0 %v634, 56
      %v2662 = vpop.permute.xlu0 %2661
      %2663 = vrot.lane.b32.xlu0 %v639, 56
      %v2664 = vpop.permute.xlu0 %2663
      %v2668 = vsel %vm1290, %v2480, 0
      %v2671 = vsel %vm1290, %v2482, 0
      %2673 = vmatprep.subr.mxu0 0.0
      %2674 = vmatpush1.msra.mxu0 %v2662
      %2675 = vmatprep.subr.mxu0 0.0
      %2676 = vmatpush1.msra.mxu0 %v2664
      %2677 = vmatprep.subr.mxu0 0.0
      %2678 = vmatpush1.msra.mxu0 0.0
      %2679 = vmatprep.subr.mxu0 0.0
      %2680 = vmatpush1.msra.mxu0 0.0
      %2681 = vmatprep.subr.mxu0 0.0
      %2682 = vmatpush1.msra.mxu0 0.0
      %2683 = vmatprep.subr.mxu0 0.0
      %2684 = vmatpush1.msra.mxu0 0.0
      %2685 = vmatprep.subr.mxu0 0.0
      %2686 = vmatpush1.msra.mxu0 0.0
      %2687 = vmatprep.subr.mxu0 0.0
      %2688 = vmatpush1.msra.mxu0 0.0
      %2689 = vmatprep.subr.mxu0 0.0
      %2690 = vmatpush1.msra.mxu0 0.0
      %2691 = vmatprep.subr.mxu0 0.0
      %2692 = vmatpush1.msra.mxu0 0.0
      %2693 = vmatprep.subr.mxu0 0.0
      %2694 = vmatpush1.msra.mxu0 0.0
      %2695 = vmatprep.subr.mxu0 0.0
      %2696 = vmatpush1.msra.mxu0 0.0
      %2697 = vmatprep.subr.mxu0 0.0
      %2698 = vmatpush1.msra.mxu0 0.0
      %2699 = vmatprep.subr.mxu0 0.0
      %2700 = vmatpush1.msra.mxu0 0.0
      %2701 = vmatprep.subr.mxu0 0.0
      %2702 = vmatpush1.msra.mxu0 0.0
      %2703 = vmatprep.subr.mxu0 0.0
      %2704 = vmatpush1.msra.mxu0 0.0
      %2705 = vmatprep.subr.mxu0 0.0
      %2706 = vmatpush1.msra.mxu0 0.0
      %2707 = vmatprep.subr.mxu0 0.0
      %2708 = vmatpush1.msra.mxu0 0.0
      %2709 = vmatprep.subr.mxu0 0.0
      %2710 = vmatpush1.msra.mxu0 0.0
      %2711 = vmatprep.subr.mxu0 0.0
      %2712 = vmatpush1.msra.mxu0 0.0
      %2713 = vmatprep.subr.mxu0 0.0
      %2714 = vmatpush1.msra.mxu0 0.0
      %2715 = vmatprep.subr.mxu0 0.0
      %2716 = vmatpush1.msra.mxu0 0.0
      %2717 = vmatprep.subr.mxu0 0.0
      %2718 = vmatpush1.msra.mxu0 0.0
      %2719 = vmatprep.subr.mxu0 0.0
      %2720 = vmatpush1.msra.mxu0 0.0
      %2721 = vmatprep.subr.mxu0 0.0
      %2722 = vmatpush1.msra.mxu0 0.0
      %2723 = vmatprep.subr.mxu0 0.0
      %2724 = vmatpush1.msra.mxu0 0.0
      %2725 = vmatprep.subr.mxu0 0.0
      %2726 = vmatpush1.msra.mxu0 0.0
      %2727 = vmatprep.subr.mxu0 0.0
      %2728 = vmatpush1.msra.mxu0 0.0
      %2729 = vmatprep.subr.mxu0 0.0
      %2730 = vmatpush1.msra.mxu0 0.0
      %2731 = vmatprep.subr.mxu0 0.0
      %2732 = vmatpush1.msra.mxu0 0.0
      %2733 = vmatprep.subr.mxu0 0.0
      %2734 = vmatpush1.msra.mxu0 0.0
      %2735 = vmatprep.subr.mxu0 0.0
      %2736 = vmatpush1.msra.mxu0 0.0
      %2737 = vmatprep.mubr.f32.mxu0 0.0
      %2738 = vmatmul.mubr.f32.gmra.mrb[0].mxu0 %v2668
      %v2739 = vpop.f32.mrb[0].mxu0
      %v2740 = vadd.f32 0.0, %v2739
      %v2741 = vpop.f32.mrb[0].mxu0
      %2742 = vmatprep.mubr.f32.mxu0 0.0
      %2743 = vmatmul.mubr.f32.gmra.mrb[0].mxu0 %v2671
      %v2744 = vpop.f32.mrb[0].mxu0
      %v2745 = vadd.f32 0.0, %v2744
      %v2746 = vpop.f32.mrb[0].mxu0
      %2747 = vdwg.mxu0
      %2748 = vrot.lane.b32.xlu0 %v644, 56
      %v2749 = vpop.permute.xlu0 %2748
      %2750 = vrot.lane.b32.xlu0 %v649, 56
      %v2751 = vpop.permute.xlu0 %2750
      %v2755 = vsel %vm1290, %v2484, 0
      %v2758 = vsel %vm1290, %v2486, 0
      %2760 = vmatprep.subr.mxu0 0.0
      %2761 = vmatpush1.msra.mxu0 %v2749
      %2762 = vmatprep.subr.mxu0 0.0
      %2763 = vmatpush1.msra.mxu0 %v2751
      %2764 = vmatprep.subr.mxu0 0.0
      %2765 = vmatpush1.msra.mxu0 0.0
      %2766 = vmatprep.subr.mxu0 0.0
      %2767 = vmatpush1.msra.mxu0 0.0
      %2768 = vmatprep.subr.mxu0 0.0
      %2769 = vmatpush1.msra.mxu0 0.0
      %2770 = vmatprep.subr.mxu0 0.0
      %2771 = vmatpush1.msra.mxu0 0.0
      %2772 = vmatprep.subr.mxu0 0.0
      %2773 = vmatpush1.msra.mxu0 0.0
      %2774 = vmatprep.subr.mxu0 0.0
      %2775 = vmatpush1.msra.mxu0 0.0
      %2776 = vmatprep.subr.mxu0 0.0
      %2777 = vmatpush1.msra.mxu0 0.0
      %2778 = vmatprep.subr.mxu0 0.0
      %2779 = vmatpush1.msra.mxu0 0.0
      %2780 = vmatprep.subr.mxu0 0.0
      %2781 = vmatpush1.msra.mxu0 0.0
      %2782 = vmatprep.subr.mxu0 0.0
      %2783 = vmatpush1.msra.mxu0 0.0
      %2784 = vmatprep.subr.mxu0 0.0
      %2785 = vmatpush1.msra.mxu0 0.0
      %2786 = vmatprep.subr.mxu0 0.0
      %2787 = vmatpush1.msra.mxu0 0.0
      %2788 = vmatprep.subr.mxu0 0.0
      %2789 = vmatpush1.msra.mxu0 0.0
      %2790 = vmatprep.subr.mxu0 0.0
      %2791 = vmatpush1.msra.mxu0 0.0
      %2792 = vmatprep.subr.mxu0 0.0
      %2793 = vmatpush1.msra.mxu0 0.0
      %2794 = vmatprep.subr.mxu0 0.0
      %2795 = vmatpush1.msra.mxu0 0.0
      %2796 = vmatprep.subr.mxu0 0.0
      %2797 = vmatpush1.msra.mxu0 0.0
      %2798 = vmatprep.subr.mxu0 0.0
      %2799 = vmatpush1.msra.mxu0 0.0
      %2800 = vmatprep.subr.mxu0 0.0
      %2801 = vmatpush1.msra.mxu0 0.0
      %2802 = vmatprep.subr.mxu0 0.0
      %2803 = vmatpush1.msra.mxu0 0.0
      %2804 = vmatprep.subr.mxu0 0.0
      %2805 = vmatpush1.msra.mxu0 0.0
      %2806 = vmatprep.subr.mxu0 0.0
      %2807 = vmatpush1.msra.mxu0 0.0
      %2808 = vmatprep.subr.mxu0 0.0
      %2809 = vmatpush1.msra.mxu0 0.0
      %2810 = vmatprep.subr.mxu0 0.0
      %2811 = vmatpush1.msra.mxu0 0.0
      %2812 = vmatprep.subr.mxu0 0.0
      %2813 = vmatpush1.msra.mxu0 0.0
      %2814 = vmatprep.subr.mxu0 0.0
      %2815 = vmatpush1.msra.mxu0 0.0
      %2816 = vmatprep.subr.mxu0 0.0
      %2817 = vmatpush1.msra.mxu0 0.0
      %2818 = vmatprep.subr.mxu0 0.0
      %2819 = vmatpush1.msra.mxu0 0.0
      %2820 = vmatprep.subr.mxu0 0.0
      %2821 = vmatpush1.msra.mxu0 0.0
      %2822 = vmatprep.subr.mxu0 0.0
      %2823 = vmatpush1.msra.mxu0 0.0
      %2824 = vmatprep.mubr.f32.mxu0 0.0
      %2825 = vmatmul.mubr.f32.gmra.mrb[0].mxu0 %v2755
      %v2826 = vpop.f32.mrb[0].mxu0
      %v2827 = vadd.f32 0.0, %v2826
      %v2828 = vpop.f32.mrb[0].mxu0
      %2829 = vmatprep.mubr.f32.mxu0 0.0
      %2830 = vmatmul.mubr.f32.gmra.mrb[0].mxu0 %v2758
      %v2831 = vpop.f32.mrb[0].mxu0
      %v2832 = vadd.f32 0.0, %v2831
      %v2833 = vpop.f32.mrb[0].mxu0
      %2834 = vdwg.mxu0
      %v2835 = vld [vmem:[%s5 + $0x8] sm:$0xff]
      %v2837 = vsel %vm660, %v2566, 0
      %v2840 = vsel %vm660, %v2571, 0
      %v2843 = vsel %vm660, %v2653, 0
      %v2846 = vsel %vm660, %v2658, 0
      %v2849 = vsel %vm660, %v2740, 0
      %v2852 = vsel %vm660, %v2745, 0
      %v2855 = vsel %vm660, %v2827, 0
      %v2858 = vsel %vm660, %v2832, 0
      %2860 = vmatprep.subr.mxu0 0.0
      %2861 = vmatpush1.msra.mxu0 %v2835
      %2862 = vmatprep.subr.mxu0 0.0
      %2863 = vmatpush1.msra.mxu0 0.0
      %2864 = vmatprep.subr.mxu0 0.0
      %2865 = vmatpush1.msra.mxu0 0.0
      %2866 = vmatprep.subr.mxu0 0.0
      %2867 = vmatpush1.msra.mxu0 0.0
      %2868 = vmatprep.subr.mxu0 0.0
      %2869 = vmatpush1.msra.mxu0 0.0
      %2870 = vmatprep.subr.mxu0 0.0
      %2871 = vmatpush1.msra.mxu0 0.0
      %2872 = vmatprep.subr.mxu0 0.0
      %2873 = vmatpush1.msra.mxu0 0.0
      %2874 = vmatprep.subr.mxu0 0.0
      %2875 = vmatpush1.msra.mxu0 0.0
      %2876 = vmatprep.subr.mxu0 0.0
      %2877 = vmatpush1.msra.mxu0 0.0
      %2878 = vmatprep.subr.mxu0 0.0
      %2879 = vmatpush1.msra.mxu0 0.0
      %2880 = vmatprep.subr.mxu0 0.0
      %2881 = vmatpush1.msra.mxu0 0.0
      %2882 = vmatprep.subr.mxu0 0.0
      %2883 = vmatpush1.msra.mxu0 0.0
      %2884 = vmatprep.subr.mxu0 0.0
      %2885 = vmatpush1.msra.mxu0 0.0
      %2886 = vmatprep.subr.mxu0 0.0
      %2887 = vmatpush1.msra.mxu0 0.0
      %2888 = vmatprep.subr.mxu0 0.0
      %2889 = vmatpush1.msra.mxu0 0.0
      %2890 = vmatprep.subr.mxu0 0.0
      %2891 = vmatpush1.msra.mxu0 0.0
      %2892 = vmatprep.subr.mxu0 0.0
      %2893 = vmatpush1.msra.mxu0 0.0
      %2894 = vmatprep.subr.mxu0 0.0
      %2895 = vmatpush1.msra.mxu0 0.0
      %2896 = vmatprep.subr.mxu0 0.0
      %2897 = vmatpush1.msra.mxu0 0.0
      %2898 = vmatprep.subr.mxu0 0.0
      %2899 = vmatpush1.msra.mxu0 0.0
      %2900 = vmatprep.subr.mxu0 0.0
      %2901 = vmatpush1.msra.mxu0 0.0
      %2902 = vmatprep.subr.mxu0 0.0
      %2903 = vmatpush1.msra.mxu0 0.0
      %2904 = vmatprep.subr.mxu0 0.0
      %2905 = vmatpush1.msra.mxu0 0.0
      %2906 = vmatprep.subr.mxu0 0.0
      %2907 = vmatpush1.msra.mxu0 0.0
      %2908 = vmatprep.subr.mxu0 0.0
      %2909 = vmatpush1.msra.mxu0 0.0
      %2910 = vmatprep.subr.mxu0 0.0
      %2911 = vmatpush1.msra.mxu0 0.0
      %2912 = vmatprep.subr.mxu0 0.0
      %2913 = vmatpush1.msra.mxu0 0.0
      %2914 = vmatprep.subr.mxu0 0.0
      %2915 = vmatpush1.msra.mxu0 0.0
      %2916 = vmatprep.subr.mxu0 0.0
      %2917 = vmatpush1.msra.mxu0 0.0
      %2918 = vmatprep.subr.mxu0 0.0
      %2919 = vmatpush1.msra.mxu0 0.0
      %2920 = vmatprep.subr.mxu0 0.0
      %2921 = vmatpush1.msra.mxu0 0.0
      %2922 = vmatprep.subr.mxu0 0.0
      %2923 = vmatpush1.msra.mxu0 0.0
      %2924 = vmatprep.mubr.f32.mxu0 0.0
      %2925 = vmatmul.mubr.f32.gmra.mrb[0].mxu0 %v2837
      %v2926 = vpop.f32.mrb[0].mxu0
      %v2927 = vadd.f32 0.0, %v2926
      %v2928 = vpop.f32.mrb[0].mxu0
      %2929 = vmatprep.mubr.f32.mxu0 0.0
      %2930 = vmatmul.mubr.f32.gmra.mrb[0].mxu0 %v2840
      %v2931 = vpop.f32.mrb[0].mxu0
      %v2932 = vadd.f32 0.0, %v2931
      %v2933 = vpop.f32.mrb[0].mxu0
      %2934 = vmatprep.mubr.f32.mxu0 0.0
      %2935 = vmatmul.mubr.f32.gmra.mrb[0].mxu0 %v2843
      %v2936 = vpop.f32.mrb[0].mxu0
      %v2937 = vadd.f32 0.0, %v2936
      %v2938 = vpop.f32.mrb[0].mxu0
      %2939 = vmatprep.mubr.f32.mxu0 0.0
      %2940 = vmatmul.mubr.f32.gmra.mrb[0].mxu0 %v2846
      %v2941 = vpop.f32.mrb[0].mxu0
      %v2942 = vadd.f32 0.0, %v2941
      %v2943 = vpop.f32.mrb[0].mxu0
      %2944 = vmatprep.mubr.f32.mxu0 0.0
      %2945 = vmatmul.mubr.f32.gmra.mrb[0].mxu0 %v2849
      %v2946 = vpop.f32.mrb[0].mxu0
      %v2947 = vadd.f32 0.0, %v2946
      %v2948 = vpop.f32.mrb[0].mxu0
      %2949 = vmatprep.mubr.f32.mxu0 0.0
      %2950 = vmatmul.mubr.f32.gmra.mrb[0].mxu0 %v2852
      %v2951 = vpop.f32.mrb[0].mxu0
      %v2952 = vadd.f32 0.0, %v2951
      %v2953 = vpop.f32.mrb[0].mxu0
      %2954 = vmatprep.mubr.f32.mxu0 0.0
      %2955 = vmatmul.mubr.f32.gmra.mrb[0].mxu0 %v2855
      %v2956 = vpop.f32.mrb[0].mxu0
      %v2957 = vadd.f32 0.0, %v2956
      %v2958 = vpop.f32.mrb[0].mxu0
      %2959 = vmatprep.mubr.f32.mxu0 0.0
      %2960 = vmatmul.mubr.f32.gmra.mrb[0].mxu0 %v2858
      %v2961 = vpop.f32.mrb[0].mxu0
      %v2962 = vadd.f32 0.0, %v2961
      %v2963 = vpop.f32.mrb[0].mxu0
      %2964 = vdwg.mxu0
      %v2966 = vsel %vm660, %v1460, 0
      %v2969 = vsel %vm660, %v1465, 0
      %v2972 = vsel %vm660, %v1549, 0
      %v2975 = vsel %vm660, %v1554, 0
      %v2978 = vsel %vm660, %v1638, 0
      %v2981 = vsel %vm660, %v1643, 0
      %v2984 = vsel %vm660, %v1727, 0
      %v2987 = vsel %vm660, %v1732, 0
      %2989 = vmatprep.subr.mxu0 0.0
      %2990 = vmatpush1.msra.mxu0 %v1735
      %2991 = vmatprep.subr.mxu0 0.0
      %2992 = vmatpush1.msra.mxu0 0.0
      %2993 = vmatprep.subr.mxu0 0.0
      %2994 = vmatpush1.msra.mxu0 0.0
      %2995 = vmatprep.subr.mxu0 0.0
      %2996 = vmatpush1.msra.mxu0 0.0
      %2997 = vmatprep.subr.mxu0 0.0
      %2998 = vmatpush1.msra.mxu0 0.0
      %2999 = vmatprep.subr.mxu0 0.0
      %3000 = vmatpush1.msra.mxu0 0.0
      %3001 = vmatprep.subr.mxu0 0.0
      %3002 = vmatpush1.msra.mxu0 0.0
      %3003 = vmatprep.subr.mxu0 0.0
      %3004 = vmatpush1.msra.mxu0 0.0
      %3005 = vmatprep.subr.mxu0 0.0
      %3006 = vmatpush1.msra.mxu0 0.0
      %3007 = vmatprep.subr.mxu0 0.0
      %3008 = vmatpush1.msra.mxu0 0.0
      %3009 = vmatprep.subr.mxu0 0.0
      %3010 = vmatpush1.msra.mxu0 0.0
      %3011 = vmatprep.subr.mxu0 0.0
      %3012 = vmatpush1.msra.mxu0 0.0
      %3013 = vmatprep.subr.mxu0 0.0
      %3014 = vmatpush1.msra.mxu0 0.0
      %3015 = vmatprep.subr.mxu0 0.0
      %3016 = vmatpush1.msra.mxu0 0.0
      %3017 = vmatprep.subr.mxu0 0.0
      %3018 = vmatpush1.msra.mxu0 0.0
      %3019 = vmatprep.subr.mxu0 0.0
      %3020 = vmatpush1.msra.mxu0 0.0
      %3021 = vmatprep.subr.mxu0 0.0
      %3022 = vmatpush1.msra.mxu0 0.0
      %3023 = vmatprep.subr.mxu0 0.0
      %3024 = vmatpush1.msra.mxu0 0.0
      %3025 = vmatprep.subr.mxu0 0.0
      %3026 = vmatpush1.msra.mxu0 0.0
      %3027 = vmatprep.subr.mxu0 0.0
      %3028 = vmatpush1.msra.mxu0 0.0
      %3029 = vmatprep.subr.mxu0 0.0
      %3030 = vmatpush1.msra.mxu0 0.0
      %3031 = vmatprep.subr.mxu0 0.0
      %3032 = vmatpush1.msra.mxu0 0.0
      %3033 = vmatprep.subr.mxu0 0.0
      %3034 = vmatpush1.msra.mxu0 0.0
      %3035 = vmatprep.subr.mxu0 0.0
      %3036 = vmatpush1.msra.mxu0 0.0
      %3037 = vmatprep.subr.mxu0 0.0
      %3038 = vmatpush1.msra.mxu0 0.0
      %3039 = vmatprep.subr.mxu0 0.0
      %3040 = vmatpush1.msra.mxu0 0.0
      %3041 = vmatprep.subr.mxu0 0.0
      %3042 = vmatpush1.msra.mxu0 0.0
      %3043 = vmatprep.subr.mxu0 0.0
      %3044 = vmatpush1.msra.mxu0 0.0
      %3045 = vmatprep.subr.mxu0 0.0
      %3046 = vmatpush1.msra.mxu0 0.0
      %3047 = vmatprep.subr.mxu0 0.0
      %3048 = vmatpush1.msra.mxu0 0.0
      %3049 = vmatprep.subr.mxu0 0.0
      %3050 = vmatpush1.msra.mxu0 0.0
      %3051 = vmatprep.subr.mxu0 0.0
      %3052 = vmatpush1.msra.mxu0 0.0
      %3053 = vmatprep.mubr.f32.mxu0 0.0
      %3054 = vmatmul.mubr.f32.gmra.mrb[0].mxu0 %v2966
      %v3055 = vpop.f32.mrb[0].mxu0
      %v3056 = vadd.f32 %v2927, %v3055
      %v3057 = vpop.f32.mrb[0].mxu0
      %3058 = vmatprep.mubr.f32.mxu0 0.0
      %3059 = vmatmul.mubr.f32.gmra.mrb[0].mxu0 %v2969
      %v3060 = vpop.f32.mrb[0].mxu0
      %v3061 = vadd.f32 %v2932, %v3060
      %v3062 = vpop.f32.mrb[0].mxu0
      %3063 = vmatprep.mubr.f32.mxu0 0.0
      %3064 = vmatmul.mubr.f32.gmra.mrb[0].mxu0 %v2972
      %v3065 = vpop.f32.mrb[0].mxu0
      %v3066 = vadd.f32 %v2937, %v3065
      %v3067 = vpop.f32.mrb[0].mxu0
      %3068 = vmatprep.mubr.f32.mxu0 0.0
      %3069 = vmatmul.mubr.f32.gmra.mrb[0].mxu0 %v2975
      %v3070 = vpop.f32.mrb[0].mxu0
      %v3071 = vadd.f32 %v2942, %v3070
      %v3072 = vpop.f32.mrb[0].mxu0
      %3073 = vmatprep.mubr.f32.mxu0 0.0
      %3074 = vmatmul.mubr.f32.gmra.mrb[0].mxu0 %v2978
      %v3075 = vpop.f32.mrb[0].mxu0
      %v3076 = vadd.f32 %v2947, %v3075
      %v3077 = vpop.f32.mrb[0].mxu0
      %3078 = vmatprep.mubr.f32.mxu0 0.0
      %3079 = vmatmul.mubr.f32.gmra.mrb[0].mxu0 %v2981
      %v3080 = vpop.f32.mrb[0].mxu0
      %v3081 = vadd.f32 %v2952, %v3080
      %v3082 = vpop.f32.mrb[0].mxu0
      %3083 = vmatprep.mubr.f32.mxu0 0.0
      %3084 = vmatmul.mubr.f32.gmra.mrb[0].mxu0 %v2984
      %v3085 = vpop.f32.mrb[0].mxu0
      %v3086 = vadd.f32 %v2957, %v3085
      %v3087 = vpop.f32.mrb[0].mxu0
      %3088 = vmatprep.mubr.f32.mxu0 0.0
      %3089 = vmatmul.mubr.f32.gmra.mrb[0].mxu0 %v2987
      %v3090 = vpop.f32.mrb[0].mxu0
      %v3091 = vadd.f32 %v2962, %v3090
      %v3092 = vpop.f32.mrb[0].mxu0
      %3093 = vdwg.mxu0
      %3094 = vrot.lane.b32.xlu0 %v652, 112
      %v3095 = vpop.permute.xlu0 %3094
      %3096 = vrot.lane.b32.xlu0 %v653, 112
      %v3097 = vpop.permute.xlu0 %3096
      %3098 = vrot.lane.b32.xlu0 %v654, 112
      %v3099 = vpop.permute.xlu0 %3098
      %3100 = vrot.lane.b32.xlu0 %v655, 112
      %v3101 = vpop.permute.xlu0 %3100
      %3102 = vrot.lane.b32.xlu0 %v656, 112
      %v3103 = vpop.permute.xlu0 %3102
      %3104 = vrot.lane.b32.xlu0 %v657, 112
      %v3105 = vpop.permute.xlu0 %3104
      %3106 = vrot.lane.b32.xlu0 %v658, 112
      %v3107 = vpop.permute.xlu0 %3106
      %3108 = vrot.lane.b32.xlu0 %v659, 112
      %v3109 = vpop.permute.xlu0 %3108
      %v3118 = vsel %vm660, %v3095, 0.0
      %3119 = vadd.xlane.f32.xlu0 %v3118
      %v3120 = vpop.xlane.xlu0 %3119
      %v3121 = vsel %vm660, %v3097, 0.0
      %3122 = vadd.xlane.f32.xlu0 %v3121
      %v3123 = vpop.xlane.xlu0 %3122
      %v3124 = vsel %vm660, %v3099, 0.0
      %3125 = vadd.xlane.f32.xlu0 %v3124
      %v3126 = vpop.xlane.xlu0 %3125
      %v3127 = vsel %vm660, %v3101, 0.0
      %3128 = vadd.xlane.f32.xlu0 %v3127
      %v3129 = vpop.xlane.xlu0 %3128
      %v3130 = vsel %vm660, %v3103, 0.0
      %3131 = vadd.xlane.f32.xlu0 %v3130
      %v3132 = vpop.xlane.xlu0 %3131
      %v3133 = vsel %vm660, %v3105, 0.0
      %3134 = vadd.xlane.f32.xlu0 %v3133
      %v3135 = vpop.xlane.xlu0 %3134
      %v3136 = vsel %vm660, %v3107, 0.0
      %3137 = vadd.xlane.f32.xlu0 %v3136
      %v3138 = vpop.xlane.xlu0 %3137
      %v3139 = vsel %vm660, %v3109, 0.0
      %3140 = vadd.xlane.f32.xlu0 %v3139
      %v3141 = vpop.xlane.xlu0 %3140
      %v3142 = vrsqrt.pop %v3120
      %v3143 = vmul.f32 %v3120, %v3142
      %vm3144 = vcmp.eq.f32.partialorder %v3120, inf
      %v3145 = vsel %vm3144, %v3120, %v3143
      %vm3146 = vcmp.eq.f32.partialorder %v3120, 0.0
      %v3147 = vand.u32 %v3120, 2147483648
      %v3148 = vsel %vm3146, %v3147, %v3145
      %v3149 = vrsqrt.pop %v3123
      %v3150 = vmul.f32 %v3123, %v3149
      %vm3151 = vcmp.eq.f32.partialorder %v3123, inf
      %v3152 = vsel %vm3151, %v3123, %v3150
      %vm3153 = vcmp.eq.f32.partialorder %v3123, 0.0
      %v3154 = vand.u32 %v3123, 2147483648
      %v3155 = vsel %vm3153, %v3154, %v3152
      %v3156 = vrsqrt.pop %v3126
      %v3157 = vmul.f32 %v3126, %v3156
      %vm3158 = vcmp.eq.f32.partialorder %v3126, inf
      %v3159 = vsel %vm3158, %v3126, %v3157
      %vm3160 = vcmp.eq.f32.partialorder %v3126, 0.0
      %v3161 = vand.u32 %v3126, 2147483648
      %v3162 = vsel %vm3160, %v3161, %v3159
      %v3163 = vrsqrt.pop %v3129
      %v3164 = vmul.f32 %v3129, %v3163
      %vm3165 = vcmp.eq.f32.partialorder %v3129, inf
      %v3166 = vsel %vm3165, %v3129, %v3164
      %vm3167 = vcmp.eq.f32.partialorder %v3129, 0.0
      %v3168 = vand.u32 %v3129, 2147483648
      %v3169 = vsel %vm3167, %v3168, %v3166
      %v3170 = vrsqrt.pop %v3132
      %v3171 = vmul.f32 %v3132, %v3170
      %vm3172 = vcmp.eq.f32.partialorder %v3132, inf
      %v3173 = vsel %vm3172, %v3132, %v3171
      %vm3174 = vcmp.eq.f32.partialorder %v3132, 0.0
      %v3175 = vand.u32 %v3132, 2147483648
      %v3176 = vsel %vm3174, %v3175, %v3173
      %v3177 = vrsqrt.pop %v3135
      %v3178 = vmul.f32 %v3135, %v3177
      %vm3179 = vcmp.eq.f32.partialorder %v3135, inf
      %v3180 = vsel %vm3179, %v3135, %v3178
      %vm3181 = vcmp.eq.f32.partialorder %v3135, 0.0
      %v3182 = vand.u32 %v3135, 2147483648
      %v3183 = vsel %vm3181, %v3182, %v3180
      %v3184 = vrsqrt.pop %v3138
      %v3185 = vmul.f32 %v3138, %v3184
      %vm3186 = vcmp.eq.f32.partialorder %v3138, inf
      %v3187 = vsel %vm3186, %v3138, %v3185
      %vm3188 = vcmp.eq.f32.partialorder %v3138, 0.0
      %v3189 = vand.u32 %v3138, 2147483648
      %v3190 = vsel %vm3188, %v3189, %v3187
      %v3191 = vrsqrt.pop %v3141
      %v3192 = vmul.f32 %v3141, %v3191
      %vm3193 = vcmp.eq.f32.partialorder %v3141, inf
      %v3194 = vsel %vm3193, %v3141, %v3192
      %vm3195 = vcmp.eq.f32.partialorder %v3141, 0.0
      %v3196 = vand.u32 %v3141, 2147483648
      %v3197 = vsel %vm3195, %v3196, %v3194
      %v3198 = vmax.f32 %v3148, 1e-12
      %v3199 = vmax.f32 %v3155, 1e-12
      %v3200 = vmax.f32 %v3162, 1e-12
      %v3201 = vmax.f32 %v3169, 1e-12
      %v3202 = vmax.f32 %v3176, 1e-12
      %v3203 = vmax.f32 %v3183, 1e-12
      %v3204 = vmax.f32 %v3190, 1e-12
      %v3205 = vmax.f32 %v3197, 1e-12
      %v3206 = vrcp.pop %v3198
      %v3207 = vmul.f32 %v614, %v3206
      %v3208 = vrcp.pop %v3199
      %v3209 = vmul.f32 %v619, %v3208
      %v3210 = vrcp.pop %v3200
      %v3211 = vmul.f32 %v624, %v3210
      %v3212 = vrcp.pop %v3201
      %v3213 = vmul.f32 %v629, %v3212
      %v3214 = vrcp.pop %v3202
      %v3215 = vmul.f32 %v634, %v3214
      %v3216 = vrcp.pop %v3203
      %v3217 = vmul.f32 %v639, %v3216
      %v3218 = vrcp.pop %v3204
      %v3219 = vmul.f32 %v644, %v3218
      %v3220 = vrcp.pop %v3205
      %v3221 = vmul.f32 %v649, %v3220
      %3222 = vrot.lane.b32.xlu0 %v652, 80
      %v3223 = vpop.permute.xlu0 %3222
      %3224 = vrot.lane.b32.xlu0 %v653, 80
      %v3225 = vpop.permute.xlu0 %3224
      %3226 = vrot.lane.b32.xlu0 %v654, 80
      %v3227 = vpop.permute.xlu0 %3226
      %3228 = vrot.lane.b32.xlu0 %v655, 80
      %v3229 = vpop.permute.xlu0 %3228
      %3230 = vrot.lane.b32.xlu0 %v656, 80
      %v3231 = vpop.permute.xlu0 %3230
      %3232 = vrot.lane.b32.xlu0 %v657, 80
      %v3233 = vpop.permute.xlu0 %3232
      %3234 = vrot.lane.b32.xlu0 %v658, 80
      %v3235 = vpop.permute.xlu0 %3234
      %3236 = vrot.lane.b32.xlu0 %v659, 80
      %v3237 = vpop.permute.xlu0 %3236
      %v3246 = vsel %vm660, %v3223, 0.0
      %3247 = vadd.xlane.f32.xlu0 %v3246
      %v3248 = vpop.xlane.xlu0 %3247
      %v3249 = vsel %vm660, %v3225, 0.0
      %3250 = vadd.xlane.f32.xlu0 %v3249
      %v3251 = vpop.xlane.xlu0 %3250
      %v3252 = vsel %vm660, %v3227, 0.0
      %3253 = vadd.xlane.f32.xlu0 %v3252
      %v3254 = vpop.xlane.xlu0 %3253
      %v3255 = vsel %vm660, %v3229, 0.0
      %3256 = vadd.xlane.f32.xlu0 %v3255
      %v3257 = vpop.xlane.xlu0 %3256
      %v3258 = vsel %vm660, %v3231, 0.0
      %3259 = vadd.xlane.f32.xlu0 %v3258
      %v3260 = vpop.xlane.xlu0 %3259
      %v3261 = vsel %vm660, %v3233, 0.0
      %3262 = vadd.xlane.f32.xlu0 %v3261
      %v3263 = vpop.xlane.xlu0 %3262
      %v3264 = vsel %vm660, %v3235, 0.0
      %3265 = vadd.xlane.f32.xlu0 %v3264
      %v3266 = vpop.xlane.xlu0 %3265
      %v3267 = vsel %vm660, %v3237, 0.0
      %3268 = vadd.xlane.f32.xlu0 %v3267
      %v3269 = vpop.xlane.xlu0 %3268
      %v3270 = vrsqrt.pop %v3248
      %v3271 = vmul.f32 %v3248, %v3270
      %vm3272 = vcmp.eq.f32.partialorder %v3248, inf
      %v3273 = vsel %vm3272, %v3248, %v3271
      %vm3274 = vcmp.eq.f32.partialorder %v3248, 0.0
      %v3275 = vand.u32 %v3248, 2147483648
      %v3276 = vsel %vm3274, %v3275, %v3273
      %v3277 = vrsqrt.pop %v3251
      %v3278 = vmul.f32 %v3251, %v3277
      %vm3279 = vcmp.eq.f32.partialorder %v3251, inf
      %v3280 = vsel %vm3279, %v3251, %v3278
      %vm3281 = vcmp.eq.f32.partialorder %v3251, 0.0
      %v3282 = vand.u32 %v3251, 2147483648
      %v3283 = vsel %vm3281, %v3282, %v3280
      %v3284 = vrsqrt.pop %v3254
      %v3285 = vmul.f32 %v3254, %v3284
      %vm3286 = vcmp.eq.f32.partialorder %v3254, inf
      %v3287 = vsel %vm3286, %v3254, %v3285
      %vm3288 = vcmp.eq.f32.partialorder %v3254, 0.0
      %v3289 = vand.u32 %v3254, 2147483648
      %v3290 = vsel %vm3288, %v3289, %v3287
      %v3291 = vrsqrt.pop %v3257
      %v3292 = vmul.f32 %v3257, %v3291
      %vm3293 = vcmp.eq.f32.partialorder %v3257, inf
      %v3294 = vsel %vm3293, %v3257, %v3292
      %vm3295 = vcmp.eq.f32.partialorder %v3257, 0.0
      %v3296 = vand.u32 %v3257, 2147483648
      %v3297 = vsel %vm3295, %v3296, %v3294
      %v3298 = vrsqrt.pop %v3260
      %v3299 = vmul.f32 %v3260, %v3298
      %vm3300 = vcmp.eq.f32.partialorder %v3260, inf
      %v3301 = vsel %vm3300, %v3260, %v3299
      %vm3302 = vcmp.eq.f32.partialorder %v3260, 0.0
      %v3303 = vand.u32 %v3260, 2147483648
      %v3304 = vsel %vm3302, %v3303, %v3301
      %v3305 = vrsqrt.pop %v3263
      %v3306 = vmul.f32 %v3263, %v3305
      %vm3307 = vcmp.eq.f32.partialorder %v3263, inf
      %v3308 = vsel %vm3307, %v3263, %v3306
      %vm3309 = vcmp.eq.f32.partialorder %v3263, 0.0
      %v3310 = vand.u32 %v3263, 2147483648
      %v3311 = vsel %vm3309, %v3310, %v3308
      %v3312 = vrsqrt.pop %v3266
      %v3313 = vmul.f32 %v3266, %v3312
      %vm3314 = vcmp.eq.f32.partialorder %v3266, inf
      %v3315 = vsel %vm3314, %v3266, %v3313
      %vm3316 = vcmp.eq.f32.partialorder %v3266, 0.0
      %v3317 = vand.u32 %v3266, 2147483648
      %v3318 = vsel %vm3316, %v3317, %v3315
      %v3319 = vrsqrt.pop %v3269
      %v3320 = vmul.f32 %v3269, %v3319
      %vm3321 = vcmp.eq.f32.partialorder %v3269, inf
      %v3322 = vsel %vm3321, %v3269, %v3320
      %vm3323 = vcmp.eq.f32.partialorder %v3269, 0.0
      %v3324 = vand.u32 %v3269, 2147483648
      %v3325 = vsel %vm3323, %v3324, %v3322
      %v3326 = vmax.f32 %v3276, 1e-12
      %v3327 = vmax.f32 %v3283, 1e-12
      %v3328 = vmax.f32 %v3290, 1e-12
      %v3329 = vmax.f32 %v3297, 1e-12
      %v3330 = vmax.f32 %v3304, 1e-12
      %v3331 = vmax.f32 %v3311, 1e-12
      %v3332 = vmax.f32 %v3318, 1e-12
      %v3333 = vmax.f32 %v3325, 1e-12
      %v3334 = vrcp.pop %v3326
      %v3335 = vmul.f32 %v614, %v3334
      %v3336 = vrcp.pop %v3327
      %v3337 = vmul.f32 %v619, %v3336
      %v3338 = vrcp.pop %v3328
      %v3339 = vmul.f32 %v624, %v3338
      %v3340 = vrcp.pop %v3329
      %v3341 = vmul.f32 %v629, %v3340
      %v3342 = vrcp.pop %v3330
      %v3343 = vmul.f32 %v634, %v3342
      %v3344 = vrcp.pop %v3331
      %v3345 = vmul.f32 %v639, %v3344
      %v3346 = vrcp.pop %v3332
      %v3347 = vmul.f32 %v644, %v3346
      %v3348 = vrcp.pop %v3333
      %v3349 = vmul.f32 %v649, %v3348
      %3352 = vrot.lane.b32.xlu0 %v3207, 112
      %v3353 = vpop.permute.xlu0 %3352
      %3354 = vrot.lane.b32.xlu0 %v3209, 112
      %v3355 = vpop.permute.xlu0 %3354
      %3358 = vrot.lane.b32.xlu0 %v3335, 80
      %v3359 = vpop.permute.xlu0 %3358
      %3360 = vrot.lane.b32.xlu0 %v3337, 80
      %v3361 = vpop.permute.xlu0 %3360
      %v3362 = vsel %vm660, %v3353, 0
      %v3364 = vsel %vm660, %v3355, 0
      %v3366 = vsel %vm660, %v3359, 0
      %v3368 = vsel %vm660, %v3361, 0
      %3370 = vmatprep.subr.mxu0 0.0
      %3371 = vmatpush1.xpose.msra.mxu0 %v3366
      %3372 = vmatprep.subr.mxu0 0.0
      %3373 = vmatpush1.xpose.msra.mxu0 %v3368
      %3374 = vmatprep.subr.mxu0 0.0
      %3375 = vmatpush1.xpose.msra.mxu0 0.0
      %3376 = vmatprep.subr.mxu0 0.0
      %3377 = vmatpush1.xpose.msra.mxu0 0.0
      %3378 = vmatprep.subr.mxu0 0.0
      %3379 = vmatpush1.xpose.msra.mxu0 0.0
      %3380 = vmatprep.subr.mxu0 0.0
      %3381 = vmatpush1.xpose.msra.mxu0 0.0
      %3382 = vmatprep.subr.mxu0 0.0
      %3383 = vmatpush1.xpose.msra.mxu0 0.0
      %3384 = vmatprep.subr.mxu0 0.0
      %3385 = vmatpush1.xpose.msra.mxu0 0.0
      %3386 = vmatprep.subr.mxu0 0.0
      %3387 = vmatpush1.xpose.msra.mxu0 0.0
      %3388 = vmatprep.subr.mxu0 0.0
      %3389 = vmatpush1.xpose.msra.mxu0 0.0
      %3390 = vmatprep.subr.mxu0 0.0
      %3391 = vmatpush1.xpose.msra.mxu0 0.0
      %3392 = vmatprep.subr.mxu0 0.0
      %3393 = vmatpush1.xpose.msra.mxu0 0.0
      %3394 = vmatprep.subr.mxu0 0.0
      %3395 = vmatpush1.xpose.msra.mxu0 0.0
      %3396 = vmatprep.subr.mxu0 0.0
      %3397 = vmatpush1.xpose.msra.mxu0 0.0
      %3398 = vmatprep.subr.mxu0 0.0
      %3399 = vmatpush1.xpose.msra.mxu0 0.0
      %3400 = vmatprep.subr.mxu0 0.0
      %3401 = vmatpush1.xpose.msra.mxu0 0.0
      %3402 = vmatprep.subr.mxu0 0.0
      %3403 = vmatpush1.xpose.msra.mxu0 0.0
      %3404 = vmatprep.subr.mxu0 0.0
      %3405 = vmatpush1.xpose.msra.mxu0 0.0
      %3406 = vmatprep.subr.mxu0 0.0
      %3407 = vmatpush1.xpose.msra.mxu0 0.0
      %3408 = vmatprep.subr.mxu0 0.0
      %3409 = vmatpush1.xpose.msra.mxu0 0.0
      %3410 = vmatprep.subr.mxu0 0.0
      %3411 = vmatpush1.xpose.msra.mxu0 0.0
      %3412 = vmatprep.subr.mxu0 0.0
      %3413 = vmatpush1.xpose.msra.mxu0 0.0
      %3414 = vmatprep.subr.mxu0 0.0
      %3415 = vmatpush1.xpose.msra.mxu0 0.0
      %3416 = vmatprep.subr.mxu0 0.0
      %3417 = vmatpush1.xpose.msra.mxu0 0.0
      %3418 = vmatprep.subr.mxu0 0.0
      %3419 = vmatpush1.xpose.msra.mxu0 0.0
      %3420 = vmatprep.subr.mxu0 0.0
      %3421 = vmatpush1.xpose.msra.mxu0 0.0
      %3422 = vmatprep.subr.mxu0 0.0
      %3423 = vmatpush1.xpose.msra.mxu0 0.0
      %3424 = vmatprep.subr.mxu0 0.0
      %3425 = vmatpush1.xpose.msra.mxu0 0.0
      %3426 = vmatprep.subr.mxu0 0.0
      %3427 = vmatpush1.xpose.msra.mxu0 0.0
      %3428 = vmatprep.subr.mxu0 0.0
      %3429 = vmatpush1.xpose.msra.mxu0 0.0
      %3430 = vmatprep.subr.mxu0 0.0
      %3431 = vmatpush1.xpose.msra.mxu0 0.0
      %3432 = vmatprep.subr.mxu0 0.0
      %3433 = vmatpush1.xpose.msra.mxu0 0.0
      %3434 = vmatprep.mubr.f32.mxu0 0.0
      %3435 = vmatmul.mubr.f32.gmra.mrb[0].mxu0 %v3362
      %v3436 = vpop.f32.mrb[0].mxu0
      %v3437 = vadd.f32 0.0, %v3436
      %v3438 = vpop.f32.mrb[0].mxu0
      %3439 = vmatprep.mubr.f32.mxu0 0.0
      %3440 = vmatmul.mubr.f32.gmra.mrb[0].mxu0 %v3364
      %v3441 = vpop.f32.mrb[0].mxu0
      %v3442 = vadd.f32 0.0, %v3441
      %v3443 = vpop.f32.mrb[0].mxu0
      %3444 = vdwg.mxu0
      %3447 = vrot.lane.b32.xlu0 %v3211, 112
      %v3448 = vpop.permute.xlu0 %3447
      %3449 = vrot.lane.b32.xlu0 %v3213, 112
      %v3450 = vpop.permute.xlu0 %3449
      %3453 = vrot.lane.b32.xlu0 %v3339, 80
      %v3454 = vpop.permute.xlu0 %3453
      %3455 = vrot.lane.b32.xlu0 %v3341, 80
      %v3456 = vpop.permute.xlu0 %3455
      %v3457 = vsel %vm660, %v3448, 0
      %v3459 = vsel %vm660, %v3450, 0
      %v3461 = vsel %vm660, %v3454, 0
      %v3463 = vsel %vm660, %v3456, 0
      %3465 = vmatprep.subr.mxu0 0.0
      %3466 = vmatpush1.xpose.msra.mxu0 %v3461
      %3467 = vmatprep.subr.mxu0 0.0
      %3468 = vmatpush1.xpose.msra.mxu0 %v3463
      %3469 = vmatprep.subr.mxu0 0.0
      %3470 = vmatpush1.xpose.msra.mxu0 0.0
      %3471 = vmatprep.subr.mxu0 0.0
      %3472 = vmatpush1.xpose.msra.mxu0 0.0
      %3473 = vmatprep.subr.mxu0 0.0
      %3474 = vmatpush1.xpose.msra.mxu0 0.0
      %3475 = vmatprep.subr.mxu0 0.0
      %3476 = vmatpush1.xpose.msra.mxu0 0.0
      %3477 = vmatprep.subr.mxu0 0.0
      %3478 = vmatpush1.xpose.msra.mxu0 0.0
      %3479 = vmatprep.subr.mxu0 0.0
      %3480 = vmatpush1.xpose.msra.mxu0 0.0
      %3481 = vmatprep.subr.mxu0 0.0
      %3482 = vmatpush1.xpose.msra.mxu0 0.0
      %3483 = vmatprep.subr.mxu0 0.0
      %3484 = vmatpush1.xpose.msra.mxu0 0.0
      %3485 = vmatprep.subr.mxu0 0.0
      %3486 = vmatpush1.xpose.msra.mxu0 0.0
      %3487 = vmatprep.subr.mxu0 0.0
      %3488 = vmatpush1.xpose.msra.mxu0 0.0
      %3489 = vmatprep.subr.mxu0 0.0
      %3490 = vmatpush1.xpose.msra.mxu0 0.0
      %3491 = vmatprep.subr.mxu0 0.0
      %3492 = vmatpush1.xpose.msra.mxu0 0.0
      %3493 = vmatprep.subr.mxu0 0.0
      %3494 = vmatpush1.xpose.msra.mxu0 0.0
      %3495 = vmatprep.subr.mxu0 0.0
      %3496 = vmatpush1.xpose.msra.mxu0 0.0
      %3497 = vmatprep.subr.mxu0 0.0
      %3498 = vmatpush1.xpose.msra.mxu0 0.0
      %3499 = vmatprep.subr.mxu0 0.0
      %3500 = vmatpush1.xpose.msra.mxu0 0.0
      %3501 = vmatprep.subr.mxu0 0.0
      %3502 = vmatpush1.xpose.msra.mxu0 0.0
      %3503 = vmatprep.subr.mxu0 0.0
      %3504 = vmatpush1.xpose.msra.mxu0 0.0
      %3505 = vmatprep.subr.mxu0 0.0
      %3506 = vmatpush1.xpose.msra.mxu0 0.0
      %3507 = vmatprep.subr.mxu0 0.0
      %3508 = vmatpush1.xpose.msra.mxu0 0.0
      %3509 = vmatprep.subr.mxu0 0.0
      %3510 = vmatpush1.xpose.msra.mxu0 0.0
      %3511 = vmatprep.subr.mxu0 0.0
      %3512 = vmatpush1.xpose.msra.mxu0 0.0
      %3513 = vmatprep.subr.mxu0 0.0
      %3514 = vmatpush1.xpose.msra.mxu0 0.0
      %3515 = vmatprep.subr.mxu0 0.0
      %3516 = vmatpush1.xpose.msra.mxu0 0.0
      %3517 = vmatprep.subr.mxu0 0.0
      %3518 = vmatpush1.xpose.msra.mxu0 0.0
      %3519 = vmatprep.subr.mxu0 0.0
      %3520 = vmatpush1.xpose.msra.mxu0 0.0
      %3521 = vmatprep.subr.mxu0 0.0
      %3522 = vmatpush1.xpose.msra.mxu0 0.0
      %3523 = vmatprep.subr.mxu0 0.0
      %3524 = vmatpush1.xpose.msra.mxu0 0.0
      %3525 = vmatprep.subr.mxu0 0.0
      %3526 = vmatpush1.xpose.msra.mxu0 0.0
      %3527 = vmatprep.subr.mxu0 0.0
      %3528 = vmatpush1.xpose.msra.mxu0 0.0
      %3529 = vmatprep.mubr.f32.mxu0 0.0
      %3530 = vmatmul.mubr.f32.gmra.mrb[0].mxu0 %v3457
      %v3531 = vpop.f32.mrb[0].mxu0
      %v3532 = vadd.f32 0.0, %v3531
      %v3533 = vpop.f32.mrb[0].mxu0
      %3534 = vmatprep.mubr.f32.mxu0 0.0
      %3535 = vmatmul.mubr.f32.gmra.mrb[0].mxu0 %v3459
      %v3536 = vpop.f32.mrb[0].mxu0
      %v3537 = vadd.f32 0.0, %v3536
      %v3538 = vpop.f32.mrb[0].mxu0
      %3539 = vdwg.mxu0
      %3542 = vrot.lane.b32.xlu0 %v3215, 112
      %v3543 = vpop.permute.xlu0 %3542
      %3544 = vrot.lane.b32.xlu0 %v3217, 112
      %v3545 = vpop.permute.xlu0 %3544
      %3548 = vrot.lane.b32.xlu0 %v3343, 80
      %v3549 = vpop.permute.xlu0 %3548
      %3550 = vrot.lane.b32.xlu0 %v3345, 80
      %v3551 = vpop.permute.xlu0 %3550
      %v3552 = vsel %vm660, %v3543, 0
      %v3554 = vsel %vm660, %v3545, 0
      %v3556 = vsel %vm660, %v3549, 0
      %v3558 = vsel %vm660, %v3551, 0
      %3560 = vmatprep.subr.mxu0 0.0
      %3561 = vmatpush1.xpose.msra.mxu0 %v3556
      %3562 = vmatprep.subr.mxu0 0.0
      %3563 = vmatpush1.xpose.msra.mxu0 %v3558
      %3564 = vmatprep.subr.mxu0 0.0
      %3565 = vmatpush1.xpose.msra.mxu0 0.0
      %3566 = vmatprep.subr.mxu0 0.0
      %3567 = vmatpush1.xpose.msra.mxu0 0.0
      %3568 = vmatprep.subr.mxu0 0.0
      %3569 = vmatpush1.xpose.msra.mxu0 0.0
      %3570 = vmatprep.subr.mxu0 0.0
      %3571 = vmatpush1.xpose.msra.mxu0 0.0
      %3572 = vmatprep.subr.mxu0 0.0
      %3573 = vmatpush1.xpose.msra.mxu0 0.0
      %3574 = vmatprep.subr.mxu0 0.0
      %3575 = vmatpush1.xpose.msra.mxu0 0.0
      %3576 = vmatprep.subr.mxu0 0.0
      %3577 = vmatpush1.xpose.msra.mxu0 0.0
      %3578 = vmatprep.subr.mxu0 0.0
      %3579 = vmatpush1.xpose.msra.mxu0 0.0
      %3580 = vmatprep.subr.mxu0 0.0
      %3581 = vmatpush1.xpose.msra.mxu0 0.0
      %3582 = vmatprep.subr.mxu0 0.0
      %3583 = vmatpush1.xpose.msra.mxu0 0.0
      %3584 = vmatprep.subr.mxu0 0.0
      %3585 = vmatpush1.xpose.msra.mxu0 0.0
      %3586 = vmatprep.subr.mxu0 0.0
      %3587 = vmatpush1.xpose.msra.mxu0 0.0
      %3588 = vmatprep.subr.mxu0 0.0
      %3589 = vmatpush1.xpose.msra.mxu0 0.0
      %3590 = vmatprep.subr.mxu0 0.0
      %3591 = vmatpush1.xpose.msra.mxu0 0.0
      %3592 = vmatprep.subr.mxu0 0.0
      %3593 = vmatpush1.xpose.msra.mxu0 0.0
      %3594 = vmatprep.subr.mxu0 0.0
      %3595 = vmatpush1.xpose.msra.mxu0 0.0
      %3596 = vmatprep.subr.mxu0 0.0
      %3597 = vmatpush1.xpose.msra.mxu0 0.0
      %3598 = vmatprep.subr.mxu0 0.0
      %3599 = vmatpush1.xpose.msra.mxu0 0.0
      %3600 = vmatprep.subr.mxu0 0.0
      %3601 = vmatpush1.xpose.msra.mxu0 0.0
      %3602 = vmatprep.subr.mxu0 0.0
      %3603 = vmatpush1.xpose.msra.mxu0 0.0
      %3604 = vmatprep.subr.mxu0 0.0
      %3605 = vmatpush1.xpose.msra.mxu0 0.0
      %3606 = vmatprep.subr.mxu0 0.0
      %3607 = vmatpush1.xpose.msra.mxu0 0.0
      %3608 = vmatprep.subr.mxu0 0.0
      %3609 = vmatpush1.xpose.msra.mxu0 0.0
      %3610 = vmatprep.subr.mxu0 0.0
      %3611 = vmatpush1.xpose.msra.mxu0 0.0
      %3612 = vmatprep.subr.mxu0 0.0
      %3613 = vmatpush1.xpose.msra.mxu0 0.0
      %3614 = vmatprep.subr.mxu0 0.0
      %3615 = vmatpush1.xpose.msra.mxu0 0.0
      %3616 = vmatprep.subr.mxu0 0.0
      %3617 = vmatpush1.xpose.msra.mxu0 0.0
      %3618 = vmatprep.subr.mxu0 0.0
      %3619 = vmatpush1.xpose.msra.mxu0 0.0
      %3620 = vmatprep.subr.mxu0 0.0
      %3621 = vmatpush1.xpose.msra.mxu0 0.0
      %3622 = vmatprep.subr.mxu0 0.0
      %3623 = vmatpush1.xpose.msra.mxu0 0.0
      %3624 = vmatprep.mubr.f32.mxu0 0.0
      %3625 = vmatmul.mubr.f32.gmra.mrb[0].mxu0 %v3552
      %v3626 = vpop.f32.mrb[0].mxu0
      %v3627 = vadd.f32 0.0, %v3626
      %v3628 = vpop.f32.mrb[0].mxu0
      %3629 = vmatprep.mubr.f32.mxu0 0.0
      %3630 = vmatmul.mubr.f32.gmra.mrb[0].mxu0 %v3554
      %v3631 = vpop.f32.mrb[0].mxu0
      %v3632 = vadd.f32 0.0, %v3631
      %v3633 = vpop.f32.mrb[0].mxu0
      %3634 = vdwg.mxu0
      %3637 = vrot.lane.b32.xlu0 %v3219, 112
      %v3638 = vpop.permute.xlu0 %3637
      %3639 = vrot.lane.b32.xlu0 %v3221, 112
      %v3640 = vpop.permute.xlu0 %3639
      %3643 = vrot.lane.b32.xlu0 %v3347, 80
      %v3644 = vpop.permute.xlu0 %3643
      %3645 = vrot.lane.b32.xlu0 %v3349, 80
      %v3646 = vpop.permute.xlu0 %3645
      %v3647 = vsel %vm660, %v3638, 0
      %v3649 = vsel %vm660, %v3640, 0
      %v3651 = vsel %vm660, %v3644, 0
      %v3653 = vsel %vm660, %v3646, 0
      %3655 = vmatprep.subr.mxu0 0.0
      %3656 = vmatpush1.xpose.msra.mxu0 %v3651
      %3657 = vmatprep.subr.mxu0 0.0
      %3658 = vmatpush1.xpose.msra.mxu0 %v3653
      %3659 = vmatprep.subr.mxu0 0.0
      %3660 = vmatpush1.xpose.msra.mxu0 0.0
      %3661 = vmatprep.subr.mxu0 0.0
      %3662 = vmatpush1.xpose.msra.mxu0 0.0
      %3663 = vmatprep.subr.mxu0 0.0
      %3664 = vmatpush1.xpose.msra.mxu0 0.0
      %3665 = vmatprep.subr.mxu0 0.0
      %3666 = vmatpush1.xpose.msra.mxu0 0.0
      %3667 = vmatprep.subr.mxu0 0.0
      %3668 = vmatpush1.xpose.msra.mxu0 0.0
      %3669 = vmatprep.subr.mxu0 0.0
      %3670 = vmatpush1.xpose.msra.mxu0 0.0
      %3671 = vmatprep.subr.mxu0 0.0
      %3672 = vmatpush1.xpose.msra.mxu0 0.0
      %3673 = vmatprep.subr.mxu0 0.0
      %3674 = vmatpush1.xpose.msra.mxu0 0.0
      %3675 = vmatprep.subr.mxu0 0.0
      %3676 = vmatpush1.xpose.msra.mxu0 0.0
      %3677 = vmatprep.subr.mxu0 0.0
      %3678 = vmatpush1.xpose.msra.mxu0 0.0
      %3679 = vmatprep.subr.mxu0 0.0
      %3680 = vmatpush1.xpose.msra.mxu0 0.0
      %3681 = vmatprep.subr.mxu0 0.0
      %3682 = vmatpush1.xpose.msra.mxu0 0.0
      %3683 = vmatprep.subr.mxu0 0.0
      %3684 = vmatpush1.xpose.msra.mxu0 0.0
      %3685 = vmatprep.subr.mxu0 0.0
      %3686 = vmatpush1.xpose.msra.mxu0 0.0
      %3687 = vmatprep.subr.mxu0 0.0
      %3688 = vmatpush1.xpose.msra.mxu0 0.0
      %3689 = vmatprep.subr.mxu0 0.0
      %3690 = vmatpush1.xpose.msra.mxu0 0.0
      %3691 = vmatprep.subr.mxu0 0.0
      %3692 = vmatpush1.xpose.msra.mxu0 0.0
      %3693 = vmatprep.subr.mxu0 0.0
      %3694 = vmatpush1.xpose.msra.mxu0 0.0
      %3695 = vmatprep.subr.mxu0 0.0
      %3696 = vmatpush1.xpose.msra.mxu0 0.0
      %3697 = vmatprep.subr.mxu0 0.0
      %3698 = vmatpush1.xpose.msra.mxu0 0.0
      %3699 = vmatprep.subr.mxu0 0.0
      %3700 = vmatpush1.xpose.msra.mxu0 0.0
      %3701 = vmatprep.subr.mxu0 0.0
      %3702 = vmatpush1.xpose.msra.mxu0 0.0
      %3703 = vmatprep.subr.mxu0 0.0
      %3704 = vmatpush1.xpose.msra.mxu0 0.0
      %3705 = vmatprep.subr.mxu0 0.0
      %3706 = vmatpush1.xpose.msra.mxu0 0.0
      %3707 = vmatprep.subr.mxu0 0.0
      %3708 = vmatpush1.xpose.msra.mxu0 0.0
      %3709 = vmatprep.subr.mxu0 0.0
      %3710 = vmatpush1.xpose.msra.mxu0 0.0
      %3711 = vmatprep.subr.mxu0 0.0
      %3712 = vmatpush1.xpose.msra.mxu0 0.0
      %3713 = vmatprep.subr.mxu0 0.0
      %3714 = vmatpush1.xpose.msra.mxu0 0.0
      %3715 = vmatprep.subr.mxu0 0.0
      %3716 = vmatpush1.xpose.msra.mxu0 0.0
      %3717 = vmatprep.subr.mxu0 0.0
      %3718 = vmatpush1.xpose.msra.mxu0 0.0
      %3719 = vmatprep.mubr.f32.mxu0 0.0
      %3720 = vmatmul.mubr.f32.gmra.mrb[0].mxu0 %v3647
      %v3721 = vpop.f32.mrb[0].mxu0
      %v3722 = vadd.f32 0.0, %v3721
      %v3723 = vpop.f32.mrb[0].mxu0
      %3724 = vmatprep.mubr.f32.mxu0 0.0
      %3725 = vmatmul.mubr.f32.gmra.mrb[0].mxu0 %v3649
      %v3726 = vpop.f32.mrb[0].mxu0
      %v3727 = vadd.f32 0.0, %v3726
      %v3728 = vpop.f32.mrb[0].mxu0
      %3729 = vdwg.mxu0
      %s3730 = scalar_lea.vmem %s3, 2
      %v3731 = vld [vmem:[%s3730] sm:$0x1]
      %v3733 = vlaneseq
      %v3734 = vshrl.u32 %v3733, 7
      %v3735 = vsub.s32 0, %v3734
      %v3736 = vrot.slane %v3731, %v3735
      %v3738 = vmul.f32 %v3437, %v3736
      %v3739 = vmul.f32 %v3442, %v3736
      %v3740 = vmul.f32 %v3532, %v3736
      %v3741 = vmul.f32 %v3537, %v3736
      %v3742 = vmul.f32 %v3627, %v3736
      %v3743 = vmul.f32 %v3632, %v3736
      %v3744 = vmul.f32 %v3722, %v3736
      %v3745 = vmul.f32 %v3727, %v3736
      %s3746 = scalar_lea.vmem %s4, 32
      %v3747 = vld [vmem:[%s3746] sm:$0xff]
      %v3748 = vld [vmem:[%s3746 + $0x8] sm:$0xff]
      %v3749 = vadd.f32 %v3738, %v3747
      %v3750 = vadd.f32 %v3739, %v3748
      %v3751 = vadd.f32 %v3740, %v3747
      %v3752 = vadd.f32 %v3741, %v3748
      %v3753 = vadd.f32 %v3742, %v3747
      %v3754 = vadd.f32 %v3743, %v3748
      %v3755 = vadd.f32 %v3744, %v3747
      %v3756 = vadd.f32 %v3745, %v3748
      %v3757 = vsel %vm1290, %v3749, -inf
      %3758 = vmax.xlane.f32.xlu0 %v3757
      %v3759 = vpop.xlane.xlu0 %3758
      %v3760 = vsel %vm1290, %v3750, -inf
      %3761 = vmax.xlane.f32.xlu0 %v3760
      %v3762 = vpop.xlane.xlu0 %3761
      %v3763 = vsel %vm1290, %v3751, -inf
      %3764 = vmax.xlane.f32.xlu0 %v3763
      %v3765 = vpop.xlane.xlu0 %3764
      %v3766 = vsel %vm1290, %v3752, -inf
      %3767 = vmax.xlane.f32.xlu0 %v3766
      %v3768 = vpop.xlane.xlu0 %3767
      %v3769 = vsel %vm1290, %v3753, -inf
      %3770 = vmax.xlane.f32.xlu0 %v3769
      %v3771 = vpop.xlane.xlu0 %3770
      %v3772 = vsel %vm1290, %v3754, -inf
      %3773 = vmax.xlane.f32.xlu0 %v3772
      %v3774 = vpop.xlane.xlu0 %3773
      %v3775 = vsel %vm1290, %v3755, -inf
      %3776 = vmax.xlane.f32.xlu0 %v3775
      %v3777 = vpop.xlane.xlu0 %3776
      %v3778 = vsel %vm1290, %v3756, -inf
      %3779 = vmax.xlane.f32.xlu0 %v3778
      %v3780 = vpop.xlane.xlu0 %3779
      %v3781 = vsub.f32 %v3749, %v3759
      %v3782 = vsub.f32 %v3750, %v3762
      %v3783 = vsub.f32 %v3751, %v3765
      %v3784 = vsub.f32 %v3752, %v3768
      %v3785 = vsub.f32 %v3753, %v3771
      %v3786 = vsub.f32 %v3754, %v3774
      %v3787 = vsub.f32 %v3755, %v3777
      %v3788 = vsub.f32 %v3756, %v3780
      %v3789 = vmul.f32 %v3781, 1.442695
      %v3790 = vpow.pop %v3789
      %v3791 = vmul.f32 %v3782, 1.442695
      %v3792 = vpow.pop %v3791
      %v3793 = vmul.f32 %v3783, 1.442695
      %v3794 = vpow.pop %v3793
      %v3795 = vmul.f32 %v3784, 1.442695
      %v3796 = vpow.pop %v3795
      %v3797 = vmul.f32 %v3785, 1.442695
      %v3798 = vpow.pop %v3797
      %v3799 = vmul.f32 %v3786, 1.442695
      %v3800 = vpow.pop %v3799
      %v3801 = vmul.f32 %v3787, 1.442695
      %v3802 = vpow.pop %v3801
      %v3803 = vmul.f32 %v3788, 1.442695
      %v3804 = vpow.pop %v3803
      %v3805 = vsel %vm1290, %v3790, 0.0
      %3806 = vadd.xlane.f32.xlu0 %v3805
      %v3807 = vpop.xlane.xlu0 %3806
      %v3808 = vsel %vm1290, %v3792, 0.0
      %3809 = vadd.xlane.f32.xlu0 %v3808
      %v3810 = vpop.xlane.xlu0 %3809
      %v3811 = vsel %vm1290, %v3794, 0.0
      %3812 = vadd.xlane.f32.xlu0 %v3811
      %v3813 = vpop.xlane.xlu0 %3812
      %v3814 = vsel %vm1290, %v3796, 0.0
      %3815 = vadd.xlane.f32.xlu0 %v3814
      %v3816 = vpop.xlane.xlu0 %3815
      %v3817 = vsel %vm1290, %v3798, 0.0
      %3818 = vadd.xlane.f32.xlu0 %v3817
      %v3819 = vpop.xlane.xlu0 %3818
      %v3820 = vsel %vm1290, %v3800, 0.0
      %3821 = vadd.xlane.f32.xlu0 %v3820
      %v3822 = vpop.xlane.xlu0 %3821
      %v3823 = vsel %vm1290, %v3802, 0.0
      %3824 = vadd.xlane.f32.xlu0 %v3823
      %v3825 = vpop.xlane.xlu0 %3824
      %v3826 = vsel %vm1290, %v3804, 0.0
      %3827 = vadd.xlane.f32.xlu0 %v3826
      %v3828 = vpop.xlane.xlu0 %3827
      %v3829 = vrcp.pop %v3807
      %v3830 = vmul.f32 %v3790, %v3829
      %v3831 = vrcp.pop %v3810
      %v3832 = vmul.f32 %v3792, %v3831
      %v3833 = vrcp.pop %v3813
      %v3834 = vmul.f32 %v3794, %v3833
      %v3835 = vrcp.pop %v3816
      %v3836 = vmul.f32 %v3796, %v3835
      %v3837 = vrcp.pop %v3819
      %v3838 = vmul.f32 %v3798, %v3837
      %v3839 = vrcp.pop %v3822
      %v3840 = vmul.f32 %v3800, %v3839
      %v3841 = vrcp.pop %v3825
      %v3842 = vmul.f32 %v3802, %v3841
      %v3843 = vrcp.pop %v3828
      %v3844 = vmul.f32 %v3804, %v3843
      %3845 = vrot.lane.b32.xlu0 %v614, 48
      %v3846 = vpop.permute.xlu0 %3845
      %3847 = vrot.lane.b32.xlu0 %v619, 48
      %v3848 = vpop.permute.xlu0 %3847
      %v3852 = vsel %vm1290, %v3830, 0
      %v3855 = vsel %vm1290, %v3832, 0
      %3857 = vmatprep.subr.mxu0 0.0
      %3858 = vmatpush1.msra.mxu0 %v3846
      %3859 = vmatprep.subr.mxu0 0.0
      %3860 = vmatpush1.msra.mxu0 %v3848
      %3861 = vmatprep.subr.mxu0 0.0
      %3862 = vmatpush1.msra.mxu0 0.0
      %3863 = vmatprep.subr.mxu0 0.0
      %3864 = vmatpush1.msra.mxu0 0.0
      %3865 = vmatprep.subr.mxu0 0.0
      %3866 = vmatpush1.msra.mxu0 0.0
      %3867 = vmatprep.subr.mxu0 0.0
      %3868 = vmatpush1.msra.mxu0 0.0
      %3869 = vmatprep.subr.mxu0 0.0
      %3870 = vmatpush1.msra.mxu0 0.0
      %3871 = vmatprep.subr.mxu0 0.0
      %3872 = vmatpush1.msra.mxu0 0.0
      %3873 = vmatprep.subr.mxu0 0.0
      %3874 = vmatpush1.msra.mxu0 0.0
      %3875 = vmatprep.subr.mxu0 0.0
      %3876 = vmatpush1.msra.mxu0 0.0
      %3877 = vmatprep.subr.mxu0 0.0
      %3878 = vmatpush1.msra.mxu0 0.0
      %3879 = vmatprep.subr.mxu0 0.0
      %3880 = vmatpush1.msra.mxu0 0.0
      %3881 = vmatprep.subr.mxu0 0.0
      %3882 = vmatpush1.msra.mxu0 0.0
      %3883 = vmatprep.subr.mxu0 0.0
      %3884 = vmatpush1.msra.mxu0 0.0
      %3885 = vmatprep.subr.mxu0 0.0
      %3886 = vmatpush1.msra.mxu0 0.0
      %3887 = vmatprep.subr.mxu0 0.0
      %3888 = vmatpush1.msra.mxu0 0.0
      %3889 = vmatprep.subr.mxu0 0.0
      %3890 = vmatpush1.msra.mxu0 0.0
      %3891 = vmatprep.subr.mxu0 0.0
      %3892 = vmatpush1.msra.mxu0 0.0
      %3893 = vmatprep.subr.mxu0 0.0
      %3894 = vmatpush1.msra.mxu0 0.0
      %3895 = vmatprep.subr.mxu0 0.0
      %3896 = vmatpush1.msra.mxu0 0.0
      %3897 = vmatprep.subr.mxu0 0.0
      %3898 = vmatpush1.msra.mxu0 0.0
      %3899 = vmatprep.subr.mxu0 0.0
      %3900 = vmatpush1.msra.mxu0 0.0
      %3901 = vmatprep.subr.mxu0 0.0
      %3902 = vmatpush1.msra.mxu0 0.0
      %3903 = vmatprep.subr.mxu0 0.0
      %3904 = vmatpush1.msra.mxu0 0.0
      %3905 = vmatprep.subr.mxu0 0.0
      %3906 = vmatpush1.msra.mxu0 0.0
      %3907 = vmatprep.subr.mxu0 0.0
      %3908 = vmatpush1.msra.mxu0 0.0
      %3909 = vmatprep.subr.mxu0 0.0
      %3910 = vmatpush1.msra.mxu0 0.0
      %3911 = vmatprep.subr.mxu0 0.0
      %3912 = vmatpush1.msra.mxu0 0.0
      %3913 = vmatprep.subr.mxu0 0.0
      %3914 = vmatpush1.msra.mxu0 0.0
      %3915 = vmatprep.subr.mxu0 0.0
      %3916 = vmatpush1.msra.mxu0 0.0
      %3917 = vmatprep.subr.mxu0 0.0
      %3918 = vmatpush1.msra.mxu0 0.0
      %3919 = vmatprep.subr.mxu0 0.0
      %3920 = vmatpush1.msra.mxu0 0.0
      %3921 = vmatprep.mubr.f32.mxu0 0.0
      %3922 = vmatmul.mubr.f32.gmra.mrb[0].mxu0 %v3852
      %v3923 = vpop.f32.mrb[0].mxu0
      %v3924 = vadd.f32 0.0, %v3923
      %v3925 = vpop.f32.mrb[0].mxu0
      %3926 = vmatprep.mubr.f32.mxu0 0.0
      %3927 = vmatmul.mubr.f32.gmra.mrb[0].mxu0 %v3855
      %v3928 = vpop.f32.mrb[0].mxu0
      %v3929 = vadd.f32 0.0, %v3928
      %v3930 = vpop.f32.mrb[0].mxu0
      %3931 = vdwg.mxu0
      %3932 = vrot.lane.b32.xlu0 %v624, 48
      %v3933 = vpop.permute.xlu0 %3932
      %3934 = vrot.lane.b32.xlu0 %v629, 48
      %v3935 = vpop.permute.xlu0 %3934
      %v3939 = vsel %vm1290, %v3834, 0
      %v3942 = vsel %vm1290, %v3836, 0
      %3944 = vmatprep.subr.mxu0 0.0
      %3945 = vmatpush1.msra.mxu0 %v3933
      %3946 = vmatprep.subr.mxu0 0.0
      %3947 = vmatpush1.msra.mxu0 %v3935
      %3948 = vmatprep.subr.mxu0 0.0
      %3949 = vmatpush1.msra.mxu0 0.0
      %3950 = vmatprep.subr.mxu0 0.0
      %3951 = vmatpush1.msra.mxu0 0.0
      %3952 = vmatprep.subr.mxu0 0.0
      %3953 = vmatpush1.msra.mxu0 0.0
      %3954 = vmatprep.subr.mxu0 0.0
      %3955 = vmatpush1.msra.mxu0 0.0
      %3956 = vmatprep.subr.mxu0 0.0
      %3957 = vmatpush1.msra.mxu0 0.0
      %3958 = vmatprep.subr.mxu0 0.0
      %3959 = vmatpush1.msra.mxu0 0.0
      %3960 = vmatprep.subr.mxu0 0.0
      %3961 = vmatpush1.msra.mxu0 0.0
      %3962 = vmatprep.subr.mxu0 0.0
      %3963 = vmatpush1.msra.mxu0 0.0
      %3964 = vmatprep.subr.mxu0 0.0
      %3965 = vmatpush1.msra.mxu0 0.0
      %3966 = vmatprep.subr.mxu0 0.0
      %3967 = vmatpush1.msra.mxu0 0.0
      %3968 = vmatprep.subr.mxu0 0.0
      %3969 = vmatpush1.msra.mxu0 0.0
      %3970 = vmatprep.subr.mxu0 0.0
      %3971 = vmatpush1.msra.mxu0 0.0
      %3972 = vmatprep.subr.mxu0 0.0
      %3973 = vmatpush1.msra.mxu0 0.0
      %3974 = vmatprep.subr.mxu0 0.0
      %3975 = vmatpush1.msra.mxu0 0.0
      %3976 = vmatprep.subr.mxu0 0.0
      %3977 = vmatpush1.msra.mxu0 0.0
      %3978 = vmatprep.subr.mxu0 0.0
      %3979 = vmatpush1.msra.mxu0 0.0
      %3980 = vmatprep.subr.mxu0 0.0
      %3981 = vmatpush1.msra.mxu0 0.0
      %3982 = vmatprep.subr.mxu0 0.0
      %3983 = vmatpush1.msra.mxu0 0.0
      %3984 = vmatprep.subr.mxu0 0.0
      %3985 = vmatpush1.msra.mxu0 0.0
      %3986 = vmatprep.subr.mxu0 0.0
      %3987 = vmatpush1.msra.mxu0 0.0
      %3988 = vmatprep.subr.mxu0 0.0
      %3989 = vmatpush1.msra.mxu0 0.0
      %3990 = vmatprep.subr.mxu0 0.0
      %3991 = vmatpush1.msra.mxu0 0.0
      %3992 = vmatprep.subr.mxu0 0.0
      %3993 = vmatpush1.msra.mxu0 0.0
      %3994 = vmatprep.subr.mxu0 0.0
      %3995 = vmatpush1.msra.mxu0 0.0
      %3996 = vmatprep.subr.mxu0 0.0
      %3997 = vmatpush1.msra.mxu0 0.0
      %3998 = vmatprep.subr.mxu0 0.0
      %3999 = vmatpush1.msra.mxu0 0.0
      %4000 = vmatprep.subr.mxu0 0.0
      %4001 = vmatpush1.msra.mxu0 0.0
      %4002 = vmatprep.subr.mxu0 0.0
      %4003 = vmatpush1.msra.mxu0 0.0
      %4004 = vmatprep.subr.mxu0 0.0
      %4005 = vmatpush1.msra.mxu0 0.0
      %4006 = vmatprep.subr.mxu0 0.0
      %4007 = vmatpush1.msra.mxu0 0.0
      %4008 = vmatprep.mubr.f32.mxu0 0.0
      %4009 = vmatmul.mubr.f32.gmra.mrb[0].mxu0 %v3939
      %v4010 = vpop.f32.mrb[0].mxu0
      %v4011 = vadd.f32 0.0, %v4010
      %v4012 = vpop.f32.mrb[0].mxu0
      %4013 = vmatprep.mubr.f32.mxu0 0.0
      %4014 = vmatmul.mubr.f32.gmra.mrb[0].mxu0 %v3942
      %v4015 = vpop.f32.mrb[0].mxu0
      %v4016 = vadd.f32 0.0, %v4015
      %v4017 = vpop.f32.mrb[0].mxu0
      %4018 = vdwg.mxu0
      %4019 = vrot.lane.b32.xlu0 %v634, 48
      %v4020 = vpop.permute.xlu0 %4019
      %4021 = vrot.lane.b32.xlu0 %v639, 48
      %v4022 = vpop.permute.xlu0 %4021
      %v4026 = vsel %vm1290, %v3838, 0
      %v4029 = vsel %vm1290, %v3840, 0
      %4031 = vmatprep.subr.mxu0 0.0
      %4032 = vmatpush1.msra.mxu0 %v4020
      %4033 = vmatprep.subr.mxu0 0.0
      %4034 = vmatpush1.msra.mxu0 %v4022
      %4035 = vmatprep.subr.mxu0 0.0
      %4036 = vmatpush1.msra.mxu0 0.0
      %4037 = vmatprep.subr.mxu0 0.0
      %4038 = vmatpush1.msra.mxu0 0.0
      %4039 = vmatprep.subr.mxu0 0.0
      %4040 = vmatpush1.msra.mxu0 0.0
      %4041 = vmatprep.subr.mxu0 0.0
      %4042 = vmatpush1.msra.mxu0 0.0
      %4043 = vmatprep.subr.mxu0 0.0
      %4044 = vmatpush1.msra.mxu0 0.0
      %4045 = vmatprep.subr.mxu0 0.0
      %4046 = vmatpush1.msra.mxu0 0.0
      %4047 = vmatprep.subr.mxu0 0.0
      %4048 = vmatpush1.msra.mxu0 0.0
      %4049 = vmatprep.subr.mxu0 0.0
      %4050 = vmatpush1.msra.mxu0 0.0
      %4051 = vmatprep.subr.mxu0 0.0
      %4052 = vmatpush1.msra.mxu0 0.0
      %4053 = vmatprep.subr.mxu0 0.0
      %4054 = vmatpush1.msra.mxu0 0.0
      %4055 = vmatprep.subr.mxu0 0.0
      %4056 = vmatpush1.msra.mxu0 0.0
      %4057 = vmatprep.subr.mxu0 0.0
      %4058 = vmatpush1.msra.mxu0 0.0
      %4059 = vmatprep.subr.mxu0 0.0
      %4060 = vmatpush1.msra.mxu0 0.0
      %4061 = vmatprep.subr.mxu0 0.0
      %4062 = vmatpush1.msra.mxu0 0.0
      %4063 = vmatprep.subr.mxu0 0.0
      %4064 = vmatpush1.msra.mxu0 0.0
      %4065 = vmatprep.subr.mxu0 0.0
      %4066 = vmatpush1.msra.mxu0 0.0
      %4067 = vmatprep.subr.mxu0 0.0
      %4068 = vmatpush1.msra.mxu0 0.0
      %4069 = vmatprep.subr.mxu0 0.0
      %4070 = vmatpush1.msra.mxu0 0.0
      %4071 = vmatprep.subr.mxu0 0.0
      %4072 = vmatpush1.msra.mxu0 0.0
      %4073 = vmatprep.subr.mxu0 0.0
      %4074 = vmatpush1.msra.mxu0 0.0
      %4075 = vmatprep.subr.mxu0 0.0
      %4076 = vmatpush1.msra.mxu0 0.0
      %4077 = vmatprep.subr.mxu0 0.0
      %4078 = vmatpush1.msra.mxu0 0.0
      %4079 = vmatprep.subr.mxu0 0.0
      %4080 = vmatpush1.msra.mxu0 0.0
      %4081 = vmatprep.subr.mxu0 0.0
      %4082 = vmatpush1.msra.mxu0 0.0
      %4083 = vmatprep.subr.mxu0 0.0
      %4084 = vmatpush1.msra.mxu0 0.0
      %4085 = vmatprep.subr.mxu0 0.0
      %4086 = vmatpush1.msra.mxu0 0.0
      %4087 = vmatprep.subr.mxu0 0.0
      %4088 = vmatpush1.msra.mxu0 0.0
      %4089 = vmatprep.subr.mxu0 0.0
      %4090 = vmatpush1.msra.mxu0 0.0
      %4091 = vmatprep.subr.mxu0 0.0
      %4092 = vmatpush1.msra.mxu0 0.0
      %4093 = vmatprep.subr.mxu0 0.0
      %4094 = vmatpush1.msra.mxu0 0.0
      %4095 = vmatprep.mubr.f32.mxu0 0.0
      %4096 = vmatmul.mubr.f32.gmra.mrb[0].mxu0 %v4026
      %v4097 = vpop.f32.mrb[0].mxu0
      %v4098 = vadd.f32 0.0, %v4097
      %v4099 = vpop.f32.mrb[0].mxu0
      %4100 = vmatprep.mubr.f32.mxu0 0.0
      %4101 = vmatmul.mubr.f32.gmra.mrb[0].mxu0 %v4029
      %v4102 = vpop.f32.mrb[0].mxu0
      %v4103 = vadd.f32 0.0, %v4102
      %v4104 = vpop.f32.mrb[0].mxu0
      %4105 = vdwg.mxu0
      %4106 = vrot.lane.b32.xlu0 %v644, 48
      %v4107 = vpop.permute.xlu0 %4106
      %4108 = vrot.lane.b32.xlu0 %v649, 48
      %v4109 = vpop.permute.xlu0 %4108
      %v4113 = vsel %vm1290, %v3842, 0
      %v4116 = vsel %vm1290, %v3844, 0
      %4118 = vmatprep.subr.mxu0 0.0
      %4119 = vmatpush1.msra.mxu0 %v4107
      %4120 = vmatprep.subr.mxu0 0.0
      %4121 = vmatpush1.msra.mxu0 %v4109
      %4122 = vmatprep.subr.mxu0 0.0
      %4123 = vmatpush1.msra.mxu0 0.0
      %4124 = vmatprep.subr.mxu0 0.0
      %4125 = vmatpush1.msra.mxu0 0.0
      %4126 = vmatprep.subr.mxu0 0.0
      %4127 = vmatpush1.msra.mxu0 0.0
      %4128 = vmatprep.subr.mxu0 0.0
      %4129 = vmatpush1.msra.mxu0 0.0
      %4130 = vmatprep.subr.mxu0 0.0
      %4131 = vmatpush1.msra.mxu0 0.0
      %4132 = vmatprep.subr.mxu0 0.0
      %4133 = vmatpush1.msra.mxu0 0.0
      %4134 = vmatprep.subr.mxu0 0.0
      %4135 = vmatpush1.msra.mxu0 0.0
      %4136 = vmatprep.subr.mxu0 0.0
      %4137 = vmatpush1.msra.mxu0 0.0
      %4138 = vmatprep.subr.mxu0 0.0
      %4139 = vmatpush1.msra.mxu0 0.0
      %4140 = vmatprep.subr.mxu0 0.0
      %4141 = vmatpush1.msra.mxu0 0.0
      %4142 = vmatprep.subr.mxu0 0.0
      %4143 = vmatpush1.msra.mxu0 0.0
      %4144 = vmatprep.subr.mxu0 0.0
      %4145 = vmatpush1.msra.mxu0 0.0
      %4146 = vmatprep.subr.mxu0 0.0
      %4147 = vmatpush1.msra.mxu0 0.0
      %4148 = vmatprep.subr.mxu0 0.0
      %4149 = vmatpush1.msra.mxu0 0.0
      %4150 = vmatprep.subr.mxu0 0.0
      %4151 = vmatpush1.msra.mxu0 0.0
      %4152 = vmatprep.subr.mxu0 0.0
      %4153 = vmatpush1.msra.mxu0 0.0
      %4154 = vmatprep.subr.mxu0 0.0
      %4155 = vmatpush1.msra.mxu0 0.0
      %4156 = vmatprep.subr.mxu0 0.0
      %4157 = vmatpush1.msra.mxu0 0.0
      %4158 = vmatprep.subr.mxu0 0.0
      %4159 = vmatpush1.msra.mxu0 0.0
      %4160 = vmatprep.subr.mxu0 0.0
      %4161 = vmatpush1.msra.mxu0 0.0
      %4162 = vmatprep.subr.mxu0 0.0
      %4163 = vmatpush1.msra.mxu0 0.0
      %4164 = vmatprep.subr.mxu0 0.0
      %4165 = vmatpush1.msra.mxu0 0.0
      %4166 = vmatprep.subr.mxu0 0.0
      %4167 = vmatpush1.msra.mxu0 0.0
      %4168 = vmatprep.subr.mxu0 0.0
      %4169 = vmatpush1.msra.mxu0 0.0
      %4170 = vmatprep.subr.mxu0 0.0
      %4171 = vmatpush1.msra.mxu0 0.0
      %4172 = vmatprep.subr.mxu0 0.0
      %4173 = vmatpush1.msra.mxu0 0.0
      %4174 = vmatprep.subr.mxu0 0.0
      %4175 = vmatpush1.msra.mxu0 0.0
      %4176 = vmatprep.subr.mxu0 0.0
      %4177 = vmatpush1.msra.mxu0 0.0
      %4178 = vmatprep.subr.mxu0 0.0
      %4179 = vmatpush1.msra.mxu0 0.0
      %4180 = vmatprep.subr.mxu0 0.0
      %4181 = vmatpush1.msra.mxu0 0.0
      %4182 = vmatprep.mubr.f32.mxu0 0.0
      %4183 = vmatmul.mubr.f32.gmra.mrb[0].mxu0 %v4113
      %v4184 = vpop.f32.mrb[0].mxu0
      %v4185 = vadd.f32 0.0, %v4184
      %v4186 = vpop.f32.mrb[0].mxu0
      %4187 = vmatprep.mubr.f32.mxu0 0.0
      %4188 = vmatmul.mubr.f32.gmra.mrb[0].mxu0 %v4116
      %v4189 = vpop.f32.mrb[0].mxu0
      %v4190 = vadd.f32 0.0, %v4189
      %v4191 = vpop.f32.mrb[0].mxu0
      %4192 = vdwg.mxu0
      %v4193 = vld [vmem:[%s5 + $0x10] sm:$0xff]
      %v4195 = vsel %vm660, %v3924, 0
      %v4198 = vsel %vm660, %v3929, 0
      %v4201 = vsel %vm660, %v4011, 0
      %v4204 = vsel %vm660, %v4016, 0
      %v4207 = vsel %vm660, %v4098, 0
      %v4210 = vsel %vm660, %v4103, 0
      %v4213 = vsel %vm660, %v4185, 0
      %v4216 = vsel %vm660, %v4190, 0
      %4218 = vmatprep.subr.mxu0 0.0
      %4219 = vmatpush1.msra.mxu0 %v4193
      %4220 = vmatprep.subr.mxu0 0.0
      %4221 = vmatpush1.msra.mxu0 0.0
      %4222 = vmatprep.subr.mxu0 0.0
      %4223 = vmatpush1.msra.mxu0 0.0
      %4224 = vmatprep.subr.mxu0 0.0
      %4225 = vmatpush1.msra.mxu0 0.0
      %4226 = vmatprep.subr.mxu0 0.0
      %4227 = vmatpush1.msra.mxu0 0.0
      %4228 = vmatprep.subr.mxu0 0.0
      %4229 = vmatpush1.msra.mxu0 0.0
      %4230 = vmatprep.subr.mxu0 0.0
      %4231 = vmatpush1.msra.mxu0 0.0
      %4232 = vmatprep.subr.mxu0 0.0
      %4233 = vmatpush1.msra.mxu0 0.0
      %4234 = vmatprep.subr.mxu0 0.0
      %4235 = vmatpush1.msra.mxu0 0.0
      %4236 = vmatprep.subr.mxu0 0.0
      %4237 = vmatpush1.msra.mxu0 0.0
      %4238 = vmatprep.subr.mxu0 0.0
      %4239 = vmatpush1.msra.mxu0 0.0
      %4240 = vmatprep.subr.mxu0 0.0
      %4241 = vmatpush1.msra.mxu0 0.0
      %4242 = vmatprep.subr.mxu0 0.0
      %4243 = vmatpush1.msra.mxu0 0.0
      %4244 = vmatprep.subr.mxu0 0.0
      %4245 = vmatpush1.msra.mxu0 0.0
      %4246 = vmatprep.subr.mxu0 0.0
      %4247 = vmatpush1.msra.mxu0 0.0
      %4248 = vmatprep.subr.mxu0 0.0
      %4249 = vmatpush1.msra.mxu0 0.0
      %4250 = vmatprep.subr.mxu0 0.0
      %4251 = vmatpush1.msra.mxu0 0.0
      %4252 = vmatprep.subr.mxu0 0.0
      %4253 = vmatpush1.msra.mxu0 0.0
      %4254 = vmatprep.subr.mxu0 0.0
      %4255 = vmatpush1.msra.mxu0 0.0
      %4256 = vmatprep.subr.mxu0 0.0
      %4257 = vmatpush1.msra.mxu0 0.0
      %4258 = vmatprep.subr.mxu0 0.0
      %4259 = vmatpush1.msra.mxu0 0.0
      %4260 = vmatprep.subr.mxu0 0.0
      %4261 = vmatpush1.msra.mxu0 0.0
      %4262 = vmatprep.subr.mxu0 0.0
      %4263 = vmatpush1.msra.mxu0 0.0
      %4264 = vmatprep.subr.mxu0 0.0
      %4265 = vmatpush1.msra.mxu0 0.0
      %4266 = vmatprep.subr.mxu0 0.0
      %4267 = vmatpush1.msra.mxu0 0.0
      %4268 = vmatprep.subr.mxu0 0.0
      %4269 = vmatpush1.msra.mxu0 0.0
      %4270 = vmatprep.subr.mxu0 0.0
      %4271 = vmatpush1.msra.mxu0 0.0
      %4272 = vmatprep.subr.mxu0 0.0
      %4273 = vmatpush1.msra.mxu0 0.0
      %4274 = vmatprep.subr.mxu0 0.0
      %4275 = vmatpush1.msra.mxu0 0.0
      %4276 = vmatprep.subr.mxu0 0.0
      %4277 = vmatpush1.msra.mxu0 0.0
      %4278 = vmatprep.subr.mxu0 0.0
      %4279 = vmatpush1.msra.mxu0 0.0
      %4280 = vmatprep.subr.mxu0 0.0
      %4281 = vmatpush1.msra.mxu0 0.0
      %4282 = vmatprep.mubr.f32.mxu0 0.0
      %4283 = vmatmul.mubr.f32.gmra.mrb[0].mxu0 %v4195
      %v4284 = vpop.f32.mrb[0].mxu0
      %v4285 = vadd.f32 0.0, %v4284
      %v4286 = vpop.f32.mrb[0].mxu0
      %4287 = vmatprep.mubr.f32.mxu0 0.0
      %4288 = vmatmul.mubr.f32.gmra.mrb[0].mxu0 %v4198
      %v4289 = vpop.f32.mrb[0].mxu0
      %v4290 = vadd.f32 0.0, %v4289
      %v4291 = vpop.f32.mrb[0].mxu0
      %4292 = vmatprep.mubr.f32.mxu0 0.0
      %4293 = vmatmul.mubr.f32.gmra.mrb[0].mxu0 %v4201
      %v4294 = vpop.f32.mrb[0].mxu0
      %v4295 = vadd.f32 0.0, %v4294
      %v4296 = vpop.f32.mrb[0].mxu0
      %4297 = vmatprep.mubr.f32.mxu0 0.0
      %4298 = vmatmul.mubr.f32.gmra.mrb[0].mxu0 %v4204
      %v4299 = vpop.f32.mrb[0].mxu0
      %v4300 = vadd.f32 0.0, %v4299
      %v4301 = vpop.f32.mrb[0].mxu0
      %4302 = vmatprep.mubr.f32.mxu0 0.0
      %4303 = vmatmul.mubr.f32.gmra.mrb[0].mxu0 %v4207
      %v4304 = vpop.f32.mrb[0].mxu0
      %v4305 = vadd.f32 0.0, %v4304
      %v4306 = vpop.f32.mrb[0].mxu0
      %4307 = vmatprep.mubr.f32.mxu0 0.0
      %4308 = vmatmul.mubr.f32.gmra.mrb[0].mxu0 %v4210
      %v4309 = vpop.f32.mrb[0].mxu0
      %v4310 = vadd.f32 0.0, %v4309
      %v4311 = vpop.f32.mrb[0].mxu0
      %4312 = vmatprep.mubr.f32.mxu0 0.0
      %4313 = vmatmul.mubr.f32.gmra.mrb[0].mxu0 %v4213
      %v4314 = vpop.f32.mrb[0].mxu0
      %v4315 = vadd.f32 0.0, %v4314
      %v4316 = vpop.f32.mrb[0].mxu0
      %4317 = vmatprep.mubr.f32.mxu0 0.0
      %4318 = vmatmul.mubr.f32.gmra.mrb[0].mxu0 %v4216
      %v4319 = vpop.f32.mrb[0].mxu0
      %v4320 = vadd.f32 0.0, %v4319
      %v4321 = vpop.f32.mrb[0].mxu0
      %4322 = vdwg.mxu0
      %v4323 = vadd.f32 %v3056, %v4285
      %v4324 = vadd.f32 %v3061, %v4290
      %v4325 = vadd.f32 %v3066, %v4295
      %v4326 = vadd.f32 %v3071, %v4300
      %v4327 = vadd.f32 %v3076, %v4305
      %v4328 = vadd.f32 %v3081, %v4310
      %v4329 = vadd.f32 %v3086, %v4315
      %v4330 = vadd.f32 %v3091, %v4320
      %4331 = vrot.lane.b32.xlu0 %v652, 104
      %v4332 = vpop.permute.xlu0 %4331
      %4333 = vrot.lane.b32.xlu0 %v653, 104
      %v4334 = vpop.permute.xlu0 %4333
      %4335 = vrot.lane.b32.xlu0 %v654, 104
      %v4336 = vpop.permute.xlu0 %4335
      %4337 = vrot.lane.b32.xlu0 %v655, 104
      %v4338 = vpop.permute.xlu0 %4337
      %4339 = vrot.lane.b32.xlu0 %v656, 104
      %v4340 = vpop.permute.xlu0 %4339
      %4341 = vrot.lane.b32.xlu0 %v657, 104
      %v4342 = vpop.permute.xlu0 %4341
      %4343 = vrot.lane.b32.xlu0 %v658, 104
      %v4344 = vpop.permute.xlu0 %4343
      %4345 = vrot.lane.b32.xlu0 %v659, 104
      %v4346 = vpop.permute.xlu0 %4345
      %v4355 = vsel %vm660, %v4332, 0.0
      %4356 = vadd.xlane.f32.xlu0 %v4355
      %v4357 = vpop.xlane.xlu0 %4356
      %v4358 = vsel %vm660, %v4334, 0.0
      %4359 = vadd.xlane.f32.xlu0 %v4358
      %v4360 = vpop.xlane.xlu0 %4359
      %v4361 = vsel %vm660, %v4336, 0.0
      %4362 = vadd.xlane.f32.xlu0 %v4361
      %v4363 = vpop.xlane.xlu0 %4362
      %v4364 = vsel %vm660, %v4338, 0.0
      %4365 = vadd.xlane.f32.xlu0 %v4364
      %v4366 = vpop.xlane.xlu0 %4365
      %v4367 = vsel %vm660, %v4340, 0.0
      %4368 = vadd.xlane.f32.xlu0 %v4367
      %v4369 = vpop.xlane.xlu0 %4368
      %v4370 = vsel %vm660, %v4342, 0.0
      %4371 = vadd.xlane.f32.xlu0 %v4370
      %v4372 = vpop.xlane.xlu0 %4371
      %v4373 = vsel %vm660, %v4344, 0.0
      %4374 = vadd.xlane.f32.xlu0 %v4373
      %v4375 = vpop.xlane.xlu0 %4374
      %v4376 = vsel %vm660, %v4346, 0.0
      %4377 = vadd.xlane.f32.xlu0 %v4376
      %v4378 = vpop.xlane.xlu0 %4377
      %v4379 = vrsqrt.pop %v4357
      %v4380 = vmul.f32 %v4357, %v4379
      %vm4381 = vcmp.eq.f32.partialorder %v4357, inf
      %v4382 = vsel %vm4381, %v4357, %v4380
      %vm4383 = vcmp.eq.f32.partialorder %v4357, 0.0
      %v4384 = vand.u32 %v4357, 2147483648
      %v4385 = vsel %vm4383, %v4384, %v4382
      %v4386 = vrsqrt.pop %v4360
      %v4387 = vmul.f32 %v4360, %v4386
      %vm4388 = vcmp.eq.f32.partialorder %v4360, inf
      %v4389 = vsel %vm4388, %v4360, %v4387
      %vm4390 = vcmp.eq.f32.partialorder %v4360, 0.0
      %v4391 = vand.u32 %v4360, 2147483648
      %v4392 = vsel %vm4390, %v4391, %v4389
      %v4393 = vrsqrt.pop %v4363
      %v4394 = vmul.f32 %v4363, %v4393
      %vm4395 = vcmp.eq.f32.partialorder %v4363, inf
      %v4396 = vsel %vm4395, %v4363, %v4394
      %vm4397 = vcmp.eq.f32.partialorder %v4363, 0.0
      %v4398 = vand.u32 %v4363, 2147483648
      %v4399 = vsel %vm4397, %v4398, %v4396
      %v4400 = vrsqrt.pop %v4366
      %v4401 = vmul.f32 %v4366, %v4400
      %vm4402 = vcmp.eq.f32.partialorder %v4366, inf
      %v4403 = vsel %vm4402, %v4366, %v4401
      %vm4404 = vcmp.eq.f32.partialorder %v4366, 0.0
      %v4405 = vand.u32 %v4366, 2147483648
      %v4406 = vsel %vm4404, %v4405, %v4403
      %v4407 = vrsqrt.pop %v4369
      %v4408 = vmul.f32 %v4369, %v4407
      %vm4409 = vcmp.eq.f32.partialorder %v4369, inf
      %v4410 = vsel %vm4409, %v4369, %v4408
      %vm4411 = vcmp.eq.f32.partialorder %v4369, 0.0
      %v4412 = vand.u32 %v4369, 2147483648
      %v4413 = vsel %vm4411, %v4412, %v4410
      %v4414 = vrsqrt.pop %v4372
      %v4415 = vmul.f32 %v4372, %v4414
      %vm4416 = vcmp.eq.f32.partialorder %v4372, inf
      %v4417 = vsel %vm4416, %v4372, %v4415
      %vm4418 = vcmp.eq.f32.partialorder %v4372, 0.0
      %v4419 = vand.u32 %v4372, 2147483648
      %v4420 = vsel %vm4418, %v4419, %v4417
      %v4421 = vrsqrt.pop %v4375
      %v4422 = vmul.f32 %v4375, %v4421
      %vm4423 = vcmp.eq.f32.partialorder %v4375, inf
      %v4424 = vsel %vm4423, %v4375, %v4422
      %vm4425 = vcmp.eq.f32.partialorder %v4375, 0.0
      %v4426 = vand.u32 %v4375, 2147483648
      %v4427 = vsel %vm4425, %v4426, %v4424
      %v4428 = vrsqrt.pop %v4378
      %v4429 = vmul.f32 %v4378, %v4428
      %vm4430 = vcmp.eq.f32.partialorder %v4378, inf
      %v4431 = vsel %vm4430, %v4378, %v4429
      %vm4432 = vcmp.eq.f32.partialorder %v4378, 0.0
      %v4433 = vand.u32 %v4378, 2147483648
      %v4434 = vsel %vm4432, %v4433, %v4431
      %v4435 = vmax.f32 %v4385, 1e-12
      %v4436 = vmax.f32 %v4392, 1e-12
      %v4437 = vmax.f32 %v4399, 1e-12
      %v4438 = vmax.f32 %v4406, 1e-12
      %v4439 = vmax.f32 %v4413, 1e-12
      %v4440 = vmax.f32 %v4420, 1e-12
      %v4441 = vmax.f32 %v4427, 1e-12
      %v4442 = vmax.f32 %v4434, 1e-12
      %v4443 = vrcp.pop %v4435
      %v4444 = vmul.f32 %v614, %v4443
      %v4445 = vrcp.pop %v4436
      %v4446 = vmul.f32 %v619, %v4445
      %v4447 = vrcp.pop %v4437
      %v4448 = vmul.f32 %v624, %v4447
      %v4449 = vrcp.pop %v4438
      %v4450 = vmul.f32 %v629, %v4449
      %v4451 = vrcp.pop %v4439
      %v4452 = vmul.f32 %v634, %v4451
      %v4453 = vrcp.pop %v4440
      %v4454 = vmul.f32 %v639, %v4453
      %v4455 = vrcp.pop %v4441
      %v4456 = vmul.f32 %v644, %v4455
      %v4457 = vrcp.pop %v4442
      %v4458 = vmul.f32 %v649, %v4457
      %4459 = vrot.lane.b32.xlu0 %v652, 72
      %v4460 = vpop.permute.xlu0 %4459
      %4461 = vrot.lane.b32.xlu0 %v653, 72
      %v4462 = vpop.permute.xlu0 %4461
      %4463 = vrot.lane.b32.xlu0 %v654, 72
      %v4464 = vpop.permute.xlu0 %4463
      %4465 = vrot.lane.b32.xlu0 %v655, 72
      %v4466 = vpop.permute.xlu0 %4465
      %4467 = vrot.lane.b32.xlu0 %v656, 72
      %v4468 = vpop.permute.xlu0 %4467
      %4469 = vrot.lane.b32.xlu0 %v657, 72
      %v4470 = vpop.permute.xlu0 %4469
      %4471 = vrot.lane.b32.xlu0 %v658, 72
      %v4472 = vpop.permute.xlu0 %4471
      %4473 = vrot.lane.b32.xlu0 %v659, 72
      %v4474 = vpop.permute.xlu0 %4473
      %v4483 = vsel %vm660, %v4460, 0.0
      %4484 = vadd.xlane.f32.xlu0 %v4483
      %v4485 = vpop.xlane.xlu0 %4484
      %v4486 = vsel %vm660, %v4462, 0.0
      %4487 = vadd.xlane.f32.xlu0 %v4486
      %v4488 = vpop.xlane.xlu0 %4487
      %v4489 = vsel %vm660, %v4464, 0.0
      %4490 = vadd.xlane.f32.xlu0 %v4489
      %v4491 = vpop.xlane.xlu0 %4490
      %v4492 = vsel %vm660, %v4466, 0.0
      %4493 = vadd.xlane.f32.xlu0 %v4492
      %v4494 = vpop.xlane.xlu0 %4493
      %v4495 = vsel %vm660, %v4468, 0.0
      %4496 = vadd.xlane.f32.xlu0 %v4495
      %v4497 = vpop.xlane.xlu0 %4496
      %v4498 = vsel %vm660, %v4470, 0.0
      %4499 = vadd.xlane.f32.xlu0 %v4498
      %v4500 = vpop.xlane.xlu0 %4499
      %v4501 = vsel %vm660, %v4472, 0.0
      %4502 = vadd.xlane.f32.xlu0 %v4501
      %v4503 = vpop.xlane.xlu0 %4502
      %v4504 = vsel %vm660, %v4474, 0.0
      %4505 = vadd.xlane.f32.xlu0 %v4504
      %v4506 = vpop.xlane.xlu0 %4505
      %v4507 = vrsqrt.pop %v4485
      %v4508 = vmul.f32 %v4485, %v4507
      %vm4509 = vcmp.eq.f32.partialorder %v4485, inf
      %v4510 = vsel %vm4509, %v4485, %v4508
      %vm4511 = vcmp.eq.f32.partialorder %v4485, 0.0
      %v4512 = vand.u32 %v4485, 2147483648
      %v4513 = vsel %vm4511, %v4512, %v4510
      %v4514 = vrsqrt.pop %v4488
      %v4515 = vmul.f32 %v4488, %v4514
      %vm4516 = vcmp.eq.f32.partialorder %v4488, inf
      %v4517 = vsel %vm4516, %v4488, %v4515
      %vm4518 = vcmp.eq.f32.partialorder %v4488, 0.0
      %v4519 = vand.u32 %v4488, 2147483648
      %v4520 = vsel %vm4518, %v4519, %v4517
      %v4521 = vrsqrt.pop %v4491
      %v4522 = vmul.f32 %v4491, %v4521
      %vm4523 = vcmp.eq.f32.partialorder %v4491, inf
      %v4524 = vsel %vm4523, %v4491, %v4522
      %vm4525 = vcmp.eq.f32.partialorder %v4491, 0.0
      %v4526 = vand.u32 %v4491, 2147483648
      %v4527 = vsel %vm4525, %v4526, %v4524
      %v4528 = vrsqrt.pop %v4494
      %v4529 = vmul.f32 %v4494, %v4528
      %vm4530 = vcmp.eq.f32.partialorder %v4494, inf
      %v4531 = vsel %vm4530, %v4494, %v4529
      %vm4532 = vcmp.eq.f32.partialorder %v4494, 0.0
      %v4533 = vand.u32 %v4494, 2147483648
      %v4534 = vsel %vm4532, %v4533, %v4531
      %v4535 = vrsqrt.pop %v4497
      %v4536 = vmul.f32 %v4497, %v4535
      %vm4537 = vcmp.eq.f32.partialorder %v4497, inf
      %v4538 = vsel %vm4537, %v4497, %v4536
      %vm4539 = vcmp.eq.f32.partialorder %v4497, 0.0
      %v4540 = vand.u32 %v4497, 2147483648
      %v4541 = vsel %vm4539, %v4540, %v4538
      %v4542 = vrsqrt.pop %v4500
      %v4543 = vmul.f32 %v4500, %v4542
      %vm4544 = vcmp.eq.f32.partialorder %v4500, inf
      %v4545 = vsel %vm4544, %v4500, %v4543
      %vm4546 = vcmp.eq.f32.partialorder %v4500, 0.0
      %v4547 = vand.u32 %v4500, 2147483648
      %v4548 = vsel %vm4546, %v4547, %v4545
      %v4549 = vrsqrt.pop %v4503
      %v4550 = vmul.f32 %v4503, %v4549
      %vm4551 = vcmp.eq.f32.partialorder %v4503, inf
      %v4552 = vsel %vm4551, %v4503, %v4550
      %vm4553 = vcmp.eq.f32.partialorder %v4503, 0.0
      %v4554 = vand.u32 %v4503, 2147483648
      %v4555 = vsel %vm4553, %v4554, %v4552
      %v4556 = vrsqrt.pop %v4506
      %v4557 = vmul.f32 %v4506, %v4556
      %vm4558 = vcmp.eq.f32.partialorder %v4506, inf
      %v4559 = vsel %vm4558, %v4506, %v4557
      %vm4560 = vcmp.eq.f32.partialorder %v4506, 0.0
      %v4561 = vand.u32 %v4506, 2147483648
      %v4562 = vsel %vm4560, %v4561, %v4559
      %v4563 = vmax.f32 %v4513, 1e-12
      %v4564 = vmax.f32 %v4520, 1e-12
      %v4565 = vmax.f32 %v4527, 1e-12
      %v4566 = vmax.f32 %v4534, 1e-12
      %v4567 = vmax.f32 %v4541, 1e-12
      %v4568 = vmax.f32 %v4548, 1e-12
      %v4569 = vmax.f32 %v4555, 1e-12
      %v4570 = vmax.f32 %v4562, 1e-12
      %v4571 = vrcp.pop %v4563
      %v4572 = vmul.f32 %v614, %v4571
      %v4573 = vrcp.pop %v4564
      %v4574 = vmul.f32 %v619, %v4573
      %v4575 = vrcp.pop %v4565
      %v4576 = vmul.f32 %v624, %v4575
      %v4577 = vrcp.pop %v4566
      %v4578 = vmul.f32 %v629, %v4577
      %v4579 = vrcp.pop %v4567
      %v4580 = vmul.f32 %v634, %v4579
      %v4581 = vrcp.pop %v4568
      %v4582 = vmul.f32 %v639, %v4581
      %v4583 = vrcp.pop %v4569
      %v4584 = vmul.f32 %v644, %v4583
      %v4585 = vrcp.pop %v4570
      %v4586 = vmul.f32 %v649, %v4585
      %4589 = vrot.lane.b32.xlu0 %v4444, 104
      %v4590 = vpop.permute.xlu0 %4589
      %4591 = vrot.lane.b32.xlu0 %v4446, 104
      %v4592 = vpop.permute.xlu0 %4591
      %4595 = vrot.lane.b32.xlu0 %v4572, 72
      %v4596 = vpop.permute.xlu0 %4595
      %4597 = vrot.lane.b32.xlu0 %v4574, 72
      %v4598 = vpop.permute.xlu0 %4597
      %v4599 = vsel %vm660, %v4590, 0
      %v4601 = vsel %vm660, %v4592, 0
      %v4603 = vsel %vm660, %v4596, 0
      %v4605 = vsel %vm660, %v4598, 0
      %4607 = vmatprep.subr.mxu0 0.0
      %4608 = vmatpush1.xpose.msra.mxu0 %v4603
      %4609 = vmatprep.subr.mxu0 0.0
      %4610 = vmatpush1.xpose.msra.mxu0 %v4605
      %4611 = vmatprep.subr.mxu0 0.0
      %4612 = vmatpush1.xpose.msra.mxu0 0.0
      %4613 = vmatprep.subr.mxu0 0.0
      %4614 = vmatpush1.xpose.msra.mxu0 0.0
      %4615 = vmatprep.subr.mxu0 0.0
      %4616 = vmatpush1.xpose.msra.mxu0 0.0
      %4617 = vmatprep.subr.mxu0 0.0
      %4618 = vmatpush1.xpose.msra.mxu0 0.0
      %4619 = vmatprep.subr.mxu0 0.0
      %4620 = vmatpush1.xpose.msra.mxu0 0.0
      %4621 = vmatprep.subr.mxu0 0.0
      %4622 = vmatpush1.xpose.msra.mxu0 0.0
      %4623 = vmatprep.subr.mxu0 0.0
      %4624 = vmatpush1.xpose.msra.mxu0 0.0
      %4625 = vmatprep.subr.mxu0 0.0
      %4626 = vmatpush1.xpose.msra.mxu0 0.0
      %4627 = vmatprep.subr.mxu0 0.0
      %4628 = vmatpush1.xpose.msra.mxu0 0.0
      %4629 = vmatprep.subr.mxu0 0.0
      %4630 = vmatpush1.xpose.msra.mxu0 0.0
      %4631 = vmatprep.subr.mxu0 0.0
      %4632 = vmatpush1.xpose.msra.mxu0 0.0
      %4633 = vmatprep.subr.mxu0 0.0
      %4634 = vmatpush1.xpose.msra.mxu0 0.0
      %4635 = vmatprep.subr.mxu0 0.0
      %4636 = vmatpush1.xpose.msra.mxu0 0.0
      %4637 = vmatprep.subr.mxu0 0.0
      %4638 = vmatpush1.xpose.msra.mxu0 0.0
      %4639 = vmatprep.subr.mxu0 0.0
      %4640 = vmatpush1.xpose.msra.mxu0 0.0
      %4641 = vmatprep.subr.mxu0 0.0
      %4642 = vmatpush1.xpose.msra.mxu0 0.0
      %4643 = vmatprep.subr.mxu0 0.0
      %4644 = vmatpush1.xpose.msra.mxu0 0.0
      %4645 = vmatprep.subr.mxu0 0.0
      %4646 = vmatpush1.xpose.msra.mxu0 0.0
      %4647 = vmatprep.subr.mxu0 0.0
      %4648 = vmatpush1.xpose.msra.mxu0 0.0
      %4649 = vmatprep.subr.mxu0 0.0
      %4650 = vmatpush1.xpose.msra.mxu0 0.0
      %4651 = vmatprep.subr.mxu0 0.0
      %4652 = vmatpush1.xpose.msra.mxu0 0.0
      %4653 = vmatprep.subr.mxu0 0.0
      %4654 = vmatpush1.xpose.msra.mxu0 0.0
      %4655 = vmatprep.subr.mxu0 0.0
      %4656 = vmatpush1.xpose.msra.mxu0 0.0
      %4657 = vmatprep.subr.mxu0 0.0
      %4658 = vmatpush1.xpose.msra.mxu0 0.0
      %4659 = vmatprep.subr.mxu0 0.0
      %4660 = vmatpush1.xpose.msra.mxu0 0.0
      %4661 = vmatprep.subr.mxu0 0.0
      %4662 = vmatpush1.xpose.msra.mxu0 0.0
      %4663 = vmatprep.subr.mxu0 0.0
      %4664 = vmatpush1.xpose.msra.mxu0 0.0
      %4665 = vmatprep.subr.mxu0 0.0
      %4666 = vmatpush1.xpose.msra.mxu0 0.0
      %4667 = vmatprep.subr.mxu0 0.0
      %4668 = vmatpush1.xpose.msra.mxu0 0.0
      %4669 = vmatprep.subr.mxu0 0.0
      %4670 = vmatpush1.xpose.msra.mxu0 0.0
      %4671 = vmatprep.mubr.f32.mxu0 0.0
      %4672 = vmatmul.mubr.f32.gmra.mrb[0].mxu0 %v4599
      %v4673 = vpop.f32.mrb[0].mxu0
      %v4674 = vadd.f32 0.0, %v4673
      %v4675 = vpop.f32.mrb[0].mxu0
      %4676 = vmatprep.mubr.f32.mxu0 0.0
      %4677 = vmatmul.mubr.f32.gmra.mrb[0].mxu0 %v4601
      %v4678 = vpop.f32.mrb[0].mxu0
      %v4679 = vadd.f32 0.0, %v4678
      %v4680 = vpop.f32.mrb[0].mxu0
      %4681 = vdwg.mxu0
      %4684 = vrot.lane.b32.xlu0 %v4448, 104
      %v4685 = vpop.permute.xlu0 %4684
      %4686 = vrot.lane.b32.xlu0 %v4450, 104
      %v4687 = vpop.permute.xlu0 %4686
      %4690 = vrot.lane.b32.xlu0 %v4576, 72
      %v4691 = vpop.permute.xlu0 %4690
      %4692 = vrot.lane.b32.xlu0 %v4578, 72
      %v4693 = vpop.permute.xlu0 %4692
      %v4694 = vsel %vm660, %v4685, 0
      %v4696 = vsel %vm660, %v4687, 0
      %v4698 = vsel %vm660, %v4691, 0
      %v4700 = vsel %vm660, %v4693, 0
      %4702 = vmatprep.subr.mxu0 0.0
      %4703 = vmatpush1.xpose.msra.mxu0 %v4698
      %4704 = vmatprep.subr.mxu0 0.0
      %4705 = vmatpush1.xpose.msra.mxu0 %v4700
      %4706 = vmatprep.subr.mxu0 0.0
      %4707 = vmatpush1.xpose.msra.mxu0 0.0
      %4708 = vmatprep.subr.mxu0 0.0
      %4709 = vmatpush1.xpose.msra.mxu0 0.0
      %4710 = vmatprep.subr.mxu0 0.0
      %4711 = vmatpush1.xpose.msra.mxu0 0.0
      %4712 = vmatprep.subr.mxu0 0.0
      %4713 = vmatpush1.xpose.msra.mxu0 0.0
      %4714 = vmatprep.subr.mxu0 0.0
      %4715 = vmatpush1.xpose.msra.mxu0 0.0
      %4716 = vmatprep.subr.mxu0 0.0
      %4717 = vmatpush1.xpose.msra.mxu0 0.0
      %4718 = vmatprep.subr.mxu0 0.0
      %4719 = vmatpush1.xpose.msra.mxu0 0.0
      %4720 = vmatprep.subr.mxu0 0.0
      %4721 = vmatpush1.xpose.msra.mxu0 0.0
      %4722 = vmatprep.subr.mxu0 0.0
      %4723 = vmatpush1.xpose.msra.mxu0 0.0
      %4724 = vmatprep.subr.mxu0 0.0
      %4725 = vmatpush1.xpose.msra.mxu0 0.0
      %4726 = vmatprep.subr.mxu0 0.0
      %4727 = vmatpush1.xpose.msra.mxu0 0.0
      %4728 = vmatprep.subr.mxu0 0.0
      %4729 = vmatpush1.xpose.msra.mxu0 0.0
      %4730 = vmatprep.subr.mxu0 0.0
      %4731 = vmatpush1.xpose.msra.mxu0 0.0
      %4732 = vmatprep.subr.mxu0 0.0
      %4733 = vmatpush1.xpose.msra.mxu0 0.0
      %4734 = vmatprep.subr.mxu0 0.0
      %4735 = vmatpush1.xpose.msra.mxu0 0.0
      %4736 = vmatprep.subr.mxu0 0.0
      %4737 = vmatpush1.xpose.msra.mxu0 0.0
      %4738 = vmatprep.subr.mxu0 0.0
      %4739 = vmatpush1.xpose.msra.mxu0 0.0
      %4740 = vmatprep.subr.mxu0 0.0
      %4741 = vmatpush1.xpose.msra.mxu0 0.0
      %4742 = vmatprep.subr.mxu0 0.0
      %4743 = vmatpush1.xpose.msra.mxu0 0.0
      %4744 = vmatprep.subr.mxu0 0.0
      %4745 = vmatpush1.xpose.msra.mxu0 0.0
      %4746 = vmatprep.subr.mxu0 0.0
      %4747 = vmatpush1.xpose.msra.mxu0 0.0
      %4748 = vmatprep.subr.mxu0 0.0
      %4749 = vmatpush1.xpose.msra.mxu0 0.0
      %4750 = vmatprep.subr.mxu0 0.0
      %4751 = vmatpush1.xpose.msra.mxu0 0.0
      %4752 = vmatprep.subr.mxu0 0.0
      %4753 = vmatpush1.xpose.msra.mxu0 0.0
      %4754 = vmatprep.subr.mxu0 0.0
      %4755 = vmatpush1.xpose.msra.mxu0 0.0
      %4756 = vmatprep.subr.mxu0 0.0
      %4757 = vmatpush1.xpose.msra.mxu0 0.0
      %4758 = vmatprep.subr.mxu0 0.0
      %4759 = vmatpush1.xpose.msra.mxu0 0.0
      %4760 = vmatprep.subr.mxu0 0.0
      %4761 = vmatpush1.xpose.msra.mxu0 0.0
      %4762 = vmatprep.subr.mxu0 0.0
      %4763 = vmatpush1.xpose.msra.mxu0 0.0
      %4764 = vmatprep.subr.mxu0 0.0
      %4765 = vmatpush1.xpose.msra.mxu0 0.0
      %4766 = vmatprep.mubr.f32.mxu0 0.0
      %4767 = vmatmul.mubr.f32.gmra.mrb[0].mxu0 %v4694
      %v4768 = vpop.f32.mrb[0].mxu0
      %v4769 = vadd.f32 0.0, %v4768
      %v4770 = vpop.f32.mrb[0].mxu0
      %4771 = vmatprep.mubr.f32.mxu0 0.0
      %4772 = vmatmul.mubr.f32.gmra.mrb[0].mxu0 %v4696
      %v4773 = vpop.f32.mrb[0].mxu0
      %v4774 = vadd.f32 0.0, %v4773
      %v4775 = vpop.f32.mrb[0].mxu0
      %4776 = vdwg.mxu0
      %4779 = vrot.lane.b32.xlu0 %v4452, 104
      %v4780 = vpop.permute.xlu0 %4779
      %4781 = vrot.lane.b32.xlu0 %v4454, 104
      %v4782 = vpop.permute.xlu0 %4781
      %4785 = vrot.lane.b32.xlu0 %v4580, 72
      %v4786 = vpop.permute.xlu0 %4785
      %4787 = vrot.lane.b32.xlu0 %v4582, 72
      %v4788 = vpop.permute.xlu0 %4787
      %v4789 = vsel %vm660, %v4780, 0
      %v4791 = vsel %vm660, %v4782, 0
      %v4793 = vsel %vm660, %v4786, 0
      %v4795 = vsel %vm660, %v4788, 0
      %4797 = vmatprep.subr.mxu0 0.0
      %4798 = vmatpush1.xpose.msra.mxu0 %v4793
      %4799 = vmatprep.subr.mxu0 0.0
      %4800 = vmatpush1.xpose.msra.mxu0 %v4795
      %4801 = vmatprep.subr.mxu0 0.0
      %4802 = vmatpush1.xpose.msra.mxu0 0.0
      %4803 = vmatprep.subr.mxu0 0.0
      %4804 = vmatpush1.xpose.msra.mxu0 0.0
      %4805 = vmatprep.subr.mxu0 0.0
      %4806 = vmatpush1.xpose.msra.mxu0 0.0
      %4807 = vmatprep.subr.mxu0 0.0
      %4808 = vmatpush1.xpose.msra.mxu0 0.0
      %4809 = vmatprep.subr.mxu0 0.0
      %4810 = vmatpush1.xpose.msra.mxu0 0.0
      %4811 = vmatprep.subr.mxu0 0.0
      %4812 = vmatpush1.xpose.msra.mxu0 0.0
      %4813 = vmatprep.subr.mxu0 0.0
      %4814 = vmatpush1.xpose.msra.mxu0 0.0
      %4815 = vmatprep.subr.mxu0 0.0
      %4816 = vmatpush1.xpose.msra.mxu0 0.0
      %4817 = vmatprep.subr.mxu0 0.0
      %4818 = vmatpush1.xpose.msra.mxu0 0.0
      %4819 = vmatprep.subr.mxu0 0.0
      %4820 = vmatpush1.xpose.msra.mxu0 0.0
      %4821 = vmatprep.subr.mxu0 0.0
      %4822 = vmatpush1.xpose.msra.mxu0 0.0
      %4823 = vmatprep.subr.mxu0 0.0
      %4824 = vmatpush1.xpose.msra.mxu0 0.0
      %4825 = vmatprep.subr.mxu0 0.0
      %4826 = vmatpush1.xpose.msra.mxu0 0.0
      %4827 = vmatprep.subr.mxu0 0.0
      %4828 = vmatpush1.xpose.msra.mxu0 0.0
      %4829 = vmatprep.subr.mxu0 0.0
      %4830 = vmatpush1.xpose.msra.mxu0 0.0
      %4831 = vmatprep.subr.mxu0 0.0
      %4832 = vmatpush1.xpose.msra.mxu0 0.0
      %4833 = vmatprep.subr.mxu0 0.0
      %4834 = vmatpush1.xpose.msra.mxu0 0.0
      %4835 = vmatprep.subr.mxu0 0.0
      %4836 = vmatpush1.xpose.msra.mxu0 0.0
      %4837 = vmatprep.subr.mxu0 0.0
      %4838 = vmatpush1.xpose.msra.mxu0 0.0
      %4839 = vmatprep.subr.mxu0 0.0
      %4840 = vmatpush1.xpose.msra.mxu0 0.0
      %4841 = vmatprep.subr.mxu0 0.0
      %4842 = vmatpush1.xpose.msra.mxu0 0.0
      %4843 = vmatprep.subr.mxu0 0.0
      %4844 = vmatpush1.xpose.msra.mxu0 0.0
      %4845 = vmatprep.subr.mxu0 0.0
      %4846 = vmatpush1.xpose.msra.mxu0 0.0
      %4847 = vmatprep.subr.mxu0 0.0
      %4848 = vmatpush1.xpose.msra.mxu0 0.0
      %4849 = vmatprep.subr.mxu0 0.0
      %4850 = vmatpush1.xpose.msra.mxu0 0.0
      %4851 = vmatprep.subr.mxu0 0.0
      %4852 = vmatpush1.xpose.msra.mxu0 0.0
      %4853 = vmatprep.subr.mxu0 0.0
      %4854 = vmatpush1.xpose.msra.mxu0 0.0
      %4855 = vmatprep.subr.mxu0 0.0
      %4856 = vmatpush1.xpose.msra.mxu0 0.0
      %4857 = vmatprep.subr.mxu0 0.0
      %4858 = vmatpush1.xpose.msra.mxu0 0.0
      %4859 = vmatprep.subr.mxu0 0.0
      %4860 = vmatpush1.xpose.msra.mxu0 0.0
      %4861 = vmatprep.mubr.f32.mxu0 0.0
      %4862 = vmatmul.mubr.f32.gmra.mrb[0].mxu0 %v4789
      %v4863 = vpop.f32.mrb[0].mxu0
      %v4864 = vadd.f32 0.0, %v4863
      %v4865 = vpop.f32.mrb[0].mxu0
      %4866 = vmatprep.mubr.f32.mxu0 0.0
      %4867 = vmatmul.mubr.f32.gmra.mrb[0].mxu0 %v4791
      %v4868 = vpop.f32.mrb[0].mxu0
      %v4869 = vadd.f32 0.0, %v4868
      %v4870 = vpop.f32.mrb[0].mxu0
      %4871 = vdwg.mxu0
      %4874 = vrot.lane.b32.xlu0 %v4456, 104
      %v4875 = vpop.permute.xlu0 %4874
      %4876 = vrot.lane.b32.xlu0 %v4458, 104
      %v4877 = vpop.permute.xlu0 %4876
      %4880 = vrot.lane.b32.xlu0 %v4584, 72
      %v4881 = vpop.permute.xlu0 %4880
      %4882 = vrot.lane.b32.xlu0 %v4586, 72
      %v4883 = vpop.permute.xlu0 %4882
      %v4884 = vsel %vm660, %v4875, 0
      %v4886 = vsel %vm660, %v4877, 0
      %v4888 = vsel %vm660, %v4881, 0
      %v4890 = vsel %vm660, %v4883, 0
      %4892 = vmatprep.subr.mxu0 0.0
      %4893 = vmatpush1.xpose.msra.mxu0 %v4888
      %4894 = vmatprep.subr.mxu0 0.0
      %4895 = vmatpush1.xpose.msra.mxu0 %v4890
      %4896 = vmatprep.subr.mxu0 0.0
      %4897 = vmatpush1.xpose.msra.mxu0 0.0
      %4898 = vmatprep.subr.mxu0 0.0
      %4899 = vmatpush1.xpose.msra.mxu0 0.0
      %4900 = vmatprep.subr.mxu0 0.0
      %4901 = vmatpush1.xpose.msra.mxu0 0.0
      %4902 = vmatprep.subr.mxu0 0.0
      %4903 = vmatpush1.xpose.msra.mxu0 0.0
      %4904 = vmatprep.subr.mxu0 0.0
      %4905 = vmatpush1.xpose.msra.mxu0 0.0
      %4906 = vmatprep.subr.mxu0 0.0
      %4907 = vmatpush1.xpose.msra.mxu0 0.0
      %4908 = vmatprep.subr.mxu0 0.0
      %4909 = vmatpush1.xpose.msra.mxu0 0.0
      %4910 = vmatprep.subr.mxu0 0.0
      %4911 = vmatpush1.xpose.msra.mxu0 0.0
      %4912 = vmatprep.subr.mxu0 0.0
      %4913 = vmatpush1.xpose.msra.mxu0 0.0
      %4914 = vmatprep.subr.mxu0 0.0
      %4915 = vmatpush1.xpose.msra.mxu0 0.0
      %4916 = vmatprep.subr.mxu0 0.0
      %4917 = vmatpush1.xpose.msra.mxu0 0.0
      %4918 = vmatprep.subr.mxu0 0.0
      %4919 = vmatpush1.xpose.msra.mxu0 0.0
      %4920 = vmatprep.subr.mxu0 0.0
      %4921 = vmatpush1.xpose.msra.mxu0 0.0
      %4922 = vmatprep.subr.mxu0 0.0
      %4923 = vmatpush1.xpose.msra.mxu0 0.0
      %4924 = vmatprep.subr.mxu0 0.0
      %4925 = vmatpush1.xpose.msra.mxu0 0.0
      %4926 = vmatprep.subr.mxu0 0.0
      %4927 = vmatpush1.xpose.msra.mxu0 0.0
      %4928 = vmatprep.subr.mxu0 0.0
      %4929 = vmatpush1.xpose.msra.mxu0 0.0
      %4930 = vmatprep.subr.mxu0 0.0
      %4931 = vmatpush1.xpose.msra.mxu0 0.0
      %4932 = vmatprep.subr.mxu0 0.0
      %4933 = vmatpush1.xpose.msra.mxu0 0.0
      %4934 = vmatprep.subr.mxu0 0.0
      %4935 = vmatpush1.xpose.msra.mxu0 0.0
      %4936 = vmatprep.subr.mxu0 0.0
      %4937 = vmatpush1.xpose.msra.mxu0 0.0
      %4938 = vmatprep.subr.mxu0 0.0
      %4939 = vmatpush1.xpose.msra.mxu0 0.0
      %4940 = vmatprep.subr.mxu0 0.0
      %4941 = vmatpush1.xpose.msra.mxu0 0.0
      %4942 = vmatprep.subr.mxu0 0.0
      %4943 = vmatpush1.xpose.msra.mxu0 0.0
      %4944 = vmatprep.subr.mxu0 0.0
      %4945 = vmatpush1.xpose.msra.mxu0 0.0
      %4946 = vmatprep.subr.mxu0 0.0
      %4947 = vmatpush1.xpose.msra.mxu0 0.0
      %4948 = vmatprep.subr.mxu0 0.0
      %4949 = vmatpush1.xpose.msra.mxu0 0.0
      %4950 = vmatprep.subr.mxu0 0.0
      %4951 = vmatpush1.xpose.msra.mxu0 0.0
      %4952 = vmatprep.subr.mxu0 0.0
      %4953 = vmatpush1.xpose.msra.mxu0 0.0
      %4954 = vmatprep.subr.mxu0 0.0
      %4955 = vmatpush1.xpose.msra.mxu0 0.0
      %4956 = vmatprep.mubr.f32.mxu0 0.0
      %4957 = vmatmul.mubr.f32.gmra.mrb[0].mxu0 %v4884
      %v4958 = vpop.f32.mrb[0].mxu0
      %v4959 = vadd.f32 0.0, %v4958
      %v4960 = vpop.f32.mrb[0].mxu0
      %4961 = vmatprep.mubr.f32.mxu0 0.0
      %4962 = vmatmul.mubr.f32.gmra.mrb[0].mxu0 %v4886
      %v4963 = vpop.f32.mrb[0].mxu0
      %v4964 = vadd.f32 0.0, %v4963
      %v4965 = vpop.f32.mrb[0].mxu0
      %4966 = vdwg.mxu0
      %s4967 = scalar_lea.vmem %s3, 3
      %v4968 = vld [vmem:[%s4967] sm:$0x1]
      %v4970 = vlaneseq
      %v4971 = vshrl.u32 %v4970, 7
      %v4972 = vsub.s32 0, %v4971
      %v4973 = vrot.slane %v4968, %v4972
      %v4975 = vmul.f32 %v4674, %v4973
      %v4976 = vmul.f32 %v4679, %v4973
      %v4977 = vmul.f32 %v4769, %v4973
      %v4978 = vmul.f32 %v4774, %v4973
      %v4979 = vmul.f32 %v4864, %v4973
      %v4980 = vmul.f32 %v4869, %v4973
      %v4981 = vmul.f32 %v4959, %v4973
      %v4982 = vmul.f32 %v4964, %v4973
      %s4983 = scalar_lea.vmem %s4, 48
      %v4984 = vld [vmem:[%s4983] sm:$0xff]
      %v4985 = vld [vmem:[%s4983 + $0x8] sm:$0xff]
      %v4986 = vadd.f32 %v4975, %v4984
      %v4987 = vadd.f32 %v4976, %v4985
      %v4988 = vadd.f32 %v4977, %v4984
      %v4989 = vadd.f32 %v4978, %v4985
      %v4990 = vadd.f32 %v4979, %v4984
      %v4991 = vadd.f32 %v4980, %v4985
      %v4992 = vadd.f32 %v4981, %v4984
      %v4993 = vadd.f32 %v4982, %v4985
      %v4994 = vsel %vm1290, %v4986, -inf
      %4995 = vmax.xlane.f32.xlu0 %v4994
      %v4996 = vpop.xlane.xlu0 %4995
      %v4997 = vsel %vm1290, %v4987, -inf
      %4998 = vmax.xlane.f32.xlu0 %v4997
      %v4999 = vpop.xlane.xlu0 %4998
      %v5000 = vsel %vm1290, %v4988, -inf
      %5001 = vmax.xlane.f32.xlu0 %v5000
      %v5002 = vpop.xlane.xlu0 %5001
      %v5003 = vsel %vm1290, %v4989, -inf
      %5004 = vmax.xlane.f32.xlu0 %v5003
      %v5005 = vpop.xlane.xlu0 %5004
      %v5006 = vsel %vm1290, %v4990, -inf
      %5007 = vmax.xlane.f32.xlu0 %v5006
      %v5008 = vpop.xlane.xlu0 %5007
      %v5009 = vsel %vm1290, %v4991, -inf
      %5010 = vmax.xlane.f32.xlu0 %v5009
      %v5011 = vpop.xlane.xlu0 %5010
      %v5012 = vsel %vm1290, %v4992, -inf
      %5013 = vmax.xlane.f32.xlu0 %v5012
      %v5014 = vpop.xlane.xlu0 %5013
      %v5015 = vsel %vm1290, %v4993, -inf
      %5016 = vmax.xlane.f32.xlu0 %v5015
      %v5017 = vpop.xlane.xlu0 %5016
      %v5018 = vsub.f32 %v4986, %v4996
      %v5019 = vsub.f32 %v4987, %v4999
      %v5020 = vsub.f32 %v4988, %v5002
      %v5021 = vsub.f32 %v4989, %v5005
      %v5022 = vsub.f32 %v4990, %v5008
      %v5023 = vsub.f32 %v4991, %v5011
      %v5024 = vsub.f32 %v4992, %v5014
      %v5025 = vsub.f32 %v4993, %v5017
      %v5026 = vmul.f32 %v5018, 1.442695
      %v5027 = vpow.pop %v5026
      %v5028 = vmul.f32 %v5019, 1.442695
      %v5029 = vpow.pop %v5028
      %v5030 = vmul.f32 %v5020, 1.442695
      %v5031 = vpow.pop %v5030
      %v5032 = vmul.f32 %v5021, 1.442695
      %v5033 = vpow.pop %v5032
      %v5034 = vmul.f32 %v5022, 1.442695
      %v5035 = vpow.pop %v5034
      %v5036 = vmul.f32 %v5023, 1.442695
      %v5037 = vpow.pop %v5036
      %v5038 = vmul.f32 %v5024, 1.442695
      %v5039 = vpow.pop %v5038
      %v5040 = vmul.f32 %v5025, 1.442695
      %v5041 = vpow.pop %v5040
      %v5042 = vsel %vm1290, %v5027, 0.0
      %5043 = vadd.xlane.f32.xlu0 %v5042
      %v5044 = vpop.xlane.xlu0 %5043
      %v5045 = vsel %vm1290, %v5029, 0.0
      %5046 = vadd.xlane.f32.xlu0 %v5045
      %v5047 = vpop.xlane.xlu0 %5046
      %v5048 = vsel %vm1290, %v5031, 0.0
      %5049 = vadd.xlane.f32.xlu0 %v5048
      %v5050 = vpop.xlane.xlu0 %5049
      %v5051 = vsel %vm1290, %v5033, 0.0
      %5052 = vadd.xlane.f32.xlu0 %v5051
      %v5053 = vpop.xlane.xlu0 %5052
      %v5054 = vsel %vm1290, %v5035, 0.0
      %5055 = vadd.xlane.f32.xlu0 %v5054
      %v5056 = vpop.xlane.xlu0 %5055
      %v5057 = vsel %vm1290, %v5037, 0.0
      %5058 = vadd.xlane.f32.xlu0 %v5057
      %v5059 = vpop.xlane.xlu0 %5058
      %v5060 = vsel %vm1290, %v5039, 0.0
      %5061 = vadd.xlane.f32.xlu0 %v5060
      %v5062 = vpop.xlane.xlu0 %5061
      %v5063 = vsel %vm1290, %v5041, 0.0
      %5064 = vadd.xlane.f32.xlu0 %v5063
      %v5065 = vpop.xlane.xlu0 %5064
      %v5066 = vrcp.pop %v5044
      %v5067 = vmul.f32 %v5027, %v5066
      %v5068 = vrcp.pop %v5047
      %v5069 = vmul.f32 %v5029, %v5068
      %v5070 = vrcp.pop %v5050
      %v5071 = vmul.f32 %v5031, %v5070
      %v5072 = vrcp.pop %v5053
      %v5073 = vmul.f32 %v5033, %v5072
      %v5074 = vrcp.pop %v5056
      %v5075 = vmul.f32 %v5035, %v5074
      %v5076 = vrcp.pop %v5059
      %v5077 = vmul.f32 %v5037, %v5076
      %v5078 = vrcp.pop %v5062
      %v5079 = vmul.f32 %v5039, %v5078
      %v5080 = vrcp.pop %v5065
      %v5081 = vmul.f32 %v5041, %v5080
      %5082 = vrot.lane.b32.xlu0 %v614, 40
      %v5083 = vpop.permute.xlu0 %5082
      %5084 = vrot.lane.b32.xlu0 %v619, 40
      %v5085 = vpop.permute.xlu0 %5084
      %v5089 = vsel %vm1290, %v5067, 0
      %v5092 = vsel %vm1290, %v5069, 0
      %5094 = vmatprep.subr.mxu0 0.0
      %5095 = vmatpush1.msra.mxu0 %v5083
      %5096 = vmatprep.subr.mxu0 0.0
      %5097 = vmatpush1.msra.mxu0 %v5085
      %5098 = vmatprep.subr.mxu0 0.0
      %5099 = vmatpush1.msra.mxu0 0.0
      %5100 = vmatprep.subr.mxu0 0.0
      %5101 = vmatpush1.msra.mxu0 0.0
      %5102 = vmatprep.subr.mxu0 0.0
      %5103 = vmatpush1.msra.mxu0 0.0
      %5104 = vmatprep.subr.mxu0 0.0
      %5105 = vmatpush1.msra.mxu0 0.0
      %5106 = vmatprep.subr.mxu0 0.0
      %5107 = vmatpush1.msra.mxu0 0.0
      %5108 = vmatprep.subr.mxu0 0.0
      %5109 = vmatpush1.msra.mxu0 0.0
      %5110 = vmatprep.subr.mxu0 0.0
      %5111 = vmatpush1.msra.mxu0 0.0
      %5112 = vmatprep.subr.mxu0 0.0
      %5113 = vmatpush1.msra.mxu0 0.0
      %5114 = vmatprep.subr.mxu0 0.0
      %5115 = vmatpush1.msra.mxu0 0.0
      %5116 = vmatprep.subr.mxu0 0.0
      %5117 = vmatpush1.msra.mxu0 0.0
      %5118 = vmatprep.subr.mxu0 0.0
      %5119 = vmatpush1.msra.mxu0 0.0
      %5120 = vmatprep.subr.mxu0 0.0
      %5121 = vmatpush1.msra.mxu0 0.0
      %5122 = vmatprep.subr.mxu0 0.0
      %5123 = vmatpush1.msra.mxu0 0.0
      %5124 = vmatprep.subr.mxu0 0.0
      %5125 = vmatpush1.msra.mxu0 0.0
      %5126 = vmatprep.subr.mxu0 0.0
      %5127 = vmatpush1.msra.mxu0 0.0
      %5128 = vmatprep.subr.mxu0 0.0
      %5129 = vmatpush1.msra.mxu0 0.0
      %5130 = vmatprep.subr.mxu0 0.0
      %5131 = vmatpush1.msra.mxu0 0.0
      %5132 = vmatprep.subr.mxu0 0.0
      %5133 = vmatpush1.msra.mxu0 0.0
      %5134 = vmatprep.subr.mxu0 0.0
      %5135 = vmatpush1.msra.mxu0 0.0
      %5136 = vmatprep.subr.mxu0 0.0
      %5137 = vmatpush1.msra.mxu0 0.0
      %5138 = vmatprep.subr.mxu0 0.0
      %5139 = vmatpush1.msra.mxu0 0.0
      %5140 = vmatprep.subr.mxu0 0.0
      %5141 = vmatpush1.msra.mxu0 0.0
      %5142 = vmatprep.subr.mxu0 0.0
      %5143 = vmatpush1.msra.mxu0 0.0
      %5144 = vmatprep.subr.mxu0 0.0
      %5145 = vmatpush1.msra.mxu0 0.0
      %5146 = vmatprep.subr.mxu0 0.0
      %5147 = vmatpush1.msra.mxu0 0.0
      %5148 = vmatprep.subr.mxu0 0.0
      %5149 = vmatpush1.msra.mxu0 0.0
      %5150 = vmatprep.subr.mxu0 0.0
      %5151 = vmatpush1.msra.mxu0 0.0
      %5152 = vmatprep.subr.mxu0 0.0
      %5153 = vmatpush1.msra.mxu0 0.0
      %5154 = vmatprep.subr.mxu0 0.0
      %5155 = vmatpush1.msra.mxu0 0.0
      %5156 = vmatprep.subr.mxu0 0.0
      %5157 = vmatpush1.msra.mxu0 0.0
      %5158 = vmatprep.mubr.f32.mxu0 0.0
      %5159 = vmatmul.mubr.f32.gmra.mrb[0].mxu0 %v5089
      %v5160 = vpop.f32.mrb[0].mxu0
      %v5161 = vadd.f32 0.0, %v5160
      %v5162 = vpop.f32.mrb[0].mxu0
      %5163 = vmatprep.mubr.f32.mxu0 0.0
      %5164 = vmatmul.mubr.f32.gmra.mrb[0].mxu0 %v5092
      %v5165 = vpop.f32.mrb[0].mxu0
      %v5166 = vadd.f32 0.0, %v5165
      %v5167 = vpop.f32.mrb[0].mxu0
      %5168 = vdwg.mxu0
      %5169 = vrot.lane.b32.xlu0 %v624, 40
      %v5170 = vpop.permute.xlu0 %5169
      %5171 = vrot.lane.b32.xlu0 %v629, 40
      %v5172 = vpop.permute.xlu0 %5171
      %v5176 = vsel %vm1290, %v5071, 0
      %v5179 = vsel %vm1290, %v5073, 0
      %5181 = vmatprep.subr.mxu0 0.0
      %5182 = vmatpush1.msra.mxu0 %v5170
      %5183 = vmatprep.subr.mxu0 0.0
      %5184 = vmatpush1.msra.mxu0 %v5172
      %5185 = vmatprep.subr.mxu0 0.0
      %5186 = vmatpush1.msra.mxu0 0.0
      %5187 = vmatprep.subr.mxu0 0.0
      %5188 = vmatpush1.msra.mxu0 0.0
      %5189 = vmatprep.subr.mxu0 0.0
      %5190 = vmatpush1.msra.mxu0 0.0
      %5191 = vmatprep.subr.mxu0 0.0
      %5192 = vmatpush1.msra.mxu0 0.0
      %5193 = vmatprep.subr.mxu0 0.0
      %5194 = vmatpush1.msra.mxu0 0.0
      %5195 = vmatprep.subr.mxu0 0.0
      %5196 = vmatpush1.msra.mxu0 0.0
      %5197 = vmatprep.subr.mxu0 0.0
      %5198 = vmatpush1.msra.mxu0 0.0
      %5199 = vmatprep.subr.mxu0 0.0
      %5200 = vmatpush1.msra.mxu0 0.0
      %5201 = vmatprep.subr.mxu0 0.0
      %5202 = vmatpush1.msra.mxu0 0.0
      %5203 = vmatprep.subr.mxu0 0.0
      %5204 = vmatpush1.msra.mxu0 0.0
      %5205 = vmatprep.subr.mxu0 0.0
      %5206 = vmatpush1.msra.mxu0 0.0
      %5207 = vmatprep.subr.mxu0 0.0
      %5208 = vmatpush1.msra.mxu0 0.0
      %5209 = vmatprep.subr.mxu0 0.0
      %5210 = vmatpush1.msra.mxu0 0.0
      %5211 = vmatprep.subr.mxu0 0.0
      %5212 = vmatpush1.msra.mxu0 0.0
      %5213 = vmatprep.subr.mxu0 0.0
      %5214 = vmatpush1.msra.mxu0 0.0
      %5215 = vmatprep.subr.mxu0 0.0
      %5216 = vmatpush1.msra.mxu0 0.0
      %5217 = vmatprep.subr.mxu0 0.0
      %5218 = vmatpush1.msra.mxu0 0.0
      %5219 = vmatprep.subr.mxu0 0.0
      %5220 = vmatpush1.msra.mxu0 0.0
      %5221 = vmatprep.subr.mxu0 0.0
      %5222 = vmatpush1.msra.mxu0 0.0
      %5223 = vmatprep.subr.mxu0 0.0
      %5224 = vmatpush1.msra.mxu0 0.0
      %5225 = vmatprep.subr.mxu0 0.0
      %5226 = vmatpush1.msra.mxu0 0.0
      %5227 = vmatprep.subr.mxu0 0.0
      %5228 = vmatpush1.msra.mxu0 0.0
      %5229 = vmatprep.subr.mxu0 0.0
      %5230 = vmatpush1.msra.mxu0 0.0
      %5231 = vmatprep.subr.mxu0 0.0
      %5232 = vmatpush1.msra.mxu0 0.0
      %5233 = vmatprep.subr.mxu0 0.0
      %5234 = vmatpush1.msra.mxu0 0.0
      %5235 = vmatprep.subr.mxu0 0.0
      %5236 = vmatpush1.msra.mxu0 0.0
      %5237 = vmatprep.subr.mxu0 0.0
      %5238 = vmatpush1.msra.mxu0 0.0
      %5239 = vmatprep.subr.mxu0 0.0
      %5240 = vmatpush1.msra.mxu0 0.0
      %5241 = vmatprep.subr.mxu0 0.0
      %5242 = vmatpush1.msra.mxu0 0.0
      %5243 = vmatprep.subr.mxu0 0.0
      %5244 = vmatpush1.msra.mxu0 0.0
      %5245 = vmatprep.mubr.f32.mxu0 0.0
      %5246 = vmatmul.mubr.f32.gmra.mrb[0].mxu0 %v5176
      %v5247 = vpop.f32.mrb[0].mxu0
      %v5248 = vadd.f32 0.0, %v5247
      %v5249 = vpop.f32.mrb[0].mxu0
      %5250 = vmatprep.mubr.f32.mxu0 0.0
      %5251 = vmatmul.mubr.f32.gmra.mrb[0].mxu0 %v5179
      %v5252 = vpop.f32.mrb[0].mxu0
      %v5253 = vadd.f32 0.0, %v5252
      %v5254 = vpop.f32.mrb[0].mxu0
      %5255 = vdwg.mxu0
      %5256 = vrot.lane.b32.xlu0 %v634, 40
      %v5257 = vpop.permute.xlu0 %5256
      %5258 = vrot.lane.b32.xlu0 %v639, 40
      %v5259 = vpop.permute.xlu0 %5258
      %v5263 = vsel %vm1290, %v5075, 0
      %v5266 = vsel %vm1290, %v5077, 0
      %5268 = vmatprep.subr.mxu0 0.0
      %5269 = vmatpush1.msra.mxu0 %v5257
      %5270 = vmatprep.subr.mxu0 0.0
      %5271 = vmatpush1.msra.mxu0 %v5259
      %5272 = vmatprep.subr.mxu0 0.0
      %5273 = vmatpush1.msra.mxu0 0.0
      %5274 = vmatprep.subr.mxu0 0.0
      %5275 = vmatpush1.msra.mxu0 0.0
      %5276 = vmatprep.subr.mxu0 0.0
      %5277 = vmatpush1.msra.mxu0 0.0
      %5278 = vmatprep.subr.mxu0 0.0
      %5279 = vmatpush1.msra.mxu0 0.0
      %5280 = vmatprep.subr.mxu0 0.0
      %5281 = vmatpush1.msra.mxu0 0.0
      %5282 = vmatprep.subr.mxu0 0.0
      %5283 = vmatpush1.msra.mxu0 0.0
      %5284 = vmatprep.subr.mxu0 0.0
      %5285 = vmatpush1.msra.mxu0 0.0
      %5286 = vmatprep.subr.mxu0 0.0
      %5287 = vmatpush1.msra.mxu0 0.0
      %5288 = vmatprep.subr.mxu0 0.0
      %5289 = vmatpush1.msra.mxu0 0.0
      %5290 = vmatprep.subr.mxu0 0.0
      %5291 = vmatpush1.msra.mxu0 0.0
      %5292 = vmatprep.subr.mxu0 0.0
      %5293 = vmatpush1.msra.mxu0 0.0
      %5294 = vmatprep.subr.mxu0 0.0
      %5295 = vmatpush1.msra.mxu0 0.0
      %5296 = vmatprep.subr.mxu0 0.0
      %5297 = vmatpush1.msra.mxu0 0.0
      %5298 = vmatprep.subr.mxu0 0.0
      %5299 = vmatpush1.msra.mxu0 0.0
      %5300 = vmatprep.subr.mxu0 0.0
      %5301 = vmatpush1.msra.mxu0 0.0
      %5302 = vmatprep.subr.mxu0 0.0
      %5303 = vmatpush1.msra.mxu0 0.0
      %5304 = vmatprep.subr.mxu0 0.0
      %5305 = vmatpush1.msra.mxu0 0.0
      %5306 = vmatprep.subr.mxu0 0.0
      %5307 = vmatpush1.msra.mxu0 0.0
      %5308 = vmatprep.subr.mxu0 0.0
      %5309 = vmatpush1.msra.mxu0 0.0
      %5310 = vmatprep.subr.mxu0 0.0
      %5311 = vmatpush1.msra.mxu0 0.0
      %5312 = vmatprep.subr.mxu0 0.0
      %5313 = vmatpush1.msra.mxu0 0.0
      %5314 = vmatprep.subr.mxu0 0.0
      %5315 = vmatpush1.msra.mxu0 0.0
      %5316 = vmatprep.subr.mxu0 0.0
      %5317 = vmatpush1.msra.mxu0 0.0
      %5318 = vmatprep.subr.mxu0 0.0
      %5319 = vmatpush1.msra.mxu0 0.0
      %5320 = vmatprep.subr.mxu0 0.0
      %5321 = vmatpush1.msra.mxu0 0.0
      %5322 = vmatprep.subr.mxu0 0.0
      %5323 = vmatpush1.msra.mxu0 0.0
      %5324 = vmatprep.subr.mxu0 0.0
      %5325 = vmatpush1.msra.mxu0 0.0
      %5326 = vmatprep.subr.mxu0 0.0
      %5327 = vmatpush1.msra.mxu0 0.0
      %5328 = vmatprep.subr.mxu0 0.0
      %5329 = vmatpush1.msra.mxu0 0.0
      %5330 = vmatprep.subr.mxu0 0.0
      %5331 = vmatpush1.msra.mxu0 0.0
      %5332 = vmatprep.mubr.f32.mxu0 0.0
      %5333 = vmatmul.mubr.f32.gmra.mrb[0].mxu0 %v5263
      %v5334 = vpop.f32.mrb[0].mxu0
      %v5335 = vadd.f32 0.0, %v5334
      %v5336 = vpop.f32.mrb[0].mxu0
      %5337 = vmatprep.mubr.f32.mxu0 0.0
      %5338 = vmatmul.mubr.f32.gmra.mrb[0].mxu0 %v5266
      %v5339 = vpop.f32.mrb[0].mxu0
      %v5340 = vadd.f32 0.0, %v5339
      %v5341 = vpop.f32.mrb[0].mxu0
      %5342 = vdwg.mxu0
      %5343 = vrot.lane.b32.xlu0 %v644, 40
      %v5344 = vpop.permute.xlu0 %5343
      %5345 = vrot.lane.b32.xlu0 %v649, 40
      %v5346 = vpop.permute.xlu0 %5345
      %v5350 = vsel %vm1290, %v5079, 0
      %v5353 = vsel %vm1290, %v5081, 0
      %5355 = vmatprep.subr.mxu0 0.0
      %5356 = vmatpush1.msra.mxu0 %v5344
      %5357 = vmatprep.subr.mxu0 0.0
      %5358 = vmatpush1.msra.mxu0 %v5346
      %5359 = vmatprep.subr.mxu0 0.0
      %5360 = vmatpush1.msra.mxu0 0.0
      %5361 = vmatprep.subr.mxu0 0.0
      %5362 = vmatpush1.msra.mxu0 0.0
      %5363 = vmatprep.subr.mxu0 0.0
      %5364 = vmatpush1.msra.mxu0 0.0
      %5365 = vmatprep.subr.mxu0 0.0
      %5366 = vmatpush1.msra.mxu0 0.0
      %5367 = vmatprep.subr.mxu0 0.0
      %5368 = vmatpush1.msra.mxu0 0.0
      %5369 = vmatprep.subr.mxu0 0.0
      %5370 = vmatpush1.msra.mxu0 0.0
      %5371 = vmatprep.subr.mxu0 0.0
      %5372 = vmatpush1.msra.mxu0 0.0
      %5373 = vmatprep.subr.mxu0 0.0
      %5374 = vmatpush1.msra.mxu0 0.0
      %5375 = vmatprep.subr.mxu0 0.0
      %5376 = vmatpush1.msra.mxu0 0.0
      %5377 = vmatprep.subr.mxu0 0.0
      %5378 = vmatpush1.msra.mxu0 0.0
      %5379 = vmatprep.subr.mxu0 0.0
      %5380 = vmatpush1.msra.mxu0 0.0
      %5381 = vmatprep.subr.mxu0 0.0
      %5382 = vmatpush1.msra.mxu0 0.0
      %5383 = vmatprep.subr.mxu0 0.0
      %5384 = vmatpush1.msra.mxu0 0.0
      %5385 = vmatprep.subr.mxu0 0.0
      %5386 = vmatpush1.msra.mxu0 0.0
      %5387 = vmatprep.subr.mxu0 0.0
      %5388 = vmatpush1.msra.mxu0 0.0
      %5389 = vmatprep.subr.mxu0 0.0
      %5390 = vmatpush1.msra.mxu0 0.0
      %5391 = vmatprep.subr.mxu0 0.0
      %5392 = vmatpush1.msra.mxu0 0.0
      %5393 = vmatprep.subr.mxu0 0.0
      %5394 = vmatpush1.msra.mxu0 0.0
      %5395 = vmatprep.subr.mxu0 0.0
      %5396 = vmatpush1.msra.mxu0 0.0
      %5397 = vmatprep.subr.mxu0 0.0
      %5398 = vmatpush1.msra.mxu0 0.0
      %5399 = vmatprep.subr.mxu0 0.0
      %5400 = vmatpush1.msra.mxu0 0.0
      %5401 = vmatprep.subr.mxu0 0.0
      %5402 = vmatpush1.msra.mxu0 0.0
      %5403 = vmatprep.subr.mxu0 0.0
      %5404 = vmatpush1.msra.mxu0 0.0
      %5405 = vmatprep.subr.mxu0 0.0
      %5406 = vmatpush1.msra.mxu0 0.0
      %5407 = vmatprep.subr.mxu0 0.0
      %5408 = vmatpush1.msra.mxu0 0.0
      %5409 = vmatprep.subr.mxu0 0.0
      %5410 = vmatpush1.msra.mxu0 0.0
      %5411 = vmatprep.subr.mxu0 0.0
      %5412 = vmatpush1.msra.mxu0 0.0
      %5413 = vmatprep.subr.mxu0 0.0
      %5414 = vmatpush1.msra.mxu0 0.0
      %5415 = vmatprep.subr.mxu0 0.0
      %5416 = vmatpush1.msra.mxu0 0.0
      %5417 = vmatprep.subr.mxu0 0.0
      %5418 = vmatpush1.msra.mxu0 0.0
      %5419 = vmatprep.mubr.f32.mxu0 0.0
      %5420 = vmatmul.mubr.f32.gmra.mrb[0].mxu0 %v5350
      %v5421 = vpop.f32.mrb[0].mxu0
      %v5422 = vadd.f32 0.0, %v5421
      %v5423 = vpop.f32.mrb[0].mxu0
      %5424 = vmatprep.mubr.f32.mxu0 0.0
      %5425 = vmatmul.mubr.f32.gmra.mrb[0].mxu0 %v5353
      %v5426 = vpop.f32.mrb[0].mxu0
      %v5427 = vadd.f32 0.0, %v5426
      %v5428 = vpop.f32.mrb[0].mxu0
      %5429 = vdwg.mxu0
      %v5430 = vld [vmem:[%s5 + $0x18] sm:$0xff]
      %v5432 = vsel %vm660, %v5161, 0
      %v5435 = vsel %vm660, %v5166, 0
      %v5438 = vsel %vm660, %v5248, 0
      %v5441 = vsel %vm660, %v5253, 0
      %v5444 = vsel %vm660, %v5335, 0
      %v5447 = vsel %vm660, %v5340, 0
      %v5450 = vsel %vm660, %v5422, 0
      %v5453 = vsel %vm660, %v5427, 0
      %5455 = vmatprep.subr.mxu0 0.0
      %5456 = vmatpush1.msra.mxu0 %v5430
      %5457 = vmatprep.subr.mxu0 0.0
      %5458 = vmatpush1.msra.mxu0 0.0
      %5459 = vmatprep.subr.mxu0 0.0
      %5460 = vmatpush1.msra.mxu0 0.0
      %5461 = vmatprep.subr.mxu0 0.0
      %5462 = vmatpush1.msra.mxu0 0.0
      %5463 = vmatprep.subr.mxu0 0.0
      %5464 = vmatpush1.msra.mxu0 0.0
      %5465 = vmatprep.subr.mxu0 0.0
      %5466 = vmatpush1.msra.mxu0 0.0
      %5467 = vmatprep.subr.mxu0 0.0
      %5468 = vmatpush1.msra.mxu0 0.0
      %5469 = vmatprep.subr.mxu0 0.0
      %5470 = vmatpush1.msra.mxu0 0.0
      %5471 = vmatprep.subr.mxu0 0.0
      %5472 = vmatpush1.msra.mxu0 0.0
      %5473 = vmatprep.subr.mxu0 0.0
      %5474 = vmatpush1.msra.mxu0 0.0
      %5475 = vmatprep.subr.mxu0 0.0
      %5476 = vmatpush1.msra.mxu0 0.0
      %5477 = vmatprep.subr.mxu0 0.0
      %5478 = vmatpush1.msra.mxu0 0.0
      %5479 = vmatprep.subr.mxu0 0.0
      %5480 = vmatpush1.msra.mxu0 0.0
      %5481 = vmatprep.subr.mxu0 0.0
      %5482 = vmatpush1.msra.mxu0 0.0
      %5483 = vmatprep.subr.mxu0 0.0
      %5484 = vmatpush1.msra.mxu0 0.0
      %5485 = vmatprep.subr.mxu0 0.0
      %5486 = vmatpush1.msra.mxu0 0.0
      %5487 = vmatprep.subr.mxu0 0.0
      %5488 = vmatpush1.msra.mxu0 0.0
      %5489 = vmatprep.subr.mxu0 0.0
      %5490 = vmatpush1.msra.mxu0 0.0
      %5491 = vmatprep.subr.mxu0 0.0
      %5492 = vmatpush1.msra.mxu0 0.0
      %5493 = vmatprep.subr.mxu0 0.0
      %5494 = vmatpush1.msra.mxu0 0.0
      %5495 = vmatprep.subr.mxu0 0.0
      %5496 = vmatpush1.msra.mxu0 0.0
      %5497 = vmatprep.subr.mxu0 0.0
      %5498 = vmatpush1.msra.mxu0 0.0
      %5499 = vmatprep.subr.mxu0 0.0
      %5500 = vmatpush1.msra.mxu0 0.0
      %5501 = vmatprep.subr.mxu0 0.0
      %5502 = vmatpush1.msra.mxu0 0.0
      %5503 = vmatprep.subr.mxu0 0.0
      %5504 = vmatpush1.msra.mxu0 0.0
      %5505 = vmatprep.subr.mxu0 0.0
      %5506 = vmatpush1.msra.mxu0 0.0
      %5507 = vmatprep.subr.mxu0 0.0
      %5508 = vmatpush1.msra.mxu0 0.0
      %5509 = vmatprep.subr.mxu0 0.0
      %5510 = vmatpush1.msra.mxu0 0.0
      %5511 = vmatprep.subr.mxu0 0.0
      %5512 = vmatpush1.msra.mxu0 0.0
      %5513 = vmatprep.subr.mxu0 0.0
      %5514 = vmatpush1.msra.mxu0 0.0
      %5515 = vmatprep.subr.mxu0 0.0
      %5516 = vmatpush1.msra.mxu0 0.0
      %5517 = vmatprep.subr.mxu0 0.0
      %5518 = vmatpush1.msra.mxu0 0.0
      %5519 = vmatprep.mubr.f32.mxu0 0.0
      %5520 = vmatmul.mubr.f32.gmra.mrb[0].mxu0 %v5432
      %v5521 = vpop.f32.mrb[0].mxu0
      %v5522 = vadd.f32 0.0, %v5521
      %v5523 = vpop.f32.mrb[0].mxu0
      %5524 = vmatprep.mubr.f32.mxu0 0.0
      %5525 = vmatmul.mubr.f32.gmra.mrb[0].mxu0 %v5435
      %v5526 = vpop.f32.mrb[0].mxu0
      %v5527 = vadd.f32 0.0, %v5526
      %v5528 = vpop.f32.mrb[0].mxu0
      %5529 = vmatprep.mubr.f32.mxu0 0.0
      %5530 = vmatmul.mubr.f32.gmra.mrb[0].mxu0 %v5438
      %v5531 = vpop.f32.mrb[0].mxu0
      %v5532 = vadd.f32 0.0, %v5531
      %v5533 = vpop.f32.mrb[0].mxu0
      %5534 = vmatprep.mubr.f32.mxu0 0.0
      %5535 = vmatmul.mubr.f32.gmra.mrb[0].mxu0 %v5441
      %v5536 = vpop.f32.mrb[0].mxu0
      %v5537 = vadd.f32 0.0, %v5536
      %v5538 = vpop.f32.mrb[0].mxu0
      %5539 = vmatprep.mubr.f32.mxu0 0.0
      %5540 = vmatmul.mubr.f32.gmra.mrb[0].mxu0 %v5444
      %v5541 = vpop.f32.mrb[0].mxu0
      %v5542 = vadd.f32 0.0, %v5541
      %v5543 = vpop.f32.mrb[0].mxu0
      %5544 = vmatprep.mubr.f32.mxu0 0.0
      %5545 = vmatmul.mubr.f32.gmra.mrb[0].mxu0 %v5447
      %v5546 = vpop.f32.mrb[0].mxu0
      %v5547 = vadd.f32 0.0, %v5546
      %v5548 = vpop.f32.mrb[0].mxu0
      %5549 = vmatprep.mubr.f32.mxu0 0.0
      %5550 = vmatmul.mubr.f32.gmra.mrb[0].mxu0 %v5450
      %v5551 = vpop.f32.mrb[0].mxu0
      %v5552 = vadd.f32 0.0, %v5551
      %v5553 = vpop.f32.mrb[0].mxu0
      %5554 = vmatprep.mubr.f32.mxu0 0.0
      %5555 = vmatmul.mubr.f32.gmra.mrb[0].mxu0 %v5453
      %v5556 = vpop.f32.mrb[0].mxu0
      %v5557 = vadd.f32 0.0, %v5556
      %v5558 = vpop.f32.mrb[0].mxu0
      %5559 = vdwg.mxu0
      %v5560 = vadd.f32 %v4323, %v5522
      %v5561 = vadd.f32 %v4324, %v5527
      %v5562 = vadd.f32 %v4325, %v5532
      %v5563 = vadd.f32 %v4326, %v5537
      %v5564 = vadd.f32 %v4327, %v5542
      %v5565 = vadd.f32 %v4328, %v5547
      %v5566 = vadd.f32 %v4329, %v5552
      %v5567 = vadd.f32 %v4330, %v5557
      %v5568 = vld [vmem:[%s6] sm:$0x1]
      %v5570 = vlaneseq
      %v5571 = vshrl.u32 %v5570, 7
      %v5572 = vsub.s32 0, %v5571
      %v5573 = vrot.slane %v5568, %v5572
      %v5575 = vadd.f32 %v5560, %v5573
      %v5576 = vadd.f32 %v5561, %v5573
      %v5577 = vadd.f32 %v5562, %v5573
      %v5578 = vadd.f32 %v5563, %v5573
      %v5579 = vadd.f32 %v5564, %v5573
      %v5580 = vadd.f32 %v5565, %v5573
      %v5581 = vadd.f32 %v5566, %v5573
      %v5582 = vadd.f32 %v5567, %v5573
      %v5583 = vld [vmem:[%s7] sm:$0x1]
      %v5584 = vld [vmem:[%s8] sm:$0x1]
      %v5585 = vsel %vm522, %v5575, 0.0
      %5586 = vadd.xlane.f32.xlu0 %v5585
      %v5587 = vpop.xlane.xlu0 %5586
      %v5588 = vsel %vm522, %v5576, 0.0
      %5589 = vadd.xlane.f32.xlu0 %v5588
      %v5590 = vpop.xlane.xlu0 %5589
      %v5591 = vsel %vm522, %v5577, 0.0
      %5592 = vadd.xlane.f32.xlu0 %v5591
      %v5593 = vpop.xlane.xlu0 %5592
      %v5594 = vsel %vm522, %v5578, 0.0
      %5595 = vadd.xlane.f32.xlu0 %v5594
      %v5596 = vpop.xlane.xlu0 %5595
      %v5597 = vsel %vm522, %v5579, 0.0
      %5598 = vadd.xlane.f32.xlu0 %v5597
      %v5599 = vpop.xlane.xlu0 %5598
      %v5600 = vsel %vm522, %v5580, 0.0
      %5601 = vadd.xlane.f32.xlu0 %v5600
      %v5602 = vpop.xlane.xlu0 %5601
      %v5603 = vsel %vm522, %v5581, 0.0
      %5604 = vadd.xlane.f32.xlu0 %v5603
      %v5605 = vpop.xlane.xlu0 %5604
      %v5606 = vsel %vm522, %v5582, 0.0
      %5607 = vadd.xlane.f32.xlu0 %v5606
      %v5608 = vpop.xlane.xlu0 %5607
      %v5609 = vrcp.pop 32.0
      %v5610 = vmul.f32 %v5587, %v5609
      %v5611 = vmul.f32 %v5590, %v5609
      %v5612 = vmul.f32 %v5593, %v5609
      %v5613 = vmul.f32 %v5596, %v5609
      %v5614 = vmul.f32 %v5599, %v5609
      %v5615 = vmul.f32 %v5602, %v5609
      %v5616 = vmul.f32 %v5605, %v5609
      %v5617 = vmul.f32 %v5608, %v5609
      %v5618 = vsub.f32 %v5575, %v5610
      %v5619 = vsub.f32 %v5576, %v5611
      %v5620 = vsub.f32 %v5577, %v5612
      %v5621 = vsub.f32 %v5578, %v5613
      %v5622 = vsub.f32 %v5579, %v5614
      %v5623 = vsub.f32 %v5580, %v5615
      %v5624 = vsub.f32 %v5581, %v5616
      %v5625 = vsub.f32 %v5582, %v5617
      %v5626 = vmul.f32 %v5618, %v5618
      %v5627 = vmul.f32 %v5619, %v5619
      %v5628 = vmul.f32 %v5620, %v5620
      %v5629 = vmul.f32 %v5621, %v5621
      %v5630 = vmul.f32 %v5622, %v5622
      %v5631 = vmul.f32 %v5623, %v5623
      %v5632 = vmul.f32 %v5624, %v5624
      %v5633 = vmul.f32 %v5625, %v5625
      %v5634 = vsel %vm522, %v5626, 0.0
      %5635 = vadd.xlane.f32.xlu0 %v5634
      %v5636 = vpop.xlane.xlu0 %5635
      %v5637 = vsel %vm522, %v5627, 0.0
      %5638 = vadd.xlane.f32.xlu0 %v5637
      %v5639 = vpop.xlane.xlu0 %5638
      %v5640 = vsel %vm522, %v5628, 0.0
      %5641 = vadd.xlane.f32.xlu0 %v5640
      %v5642 = vpop.xlane.xlu0 %5641
      %v5643 = vsel %vm522, %v5629, 0.0
      %5644 = vadd.xlane.f32.xlu0 %v5643
      %v5645 = vpop.xlane.xlu0 %5644
      %v5646 = vsel %vm522, %v5630, 0.0
      %5647 = vadd.xlane.f32.xlu0 %v5646
      %v5648 = vpop.xlane.xlu0 %5647
      %v5649 = vsel %vm522, %v5631, 0.0
      %5650 = vadd.xlane.f32.xlu0 %v5649
      %v5651 = vpop.xlane.xlu0 %5650
      %v5652 = vsel %vm522, %v5632, 0.0
      %5653 = vadd.xlane.f32.xlu0 %v5652
      %v5654 = vpop.xlane.xlu0 %5653
      %v5655 = vsel %vm522, %v5633, 0.0
      %5656 = vadd.xlane.f32.xlu0 %v5655
      %v5657 = vpop.xlane.xlu0 %5656
      %v5658 = vmul.f32 %v5636, %v5609
      %v5659 = vmul.f32 %v5639, %v5609
      %v5660 = vmul.f32 %v5642, %v5609
      %v5661 = vmul.f32 %v5645, %v5609
      %v5662 = vmul.f32 %v5648, %v5609
      %v5663 = vmul.f32 %v5651, %v5609
      %v5664 = vmul.f32 %v5654, %v5609
      %v5665 = vmul.f32 %v5657, %v5609
      %v5666 = vadd.f32 %v5658, 1e-05
      %v5667 = vadd.f32 %v5659, 1e-05
      %v5668 = vadd.f32 %v5660, 1e-05
      %v5669 = vadd.f32 %v5661, 1e-05
      %v5670 = vadd.f32 %v5662, 1e-05
      %v5671 = vadd.f32 %v5663, 1e-05
      %v5672 = vadd.f32 %v5664, 1e-05
      %v5673 = vadd.f32 %v5665, 1e-05
      %v5674 = vrsqrt.pop %v5666
      %v5675 = vrsqrt.pop %v5667
      %v5676 = vrsqrt.pop %v5668
      %v5677 = vrsqrt.pop %v5669
      %v5678 = vrsqrt.pop %v5670
      %v5679 = vrsqrt.pop %v5671
      %v5680 = vrsqrt.pop %v5672
      %v5681 = vrsqrt.pop %v5673
      %v5682 = vmul.f32 %v5618, %v5674
      %v5683 = vmul.f32 %v5619, %v5675
      %v5684 = vmul.f32 %v5620, %v5676
      %v5685 = vmul.f32 %v5621, %v5677
      %v5686 = vmul.f32 %v5622, %v5678
      %v5687 = vmul.f32 %v5623, %v5679
      %v5688 = vmul.f32 %v5624, %v5680
      %v5689 = vmul.f32 %v5625, %v5681
      %v5691 = vlaneseq
      %v5692 = vshrl.u32 %v5691, 7
      %v5693 = vsub.s32 0, %v5692
      %v5694 = vrot.slane %v5583, %v5693
      %v5696 = vmul.f32 %v5682, %v5694
      %v5697 = vmul.f32 %v5683, %v5694
      %v5698 = vmul.f32 %v5684, %v5694
      %v5699 = vmul.f32 %v5685, %v5694
      %v5700 = vmul.f32 %v5686, %v5694
      %v5701 = vmul.f32 %v5687, %v5694
      %v5702 = vmul.f32 %v5688, %v5694
      %v5703 = vmul.f32 %v5689, %v5694
      %v5705 = vlaneseq
      %v5706 = vshrl.u32 %v5705, 7
      %v5707 = vsub.s32 0, %v5706
      %v5708 = vrot.slane %v5584, %v5707
      %v5710 = vadd.f32 %v5696, %v5708
      %v5711 = vadd.f32 %v5697, %v5708
      %v5712 = vadd.f32 %v5698, %v5708
      %v5713 = vadd.f32 %v5699, %v5708
      %v5714 = vadd.f32 %v5700, %v5708
      %v5715 = vadd.f32 %v5701, %v5708
      %v5716 = vadd.f32 %v5702, %v5708
      %v5717 = vadd.f32 %v5703, %v5708
      %v5718 = vadd.f32 %v503, %v5710
      %v5719 = vadd.f32 %v504, %v5711
      %v5720 = vadd.f32 %v505, %v5712
      %v5721 = vadd.f32 %v506, %v5713
      %v5722 = vadd.f32 %v507, %v5714
      %v5723 = vadd.f32 %v508, %v5715
      %v5724 = vadd.f32 %v509, %v5716
      %v5725 = vadd.f32 %v510, %v5717
      %v5726 = vld [vmem:[%s9] sm:$0xff]
      %v5727 = vld [vmem:[%s9 + $0x8] sm:$0xff]
      %v5728 = vld [vmem:[%s9 + $0x10] sm:$0xff]
      %v5729 = vld [vmem:[%s9 + $0x18] sm:$0xff]
      %v5730 = vld [vmem:[%s10] sm:$0x1]
      %v5732 = vlaneseq
      %v5733 = vshrl.u32 %v5732, 7
      %v5734 = vsub.s32 0, %v5733
      %v5735 = vrot.slane %v5730, %v5734
      %v5738 = vsel %vm522, %v5718, 0
      %v5741 = vsel %vm522, %v5719, 0
      %v5744 = vsel %vm522, %v5720, 0
      %v5747 = vsel %vm522, %v5721, 0
      %v5750 = vsel %vm522, %v5722, 0
      %v5753 = vsel %vm522, %v5723, 0
      %v5756 = vsel %vm522, %v5724, 0
      %v5759 = vsel %vm522, %v5725, 0
      %5761 = vmatprep.subr.mxu0 0.0
      %5762 = vmatpush1.msra.mxu0 %v5726
      %5763 = vmatprep.subr.mxu0 0.0
      %5764 = vmatpush1.msra.mxu0 %v5727
      %5765 = vmatprep.subr.mxu0 0.0
      %5766 = vmatpush1.msra.mxu0 %v5728
      %5767 = vmatprep.subr.mxu0 0.0
      %5768 = vmatpush1.msra.mxu0 %v5729
      %5769 = vmatprep.subr.mxu0 0.0
      %5770 = vmatpush1.msra.mxu0 0.0
      %5771 = vmatprep.subr.mxu0 0.0
      %5772 = vmatpush1.msra.mxu0 0.0
      %5773 = vmatprep.subr.mxu0 0.0
      %5774 = vmatpush1.msra.mxu0 0.0
      %5775 = vmatprep.subr.mxu0 0.0
      %5776 = vmatpush1.msra.mxu0 0.0
      %5777 = vmatprep.subr.mxu0 0.0
      %5778 = vmatpush1.msra.mxu0 0.0
      %5779 = vmatprep.subr.mxu0 0.0
      %5780 = vmatpush1.msra.mxu0 0.0
      %5781 = vmatprep.subr.mxu0 0.0
      %5782 = vmatpush1.msra.mxu0 0.0
      %5783 = vmatprep.subr.mxu0 0.0
      %5784 = vmatpush1.msra.mxu0 0.0
      %5785 = vmatprep.subr.mxu0 0.0
      %5786 = vmatpush1.msra.mxu0 0.0
      %5787 = vmatprep.subr.mxu0 0.0
      %5788 = vmatpush1.msra.mxu0 0.0
      %5789 = vmatprep.subr.mxu0 0.0
      %5790 = vmatpush1.msra.mxu0 0.0
      %5791 = vmatprep.subr.mxu0 0.0
      %5792 = vmatpush1.msra.mxu0 0.0
      %5793 = vmatprep.subr.mxu0 0.0
      %5794 = vmatpush1.msra.mxu0 0.0
      %5795 = vmatprep.subr.mxu0 0.0
      %5796 = vmatpush1.msra.mxu0 0.0
      %5797 = vmatprep.subr.mxu0 0.0
      %5798 = vmatpush1.msra.mxu0 0.0
      %5799 = vmatprep.subr.mxu0 0.0
      %5800 = vmatpush1.msra.mxu0 0.0
      %5801 = vmatprep.subr.mxu0 0.0
      %5802 = vmatpush1.msra.mxu0 0.0
      %5803 = vmatprep.subr.mxu0 0.0
      %5804 = vmatpush1.msra.mxu0 0.0
      %5805 = vmatprep.subr.mxu0 0.0
      %5806 = vmatpush1.msra.mxu0 0.0
      %5807 = vmatprep.subr.mxu0 0.0
      %5808 = vmatpush1.msra.mxu0 0.0
      %5809 = vmatprep.subr.mxu0 0.0
      %5810 = vmatpush1.msra.mxu0 0.0
      %5811 = vmatprep.subr.mxu0 0.0
      %5812 = vmatpush1.msra.mxu0 0.0
      %5813 = vmatprep.subr.mxu0 0.0
      %5814 = vmatpush1.msra.mxu0 0.0
      %5815 = vmatprep.subr.mxu0 0.0
      %5816 = vmatpush1.msra.mxu0 0.0
      %5817 = vmatprep.subr.mxu0 0.0
      %5818 = vmatpush1.msra.mxu0 0.0
      %5819 = vmatprep.subr.mxu0 0.0
      %5820 = vmatpush1.msra.mxu0 0.0
      %5821 = vmatprep.subr.mxu0 0.0
      %5822 = vmatpush1.msra.mxu0 0.0
      %5823 = vmatprep.subr.mxu0 0.0
      %5824 = vmatpush1.msra.mxu0 0.0
      %5825 = vmatprep.mubr.f32.mxu0 0.0
      %5826 = vmatmul.mubr.f32.gmra.mrb[0].mxu0 %v5738
      %v5827 = vpop.f32.mrb[0].mxu0
      %v5828 = vadd.f32 %v5735, %v5827
      %v5829 = vpop.f32.mrb[0].mxu0
      %5830 = vmatprep.mubr.f32.mxu0 0.0
      %5831 = vmatmul.mubr.f32.gmra.mrb[0].mxu0 %v5741
      %v5832 = vpop.f32.mrb[0].mxu0
      %v5833 = vadd.f32 %v5735, %v5832
      %v5834 = vpop.f32.mrb[0].mxu0
      %5835 = vmatprep.mubr.f32.mxu0 0.0
      %5836 = vmatmul.mubr.f32.gmra.mrb[0].mxu0 %v5744
      %v5837 = vpop.f32.mrb[0].mxu0
      %v5838 = vadd.f32 %v5735, %v5837
      %v5839 = vpop.f32.mrb[0].mxu0
      %5840 = vmatprep.mubr.f32.mxu0 0.0
      %5841 = vmatmul.mubr.f32.gmra.mrb[0].mxu0 %v5747
      %v5842 = vpop.f32.mrb[0].mxu0
      %v5843 = vadd.f32 %v5735, %v5842
      %v5844 = vpop.f32.mrb[0].mxu0
      %5845 = vmatprep.mubr.f32.mxu0 0.0
      %5846 = vmatmul.mubr.f32.gmra.mrb[0].mxu0 %v5750
      %v5847 = vpop.f32.mrb[0].mxu0
      %v5848 = vadd.f32 %v5735, %v5847
      %v5849 = vpop.f32.mrb[0].mxu0
      %5850 = vmatprep.mubr.f32.mxu0 0.0
      %5851 = vmatmul.mubr.f32.gmra.mrb[0].mxu0 %v5753
      %v5852 = vpop.f32.mrb[0].mxu0
      %v5853 = vadd.f32 %v5735, %v5852
      %v5854 = vpop.f32.mrb[0].mxu0
      %5855 = vmatprep.mubr.f32.mxu0 0.0
      %5856 = vmatmul.mubr.f32.gmra.mrb[0].mxu0 %v5756
      %v5857 = vpop.f32.mrb[0].mxu0
      %v5858 = vadd.f32 %v5735, %v5857
      %v5859 = vpop.f32.mrb[0].mxu0
      %5860 = vmatprep.mubr.f32.mxu0 0.0
      %5861 = vmatmul.mubr.f32.gmra.mrb[0].mxu0 %v5759
      %v5862 = vpop.f32.mrb[0].mxu0
      %v5863 = vadd.f32 %v5735, %v5862
      %v5864 = vpop.f32.mrb[0].mxu0
      %5865 = vdwg.mxu0
      %v5866 = vsub.f32 0.0, %v5828
      %v5867 = vsub.f32 0.0, %v5833
      %v5868 = vsub.f32 0.0, %v5838
      %v5869 = vsub.f32 0.0, %v5843
      %v5870 = vsub.f32 0.0, %v5848
      %v5871 = vsub.f32 0.0, %v5853
      %v5872 = vsub.f32 0.0, %v5858
      %v5873 = vsub.f32 0.0, %v5863
      %v5874 = vmul.f32 %v5866, 1.442695
      %v5875 = vpow.pop %v5874
      %v5876 = vmul.f32 %v5867, 1.442695
      %v5877 = vpow.pop %v5876
      %v5878 = vmul.f32 %v5868, 1.442695
      %v5879 = vpow.pop %v5878
      %v5880 = vmul.f32 %v5869, 1.442695
      %v5881 = vpow.pop %v5880
      %v5882 = vmul.f32 %v5870, 1.442695
      %v5883 = vpow.pop %v5882
      %v5884 = vmul.f32 %v5871, 1.442695
      %v5885 = vpow.pop %v5884
      %v5886 = vmul.f32 %v5872, 1.442695
      %v5887 = vpow.pop %v5886
      %v5888 = vmul.f32 %v5873, 1.442695
      %v5889 = vpow.pop %v5888
      %v5890 = vadd.f32 %v5875, 1.0
      %v5891 = vadd.f32 %v5877, 1.0
      %v5892 = vadd.f32 %v5879, 1.0
      %v5893 = vadd.f32 %v5881, 1.0
      %v5894 = vadd.f32 %v5883, 1.0
      %v5895 = vadd.f32 %v5885, 1.0
      %v5896 = vadd.f32 %v5887, 1.0
      %v5897 = vadd.f32 %v5889, 1.0
      %v5898 = vrcp.pop %v5890
      %v5899 = vmul.f32 1.0, %v5898
      %v5900 = vrcp.pop %v5891
      %v5901 = vmul.f32 1.0, %v5900
      %v5902 = vrcp.pop %v5892
      %v5903 = vmul.f32 1.0, %v5902
      %v5904 = vrcp.pop %v5893
      %v5905 = vmul.f32 1.0, %v5904
      %v5906 = vrcp.pop %v5894
      %v5907 = vmul.f32 1.0, %v5906
      %v5908 = vrcp.pop %v5895
      %v5909 = vmul.f32 1.0, %v5908
      %v5910 = vrcp.pop %v5896
      %v5911 = vmul.f32 1.0, %v5910
      %v5912 = vrcp.pop %v5897
      %v5913 = vmul.f32 1.0, %v5912
      %v5914 = vmul.f32 %v5828, %v5899
      %v5915 = vmul.f32 %v5833, %v5901
      %v5916 = vmul.f32 %v5838, %v5903
      %v5917 = vmul.f32 %v5843, %v5905
      %v5918 = vmul.f32 %v5848, %v5907
      %v5919 = vmul.f32 %v5853, %v5909
      %v5920 = vmul.f32 %v5858, %v5911
      %v5921 = vmul.f32 %v5863, %v5913
      %v5922 = vld [vmem:[%s11] sm:$0xff]
      %v5923 = vld [vmem:[%s11 + $0x8] sm:$0xff]
      %v5924 = vld [vmem:[%s11 + $0x10] sm:$0xff]
      %v5925 = vld [vmem:[%s11 + $0x18] sm:$0xff]
      %v5926 = vld [vmem:[%s11 + $0x20] sm:$0xff]
      %v5927 = vld [vmem:[%s11 + $0x28] sm:$0xff]
      %v5928 = vld [vmem:[%s11 + $0x30] sm:$0xff]
      %v5929 = vld [vmem:[%s11 + $0x38] sm:$0xff]
      %v5930 = vld [vmem:[%s11 + $0x40] sm:$0xff]
      %v5931 = vld [vmem:[%s11 + $0x48] sm:$0xff]
      %v5932 = vld [vmem:[%s11 + $0x50] sm:$0xff]
      %v5933 = vld [vmem:[%s11 + $0x58] sm:$0xff]
      %v5934 = vld [vmem:[%s11 + $0x60] sm:$0xff]
      %v5935 = vld [vmem:[%s11 + $0x68] sm:$0xff]
      %v5936 = vld [vmem:[%s11 + $0x70] sm:$0xff]
      %v5937 = vld [vmem:[%s11 + $0x78] sm:$0xff]
      %v5938 = vld [vmem:[%s12] sm:$0x1]
      %v5940 = vlaneseq
      %v5941 = vshrl.u32 %v5940, 7
      %v5942 = vsub.s32 0, %v5941
      %v5943 = vrot.slane %v5938, %v5942
      %5945 = vmatprep.subr.mxu0 0.0
      %5946 = vmatpush1.msra.mxu0 %v5922
      %5947 = vmatprep.subr.mxu0 0.0
      %5948 = vmatpush1.msra.mxu0 %v5923
      %5949 = vmatprep.subr.mxu0 0.0
      %5950 = vmatpush1.msra.mxu0 %v5924
      %5951 = vmatprep.subr.mxu0 0.0
      %5952 = vmatpush1.msra.mxu0 %v5925
      %5953 = vmatprep.subr.mxu0 0.0
      %5954 = vmatpush1.msra.mxu0 %v5926
      %5955 = vmatprep.subr.mxu0 0.0
      %5956 = vmatpush1.msra.mxu0 %v5927
      %5957 = vmatprep.subr.mxu0 0.0
      %5958 = vmatpush1.msra.mxu0 %v5928
      %5959 = vmatprep.subr.mxu0 0.0
      %5960 = vmatpush1.msra.mxu0 %v5929
      %5961 = vmatprep.subr.mxu0 0.0
      %5962 = vmatpush1.msra.mxu0 %v5930
      %5963 = vmatprep.subr.mxu0 0.0
      %5964 = vmatpush1.msra.mxu0 %v5931
      %5965 = vmatprep.subr.mxu0 0.0
      %5966 = vmatpush1.msra.mxu0 %v5932
      %5967 = vmatprep.subr.mxu0 0.0
      %5968 = vmatpush1.msra.mxu0 %v5933
      %5969 = vmatprep.subr.mxu0 0.0
      %5970 = vmatpush1.msra.mxu0 %v5934
      %5971 = vmatprep.subr.mxu0 0.0
      %5972 = vmatpush1.msra.mxu0 %v5935
      %5973 = vmatprep.subr.mxu0 0.0
      %5974 = vmatpush1.msra.mxu0 %v5936
      %5975 = vmatprep.subr.mxu0 0.0
      %5976 = vmatpush1.msra.mxu0 %v5937
      %5977 = vmatprep.subr.mxu0 0.0
      %5978 = vmatpush1.msra.mxu0 0.0
      %5979 = vmatprep.subr.mxu0 0.0
      %5980 = vmatpush1.msra.mxu0 0.0
      %5981 = vmatprep.subr.mxu0 0.0
      %5982 = vmatpush1.msra.mxu0 0.0
      %5983 = vmatprep.subr.mxu0 0.0
      %5984 = vmatpush1.msra.mxu0 0.0
      %5985 = vmatprep.subr.mxu0 0.0
      %5986 = vmatpush1.msra.mxu0 0.0
      %5987 = vmatprep.subr.mxu0 0.0
      %5988 = vmatpush1.msra.mxu0 0.0
      %5989 = vmatprep.subr.mxu0 0.0
      %5990 = vmatpush1.msra.mxu0 0.0
      %5991 = vmatprep.subr.mxu0 0.0
      %5992 = vmatpush1.msra.mxu0 0.0
      %5993 = vmatprep.subr.mxu0 0.0
      %5994 = vmatpush1.msra.mxu0 0.0
      %5995 = vmatprep.subr.mxu0 0.0
      %5996 = vmatpush1.msra.mxu0 0.0
      %5997 = vmatprep.subr.mxu0 0.0
      %5998 = vmatpush1.msra.mxu0 0.0
      %5999 = vmatprep.subr.mxu0 0.0
      %6000 = vmatpush1.msra.mxu0 0.0
      %6001 = vmatprep.subr.mxu0 0.0
      %6002 = vmatpush1.msra.mxu0 0.0
      %6003 = vmatprep.subr.mxu0 0.0
      %6004 = vmatpush1.msra.mxu0 0.0
      %6005 = vmatprep.subr.mxu0 0.0
      %6006 = vmatpush1.msra.mxu0 0.0
      %6007 = vmatprep.subr.mxu0 0.0
      %6008 = vmatpush1.msra.mxu0 0.0
      %6009 = vmatprep.mubr.f32.mxu0 0.0
      %6010 = vmatmul.mubr.f32.gmra.mrb[0].mxu0 %v5914
      %v6011 = vpop.f32.mrb[0].mxu0
      %v6012 = vadd.f32 %v5943, %v6011
      %v6013 = vpop.f32.mrb[0].mxu0
      %6014 = vmatprep.mubr.f32.mxu0 0.0
      %6015 = vmatmul.mubr.f32.gmra.mrb[0].mxu0 %v5915
      %v6016 = vpop.f32.mrb[0].mxu0
      %v6017 = vadd.f32 %v5943, %v6016
      %v6018 = vpop.f32.mrb[0].mxu0
      %6019 = vmatprep.mubr.f32.mxu0 0.0
      %6020 = vmatmul.mubr.f32.gmra.mrb[0].mxu0 %v5916
      %v6021 = vpop.f32.mrb[0].mxu0
      %v6022 = vadd.f32 %v5943, %v6021
      %v6023 = vpop.f32.mrb[0].mxu0
      %6024 = vmatprep.mubr.f32.mxu0 0.0
      %6025 = vmatmul.mubr.f32.gmra.mrb[0].mxu0 %v5917
      %v6026 = vpop.f32.mrb[0].mxu0
      %v6027 = vadd.f32 %v5943, %v6026
      %v6028 = vpop.f32.mrb[0].mxu0
      %6029 = vmatprep.mubr.f32.mxu0 0.0
      %6030 = vmatmul.mubr.f32.gmra.mrb[0].mxu0 %v5918
      %v6031 = vpop.f32.mrb[0].mxu0
      %v6032 = vadd.f32 %v5943, %v6031
      %v6033 = vpop.f32.mrb[0].mxu0
      %6034 = vmatprep.mubr.f32.mxu0 0.0
      %6035 = vmatmul.mubr.f32.gmra.mrb[0].mxu0 %v5919
      %v6036 = vpop.f32.mrb[0].mxu0
      %v6037 = vadd.f32 %v5943, %v6036
      %v6038 = vpop.f32.mrb[0].mxu0
      %6039 = vmatprep.mubr.f32.mxu0 0.0
      %6040 = vmatmul.mubr.f32.gmra.mrb[0].mxu0 %v5920
      %v6041 = vpop.f32.mrb[0].mxu0
      %v6042 = vadd.f32 %v5943, %v6041
      %v6043 = vpop.f32.mrb[0].mxu0
      %6044 = vmatprep.mubr.f32.mxu0 0.0
      %6045 = vmatmul.mubr.f32.gmra.mrb[0].mxu0 %v5921
      %v6046 = vpop.f32.mrb[0].mxu0
      %v6047 = vadd.f32 %v5943, %v6046
      %v6048 = vpop.f32.mrb[0].mxu0
      %6049 = vdwg.mxu0
      %v6050 = vld [vmem:[%s13] sm:$0x1]
      %v6051 = vld [vmem:[%s14] sm:$0x1]
      %v6052 = vsel %vm522, %v6012, 0.0
      %6053 = vadd.xlane.f32.xlu0 %v6052
      %v6054 = vpop.xlane.xlu0 %6053
      %v6055 = vsel %vm522, %v6017, 0.0
      %6056 = vadd.xlane.f32.xlu0 %v6055
      %v6057 = vpop.xlane.xlu0 %6056
      %v6058 = vsel %vm522, %v6022, 0.0
      %6059 = vadd.xlane.f32.xlu0 %v6058
      %v6060 = vpop.xlane.xlu0 %6059
      %v6061 = vsel %vm522, %v6027, 0.0
      %6062 = vadd.xlane.f32.xlu0 %v6061
      %v6063 = vpop.xlane.xlu0 %6062
      %v6064 = vsel %vm522, %v6032, 0.0
      %6065 = vadd.xlane.f32.xlu0 %v6064
      %v6066 = vpop.xlane.xlu0 %6065
      %v6067 = vsel %vm522, %v6037, 0.0
      %6068 = vadd.xlane.f32.xlu0 %v6067
      %v6069 = vpop.xlane.xlu0 %6068
      %v6070 = vsel %vm522, %v6042, 0.0
      %6071 = vadd.xlane.f32.xlu0 %v6070
      %v6072 = vpop.xlane.xlu0 %6071
      %v6073 = vsel %vm522, %v6047, 0.0
      %6074 = vadd.xlane.f32.xlu0 %v6073
      %v6075 = vpop.xlane.xlu0 %6074
      %v6076 = vmul.f32 %v6054, %v5609
      %v6077 = vmul.f32 %v6057, %v5609
      %v6078 = vmul.f32 %v6060, %v5609
      %v6079 = vmul.f32 %v6063, %v5609
      %v6080 = vmul.f32 %v6066, %v5609
      %v6081 = vmul.f32 %v6069, %v5609
      %v6082 = vmul.f32 %v6072, %v5609
      %v6083 = vmul.f32 %v6075, %v5609
      %v6084 = vsub.f32 %v6012, %v6076
      %v6085 = vsub.f32 %v6017, %v6077
      %v6086 = vsub.f32 %v6022, %v6078
      %v6087 = vsub.f32 %v6027, %v6079
      %v6088 = vsub.f32 %v6032, %v6080
      %v6089 = vsub.f32 %v6037, %v6081
      %v6090 = vsub.f32 %v6042, %v6082
      %v6091 = vsub.f32 %v6047, %v6083
      %v6092 = vmul.f32 %v6084, %v6084
      %v6093 = vmul.f32 %v6085, %v6085
      %v6094 = vmul.f32 %v6086, %v6086
      %v6095 = vmul.f32 %v6087, %v6087
      %v6096 = vmul.f32 %v6088, %v6088
      %v6097 = vmul.f32 %v6089, %v6089
      %v6098 = vmul.f32 %v6090, %v6090
      %v6099 = vmul.f32 %v6091, %v6091
      %v6100 = vsel %vm522, %v6092, 0.0
      %6101 = vadd.xlane.f32.xlu0 %v6100
      %v6102 = vpop.xlane.xlu0 %6101
      %v6103 = vsel %vm522, %v6093, 0.0
      %6104 = vadd.xlane.f32.xlu0 %v6103
      %v6105 = vpop.xlane.xlu0 %6104
      %v6106 = vsel %vm522, %v6094, 0.0
      %6107 = vadd.xlane.f32.xlu0 %v6106
      %v6108 = vpop.xlane.xlu0 %6107
      %v6109 = vsel %vm522, %v6095, 0.0
      %6110 = vadd.xlane.f32.xlu0 %v6109
      %v6111 = vpop.xlane.xlu0 %6110
      %v6112 = vsel %vm522, %v6096, 0.0
      %6113 = vadd.xlane.f32.xlu0 %v6112
      %v6114 = vpop.xlane.xlu0 %6113
      %v6115 = vsel %vm522, %v6097, 0.0
      %6116 = vadd.xlane.f32.xlu0 %v6115
      %v6117 = vpop.xlane.xlu0 %6116
      %v6118 = vsel %vm522, %v6098, 0.0
      %6119 = vadd.xlane.f32.xlu0 %v6118
      %v6120 = vpop.xlane.xlu0 %6119
      %v6121 = vsel %vm522, %v6099, 0.0
      %6122 = vadd.xlane.f32.xlu0 %v6121
      %v6123 = vpop.xlane.xlu0 %6122
      %v6124 = vmul.f32 %v6102, %v5609
      %v6125 = vmul.f32 %v6105, %v5609
      %v6126 = vmul.f32 %v6108, %v5609
      %v6127 = vmul.f32 %v6111, %v5609
      %v6128 = vmul.f32 %v6114, %v5609
      %v6129 = vmul.f32 %v6117, %v5609
      %v6130 = vmul.f32 %v6120, %v5609
      %v6131 = vmul.f32 %v6123, %v5609
      %v6132 = vadd.f32 %v6124, 1e-05
      %v6133 = vadd.f32 %v6125, 1e-05
      %v6134 = vadd.f32 %v6126, 1e-05
      %v6135 = vadd.f32 %v6127, 1e-05
      %v6136 = vadd.f32 %v6128, 1e-05
      %v6137 = vadd.f32 %v6129, 1e-05
      %v6138 = vadd.f32 %v6130, 1e-05
      %v6139 = vadd.f32 %v6131, 1e-05
      %v6140 = vrsqrt.pop %v6132
      %v6141 = vrsqrt.pop %v6133
      %v6142 = vrsqrt.pop %v6134
      %v6143 = vrsqrt.pop %v6135
      %v6144 = vrsqrt.pop %v6136
      %v6145 = vrsqrt.pop %v6137
      %v6146 = vrsqrt.pop %v6138
      %v6147 = vrsqrt.pop %v6139
      %v6148 = vmul.f32 %v6084, %v6140
      %v6149 = vmul.f32 %v6085, %v6141
      %v6150 = vmul.f32 %v6086, %v6142
      %v6151 = vmul.f32 %v6087, %v6143
      %v6152 = vmul.f32 %v6088, %v6144
      %v6153 = vmul.f32 %v6089, %v6145
      %v6154 = vmul.f32 %v6090, %v6146
      %v6155 = vmul.f32 %v6091, %v6147
      %v6157 = vlaneseq
      %v6158 = vshrl.u32 %v6157, 7
      %v6159 = vsub.s32 0, %v6158
      %v6160 = vrot.slane %v6050, %v6159
      %v6162 = vmul.f32 %v6148, %v6160
      %v6163 = vmul.f32 %v6149, %v6160
      %v6164 = vmul.f32 %v6150, %v6160
      %v6165 = vmul.f32 %v6151, %v6160
      %v6166 = vmul.f32 %v6152, %v6160
      %v6167 = vmul.f32 %v6153, %v6160
      %v6168 = vmul.f32 %v6154, %v6160
      %v6169 = vmul.f32 %v6155, %v6160
      %v6171 = vlaneseq
      %v6172 = vshrl.u32 %v6171, 7
      %v6173 = vsub.s32 0, %v6172
      %v6174 = vrot.slane %v6051, %v6173
      %v6176 = vadd.f32 %v6162, %v6174
      %v6177 = vadd.f32 %v6163, %v6174
      %v6178 = vadd.f32 %v6164, %v6174
      %v6179 = vadd.f32 %v6165, %v6174
      %v6180 = vadd.f32 %v6166, %v6174
      %v6181 = vadd.f32 %v6167, %v6174
      %v6182 = vadd.f32 %v6168, %v6174
      %v6183 = vadd.f32 %v6169, %v6174
      %v6184 = vadd.f32 %v5718, %v6176
      %v6185 = vadd.f32 %v5719, %v6177
      %v6186 = vadd.f32 %v5720, %v6178
      %v6187 = vadd.f32 %v5721, %v6179
      %v6188 = vadd.f32 %v5722, %v6180
      %v6189 = vadd.f32 %v5723, %v6181
      %v6190 = vadd.f32 %v5724, %v6182
      %v6191 = vadd.f32 %v5725, %v6183
      %6192 = vst.msk [vmem:[%s501] sm:$0xff] %vm522, %v6184
      %6193 = vst.msk [vmem:[%s501 + $0x8] sm:$0xff] %vm522, %v6185
      %6194 = vst.msk [vmem:[%s501 + $0x10] sm:$0xff] %vm522, %v6186
      %6195 = vst.msk [vmem:[%s501 + $0x18] sm:$0xff] %vm522, %v6187
      %6196 = vst.msk [vmem:[%s501 + $0x20] sm:$0xff] %vm522, %v6188
      %6197 = vst.msk [vmem:[%s501 + $0x28] sm:$0xff] %vm522, %v6189
      %6198 = vst.msk [vmem:[%s501 + $0x30] sm:$0xff] %vm522, %v6190
      %6199 = vst.msk [vmem:[%s501 + $0x38] sm:$0xff] %vm522, %v6191
      %s6200 = smul.u32 4, %s26
      %p6201 = scmp.lt.s32.totalorder %s6200, 7
      %s6202 = scalar_select %p6201, %s6200, 7
      %s6203 = smul.addr %s6202, 2
      %s6204 = smul.addr %s6203, 8
      %s6205 = scalar_lea.vmem %s15, %s6204
      // Predicated region
      $region81: #{swin_layer_forward.3} parent=79 // pred_check
        %p6206 = pneg %p364
      $region82: #{swin_layer_forward.3} parent=79 // pred_check_branch
        %6208 = sbr.rel (%p6206) target = $region84
      $region83: #{swin_layer_forward.3} parent=79 // pred_region
        %s6209 = smul.u32 4, %s26
      $region84: #{swin_layer_forward.3} parent=79 // pred_fallthru
        _
    $region80: #{swin_layer_forward.3} parent=5 // pred_fallthru
      _
    %p6210 = scmp.le.s32.totalorder 2, %s21
    // Predicated region
    $region85: #{swin_layer_forward.3} parent=5 // pred_check
      %p6211 = pneg %p6210
    $region86: #{swin_layer_forward.3} parent=5 // pred_check_branch
      %6213 = sbr.rel (%p6211) target = $region88
    $region87: #{swin_layer_forward.3} parent=5 // pred_region
      %s6214 = ssub.s32 %s21, 2
      // Predicated region
      $region89: #{swin_layer_forward.3} parent=87 // pred_check
        %p6215 = pneg %p370
      $region90: #{swin_layer_forward.3} parent=87 // pred_check_branch
        %6217 = sbr.rel (%p6215) target = $region92
      $region91: #{swin_layer_forward.3} parent=87 // pred_region
        %s6218 = smul.u32 4, %s27
        %p6219 = scmp.lt.s32.totalorder %s6218, 7
        %s6220 = scalar_select %p6219, %s6218, 7
        %s6221 = smul.addr %s6220, 2
        %s6222 = smul.addr %s6221, 8
        %s6223 = scalar_lea.vmem %s15, %s6222
      $region92: #{swin_layer_forward.3} parent=87 // pred_fallthru
        _
    $region88: #{swin_layer_forward.3} parent=5 // pred_fallthru
      _
  $region6: #{swin_layer_forward.3} parent=0 // loop_footer
    %s25 = sadd.s32 1, %s21
  $region7: #{swin_layer_forward.3} parent=0 // loop_footer_branch
    %20 = sbr.rel target = $region3
  $region8: #{swin_layer_forward.3} parent=0 // loop_exit
    _

</llo_original>
